<compile_context>
chip_gen: v5e
topology: v5e:2x2
jax: 0.10.0
libtpu: 0.0.40
codegen_flags: <defaults>
</compile_context>

<pallas_src>
import math
from functools import partial

import jax
import jax.numpy as jnp
from jax.experimental import pallas as pl
from jax.experimental.pallas import tpu as pltpu


def _round_up(x, m):
    return (x + m - 1) // m * m


# ---------------------------------------------------------------------------
# Fused Pallas kernel: DataEmbedding -> wavefront GRU stack -> projection
# ---------------------------------------------------------------------------

def _make_fused_kernel(Bp, L, pred_len, e_layers, Hp):
    LBp = L * Bp
    n_diag = L + e_layers - 1
    f32 = jnp.float32
    bf16 = jnp.bfloat16

    def kernel(xcat_ref,    # [L*Bp, 3*enc_in + mark_dim] bf16, time-major (row = t*Bp + b)
               pos_ref,     # [L, Hp]                     f32 positional embedding
               emb_w_ref,   # [3*enc_in + mark_dim, Hp]   bf16 conv taps (t-1,t,t+1) + timeF W
               wih_ref,     # [e_layers, Hp, 3*Hp]        bf16 input weights, gate slabs (r|z|n)
               whh_ref,     # [e_layers, Hp, 3*Hp]        bf16 hidden weights, gate slabs (r|z|n)
               bias_ref,    # [e_layers, 1, 3*Hp]         f32 [b_ir+b_hr | b_iz+b_hz | b_in]
               bhn_ref,     # [e_layers, 1, Hp]           f32 b_hn
               proj_w_ref,  # [Hp, Cp]                    bf16
               proj_b_ref,  # [1, Cp]                     f32
               out_ref,     # [pred_len*Bp, Cp]           f32 time-major, lane-dense
               xg0_seq,     # VMEM scratch [L*Bp, 3*Hp] f32: hoisted layer-0 input projections
               hN_seq):     # VMEM scratch [L*Bp, Hp]   f32: last-layer hidden sequence

        # ---- DataEmbedding: one bf16 MXU matmul + in-kernel positional add ----
        emb = jnp.dot(xcat_ref[...], emb_w_ref[...],
                      preferred_element_type=f32)                       # [L*Bp, Hp] f32
        pos3 = jnp.broadcast_to(pos_ref[...].reshape(L, 1, Hp), (L, Bp, Hp))
        emb = (emb.reshape(L, Bp, Hp) + pos3).reshape(LBp, Hp)

        # ---- Hoisted layer-0 input projection over the whole sequence ----
        xg0_seq[...] = (jnp.dot(emb.astype(bf16), wih_ref[0],
                                preferred_element_type=f32) + bias_ref[0])

        # Hoisted per-layer bias broadcasts (JAX does not CSE broadcast_in_dim;
        # do it once, outside the recurrence).
        bias_b = [jnp.broadcast_to(bias_ref[l], (Bp, 3 * Hp)) for l in range(e_layers)]
        bhn_b = [jnp.broadcast_to(bhn_ref[l], (Bp, Hp)) for l in range(e_layers)]

        def gru_cell(xg, g, h_prev, bhn):
            # gate slabs are 128-lane aligned -> zero-cost vreg slices
            r = jax.nn.sigmoid(xg[:, 0:Hp] + g[:, 0:Hp])
            z = jax.nn.sigmoid(xg[:, Hp:2 * Hp] + g[:, Hp:2 * Hp])
            n = jnp.tanh(xg[:, 2 * Hp:3 * Hp] + r * (g[:, 2 * Hp:3 * Hp] + bhn))
            return (1.0 - z) * n + z * h_prev

        # ---- Layer-wavefront recurrence: diagonal d runs layer l at t = d - l ----
        # Within a diagonal all live layers are independent (layer l reads
        # h_{l-1}(t) produced at diagonal d-1), so their latency-bound matmuls
        # overlap instead of serializing layer-by-layer.
        def diag_step(d, hs):
            new_hs = []
            for l in range(e_layers):
                t = d - l
                live = jnp.logical_and(t >= 0, t < L)
                h_prev = hs[l]                                   # h_l(t-1), f32 [Bp, Hp]
                if l == 0:
                    # layer-0 input projection was hoisted; clamp so dead
                    # diagonals still read a valid (masked-out) row.
                    tc = jnp.clip(t, 0, L - 1)
                    row = pl.multiple_of(tc * Bp, Bp)            # sublane-aligned
                    xg = xg0_seq[pl.ds(row, Bp), :]
                else:
                    inp = hs[l - 1].astype(bf16)                 # h_{l-1}(t) from prev diagonal
                    xg = jnp.dot(inp, wih_ref[l],
                                 preferred_element_type=f32) + bias_b[l]
                # TODO(synk): pin whh in MXU weight registers across timesteps
                # (pltpu.matmul_push_rhs / matmul_acc_lhs / matmul_pop).
                g = jnp.dot(h_prev.astype(bf16), whh_ref[l],
                            preferred_element_type=f32)          # [Bp, 3*Hp] f32
                h_new = gru_cell(xg, g, h_prev, bhn_b[l])
                h_new = jnp.where(live, h_new, h_prev)           # mask dead diagonals
                new_hs.append(h_new)

                if l == e_layers - 1:
                    @pl.when(live)
                    def _():
                        row_o = pl.multiple_of(t * Bp, Bp)
                        hN_seq[pl.ds(row_o, Bp), :] = h_new
            return tuple(new_hs)

        h0 = tuple(jnp.zeros((Bp, Hp), f32) for _ in range(e_layers))
        unroll = True if n_diag <= 32 else 8   # cap unroll for long sequences
        jax.lax.fori_loop(0, n_diag, diag_step, h0, unroll=unroll)

        # ---- Projection: only the last pred_len timesteps, lane-dense columns ----
        h_last = hN_seq[pl.ds((L - pred_len) * Bp, pred_len * Bp), :]   # static start
        out_ref[...] = (jnp.dot(h_last.astype(bf16), proj_w_ref[...],
                                preferred_element_type=f32)
                        + proj_b_ref[...]).astype(out_ref.dtype)

    return kernel


# ---------------------------------------------------------------------------
# Wrapper-side glue (layout plumbing + weight packing; cheap XLA ops)
# ---------------------------------------------------------------------------

def positional_embedding(L, d_model):
    assert d_model % 2 == 0, "sinusoidal positional embedding requires even d_model"
    position = jnp.arange(L, dtype=jnp.float32)[:, None]
    div_term = jnp.exp(
        jnp.arange(0, d_model, 2, dtype=jnp.float32) * -(math.log(10000.0) / d_model))
    pe = jnp.zeros((L, d_model), jnp.float32)
    pe = pe.at[:, 0::2].set(jnp.sin(position * div_term))
    pe = pe.at[:, 1::2].set(jnp.cos(position * div_term))
    return pe


def _pack_params(params, Hp, Cp):
    """Pack weights into lane-aligned, MXU-friendly bf16 slabs (zero-padded)."""
    f32, bf16 = jnp.float32, jnp.bfloat16
    conv_w = params["conv_w"]                 # [3, enc_in, d_model], tap 0 = t-1
    D = conv_w.shape[2]

    emb_w = jnp.concatenate(
        [conv_w[0], conv_w[1], conv_w[2], params["timef_w"]], axis=0)
    emb_w = jnp.pad(emb_w, ((0, 0), (0, Hp - D))).astype(bf16)

    def gate_slab_w(w3):                      # [3, D, D] -> [Hp, 3*Hp], 128-lane aligned gates
        out = jnp.zeros((Hp, 3 * Hp), f32)
        for g in range(3):
            out = out.at[:D, g * Hp:g * Hp + D].set(w3[g])
        return out.astype(bf16)

    def gate_slab_b(b_r, b_z, b_n):           # [1, D] each -> [1, 3*Hp]
        out = jnp.zeros((1, 3 * Hp), f32)
        out = out.at[:, 0 * Hp:0 * Hp + D].set(b_r)
        out = out.at[:, 1 * Hp:1 * Hp + D].set(b_z)
        out = out.at[:, 2 * Hp:2 * Hp + D].set(b_n)
        return out

    wih, whh, bias, bhn = [], [], [], []
    for lyr in params["gru"]:
        wih.append(gate_slab_w(lyr["wih"]))
        whh.append(gate_slab_w(lyr["whh"]))
        bias.append(gate_slab_b(lyr["bih"][0] + lyr["bhh"][0],   # r: b_ir + b_hr
                                lyr["bih"][1] + lyr["bhh"][1],   # z: b_iz + b_hz
                                lyr["bih"][2]))                  # n: b_in (b_hn separate)
        bhn.append(jnp.pad(lyr["bhh"][2], ((0, 0), (0, Hp - D))))

    c_out = params["proj_w"].shape[1]
    proj_w = jnp.zeros((Hp, Cp), f32).at[:D, :c_out].set(params["proj_w"]).astype(bf16)
    proj_b = jnp.zeros((1, Cp), f32).at[:, :c_out].set(params["proj_b"])

    return dict(emb_w=emb_w,
                wih=jnp.stack(wih), whh=jnp.stack(whh),        # [e_layers, Hp, 3*Hp]
                bias=jnp.stack(bias), bhn=jnp.stack(bhn),      # [e_layers, 1, 3*Hp]/[.., Hp]
                proj_w=proj_w, proj_b=proj_b)


@partial(jax.jit, static_argnames=("pred_len",))
def model_forward(params, x_enc, x_mark_enc, x_dec=None, x_mark_dec=None,
                  *, pred_len):
    B, L, enc_in = x_enc.shape
    mark_dim = x_mark_enc.shape[-1]
    d_model = params["conv_w"].shape[2]
    c_out = params["proj_w"].shape[1]
    e_layers = len(params["gru"])

    Bp = _round_up(B, 8)           # sublane-pad batch -> full (8,128) per-step tiles
    Hp = _round_up(d_model, 128)   # lane-pad hidden dim -> aligned gate slabs
    Cp = _round_up(c_out, 128)     # lane-dense projection output

    packed = _pack_params(params, Hp, Cp)

    # Batch padding: padded rows are independent junk, sliced off at the end.
    x_p = jnp.pad(x_enc, ((0, Bp - B), (0, 0), (0, 0)))
    m_p = jnp.pad(x_mark_enc, ((0, Bp - B), (0, 0), (0, 0)))

    # time-major [L, Bp, C]; circular Conv1d(k=3) taps == rolls along time,
    # concatenated on the contraction axis so embedding is ONE matmul in-kernel.
    x_tm = jnp.transpose(x_p, (1, 0, 2))
    m_tm = jnp.transpose(m_p, (1, 0, 2))
    x_cat = jnp.concatenate([jnp.roll(x_tm, 1, axis=0),    # tap 0: x(t-1)
                             x_tm,                         # tap 1: x(t)
                             jnp.roll(x_tm, -1, axis=0),   # tap 2: x(t+1)
                             m_tm], axis=-1)
    x_cat = x_cat.reshape(L * Bp, 3 * enc_in + mark_dim).astype(jnp.bfloat16)

    pos = jnp.pad(positional_embedding(L, d_model),
                  ((0, 0), (0, Hp - d_model)))             # [L, Hp] (no repeat over batch)

    kernel = _make_fused_kernel(Bp, L, pred_len, e_layers, Hp)
    # TODO(synk): on v7x, split the (padded) batch over the 2 TensorCores via a
    # leading "parallel" grid axis; single TC is used here.
    out_flat = pl.pallas_call(
        kernel,
        out_shape=jax.ShapeDtypeStruct((pred_len * Bp, Cp), jnp.float32),
        in_specs=[pl.BlockSpec(memory_space=pltpu.MemorySpace.VMEM)] * 9,
        out_specs=pl.BlockSpec(memory_space=pltpu.MemorySpace.VMEM),
        scratch_shapes=[
            pltpu.VMEM((L * Bp, 3 * Hp), jnp.float32),     # xg0_seq
            pltpu.VMEM((L * Bp, Hp), jnp.float32),         # hN_seq
        ],
        # VMEM budget: bf16 weights halve the slab footprint.  At production
        # sizes raise this toward ~100 MiB on v5e/v6e (128 MiB physical) and
        # keep the total <= ~48 MiB on v7x (64 MiB physical), tiling xg0_seq
        # over L chunks if it does not fit.
        compiler_params=pltpu.CompilerParams(vmem_limit_bytes=32 * 1024 * 1024),
    )(x_cat, pos, packed["emb_w"], packed["wih"], packed["whh"],
      packed["bias"], packed["bhn"], packed["proj_w"], packed["proj_b"])

    # [pred_len*Bp, Cp] time-major -> [B, pred_len, c_out]
    out = out_flat.reshape(pred_len, Bp, Cp)[:, :B, :c_out]
    return jnp.transpose(out, (1, 0, 2))


# ---------------------------------------------------------------------------
# Deterministic parameter init (matches the PyTorch module's shapes)
# ---------------------------------------------------------------------------

def init_params(key, enc_in, d_model, mark_dim, e_layers, c_out):
    keys = jax.random.split(key, 4 + 4 * e_layers)
    s = 1.0 / math.sqrt(d_model)

    # conv taps: [3, enc_in, d_model]  (tap 0 = t-1, 1 = t, 2 = t+1)
    conv_w = jax.random.uniform(keys[0], (3, enc_in, d_model), jnp.float32, -s, s)
    timef_w = jax.random.uniform(keys[1], (mark_dim, d_model), jnp.float32, -s, s)
    proj_w = jax.random.uniform(keys[2], (d_model, c_out), jnp.float32, -s, s)
    proj_b = jax.random.uniform(keys[3], (1, c_out), jnp.float32, -s, s)

    gru = []
    for l in range(e_layers):
        k0, k1, k2, k3 = keys[4 + 4 * l: 8 + 4 * l]
        gru.append(dict(
            wih=jax.random.uniform(k0, (3, d_model, d_model), jnp.float32, -s, s),
            whh=jax.random.uniform(k1, (3, d_model, d_model), jnp.float32, -s, s),
            bih=jax.random.uniform(k2, (3, 1, d_model), jnp.float32, -s, s),
            bhh=jax.random.uniform(k3, (3, 1, d_model), jnp.float32, -s, s),
        ))

    return dict(conv_w=conv_w, timef_w=timef_w, proj_w=proj_w, proj_b=proj_b, gru=gru)


# ---------------------------------------------------------------------------
# Main
# ---------------------------------------------------------------------------

if __name__ == "__main__":
    B, L = 2, 8
    enc_in, d_model, e_layers, c_out = 4, 32, 2, 4
    mark_dim = 4          # freq='h' -> 4 time features
    pred_len = 4

    key = jax.random.PRNGKey(0)
    kp, kx, km, kxd, kmd = jax.random.split(key, 5)

    params = init_params(kp, enc_in, d_model, mark_dim, e_layers, c_out)

    x_enc = jax.random.normal(kx, (B, L, enc_in), jnp.float32)
    x_mark_enc = jax.random.normal(km, (B, L, mark_dim), jnp.float32)
    x_dec = jax.random.normal(kxd, (B, L, enc_in), jnp.float32)        # unused by forward
    x_mark_dec = jax.random.normal(kmd, (B, L, mark_dim), jnp.float32) # unused by forward

    out = model_forward(params, x_enc, x_mark_enc, x_dec, x_mark_dec,
                        pred_len=pred_len)
    jax.block_until_ready(out)

    assert out.shape == (B, pred_len, c_out), out.shape
    print("KERNEL_OK")
</pallas_src>

<mosaic_0001>
module attributes {stable_mosaic.version = 11 : i64} {
  func.func @kernel(%arg0: memref<64x16xbf16, #tpu.memory_space<vmem>>, %arg1: memref<8x128xf32, #tpu.memory_space<vmem>>, %arg2: memref<16x128xbf16, #tpu.memory_space<vmem>>, %arg3: memref<2x128x384xbf16, #tpu.memory_space<vmem>>, %arg4: memref<2x128x384xbf16, #tpu.memory_space<vmem>>, %arg5: memref<2x1x384xf32, #tpu.memory_space<vmem>>, %arg6: memref<2x1x128xf32, #tpu.memory_space<vmem>>, %arg7: memref<128x128xbf16, #tpu.memory_space<vmem>>, %arg8: memref<1x128xf32, #tpu.memory_space<vmem>>, %arg9: memref<32x128xf32, #tpu.memory_space<vmem>>, %arg10: memref<64x384xf32, #tpu.memory_space<vmem>>, %arg11: memref<64x128xf32, #tpu.memory_space<vmem>>) attributes {dimension_semantics = [], scalar_prefetch = 0 : i64, scratch_operands = 2 : i64, tpu.core_type = #tpu.core_type<tc>} {
    %c0 = arith.constant 0 : index
    %c0_0 = arith.constant 0 : index
    %0 = vector.load %arg0[%c0, %c0_0] : memref<64x16xbf16, #tpu.memory_space<vmem>>, vector<64x16xbf16>
    %c0_1 = arith.constant 0 : index
    %c0_2 = arith.constant 0 : index
    %1 = vector.load %arg2[%c0_1, %c0_2] : memref<16x128xbf16, #tpu.memory_space<vmem>>, vector<16x128xbf16>
    %cst = arith.constant dense<0.000000e+00> : vector<64x128xf32>
    %2 = tpu.matmul %0, %1, %cst {dimension_numbers = #tpu.dot_dimension_numbers<[1], [0], [0], [1], [0, 0, 1, 1], [], []>} : vector<64x16xbf16>, vector<16x128xbf16>, vector<64x128xf32> -> vector<64x128xf32>
    %c0_3 = arith.constant 0 : index
    %c0_4 = arith.constant 0 : index
    %3 = vector.load %arg1[%c0_3, %c0_4] : memref<8x128xf32, #tpu.memory_space<vmem>>, vector<8x128xf32>
    %4 = vector.shape_cast %3 : vector<8x128xf32> to vector<8x1x128xf32>
    %5 = vector.shape_cast %4 : vector<8x1x128xf32> to vector<8x1x128xf32>
    %6 = vector.broadcast %5 : vector<8x1x128xf32> to vector<8x8x128xf32>
    %7 = vector.shape_cast %2 : vector<64x128xf32> to vector<8x8x128xf32>
    %8 = arith.addf %7, %6 : vector<8x8x128xf32>
    %9 = vector.shape_cast %8 : vector<8x8x128xf32> to vector<64x128xf32>
    %10 = arith.truncf %9 : vector<64x128xf32> to vector<64x128xbf16>
    %c0_5 = arith.constant 0 : index
    %c0_6 = arith.constant 0 : index
    %c0_7 = arith.constant 0 : index
    %11 = vector.load %arg3[%c0_5, %c0_6, %c0_7] : memref<2x128x384xbf16, #tpu.memory_space<vmem>>, vector<1x128x384xbf16>
    %12 = vector.shape_cast %11 : vector<1x128x384xbf16> to vector<128x384xbf16>
    %cst_8 = arith.constant dense<0.000000e+00> : vector<64x384xf32>
    %13 = tpu.matmul %10, %12, %cst_8 {dimension_numbers = #tpu.dot_dimension_numbers<[1], [0], [0], [1], [0, 0, 1, 1], [], []>} : vector<64x128xbf16>, vector<128x384xbf16>, vector<64x384xf32> -> vector<64x384xf32>
    %c0_9 = arith.constant 0 : index
    %c0_10 = arith.constant 0 : index
    %c0_11 = arith.constant 0 : index
    %14 = vector.load %arg5[%c0_9, %c0_10, %c0_11] : memref<2x1x384xf32, #tpu.memory_space<vmem>>, vector<1x1x384xf32>
    %15 = vector.shape_cast %14 : vector<1x1x384xf32> to vector<1x384xf32>
    %16 = vector.broadcast %15 : vector<1x384xf32> to vector<64x384xf32>
    %17 = arith.addf %13, %16 : vector<64x384xf32>
    %c0_12 = arith.constant 0 : index
    %c0_13 = arith.constant 0 : index
    %18 = vector.load %arg10[%c0_12, %c0_13] : memref<64x384xf32, #tpu.memory_space<vmem>>, vector<64x384xf32>
    tpu.vector_store %arg10[%c0_12, %c0_13], %17 {strides = array<i32>} : memref<64x384xf32, #tpu.memory_space<vmem>>, vector<64x384xf32>,
    %c1 = arith.constant 1 : index
    %c0_14 = arith.constant 0 : index
    %c0_15 = arith.constant 0 : index
    %19 = vector.load %arg5[%c1, %c0_14, %c0_15] : memref<2x1x384xf32, #tpu.memory_space<vmem>>, vector<1x1x384xf32>
    %20 = vector.shape_cast %19 : vector<1x1x384xf32> to vector<1x384xf32>
    %21 = vector.shape_cast %20 : vector<1x384xf32> to vector<1x384xf32>
    %22 = vector.broadcast %21 : vector<1x384xf32> to vector<8x384xf32>
    %c0_16 = arith.constant 0 : index
    %c0_17 = arith.constant 0 : index
    %c0_18 = arith.constant 0 : index
    %23 = vector.load %arg6[%c0_16, %c0_17, %c0_18] : memref<2x1x128xf32, #tpu.memory_space<vmem>>, vector<1x1x128xf32>
    %24 = vector.shape_cast %23 : vector<1x1x128xf32> to vector<1x128xf32>
    %25 = vector.shape_cast %24 : vector<1x128xf32> to vector<1x128xf32>
    %26 = vector.broadcast %25 : vector<1x128xf32> to vector<8x128xf32>
    %c1_19 = arith.constant 1 : index
    %c0_20 = arith.constant 0 : index
    %c0_21 = arith.constant 0 : index
    %27 = vector.load %arg6[%c1_19, %c0_20, %c0_21] : memref<2x1x128xf32, #tpu.memory_space<vmem>>, vector<1x1x128xf32>
    %28 = vector.shape_cast %27 : vector<1x1x128xf32> to vector<1x128xf32>
    %29 = vector.shape_cast %28 : vector<1x128xf32> to vector<1x128xf32>
    %30 = vector.broadcast %29 : vector<1x128xf32> to vector<8x128xf32>
    %cst_22 = arith.constant 0.000000e+00 : f32
    %31 = vector.broadcast %cst_22 : f32 to vector<8x128xf32>
    %cst_23 = arith.constant 0.000000e+00 : f32
    %32 = vector.broadcast %cst_23 : f32 to vector<8x128xf32>
    %c0_i32 = arith.constant 0 : i32
    %c0_i32_24 = arith.constant 0 : i32
    %33 = arith.subi %c0_i32, %c0_i32_24 : i32
    %c0_i32_25 = arith.constant 0 : i32
    %34 = arith.cmpi sge, %33, %c0_i32_25 : i32
    %c8_i32 = arith.constant 8 : i32
    %35 = arith.cmpi slt, %33, %c8_i32 : i32
    %36 = arith.andi %34, %35 : i1
    %c0_i32_26 = arith.constant 0 : i32
    %c7_i32 = arith.constant 7 : i32
    %37 = arith.maxsi %c0_i32_26, %33 : i32
    %38 = arith.minsi %c7_i32, %37 : i32
    %c8_i32_27 = arith.constant 8 : i32
    %39 = arith.muli %38, %c8_i32_27 : i32
    %40 = tpu.assume_multiple %39, 8 : i32
    %41 = arith.index_cast %40 : i32 to index
    %c0_28 = arith.constant 0 : index
    %42 = vector.load %arg10[%41, %c0_28] : memref<64x384xf32, #tpu.memory_space<vmem>>, vector<8x384xf32>
    %43 = arith.truncf %31 : vector<8x128xf32> to vector<8x128xbf16>
    %c0_29 = arith.constant 0 : index
    %c0_30 = arith.constant 0 : index
    %c0_31 = arith.constant 0 : index
    %44 = vector.load %arg4[%c0_29, %c0_30, %c0_31] : memref<2x128x384xbf16, #tpu.memory_space<vmem>>, vector<1x128x384xbf16>
    %45 = vector.shape_cast %44 : vector<1x128x384xbf16> to vector<128x384xbf16>
    %cst_32 = arith.constant dense<0.000000e+00> : vector<8x384xf32>
    %46 = tpu.matmul %43, %45, %cst_32 {dimension_numbers = #tpu.dot_dimension_numbers<[1], [0], [0], [1], [0, 0, 1, 1], [], []>} : vector<8x128xbf16>, vector<128x384xbf16>, vector<8x384xf32> -> vector<8x384xf32>
    %47 = vector.extract_strided_slice %42 {offsets = [0, 0], sizes = [8, 128], strides = [1, 1]} : vector<8x384xf32> to vector<8x128xf32>
    %48 = vector.extract_strided_slice %46 {offsets = [0, 0], sizes = [8, 128], strides = [1, 1]} : vector<8x384xf32> to vector<8x128xf32>
    %49 = arith.addf %47, %48 : vector<8x128xf32>
    %50 = arith.negf %49 : vector<8x128xf32>
    %51 = math.exp %50 : vector<8x128xf32>
    %cst_33 = arith.constant 1.000000e+00 : f32
    %52 = vector.broadcast %cst_33 : f32 to vector<8x128xf32>
    %53 = arith.addf %52, %51 : vector<8x128xf32>
    %54 = arith.divf %52, %53 : vector<8x128xf32>
    %55 = vector.extract_strided_slice %42 {offsets = [0, 128], sizes = [8, 128], strides = [1, 1]} : vector<8x384xf32> to vector<8x128xf32>
    %56 = vector.extract_strided_slice %46 {offsets = [0, 128], sizes = [8, 128], strides = [1, 1]} : vector<8x384xf32> to vector<8x128xf32>
    %57 = arith.addf %55, %56 : vector<8x128xf32>
    %58 = arith.negf %57 : vector<8x128xf32>
    %59 = math.exp %58 : vector<8x128xf32>
    %cst_34 = arith.constant 1.000000e+00 : f32
    %60 = vector.broadcast %cst_34 : f32 to vector<8x128xf32>
    %61 = arith.addf %60, %59 : vector<8x128xf32>
    %62 = arith.divf %60, %61 : vector<8x128xf32>
    %63 = vector.extract_strided_slice %42 {offsets = [0, 256], sizes = [8, 128], strides = [1, 1]} : vector<8x384xf32> to vector<8x128xf32>
    %64 = vector.extract_strided_slice %46 {offsets = [0, 256], sizes = [8, 128], strides = [1, 1]} : vector<8x384xf32> to vector<8x128xf32>
    %65 = arith.addf %64, %26 : vector<8x128xf32>
    %66 = arith.mulf %54, %65 : vector<8x128xf32>
    %67 = arith.addf %63, %66 : vector<8x128xf32>
    %68 = math.tanh %67 : vector<8x128xf32>
    %cst_35 = arith.constant 1.000000e+00 : f32
    %69 = vector.broadcast %cst_35 : f32 to vector<8x128xf32>
    %70 = arith.subf %69, %62 : vector<8x128xf32>
    %71 = arith.mulf %70, %68 : vector<8x128xf32>
    %72 = arith.mulf %62, %31 : vector<8x128xf32>
    %73 = arith.addf %71, %72 : vector<8x128xf32>
    %74 = arith.select %36, %73, %31 : vector<8x128xf32>
    %c1_i32 = arith.constant 1 : i32
    %75 = arith.subi %c0_i32, %c1_i32 : i32
    %c0_i32_36 = arith.constant 0 : i32
    %76 = arith.cmpi sge, %75, %c0_i32_36 : i32
    %c8_i32_37 = arith.constant 8 : i32
    %77 = arith.cmpi slt, %75, %c8_i32_37 : i32
    %78 = arith.andi %76, %77 : i1
    %79 = arith.truncf %31 : vector<8x128xf32> to vector<8x128xbf16>
    %c1_38 = arith.constant 1 : index
    %c0_39 = arith.constant 0 : index
    %c0_40 = arith.constant 0 : index
    %80 = vector.load %arg3[%c1_38, %c0_39, %c0_40] : memref<2x128x384xbf16, #tpu.memory_space<vmem>>, vector<1x128x384xbf16>
    %81 = vector.shape_cast %80 : vector<1x128x384xbf16> to vector<128x384xbf16>
    %cst_41 = arith.constant dense<0.000000e+00> : vector<8x384xf32>
    %82 = tpu.matmul %79, %81, %cst_41 {dimension_numbers = #tpu.dot_dimension_numbers<[1], [0], [0], [1], [0, 0, 1, 1], [], []>} : vector<8x128xbf16>, vector<128x384xbf16>, vector<8x384xf32> -> vector<8x384xf32>
    %83 = arith.addf %82, %22 : vector<8x384xf32>
    %84 = arith.truncf %32 : vector<8x128xf32> to vector<8x128xbf16>
    %c1_42 = arith.constant 1 : index
    %c0_43 = arith.constant 0 : index
    %c0_44 = arith.constant 0 : index
    %85 = vector.load %arg4[%c1_42, %c0_43, %c0_44] : memref<2x128x384xbf16, #tpu.memory_space<vmem>>, vector<1x128x384xbf16>
    %86 = vector.shape_cast %85 : vector<1x128x384xbf16> to vector<128x384xbf16>
    %cst_45 = arith.constant dense<0.000000e+00> : vector<8x384xf32>
    %87 = tpu.matmul %84, %86, %cst_45 {dimension_numbers = #tpu.dot_dimension_numbers<[1], [0], [0], [1], [0, 0, 1, 1], [], []>} : vector<8x128xbf16>, vector<128x384xbf16>, vector<8x384xf32> -> vector<8x384xf32>
    %88 = vector.extract_strided_slice %83 {offsets = [0, 0], sizes = [8, 128], strides = [1, 1]} : vector<8x384xf32> to vector<8x128xf32>
    %89 = vector.extract_strided_slice %87 {offsets = [0, 0], sizes = [8, 128], strides = [1, 1]} : vector<8x384xf32> to vector<8x128xf32>
    %90 = arith.addf %88, %89 : vector<8x128xf32>
    %91 = arith.negf %90 : vector<8x128xf32>
    %92 = math.exp %91 : vector<8x128xf32>
    %cst_46 = arith.constant 1.000000e+00 : f32
    %93 = vector.broadcast %cst_46 : f32 to vector<8x128xf32>
    %94 = arith.addf %93, %92 : vector<8x128xf32>
    %95 = arith.divf %93, %94 : vector<8x128xf32>
    %96 = vector.extract_strided_slice %83 {offsets = [0, 128], sizes = [8, 128], strides = [1, 1]} : vector<8x384xf32> to vector<8x128xf32>
    %97 = vector.extract_strided_slice %87 {offsets = [0, 128], sizes = [8, 128], strides = [1, 1]} : vector<8x384xf32> to vector<8x128xf32>
    %98 = arith.addf %96, %97 : vector<8x128xf32>
    %99 = arith.negf %98 : vector<8x128xf32>
    %100 = math.exp %99 : vector<8x128xf32>
    %cst_47 = arith.constant 1.000000e+00 : f32
    %101 = vector.broadcast %cst_47 : f32 to vector<8x128xf32>
    %102 = arith.addf %101, %100 : vector<8x128xf32>
    %103 = arith.divf %101, %102 : vector<8x128xf32>
    %104 = vector.extract_strided_slice %83 {offsets = [0, 256], sizes = [8, 128], strides = [1, 1]} : vector<8x384xf32> to vector<8x128xf32>
    %105 = vector.extract_strided_slice %87 {offsets = [0, 256], sizes = [8, 128], strides = [1, 1]} : vector<8x384xf32> to vector<8x128xf32>
    %106 = arith.addf %105, %30 : vector<8x128xf32>
    %107 = arith.mulf %95, %106 : vector<8x128xf32>
    %108 = arith.addf %104, %107 : vector<8x128xf32>
    %109 = math.tanh %108 : vector<8x128xf32>
    %cst_48 = arith.constant 1.000000e+00 : f32
    %110 = vector.broadcast %cst_48 : f32 to vector<8x128xf32>
    %111 = arith.subf %110, %103 : vector<8x128xf32>
    %112 = arith.mulf %111, %109 : vector<8x128xf32>
    %113 = arith.mulf %103, %32 : vector<8x128xf32>
    %114 = arith.addf %112, %113 : vector<8x128xf32>
    %115 = arith.select %78, %114, %32 : vector<8x128xf32>
    %116 = arith.extui %78 : i1 to i32
    %c0_i32_49 = arith.constant 0 : i32
    %117 = arith.cmpi ne, %116, %c0_i32_49 : i32
    scf.if %117 {
      %c8_i32_293 = arith.constant 8 : i32
      %806 = arith.muli %75, %c8_i32_293 : i32
      %807 = tpu.assume_multiple %806, 8 : i32
      %808 = arith.index_cast %807 : i32 to index
      %c0_294 = arith.constant 0 : index
      %809 = vector.load %arg11[%808, %c0_294] : memref<64x128xf32, #tpu.memory_space<vmem>>, vector<8x128xf32>
      tpu.vector_store %arg11[%808, %c0_294], %115 {strides = array<i32>} : memref<64x128xf32, #tpu.memory_space<vmem>>, vector<8x128xf32>,
    } else {
    }
    %c1_i32_50 = arith.constant 1 : i32
    %c0_i32_51 = arith.constant 0 : i32
    %118 = arith.subi %c1_i32_50, %c0_i32_51 : i32
    %c0_i32_52 = arith.constant 0 : i32
    %119 = arith.cmpi sge, %118, %c0_i32_52 : i32
    %c8_i32_53 = arith.constant 8 : i32
    %120 = arith.cmpi slt, %118, %c8_i32_53 : i32
    %121 = arith.andi %119, %120 : i1
    %c0_i32_54 = arith.constant 0 : i32
    %c7_i32_55 = arith.constant 7 : i32
    %122 = arith.maxsi %c0_i32_54, %118 : i32
    %123 = arith.minsi %c7_i32_55, %122 : i32
    %c8_i32_56 = arith.constant 8 : i32
    %124 = arith.muli %123, %c8_i32_56 : i32
    %125 = tpu.assume_multiple %124, 8 : i32
    %126 = arith.index_cast %125 : i32 to index
    %c0_57 = arith.constant 0 : index
    %127 = vector.load %arg10[%126, %c0_57] : memref<64x384xf32, #tpu.memory_space<vmem>>, vector<8x384xf32>
    %128 = arith.truncf %74 : vector<8x128xf32> to vector<8x128xbf16>
    %c0_58 = arith.constant 0 : index
    %c0_59 = arith.constant 0 : index
    %c0_60 = arith.constant 0 : index
    %129 = vector.load %arg4[%c0_58, %c0_59, %c0_60] : memref<2x128x384xbf16, #tpu.memory_space<vmem>>, vector<1x128x384xbf16>
    %130 = vector.shape_cast %129 : vector<1x128x384xbf16> to vector<128x384xbf16>
    %cst_61 = arith.constant dense<0.000000e+00> : vector<8x384xf32>
    %131 = tpu.matmul %128, %130, %cst_61 {dimension_numbers = #tpu.dot_dimension_numbers<[1], [0], [0], [1], [0, 0, 1, 1], [], []>} : vector<8x128xbf16>, vector<128x384xbf16>, vector<8x384xf32> -> vector<8x384xf32>
    %132 = vector.extract_strided_slice %127 {offsets = [0, 0], sizes = [8, 128], strides = [1, 1]} : vector<8x384xf32> to vector<8x128xf32>
    %133 = vector.extract_strided_slice %131 {offsets = [0, 0], sizes = [8, 128], strides = [1, 1]} : vector<8x384xf32> to vector<8x128xf32>
    %134 = arith.addf %132, %133 : vector<8x128xf32>
    %135 = arith.negf %134 : vector<8x128xf32>
    %136 = math.exp %135 : vector<8x128xf32>
    %cst_62 = arith.constant 1.000000e+00 : f32
    %137 = vector.broadcast %cst_62 : f32 to vector<8x128xf32>
    %138 = arith.addf %137, %136 : vector<8x128xf32>
    %139 = arith.divf %137, %138 : vector<8x128xf32>
    %140 = vector.extract_strided_slice %127 {offsets = [0, 128], sizes = [8, 128], strides = [1, 1]} : vector<8x384xf32> to vector<8x128xf32>
    %141 = vector.extract_strided_slice %131 {offsets = [0, 128], sizes = [8, 128], strides = [1, 1]} : vector<8x384xf32> to vector<8x128xf32>
    %142 = arith.addf %140, %141 : vector<8x128xf32>
    %143 = arith.negf %142 : vector<8x128xf32>
    %144 = math.exp %143 : vector<8x128xf32>
    %cst_63 = arith.constant 1.000000e+00 : f32
    %145 = vector.broadcast %cst_63 : f32 to vector<8x128xf32>
    %146 = arith.addf %145, %144 : vector<8x128xf32>
    %147 = arith.divf %145, %146 : vector<8x128xf32>
    %148 = vector.extract_strided_slice %127 {offsets = [0, 256], sizes = [8, 128], strides = [1, 1]} : vector<8x384xf32> to vector<8x128xf32>
    %149 = vector.extract_strided_slice %131 {offsets = [0, 256], sizes = [8, 128], strides = [1, 1]} : vector<8x384xf32> to vector<8x128xf32>
    %150 = arith.addf %149, %26 : vector<8x128xf32>
    %151 = arith.mulf %139, %150 : vector<8x128xf32>
    %152 = arith.addf %148, %151 : vector<8x128xf32>
    %153 = math.tanh %152 : vector<8x128xf32>
    %cst_64 = arith.constant 1.000000e+00 : f32
    %154 = vector.broadcast %cst_64 : f32 to vector<8x128xf32>
    %155 = arith.subf %154, %147 : vector<8x128xf32>
    %156 = arith.mulf %155, %153 : vector<8x128xf32>
    %157 = arith.mulf %147, %74 : vector<8x128xf32>
    %158 = arith.addf %156, %157 : vector<8x128xf32>
    %159 = arith.select %121, %158, %74 : vector<8x128xf32>
    %c1_i32_65 = arith.constant 1 : i32
    %160 = arith.subi %c1_i32_50, %c1_i32_65 : i32
    %c0_i32_66 = arith.constant 0 : i32
    %161 = arith.cmpi sge, %160, %c0_i32_66 : i32
    %c8_i32_67 = arith.constant 8 : i32
    %162 = arith.cmpi slt, %160, %c8_i32_67 : i32
    %163 = arith.andi %161, %162 : i1
    %164 = arith.truncf %74 : vector<8x128xf32> to vector<8x128xbf16>
    %c1_68 = arith.constant 1 : index
    %c0_69 = arith.constant 0 : index
    %c0_70 = arith.constant 0 : index
    %165 = vector.load %arg3[%c1_68, %c0_69, %c0_70] : memref<2x128x384xbf16, #tpu.memory_space<vmem>>, vector<1x128x384xbf16>
    %166 = vector.shape_cast %165 : vector<1x128x384xbf16> to vector<128x384xbf16>
    %cst_71 = arith.constant dense<0.000000e+00> : vector<8x384xf32>
    %167 = tpu.matmul %164, %166, %cst_71 {dimension_numbers = #tpu.dot_dimension_numbers<[1], [0], [0], [1], [0, 0, 1, 1], [], []>} : vector<8x128xbf16>, vector<128x384xbf16>, vector<8x384xf32> -> vector<8x384xf32>
    %168 = arith.addf %167, %22 : vector<8x384xf32>
    %169 = arith.truncf %115 : vector<8x128xf32> to vector<8x128xbf16>
    %c1_72 = arith.constant 1 : index
    %c0_73 = arith.constant 0 : index
    %c0_74 = arith.constant 0 : index
    %170 = vector.load %arg4[%c1_72, %c0_73, %c0_74] : memref<2x128x384xbf16, #tpu.memory_space<vmem>>, vector<1x128x384xbf16>
    %171 = vector.shape_cast %170 : vector<1x128x384xbf16> to vector<128x384xbf16>
    %cst_75 = arith.constant dense<0.000000e+00> : vector<8x384xf32>
    %172 = tpu.matmul %169, %171, %cst_75 {dimension_numbers = #tpu.dot_dimension_numbers<[1], [0], [0], [1], [0, 0, 1, 1], [], []>} : vector<8x128xbf16>, vector<128x384xbf16>, vector<8x384xf32> -> vector<8x384xf32>
    %173 = vector.extract_strided_slice %168 {offsets = [0, 0], sizes = [8, 128], strides = [1, 1]} : vector<8x384xf32> to vector<8x128xf32>
    %174 = vector.extract_strided_slice %172 {offsets = [0, 0], sizes = [8, 128], strides = [1, 1]} : vector<8x384xf32> to vector<8x128xf32>
    %175 = arith.addf %173, %174 : vector<8x128xf32>
    %176 = arith.negf %175 : vector<8x128xf32>
    %177 = math.exp %176 : vector<8x128xf32>
    %cst_76 = arith.constant 1.000000e+00 : f32
    %178 = vector.broadcast %cst_76 : f32 to vector<8x128xf32>
    %179 = arith.addf %178, %177 : vector<8x128xf32>
    %180 = arith.divf %178, %179 : vector<8x128xf32>
    %181 = vector.extract_strided_slice %168 {offsets = [0, 128], sizes = [8, 128], strides = [1, 1]} : vector<8x384xf32> to vector<8x128xf32>
    %182 = vector.extract_strided_slice %172 {offsets = [0, 128], sizes = [8, 128], strides = [1, 1]} : vector<8x384xf32> to vector<8x128xf32>
    %183 = arith.addf %181, %182 : vector<8x128xf32>
    %184 = arith.negf %183 : vector<8x128xf32>
    %185 = math.exp %184 : vector<8x128xf32>
    %cst_77 = arith.constant 1.000000e+00 : f32
    %186 = vector.broadcast %cst_77 : f32 to vector<8x128xf32>
    %187 = arith.addf %186, %185 : vector<8x128xf32>
    %188 = arith.divf %186, %187 : vector<8x128xf32>
    %189 = vector.extract_strided_slice %168 {offsets = [0, 256], sizes = [8, 128], strides = [1, 1]} : vector<8x384xf32> to vector<8x128xf32>
    %190 = vector.extract_strided_slice %172 {offsets = [0, 256], sizes = [8, 128], strides = [1, 1]} : vector<8x384xf32> to vector<8x128xf32>
    %191 = arith.addf %190, %30 : vector<8x128xf32>
    %192 = arith.mulf %180, %191 : vector<8x128xf32>
    %193 = arith.addf %189, %192 : vector<8x128xf32>
    %194 = math.tanh %193 : vector<8x128xf32>
    %cst_78 = arith.constant 1.000000e+00 : f32
    %195 = vector.broadcast %cst_78 : f32 to vector<8x128xf32>
    %196 = arith.subf %195, %188 : vector<8x128xf32>
    %197 = arith.mulf %196, %194 : vector<8x128xf32>
    %198 = arith.mulf %188, %115 : vector<8x128xf32>
    %199 = arith.addf %197, %198 : vector<8x128xf32>
    %200 = arith.select %163, %199, %115 : vector<8x128xf32>
    %201 = arith.extui %163 : i1 to i32
    %c0_i32_79 = arith.constant 0 : i32
    %202 = arith.cmpi ne, %201, %c0_i32_79 : i32
    scf.if %202 {
      %c8_i32_293 = arith.constant 8 : i32
      %806 = arith.muli %160, %c8_i32_293 : i32
      %807 = tpu.assume_multiple %806, 8 : i32
      %808 = arith.index_cast %807 : i32 to index
      %c0_294 = arith.constant 0 : index
      %809 = vector.load %arg11[%808, %c0_294] : memref<64x128xf32, #tpu.memory_space<vmem>>, vector<8x128xf32>
      tpu.vector_store %arg11[%808, %c0_294], %200 {strides = array<i32>} : memref<64x128xf32, #tpu.memory_space<vmem>>, vector<8x128xf32>,
    } else {
    }
    %c2_i32 = arith.constant 2 : i32
    %c0_i32_80 = arith.constant 0 : i32
    %203 = arith.subi %c2_i32, %c0_i32_80 : i32
    %c0_i32_81 = arith.constant 0 : i32
    %204 = arith.cmpi sge, %203, %c0_i32_81 : i32
    %c8_i32_82 = arith.constant 8 : i32
    %205 = arith.cmpi slt, %203, %c8_i32_82 : i32
    %206 = arith.andi %204, %205 : i1
    %c0_i32_83 = arith.constant 0 : i32
    %c7_i32_84 = arith.constant 7 : i32
    %207 = arith.maxsi %c0_i32_83, %203 : i32
    %208 = arith.minsi %c7_i32_84, %207 : i32
    %c8_i32_85 = arith.constant 8 : i32
    %209 = arith.muli %208, %c8_i32_85 : i32
    %210 = tpu.assume_multiple %209, 8 : i32
    %211 = arith.index_cast %210 : i32 to index
    %c0_86 = arith.constant 0 : index
    %212 = vector.load %arg10[%211, %c0_86] : memref<64x384xf32, #tpu.memory_space<vmem>>, vector<8x384xf32>
    %213 = arith.truncf %159 : vector<8x128xf32> to vector<8x128xbf16>
    %c0_87 = arith.constant 0 : index
    %c0_88 = arith.constant 0 : index
    %c0_89 = arith.constant 0 : index
    %214 = vector.load %arg4[%c0_87, %c0_88, %c0_89] : memref<2x128x384xbf16, #tpu.memory_space<vmem>>, vector<1x128x384xbf16>
    %215 = vector.shape_cast %214 : vector<1x128x384xbf16> to vector<128x384xbf16>
    %cst_90 = arith.constant dense<0.000000e+00> : vector<8x384xf32>
    %216 = tpu.matmul %213, %215, %cst_90 {dimension_numbers = #tpu.dot_dimension_numbers<[1], [0], [0], [1], [0, 0, 1, 1], [], []>} : vector<8x128xbf16>, vector<128x384xbf16>, vector<8x384xf32> -> vector<8x384xf32>
    %217 = vector.extract_strided_slice %212 {offsets = [0, 0], sizes = [8, 128], strides = [1, 1]} : vector<8x384xf32> to vector<8x128xf32>
    %218 = vector.extract_strided_slice %216 {offsets = [0, 0], sizes = [8, 128], strides = [1, 1]} : vector<8x384xf32> to vector<8x128xf32>
    %219 = arith.addf %217, %218 : vector<8x128xf32>
    %220 = arith.negf %219 : vector<8x128xf32>
    %221 = math.exp %220 : vector<8x128xf32>
    %cst_91 = arith.constant 1.000000e+00 : f32
    %222 = vector.broadcast %cst_91 : f32 to vector<8x128xf32>
    %223 = arith.addf %222, %221 : vector<8x128xf32>
    %224 = arith.divf %222, %223 : vector<8x128xf32>
    %225 = vector.extract_strided_slice %212 {offsets = [0, 128], sizes = [8, 128], strides = [1, 1]} : vector<8x384xf32> to vector<8x128xf32>
    %226 = vector.extract_strided_slice %216 {offsets = [0, 128], sizes = [8, 128], strides = [1, 1]} : vector<8x384xf32> to vector<8x128xf32>
    %227 = arith.addf %225, %226 : vector<8x128xf32>
    %228 = arith.negf %227 : vector<8x128xf32>
    %229 = math.exp %228 : vector<8x128xf32>
    %cst_92 = arith.constant 1.000000e+00 : f32
    %230 = vector.broadcast %cst_92 : f32 to vector<8x128xf32>
    %231 = arith.addf %230, %229 : vector<8x128xf32>
    %232 = arith.divf %230, %231 : vector<8x128xf32>
    %233 = vector.extract_strided_slice %212 {offsets = [0, 256], sizes = [8, 128], strides = [1, 1]} : vector<8x384xf32> to vector<8x128xf32>
    %234 = vector.extract_strided_slice %216 {offsets = [0, 256], sizes = [8, 128], strides = [1, 1]} : vector<8x384xf32> to vector<8x128xf32>
    %235 = arith.addf %234, %26 : vector<8x128xf32>
    %236 = arith.mulf %224, %235 : vector<8x128xf32>
    %237 = arith.addf %233, %236 : vector<8x128xf32>
    %238 = math.tanh %237 : vector<8x128xf32>
    %cst_93 = arith.constant 1.000000e+00 : f32
    %239 = vector.broadcast %cst_93 : f32 to vector<8x128xf32>
    %240 = arith.subf %239, %232 : vector<8x128xf32>
    %241 = arith.mulf %240, %238 : vector<8x128xf32>
    %242 = arith.mulf %232, %159 : vector<8x128xf32>
    %243 = arith.addf %241, %242 : vector<8x128xf32>
    %244 = arith.select %206, %243, %159 : vector<8x128xf32>
    %c1_i32_94 = arith.constant 1 : i32
    %245 = arith.subi %c2_i32, %c1_i32_94 : i32
    %c0_i32_95 = arith.constant 0 : i32
    %246 = arith.cmpi sge, %245, %c0_i32_95 : i32
    %c8_i32_96 = arith.constant 8 : i32
    %247 = arith.cmpi slt, %245, %c8_i32_96 : i32
    %248 = arith.andi %246, %247 : i1
    %249 = arith.truncf %159 : vector<8x128xf32> to vector<8x128xbf16>
    %c1_97 = arith.constant 1 : index
    %c0_98 = arith.constant 0 : index
    %c0_99 = arith.constant 0 : index
    %250 = vector.load %arg3[%c1_97, %c0_98, %c0_99] : memref<2x128x384xbf16, #tpu.memory_space<vmem>>, vector<1x128x384xbf16>
    %251 = vector.shape_cast %250 : vector<1x128x384xbf16> to vector<128x384xbf16>
    %cst_100 = arith.constant dense<0.000000e+00> : vector<8x384xf32>
    %252 = tpu.matmul %249, %251, %cst_100 {dimension_numbers = #tpu.dot_dimension_numbers<[1], [0], [0], [1], [0, 0, 1, 1], [], []>} : vector<8x128xbf16>, vector<128x384xbf16>, vector<8x384xf32> -> vector<8x384xf32>
    %253 = arith.addf %252, %22 : vector<8x384xf32>
    %254 = arith.truncf %200 : vector<8x128xf32> to vector<8x128xbf16>
    %c1_101 = arith.constant 1 : index
    %c0_102 = arith.constant 0 : index
    %c0_103 = arith.constant 0 : index
    %255 = vector.load %arg4[%c1_101, %c0_102, %c0_103] : memref<2x128x384xbf16, #tpu.memory_space<vmem>>, vector<1x128x384xbf16>
    %256 = vector.shape_cast %255 : vector<1x128x384xbf16> to vector<128x384xbf16>
    %cst_104 = arith.constant dense<0.000000e+00> : vector<8x384xf32>
    %257 = tpu.matmul %254, %256, %cst_104 {dimension_numbers = #tpu.dot_dimension_numbers<[1], [0], [0], [1], [0, 0, 1, 1], [], []>} : vector<8x128xbf16>, vector<128x384xbf16>, vector<8x384xf32> -> vector<8x384xf32>
    %258 = vector.extract_strided_slice %253 {offsets = [0, 0], sizes = [8, 128], strides = [1, 1]} : vector<8x384xf32> to vector<8x128xf32>
    %259 = vector.extract_strided_slice %257 {offsets = [0, 0], sizes = [8, 128], strides = [1, 1]} : vector<8x384xf32> to vector<8x128xf32>
    %260 = arith.addf %258, %259 : vector<8x128xf32>
    %261 = arith.negf %260 : vector<8x128xf32>
    %262 = math.exp %261 : vector<8x128xf32>
    %cst_105 = arith.constant 1.000000e+00 : f32
    %263 = vector.broadcast %cst_105 : f32 to vector<8x128xf32>
    %264 = arith.addf %263, %262 : vector<8x128xf32>
    %265 = arith.divf %263, %264 : vector<8x128xf32>
    %266 = vector.extract_strided_slice %253 {offsets = [0, 128], sizes = [8, 128], strides = [1, 1]} : vector<8x384xf32> to vector<8x128xf32>
    %267 = vector.extract_strided_slice %257 {offsets = [0, 128], sizes = [8, 128], strides = [1, 1]} : vector<8x384xf32> to vector<8x128xf32>
    %268 = arith.addf %266, %267 : vector<8x128xf32>
    %269 = arith.negf %268 : vector<8x128xf32>
    %270 = math.exp %269 : vector<8x128xf32>
    %cst_106 = arith.constant 1.000000e+00 : f32
    %271 = vector.broadcast %cst_106 : f32 to vector<8x128xf32>
    %272 = arith.addf %271, %270 : vector<8x128xf32>
    %273 = arith.divf %271, %272 : vector<8x128xf32>
    %274 = vector.extract_strided_slice %253 {offsets = [0, 256], sizes = [8, 128], strides = [1, 1]} : vector<8x384xf32> to vector<8x128xf32>
    %275 = vector.extract_strided_slice %257 {offsets = [0, 256], sizes = [8, 128], strides = [1, 1]} : vector<8x384xf32> to vector<8x128xf32>
    %276 = arith.addf %275, %30 : vector<8x128xf32>
    %277 = arith.mulf %265, %276 : vector<8x128xf32>
    %278 = arith.addf %274, %277 : vector<8x128xf32>
    %279 = math.tanh %278 : vector<8x128xf32>
    %cst_107 = arith.constant 1.000000e+00 : f32
    %280 = vector.broadcast %cst_107 : f32 to vector<8x128xf32>
    %281 = arith.subf %280, %273 : vector<8x128xf32>
    %282 = arith.mulf %281, %279 : vector<8x128xf32>
    %283 = arith.mulf %273, %200 : vector<8x128xf32>
    %284 = arith.addf %282, %283 : vector<8x128xf32>
    %285 = arith.select %248, %284, %200 : vector<8x128xf32>
    %286 = arith.extui %248 : i1 to i32
    %c0_i32_108 = arith.constant 0 : i32
    %287 = arith.cmpi ne, %286, %c0_i32_108 : i32
    scf.if %287 {
      %c8_i32_293 = arith.constant 8 : i32
      %806 = arith.muli %245, %c8_i32_293 : i32
      %807 = tpu.assume_multiple %806, 8 : i32
      %808 = arith.index_cast %807 : i32 to index
      %c0_294 = arith.constant 0 : index
      %809 = vector.load %arg11[%808, %c0_294] : memref<64x128xf32, #tpu.memory_space<vmem>>, vector<8x128xf32>
      tpu.vector_store %arg11[%808, %c0_294], %285 {strides = array<i32>} : memref<64x128xf32, #tpu.memory_space<vmem>>, vector<8x128xf32>,
    } else {
    }
    %c3_i32 = arith.constant 3 : i32
    %c0_i32_109 = arith.constant 0 : i32
    %288 = arith.subi %c3_i32, %c0_i32_109 : i32
    %c0_i32_110 = arith.constant 0 : i32
    %289 = arith.cmpi sge, %288, %c0_i32_110 : i32
    %c8_i32_111 = arith.constant 8 : i32
    %290 = arith.cmpi slt, %288, %c8_i32_111 : i32
    %291 = arith.andi %289, %290 : i1
    %c0_i32_112 = arith.constant 0 : i32
    %c7_i32_113 = arith.constant 7 : i32
    %292 = arith.maxsi %c0_i32_112, %288 : i32
    %293 = arith.minsi %c7_i32_113, %292 : i32
    %c8_i32_114 = arith.constant 8 : i32
    %294 = arith.muli %293, %c8_i32_114 : i32
    %295 = tpu.assume_multiple %294, 8 : i32
    %296 = arith.index_cast %295 : i32 to index
    %c0_115 = arith.constant 0 : index
    %297 = vector.load %arg10[%296, %c0_115] : memref<64x384xf32, #tpu.memory_space<vmem>>, vector<8x384xf32>
    %298 = arith.truncf %244 : vector<8x128xf32> to vector<8x128xbf16>
    %c0_116 = arith.constant 0 : index
    %c0_117 = arith.constant 0 : index
    %c0_118 = arith.constant 0 : index
    %299 = vector.load %arg4[%c0_116, %c0_117, %c0_118] : memref<2x128x384xbf16, #tpu.memory_space<vmem>>, vector<1x128x384xbf16>
    %300 = vector.shape_cast %299 : vector<1x128x384xbf16> to vector<128x384xbf16>
    %cst_119 = arith.constant dense<0.000000e+00> : vector<8x384xf32>
    %301 = tpu.matmul %298, %300, %cst_119 {dimension_numbers = #tpu.dot_dimension_numbers<[1], [0], [0], [1], [0, 0, 1, 1], [], []>} : vector<8x128xbf16>, vector<128x384xbf16>, vector<8x384xf32> -> vector<8x384xf32>
    %302 = vector.extract_strided_slice %297 {offsets = [0, 0], sizes = [8, 128], strides = [1, 1]} : vector<8x384xf32> to vector<8x128xf32>
    %303 = vector.extract_strided_slice %301 {offsets = [0, 0], sizes = [8, 128], strides = [1, 1]} : vector<8x384xf32> to vector<8x128xf32>
    %304 = arith.addf %302, %303 : vector<8x128xf32>
    %305 = arith.negf %304 : vector<8x128xf32>
    %306 = math.exp %305 : vector<8x128xf32>
    %cst_120 = arith.constant 1.000000e+00 : f32
    %307 = vector.broadcast %cst_120 : f32 to vector<8x128xf32>
    %308 = arith.addf %307, %306 : vector<8x128xf32>
    %309 = arith.divf %307, %308 : vector<8x128xf32>
    %310 = vector.extract_strided_slice %297 {offsets = [0, 128], sizes = [8, 128], strides = [1, 1]} : vector<8x384xf32> to vector<8x128xf32>
    %311 = vector.extract_strided_slice %301 {offsets = [0, 128], sizes = [8, 128], strides = [1, 1]} : vector<8x384xf32> to vector<8x128xf32>
    %312 = arith.addf %310, %311 : vector<8x128xf32>
    %313 = arith.negf %312 : vector<8x128xf32>
    %314 = math.exp %313 : vector<8x128xf32>
    %cst_121 = arith.constant 1.000000e+00 : f32
    %315 = vector.broadcast %cst_121 : f32 to vector<8x128xf32>
    %316 = arith.addf %315, %314 : vector<8x128xf32>
    %317 = arith.divf %315, %316 : vector<8x128xf32>
    %318 = vector.extract_strided_slice %297 {offsets = [0, 256], sizes = [8, 128], strides = [1, 1]} : vector<8x384xf32> to vector<8x128xf32>
    %319 = vector.extract_strided_slice %301 {offsets = [0, 256], sizes = [8, 128], strides = [1, 1]} : vector<8x384xf32> to vector<8x128xf32>
    %320 = arith.addf %319, %26 : vector<8x128xf32>
    %321 = arith.mulf %309, %320 : vector<8x128xf32>
    %322 = arith.addf %318, %321 : vector<8x128xf32>
    %323 = math.tanh %322 : vector<8x128xf32>
    %cst_122 = arith.constant 1.000000e+00 : f32
    %324 = vector.broadcast %cst_122 : f32 to vector<8x128xf32>
    %325 = arith.subf %324, %317 : vector<8x128xf32>
    %326 = arith.mulf %325, %323 : vector<8x128xf32>
    %327 = arith.mulf %317, %244 : vector<8x128xf32>
    %328 = arith.addf %326, %327 : vector<8x128xf32>
    %329 = arith.select %291, %328, %244 : vector<8x128xf32>
    %c1_i32_123 = arith.constant 1 : i32
    %330 = arith.subi %c3_i32, %c1_i32_123 : i32
    %c0_i32_124 = arith.constant 0 : i32
    %331 = arith.cmpi sge, %330, %c0_i32_124 : i32
    %c8_i32_125 = arith.constant 8 : i32
    %332 = arith.cmpi slt, %330, %c8_i32_125 : i32
    %333 = arith.andi %331, %332 : i1
    %334 = arith.truncf %244 : vector<8x128xf32> to vector<8x128xbf16>
    %c1_126 = arith.constant 1 : index
    %c0_127 = arith.constant 0 : index
    %c0_128 = arith.constant 0 : index
    %335 = vector.load %arg3[%c1_126, %c0_127, %c0_128] : memref<2x128x384xbf16, #tpu.memory_space<vmem>>, vector<1x128x384xbf16>
    %336 = vector.shape_cast %335 : vector<1x128x384xbf16> to vector<128x384xbf16>
    %cst_129 = arith.constant dense<0.000000e+00> : vector<8x384xf32>
    %337 = tpu.matmul %334, %336, %cst_129 {dimension_numbers = #tpu.dot_dimension_numbers<[1], [0], [0], [1], [0, 0, 1, 1], [], []>} : vector<8x128xbf16>, vector<128x384xbf16>, vector<8x384xf32> -> vector<8x384xf32>
    %338 = arith.addf %337, %22 : vector<8x384xf32>
    %339 = arith.truncf %285 : vector<8x128xf32> to vector<8x128xbf16>
    %c1_130 = arith.constant 1 : index
    %c0_131 = arith.constant 0 : index
    %c0_132 = arith.constant 0 : index
    %340 = vector.load %arg4[%c1_130, %c0_131, %c0_132] : memref<2x128x384xbf16, #tpu.memory_space<vmem>>, vector<1x128x384xbf16>
    %341 = vector.shape_cast %340 : vector<1x128x384xbf16> to vector<128x384xbf16>
    %cst_133 = arith.constant dense<0.000000e+00> : vector<8x384xf32>
    %342 = tpu.matmul %339, %341, %cst_133 {dimension_numbers = #tpu.dot_dimension_numbers<[1], [0], [0], [1], [0, 0, 1, 1], [], []>} : vector<8x128xbf16>, vector<128x384xbf16>, vector<8x384xf32> -> vector<8x384xf32>
    %343 = vector.extract_strided_slice %338 {offsets = [0, 0], sizes = [8, 128], strides = [1, 1]} : vector<8x384xf32> to vector<8x128xf32>
    %344 = vector.extract_strided_slice %342 {offsets = [0, 0], sizes = [8, 128], strides = [1, 1]} : vector<8x384xf32> to vector<8x128xf32>
    %345 = arith.addf %343, %344 : vector<8x128xf32>
    %346 = arith.negf %345 : vector<8x128xf32>
    %347 = math.exp %346 : vector<8x128xf32>
    %cst_134 = arith.constant 1.000000e+00 : f32
    %348 = vector.broadcast %cst_134 : f32 to vector<8x128xf32>
    %349 = arith.addf %348, %347 : vector<8x128xf32>
    %350 = arith.divf %348, %349 : vector<8x128xf32>
    %351 = vector.extract_strided_slice %338 {offsets = [0, 128], sizes = [8, 128], strides = [1, 1]} : vector<8x384xf32> to vector<8x128xf32>
    %352 = vector.extract_strided_slice %342 {offsets = [0, 128], sizes = [8, 128], strides = [1, 1]} : vector<8x384xf32> to vector<8x128xf32>
    %353 = arith.addf %351, %352 : vector<8x128xf32>
    %354 = arith.negf %353 : vector<8x128xf32>
    %355 = math.exp %354 : vector<8x128xf32>
    %cst_135 = arith.constant 1.000000e+00 : f32
    %356 = vector.broadcast %cst_135 : f32 to vector<8x128xf32>
    %357 = arith.addf %356, %355 : vector<8x128xf32>
    %358 = arith.divf %356, %357 : vector<8x128xf32>
    %359 = vector.extract_strided_slice %338 {offsets = [0, 256], sizes = [8, 128], strides = [1, 1]} : vector<8x384xf32> to vector<8x128xf32>
    %360 = vector.extract_strided_slice %342 {offsets = [0, 256], sizes = [8, 128], strides = [1, 1]} : vector<8x384xf32> to vector<8x128xf32>
    %361 = arith.addf %360, %30 : vector<8x128xf32>
    %362 = arith.mulf %350, %361 : vector<8x128xf32>
    %363 = arith.addf %359, %362 : vector<8x128xf32>
    %364 = math.tanh %363 : vector<8x128xf32>
    %cst_136 = arith.constant 1.000000e+00 : f32
    %365 = vector.broadcast %cst_136 : f32 to vector<8x128xf32>
    %366 = arith.subf %365, %358 : vector<8x128xf32>
    %367 = arith.mulf %366, %364 : vector<8x128xf32>
    %368 = arith.mulf %358, %285 : vector<8x128xf32>
    %369 = arith.addf %367, %368 : vector<8x128xf32>
    %370 = arith.select %333, %369, %285 : vector<8x128xf32>
    %371 = arith.extui %333 : i1 to i32
    %c0_i32_137 = arith.constant 0 : i32
    %372 = arith.cmpi ne, %371, %c0_i32_137 : i32
    scf.if %372 {
      %c8_i32_293 = arith.constant 8 : i32
      %806 = arith.muli %330, %c8_i32_293 : i32
      %807 = tpu.assume_multiple %806, 8 : i32
      %808 = arith.index_cast %807 : i32 to index
      %c0_294 = arith.constant 0 : index
      %809 = vector.load %arg11[%808, %c0_294] : memref<64x128xf32, #tpu.memory_space<vmem>>, vector<8x128xf32>
      tpu.vector_store %arg11[%808, %c0_294], %370 {strides = array<i32>} : memref<64x128xf32, #tpu.memory_space<vmem>>, vector<8x128xf32>,
    } else {
    }
    %c4_i32 = arith.constant 4 : i32
    %c0_i32_138 = arith.constant 0 : i32
    %373 = arith.subi %c4_i32, %c0_i32_138 : i32
    %c0_i32_139 = arith.constant 0 : i32
    %374 = arith.cmpi sge, %373, %c0_i32_139 : i32
    %c8_i32_140 = arith.constant 8 : i32
    %375 = arith.cmpi slt, %373, %c8_i32_140 : i32
    %376 = arith.andi %374, %375 : i1
    %c0_i32_141 = arith.constant 0 : i32
    %c7_i32_142 = arith.constant 7 : i32
    %377 = arith.maxsi %c0_i32_141, %373 : i32
    %378 = arith.minsi %c7_i32_142, %377 : i32
    %c8_i32_143 = arith.constant 8 : i32
    %379 = arith.muli %378, %c8_i32_143 : i32
    %380 = tpu.assume_multiple %379, 8 : i32
    %381 = arith.index_cast %380 : i32 to index
    %c0_144 = arith.constant 0 : index
    %382 = vector.load %arg10[%381, %c0_144] : memref<64x384xf32, #tpu.memory_space<vmem>>, vector<8x384xf32>
    %383 = arith.truncf %329 : vector<8x128xf32> to vector<8x128xbf16>
    %c0_145 = arith.constant 0 : index
    %c0_146 = arith.constant 0 : index
    %c0_147 = arith.constant 0 : index
    %384 = vector.load %arg4[%c0_145, %c0_146, %c0_147] : memref<2x128x384xbf16, #tpu.memory_space<vmem>>, vector<1x128x384xbf16>
    %385 = vector.shape_cast %384 : vector<1x128x384xbf16> to vector<128x384xbf16>
    %cst_148 = arith.constant dense<0.000000e+00> : vector<8x384xf32>
    %386 = tpu.matmul %383, %385, %cst_148 {dimension_numbers = #tpu.dot_dimension_numbers<[1], [0], [0], [1], [0, 0, 1, 1], [], []>} : vector<8x128xbf16>, vector<128x384xbf16>, vector<8x384xf32> -> vector<8x384xf32>
    %387 = vector.extract_strided_slice %382 {offsets = [0, 0], sizes = [8, 128], strides = [1, 1]} : vector<8x384xf32> to vector<8x128xf32>
    %388 = vector.extract_strided_slice %386 {offsets = [0, 0], sizes = [8, 128], strides = [1, 1]} : vector<8x384xf32> to vector<8x128xf32>
    %389 = arith.addf %387, %388 : vector<8x128xf32>
    %390 = arith.negf %389 : vector<8x128xf32>
    %391 = math.exp %390 : vector<8x128xf32>
    %cst_149 = arith.constant 1.000000e+00 : f32
    %392 = vector.broadcast %cst_149 : f32 to vector<8x128xf32>
    %393 = arith.addf %392, %391 : vector<8x128xf32>
    %394 = arith.divf %392, %393 : vector<8x128xf32>
    %395 = vector.extract_strided_slice %382 {offsets = [0, 128], sizes = [8, 128], strides = [1, 1]} : vector<8x384xf32> to vector<8x128xf32>
    %396 = vector.extract_strided_slice %386 {offsets = [0, 128], sizes = [8, 128], strides = [1, 1]} : vector<8x384xf32> to vector<8x128xf32>
    %397 = arith.addf %395, %396 : vector<8x128xf32>
    %398 = arith.negf %397 : vector<8x128xf32>
    %399 = math.exp %398 : vector<8x128xf32>
    %cst_150 = arith.constant 1.000000e+00 : f32
    %400 = vector.broadcast %cst_150 : f32 to vector<8x128xf32>
    %401 = arith.addf %400, %399 : vector<8x128xf32>
    %402 = arith.divf %400, %401 : vector<8x128xf32>
    %403 = vector.extract_strided_slice %382 {offsets = [0, 256], sizes = [8, 128], strides = [1, 1]} : vector<8x384xf32> to vector<8x128xf32>
    %404 = vector.extract_strided_slice %386 {offsets = [0, 256], sizes = [8, 128], strides = [1, 1]} : vector<8x384xf32> to vector<8x128xf32>
    %405 = arith.addf %404, %26 : vector<8x128xf32>
    %406 = arith.mulf %394, %405 : vector<8x128xf32>
    %407 = arith.addf %403, %406 : vector<8x128xf32>
    %408 = math.tanh %407 : vector<8x128xf32>
    %cst_151 = arith.constant 1.000000e+00 : f32
    %409 = vector.broadcast %cst_151 : f32 to vector<8x128xf32>
    %410 = arith.subf %409, %402 : vector<8x128xf32>
    %411 = arith.mulf %410, %408 : vector<8x128xf32>
    %412 = arith.mulf %402, %329 : vector<8x128xf32>
    %413 = arith.addf %411, %412 : vector<8x128xf32>
    %414 = arith.select %376, %413, %329 : vector<8x128xf32>
    %c1_i32_152 = arith.constant 1 : i32
    %415 = arith.subi %c4_i32, %c1_i32_152 : i32
    %c0_i32_153 = arith.constant 0 : i32
    %416 = arith.cmpi sge, %415, %c0_i32_153 : i32
    %c8_i32_154 = arith.constant 8 : i32
    %417 = arith.cmpi slt, %415, %c8_i32_154 : i32
    %418 = arith.andi %416, %417 : i1
    %419 = arith.truncf %329 : vector<8x128xf32> to vector<8x128xbf16>
    %c1_155 = arith.constant 1 : index
    %c0_156 = arith.constant 0 : index
    %c0_157 = arith.constant 0 : index
    %420 = vector.load %arg3[%c1_155, %c0_156, %c0_157] : memref<2x128x384xbf16, #tpu.memory_space<vmem>>, vector<1x128x384xbf16>
    %421 = vector.shape_cast %420 : vector<1x128x384xbf16> to vector<128x384xbf16>
    %cst_158 = arith.constant dense<0.000000e+00> : vector<8x384xf32>
    %422 = tpu.matmul %419, %421, %cst_158 {dimension_numbers = #tpu.dot_dimension_numbers<[1], [0], [0], [1], [0, 0, 1, 1], [], []>} : vector<8x128xbf16>, vector<128x384xbf16>, vector<8x384xf32> -> vector<8x384xf32>
    %423 = arith.addf %422, %22 : vector<8x384xf32>
    %424 = arith.truncf %370 : vector<8x128xf32> to vector<8x128xbf16>
    %c1_159 = arith.constant 1 : index
    %c0_160 = arith.constant 0 : index
    %c0_161 = arith.constant 0 : index
    %425 = vector.load %arg4[%c1_159, %c0_160, %c0_161] : memref<2x128x384xbf16, #tpu.memory_space<vmem>>, vector<1x128x384xbf16>
    %426 = vector.shape_cast %425 : vector<1x128x384xbf16> to vector<128x384xbf16>
    %cst_162 = arith.constant dense<0.000000e+00> : vector<8x384xf32>
    %427 = tpu.matmul %424, %426, %cst_162 {dimension_numbers = #tpu.dot_dimension_numbers<[1], [0], [0], [1], [0, 0, 1, 1], [], []>} : vector<8x128xbf16>, vector<128x384xbf16>, vector<8x384xf32> -> vector<8x384xf32>
    %428 = vector.extract_strided_slice %423 {offsets = [0, 0], sizes = [8, 128], strides = [1, 1]} : vector<8x384xf32> to vector<8x128xf32>
    %429 = vector.extract_strided_slice %427 {offsets = [0, 0], sizes = [8, 128], strides = [1, 1]} : vector<8x384xf32> to vector<8x128xf32>
    %430 = arith.addf %428, %429 : vector<8x128xf32>
    %431 = arith.negf %430 : vector<8x128xf32>
    %432 = math.exp %431 : vector<8x128xf32>
    %cst_163 = arith.constant 1.000000e+00 : f32
    %433 = vector.broadcast %cst_163 : f32 to vector<8x128xf32>
    %434 = arith.addf %433, %432 : vector<8x128xf32>
    %435 = arith.divf %433, %434 : vector<8x128xf32>
    %436 = vector.extract_strided_slice %423 {offsets = [0, 128], sizes = [8, 128], strides = [1, 1]} : vector<8x384xf32> to vector<8x128xf32>
    %437 = vector.extract_strided_slice %427 {offsets = [0, 128], sizes = [8, 128], strides = [1, 1]} : vector<8x384xf32> to vector<8x128xf32>
    %438 = arith.addf %436, %437 : vector<8x128xf32>
    %439 = arith.negf %438 : vector<8x128xf32>
    %440 = math.exp %439 : vector<8x128xf32>
    %cst_164 = arith.constant 1.000000e+00 : f32
    %441 = vector.broadcast %cst_164 : f32 to vector<8x128xf32>
    %442 = arith.addf %441, %440 : vector<8x128xf32>
    %443 = arith.divf %441, %442 : vector<8x128xf32>
    %444 = vector.extract_strided_slice %423 {offsets = [0, 256], sizes = [8, 128], strides = [1, 1]} : vector<8x384xf32> to vector<8x128xf32>
    %445 = vector.extract_strided_slice %427 {offsets = [0, 256], sizes = [8, 128], strides = [1, 1]} : vector<8x384xf32> to vector<8x128xf32>
    %446 = arith.addf %445, %30 : vector<8x128xf32>
    %447 = arith.mulf %435, %446 : vector<8x128xf32>
    %448 = arith.addf %444, %447 : vector<8x128xf32>
    %449 = math.tanh %448 : vector<8x128xf32>
    %cst_165 = arith.constant 1.000000e+00 : f32
    %450 = vector.broadcast %cst_165 : f32 to vector<8x128xf32>
    %451 = arith.subf %450, %443 : vector<8x128xf32>
    %452 = arith.mulf %451, %449 : vector<8x128xf32>
    %453 = arith.mulf %443, %370 : vector<8x128xf32>
    %454 = arith.addf %452, %453 : vector<8x128xf32>
    %455 = arith.select %418, %454, %370 : vector<8x128xf32>
    %456 = arith.extui %418 : i1 to i32
    %c0_i32_166 = arith.constant 0 : i32
    %457 = arith.cmpi ne, %456, %c0_i32_166 : i32
    scf.if %457 {
      %c8_i32_293 = arith.constant 8 : i32
      %806 = arith.muli %415, %c8_i32_293 : i32
      %807 = tpu.assume_multiple %806, 8 : i32
      %808 = arith.index_cast %807 : i32 to index
      %c0_294 = arith.constant 0 : index
      %809 = vector.load %arg11[%808, %c0_294] : memref<64x128xf32, #tpu.memory_space<vmem>>, vector<8x128xf32>
      tpu.vector_store %arg11[%808, %c0_294], %455 {strides = array<i32>} : memref<64x128xf32, #tpu.memory_space<vmem>>, vector<8x128xf32>,
    } else {
    }
    %c5_i32 = arith.constant 5 : i32
    %c0_i32_167 = arith.constant 0 : i32
    %458 = arith.subi %c5_i32, %c0_i32_167 : i32
    %c0_i32_168 = arith.constant 0 : i32
    %459 = arith.cmpi sge, %458, %c0_i32_168 : i32
    %c8_i32_169 = arith.constant 8 : i32
    %460 = arith.cmpi slt, %458, %c8_i32_169 : i32
    %461 = arith.andi %459, %460 : i1
    %c0_i32_170 = arith.constant 0 : i32
    %c7_i32_171 = arith.constant 7 : i32
    %462 = arith.maxsi %c0_i32_170, %458 : i32
    %463 = arith.minsi %c7_i32_171, %462 : i32
    %c8_i32_172 = arith.constant 8 : i32
    %464 = arith.muli %463, %c8_i32_172 : i32
    %465 = tpu.assume_multiple %464, 8 : i32
    %466 = arith.index_cast %465 : i32 to index
    %c0_173 = arith.constant 0 : index
    %467 = vector.load %arg10[%466, %c0_173] : memref<64x384xf32, #tpu.memory_space<vmem>>, vector<8x384xf32>
    %468 = arith.truncf %414 : vector<8x128xf32> to vector<8x128xbf16>
    %c0_174 = arith.constant 0 : index
    %c0_175 = arith.constant 0 : index
    %c0_176 = arith.constant 0 : index
    %469 = vector.load %arg4[%c0_174, %c0_175, %c0_176] : memref<2x128x384xbf16, #tpu.memory_space<vmem>>, vector<1x128x384xbf16>
    %470 = vector.shape_cast %469 : vector<1x128x384xbf16> to vector<128x384xbf16>
    %cst_177 = arith.constant dense<0.000000e+00> : vector<8x384xf32>
    %471 = tpu.matmul %468, %470, %cst_177 {dimension_numbers = #tpu.dot_dimension_numbers<[1], [0], [0], [1], [0, 0, 1, 1], [], []>} : vector<8x128xbf16>, vector<128x384xbf16>, vector<8x384xf32> -> vector<8x384xf32>
    %472 = vector.extract_strided_slice %467 {offsets = [0, 0], sizes = [8, 128], strides = [1, 1]} : vector<8x384xf32> to vector<8x128xf32>
    %473 = vector.extract_strided_slice %471 {offsets = [0, 0], sizes = [8, 128], strides = [1, 1]} : vector<8x384xf32> to vector<8x128xf32>
    %474 = arith.addf %472, %473 : vector<8x128xf32>
    %475 = arith.negf %474 : vector<8x128xf32>
    %476 = math.exp %475 : vector<8x128xf32>
    %cst_178 = arith.constant 1.000000e+00 : f32
    %477 = vector.broadcast %cst_178 : f32 to vector<8x128xf32>
    %478 = arith.addf %477, %476 : vector<8x128xf32>
    %479 = arith.divf %477, %478 : vector<8x128xf32>
    %480 = vector.extract_strided_slice %467 {offsets = [0, 128], sizes = [8, 128], strides = [1, 1]} : vector<8x384xf32> to vector<8x128xf32>
    %481 = vector.extract_strided_slice %471 {offsets = [0, 128], sizes = [8, 128], strides = [1, 1]} : vector<8x384xf32> to vector<8x128xf32>
    %482 = arith.addf %480, %481 : vector<8x128xf32>
    %483 = arith.negf %482 : vector<8x128xf32>
    %484 = math.exp %483 : vector<8x128xf32>
    %cst_179 = arith.constant 1.000000e+00 : f32
    %485 = vector.broadcast %cst_179 : f32 to vector<8x128xf32>
    %486 = arith.addf %485, %484 : vector<8x128xf32>
    %487 = arith.divf %485, %486 : vector<8x128xf32>
    %488 = vector.extract_strided_slice %467 {offsets = [0, 256], sizes = [8, 128], strides = [1, 1]} : vector<8x384xf32> to vector<8x128xf32>
    %489 = vector.extract_strided_slice %471 {offsets = [0, 256], sizes = [8, 128], strides = [1, 1]} : vector<8x384xf32> to vector<8x128xf32>
    %490 = arith.addf %489, %26 : vector<8x128xf32>
    %491 = arith.mulf %479, %490 : vector<8x128xf32>
    %492 = arith.addf %488, %491 : vector<8x128xf32>
    %493 = math.tanh %492 : vector<8x128xf32>
    %cst_180 = arith.constant 1.000000e+00 : f32
    %494 = vector.broadcast %cst_180 : f32 to vector<8x128xf32>
    %495 = arith.subf %494, %487 : vector<8x128xf32>
    %496 = arith.mulf %495, %493 : vector<8x128xf32>
    %497 = arith.mulf %487, %414 : vector<8x128xf32>
    %498 = arith.addf %496, %497 : vector<8x128xf32>
    %499 = arith.select %461, %498, %414 : vector<8x128xf32>
    %c1_i32_181 = arith.constant 1 : i32
    %500 = arith.subi %c5_i32, %c1_i32_181 : i32
    %c0_i32_182 = arith.constant 0 : i32
    %501 = arith.cmpi sge, %500, %c0_i32_182 : i32
    %c8_i32_183 = arith.constant 8 : i32
    %502 = arith.cmpi slt, %500, %c8_i32_183 : i32
    %503 = arith.andi %501, %502 : i1
    %504 = arith.truncf %414 : vector<8x128xf32> to vector<8x128xbf16>
    %c1_184 = arith.constant 1 : index
    %c0_185 = arith.constant 0 : index
    %c0_186 = arith.constant 0 : index
    %505 = vector.load %arg3[%c1_184, %c0_185, %c0_186] : memref<2x128x384xbf16, #tpu.memory_space<vmem>>, vector<1x128x384xbf16>
    %506 = vector.shape_cast %505 : vector<1x128x384xbf16> to vector<128x384xbf16>
    %cst_187 = arith.constant dense<0.000000e+00> : vector<8x384xf32>
    %507 = tpu.matmul %504, %506, %cst_187 {dimension_numbers = #tpu.dot_dimension_numbers<[1], [0], [0], [1], [0, 0, 1, 1], [], []>} : vector<8x128xbf16>, vector<128x384xbf16>, vector<8x384xf32> -> vector<8x384xf32>
    %508 = arith.addf %507, %22 : vector<8x384xf32>
    %509 = arith.truncf %455 : vector<8x128xf32> to vector<8x128xbf16>
    %c1_188 = arith.constant 1 : index
    %c0_189 = arith.constant 0 : index
    %c0_190 = arith.constant 0 : index
    %510 = vector.load %arg4[%c1_188, %c0_189, %c0_190] : memref<2x128x384xbf16, #tpu.memory_space<vmem>>, vector<1x128x384xbf16>
    %511 = vector.shape_cast %510 : vector<1x128x384xbf16> to vector<128x384xbf16>
    %cst_191 = arith.constant dense<0.000000e+00> : vector<8x384xf32>
    %512 = tpu.matmul %509, %511, %cst_191 {dimension_numbers = #tpu.dot_dimension_numbers<[1], [0], [0], [1], [0, 0, 1, 1], [], []>} : vector<8x128xbf16>, vector<128x384xbf16>, vector<8x384xf32> -> vector<8x384xf32>
    %513 = vector.extract_strided_slice %508 {offsets = [0, 0], sizes = [8, 128], strides = [1, 1]} : vector<8x384xf32> to vector<8x128xf32>
    %514 = vector.extract_strided_slice %512 {offsets = [0, 0], sizes = [8, 128], strides = [1, 1]} : vector<8x384xf32> to vector<8x128xf32>
    %515 = arith.addf %513, %514 : vector<8x128xf32>
    %516 = arith.negf %515 : vector<8x128xf32>
    %517 = math.exp %516 : vector<8x128xf32>
    %cst_192 = arith.constant 1.000000e+00 : f32
    %518 = vector.broadcast %cst_192 : f32 to vector<8x128xf32>
    %519 = arith.addf %518, %517 : vector<8x128xf32>
    %520 = arith.divf %518, %519 : vector<8x128xf32>
    %521 = vector.extract_strided_slice %508 {offsets = [0, 128], sizes = [8, 128], strides = [1, 1]} : vector<8x384xf32> to vector<8x128xf32>
    %522 = vector.extract_strided_slice %512 {offsets = [0, 128], sizes = [8, 128], strides = [1, 1]} : vector<8x384xf32> to vector<8x128xf32>
    %523 = arith.addf %521, %522 : vector<8x128xf32>
    %524 = arith.negf %523 : vector<8x128xf32>
    %525 = math.exp %524 : vector<8x128xf32>
    %cst_193 = arith.constant 1.000000e+00 : f32
    %526 = vector.broadcast %cst_193 : f32 to vector<8x128xf32>
    %527 = arith.addf %526, %525 : vector<8x128xf32>
    %528 = arith.divf %526, %527 : vector<8x128xf32>
    %529 = vector.extract_strided_slice %508 {offsets = [0, 256], sizes = [8, 128], strides = [1, 1]} : vector<8x384xf32> to vector<8x128xf32>
    %530 = vector.extract_strided_slice %512 {offsets = [0, 256], sizes = [8, 128], strides = [1, 1]} : vector<8x384xf32> to vector<8x128xf32>
    %531 = arith.addf %530, %30 : vector<8x128xf32>
    %532 = arith.mulf %520, %531 : vector<8x128xf32>
    %533 = arith.addf %529, %532 : vector<8x128xf32>
    %534 = math.tanh %533 : vector<8x128xf32>
    %cst_194 = arith.constant 1.000000e+00 : f32
    %535 = vector.broadcast %cst_194 : f32 to vector<8x128xf32>
    %536 = arith.subf %535, %528 : vector<8x128xf32>
    %537 = arith.mulf %536, %534 : vector<8x128xf32>
    %538 = arith.mulf %528, %455 : vector<8x128xf32>
    %539 = arith.addf %537, %538 : vector<8x128xf32>
    %540 = arith.select %503, %539, %455 : vector<8x128xf32>
    %541 = arith.extui %503 : i1 to i32
    %c0_i32_195 = arith.constant 0 : i32
    %542 = arith.cmpi ne, %541, %c0_i32_195 : i32
    scf.if %542 {
      %c8_i32_293 = arith.constant 8 : i32
      %806 = arith.muli %500, %c8_i32_293 : i32
      %807 = tpu.assume_multiple %806, 8 : i32
      %808 = arith.index_cast %807 : i32 to index
      %c0_294 = arith.constant 0 : index
      %809 = vector.load %arg11[%808, %c0_294] : memref<64x128xf32, #tpu.memory_space<vmem>>, vector<8x128xf32>
      tpu.vector_store %arg11[%808, %c0_294], %540 {strides = array<i32>} : memref<64x128xf32, #tpu.memory_space<vmem>>, vector<8x128xf32>,
    } else {
    }
    %c6_i32 = arith.constant 6 : i32
    %c0_i32_196 = arith.constant 0 : i32
    %543 = arith.subi %c6_i32, %c0_i32_196 : i32
    %c0_i32_197 = arith.constant 0 : i32
    %544 = arith.cmpi sge, %543, %c0_i32_197 : i32
    %c8_i32_198 = arith.constant 8 : i32
    %545 = arith.cmpi slt, %543, %c8_i32_198 : i32
    %546 = arith.andi %544, %545 : i1
    %c0_i32_199 = arith.constant 0 : i32
    %c7_i32_200 = arith.constant 7 : i32
    %547 = arith.maxsi %c0_i32_199, %543 : i32
    %548 = arith.minsi %c7_i32_200, %547 : i32
    %c8_i32_201 = arith.constant 8 : i32
    %549 = arith.muli %548, %c8_i32_201 : i32
    %550 = tpu.assume_multiple %549, 8 : i32
    %551 = arith.index_cast %550 : i32 to index
    %c0_202 = arith.constant 0 : index
    %552 = vector.load %arg10[%551, %c0_202] : memref<64x384xf32, #tpu.memory_space<vmem>>, vector<8x384xf32>
    %553 = arith.truncf %499 : vector<8x128xf32> to vector<8x128xbf16>
    %c0_203 = arith.constant 0 : index
    %c0_204 = arith.constant 0 : index
    %c0_205 = arith.constant 0 : index
    %554 = vector.load %arg4[%c0_203, %c0_204, %c0_205] : memref<2x128x384xbf16, #tpu.memory_space<vmem>>, vector<1x128x384xbf16>
    %555 = vector.shape_cast %554 : vector<1x128x384xbf16> to vector<128x384xbf16>
    %cst_206 = arith.constant dense<0.000000e+00> : vector<8x384xf32>
    %556 = tpu.matmul %553, %555, %cst_206 {dimension_numbers = #tpu.dot_dimension_numbers<[1], [0], [0], [1], [0, 0, 1, 1], [], []>} : vector<8x128xbf16>, vector<128x384xbf16>, vector<8x384xf32> -> vector<8x384xf32>
    %557 = vector.extract_strided_slice %552 {offsets = [0, 0], sizes = [8, 128], strides = [1, 1]} : vector<8x384xf32> to vector<8x128xf32>
    %558 = vector.extract_strided_slice %556 {offsets = [0, 0], sizes = [8, 128], strides = [1, 1]} : vector<8x384xf32> to vector<8x128xf32>
    %559 = arith.addf %557, %558 : vector<8x128xf32>
    %560 = arith.negf %559 : vector<8x128xf32>
    %561 = math.exp %560 : vector<8x128xf32>
    %cst_207 = arith.constant 1.000000e+00 : f32
    %562 = vector.broadcast %cst_207 : f32 to vector<8x128xf32>
    %563 = arith.addf %562, %561 : vector<8x128xf32>
    %564 = arith.divf %562, %563 : vector<8x128xf32>
    %565 = vector.extract_strided_slice %552 {offsets = [0, 128], sizes = [8, 128], strides = [1, 1]} : vector<8x384xf32> to vector<8x128xf32>
    %566 = vector.extract_strided_slice %556 {offsets = [0, 128], sizes = [8, 128], strides = [1, 1]} : vector<8x384xf32> to vector<8x128xf32>
    %567 = arith.addf %565, %566 : vector<8x128xf32>
    %568 = arith.negf %567 : vector<8x128xf32>
    %569 = math.exp %568 : vector<8x128xf32>
    %cst_208 = arith.constant 1.000000e+00 : f32
    %570 = vector.broadcast %cst_208 : f32 to vector<8x128xf32>
    %571 = arith.addf %570, %569 : vector<8x128xf32>
    %572 = arith.divf %570, %571 : vector<8x128xf32>
    %573 = vector.extract_strided_slice %552 {offsets = [0, 256], sizes = [8, 128], strides = [1, 1]} : vector<8x384xf32> to vector<8x128xf32>
    %574 = vector.extract_strided_slice %556 {offsets = [0, 256], sizes = [8, 128], strides = [1, 1]} : vector<8x384xf32> to vector<8x128xf32>
    %575 = arith.addf %574, %26 : vector<8x128xf32>
    %576 = arith.mulf %564, %575 : vector<8x128xf32>
    %577 = arith.addf %573, %576 : vector<8x128xf32>
    %578 = math.tanh %577 : vector<8x128xf32>
    %cst_209 = arith.constant 1.000000e+00 : f32
    %579 = vector.broadcast %cst_209 : f32 to vector<8x128xf32>
    %580 = arith.subf %579, %572 : vector<8x128xf32>
    %581 = arith.mulf %580, %578 : vector<8x128xf32>
    %582 = arith.mulf %572, %499 : vector<8x128xf32>
    %583 = arith.addf %581, %582 : vector<8x128xf32>
    %584 = arith.select %546, %583, %499 : vector<8x128xf32>
    %c1_i32_210 = arith.constant 1 : i32
    %585 = arith.subi %c6_i32, %c1_i32_210 : i32
    %c0_i32_211 = arith.constant 0 : i32
    %586 = arith.cmpi sge, %585, %c0_i32_211 : i32
    %c8_i32_212 = arith.constant 8 : i32
    %587 = arith.cmpi slt, %585, %c8_i32_212 : i32
    %588 = arith.andi %586, %587 : i1
    %589 = arith.truncf %499 : vector<8x128xf32> to vector<8x128xbf16>
    %c1_213 = arith.constant 1 : index
    %c0_214 = arith.constant 0 : index
    %c0_215 = arith.constant 0 : index
    %590 = vector.load %arg3[%c1_213, %c0_214, %c0_215] : memref<2x128x384xbf16, #tpu.memory_space<vmem>>, vector<1x128x384xbf16>
    %591 = vector.shape_cast %590 : vector<1x128x384xbf16> to vector<128x384xbf16>
    %cst_216 = arith.constant dense<0.000000e+00> : vector<8x384xf32>
    %592 = tpu.matmul %589, %591, %cst_216 {dimension_numbers = #tpu.dot_dimension_numbers<[1], [0], [0], [1], [0, 0, 1, 1], [], []>} : vector<8x128xbf16>, vector<128x384xbf16>, vector<8x384xf32> -> vector<8x384xf32>
    %593 = arith.addf %592, %22 : vector<8x384xf32>
    %594 = arith.truncf %540 : vector<8x128xf32> to vector<8x128xbf16>
    %c1_217 = arith.constant 1 : index
    %c0_218 = arith.constant 0 : index
    %c0_219 = arith.constant 0 : index
    %595 = vector.load %arg4[%c1_217, %c0_218, %c0_219] : memref<2x128x384xbf16, #tpu.memory_space<vmem>>, vector<1x128x384xbf16>
    %596 = vector.shape_cast %595 : vector<1x128x384xbf16> to vector<128x384xbf16>
    %cst_220 = arith.constant dense<0.000000e+00> : vector<8x384xf32>
    %597 = tpu.matmul %594, %596, %cst_220 {dimension_numbers = #tpu.dot_dimension_numbers<[1], [0], [0], [1], [0, 0, 1, 1], [], []>} : vector<8x128xbf16>, vector<128x384xbf16>, vector<8x384xf32> -> vector<8x384xf32>
    %598 = vector.extract_strided_slice %593 {offsets = [0, 0], sizes = [8, 128], strides = [1, 1]} : vector<8x384xf32> to vector<8x128xf32>
    %599 = vector.extract_strided_slice %597 {offsets = [0, 0], sizes = [8, 128], strides = [1, 1]} : vector<8x384xf32> to vector<8x128xf32>
    %600 = arith.addf %598, %599 : vector<8x128xf32>
    %601 = arith.negf %600 : vector<8x128xf32>
    %602 = math.exp %601 : vector<8x128xf32>
    %cst_221 = arith.constant 1.000000e+00 : f32
    %603 = vector.broadcast %cst_221 : f32 to vector<8x128xf32>
    %604 = arith.addf %603, %602 : vector<8x128xf32>
    %605 = arith.divf %603, %604 : vector<8x128xf32>
    %606 = vector.extract_strided_slice %593 {offsets = [0, 128], sizes = [8, 128], strides = [1, 1]} : vector<8x384xf32> to vector<8x128xf32>
    %607 = vector.extract_strided_slice %597 {offsets = [0, 128], sizes = [8, 128], strides = [1, 1]} : vector<8x384xf32> to vector<8x128xf32>
    %608 = arith.addf %606, %607 : vector<8x128xf32>
    %609 = arith.negf %608 : vector<8x128xf32>
    %610 = math.exp %609 : vector<8x128xf32>
    %cst_222 = arith.constant 1.000000e+00 : f32
    %611 = vector.broadcast %cst_222 : f32 to vector<8x128xf32>
    %612 = arith.addf %611, %610 : vector<8x128xf32>
    %613 = arith.divf %611, %612 : vector<8x128xf32>
    %614 = vector.extract_strided_slice %593 {offsets = [0, 256], sizes = [8, 128], strides = [1, 1]} : vector<8x384xf32> to vector<8x128xf32>
    %615 = vector.extract_strided_slice %597 {offsets = [0, 256], sizes = [8, 128], strides = [1, 1]} : vector<8x384xf32> to vector<8x128xf32>
    %616 = arith.addf %615, %30 : vector<8x128xf32>
    %617 = arith.mulf %605, %616 : vector<8x128xf32>
    %618 = arith.addf %614, %617 : vector<8x128xf32>
    %619 = math.tanh %618 : vector<8x128xf32>
    %cst_223 = arith.constant 1.000000e+00 : f32
    %620 = vector.broadcast %cst_223 : f32 to vector<8x128xf32>
    %621 = arith.subf %620, %613 : vector<8x128xf32>
    %622 = arith.mulf %621, %619 : vector<8x128xf32>
    %623 = arith.mulf %613, %540 : vector<8x128xf32>
    %624 = arith.addf %622, %623 : vector<8x128xf32>
    %625 = arith.select %588, %624, %540 : vector<8x128xf32>
    %626 = arith.extui %588 : i1 to i32
    %c0_i32_224 = arith.constant 0 : i32
    %627 = arith.cmpi ne, %626, %c0_i32_224 : i32
    scf.if %627 {
      %c8_i32_293 = arith.constant 8 : i32
      %806 = arith.muli %585, %c8_i32_293 : i32
      %807 = tpu.assume_multiple %806, 8 : i32
      %808 = arith.index_cast %807 : i32 to index
      %c0_294 = arith.constant 0 : index
      %809 = vector.load %arg11[%808, %c0_294] : memref<64x128xf32, #tpu.memory_space<vmem>>, vector<8x128xf32>
      tpu.vector_store %arg11[%808, %c0_294], %625 {strides = array<i32>} : memref<64x128xf32, #tpu.memory_space<vmem>>, vector<8x128xf32>,
    } else {
    }
    %c7_i32_225 = arith.constant 7 : i32
    %c0_i32_226 = arith.constant 0 : i32
    %628 = arith.subi %c7_i32_225, %c0_i32_226 : i32
    %c0_i32_227 = arith.constant 0 : i32
    %629 = arith.cmpi sge, %628, %c0_i32_227 : i32
    %c8_i32_228 = arith.constant 8 : i32
    %630 = arith.cmpi slt, %628, %c8_i32_228 : i32
    %631 = arith.andi %629, %630 : i1
    %c0_i32_229 = arith.constant 0 : i32
    %c7_i32_230 = arith.constant 7 : i32
    %632 = arith.maxsi %c0_i32_229, %628 : i32
    %633 = arith.minsi %c7_i32_230, %632 : i32
    %c8_i32_231 = arith.constant 8 : i32
    %634 = arith.muli %633, %c8_i32_231 : i32
    %635 = tpu.assume_multiple %634, 8 : i32
    %636 = arith.index_cast %635 : i32 to index
    %c0_232 = arith.constant 0 : index
    %637 = vector.load %arg10[%636, %c0_232] : memref<64x384xf32, #tpu.memory_space<vmem>>, vector<8x384xf32>
    %638 = arith.truncf %584 : vector<8x128xf32> to vector<8x128xbf16>
    %c0_233 = arith.constant 0 : index
    %c0_234 = arith.constant 0 : index
    %c0_235 = arith.constant 0 : index
    %639 = vector.load %arg4[%c0_233, %c0_234, %c0_235] : memref<2x128x384xbf16, #tpu.memory_space<vmem>>, vector<1x128x384xbf16>
    %640 = vector.shape_cast %639 : vector<1x128x384xbf16> to vector<128x384xbf16>
    %cst_236 = arith.constant dense<0.000000e+00> : vector<8x384xf32>
    %641 = tpu.matmul %638, %640, %cst_236 {dimension_numbers = #tpu.dot_dimension_numbers<[1], [0], [0], [1], [0, 0, 1, 1], [], []>} : vector<8x128xbf16>, vector<128x384xbf16>, vector<8x384xf32> -> vector<8x384xf32>
    %642 = vector.extract_strided_slice %637 {offsets = [0, 0], sizes = [8, 128], strides = [1, 1]} : vector<8x384xf32> to vector<8x128xf32>
    %643 = vector.extract_strided_slice %641 {offsets = [0, 0], sizes = [8, 128], strides = [1, 1]} : vector<8x384xf32> to vector<8x128xf32>
    %644 = arith.addf %642, %643 : vector<8x128xf32>
    %645 = arith.negf %644 : vector<8x128xf32>
    %646 = math.exp %645 : vector<8x128xf32>
    %cst_237 = arith.constant 1.000000e+00 : f32
    %647 = vector.broadcast %cst_237 : f32 to vector<8x128xf32>
    %648 = arith.addf %647, %646 : vector<8x128xf32>
    %649 = arith.divf %647, %648 : vector<8x128xf32>
    %650 = vector.extract_strided_slice %637 {offsets = [0, 128], sizes = [8, 128], strides = [1, 1]} : vector<8x384xf32> to vector<8x128xf32>
    %651 = vector.extract_strided_slice %641 {offsets = [0, 128], sizes = [8, 128], strides = [1, 1]} : vector<8x384xf32> to vector<8x128xf32>
    %652 = arith.addf %650, %651 : vector<8x128xf32>
    %653 = arith.negf %652 : vector<8x128xf32>
    %654 = math.exp %653 : vector<8x128xf32>
    %cst_238 = arith.constant 1.000000e+00 : f32
    %655 = vector.broadcast %cst_238 : f32 to vector<8x128xf32>
    %656 = arith.addf %655, %654 : vector<8x128xf32>
    %657 = arith.divf %655, %656 : vector<8x128xf32>
    %658 = vector.extract_strided_slice %637 {offsets = [0, 256], sizes = [8, 128], strides = [1, 1]} : vector<8x384xf32> to vector<8x128xf32>
    %659 = vector.extract_strided_slice %641 {offsets = [0, 256], sizes = [8, 128], strides = [1, 1]} : vector<8x384xf32> to vector<8x128xf32>
    %660 = arith.addf %659, %26 : vector<8x128xf32>
    %661 = arith.mulf %649, %660 : vector<8x128xf32>
    %662 = arith.addf %658, %661 : vector<8x128xf32>
    %663 = math.tanh %662 : vector<8x128xf32>
    %cst_239 = arith.constant 1.000000e+00 : f32
    %664 = vector.broadcast %cst_239 : f32 to vector<8x128xf32>
    %665 = arith.subf %664, %657 : vector<8x128xf32>
    %666 = arith.mulf %665, %663 : vector<8x128xf32>
    %667 = arith.mulf %657, %584 : vector<8x128xf32>
    %668 = arith.addf %666, %667 : vector<8x128xf32>
    %669 = arith.select %631, %668, %584 : vector<8x128xf32>
    %c1_i32_240 = arith.constant 1 : i32
    %670 = arith.subi %c7_i32_225, %c1_i32_240 : i32
    %c0_i32_241 = arith.constant 0 : i32
    %671 = arith.cmpi sge, %670, %c0_i32_241 : i32
    %c8_i32_242 = arith.constant 8 : i32
    %672 = arith.cmpi slt, %670, %c8_i32_242 : i32
    %673 = arith.andi %671, %672 : i1
    %674 = arith.truncf %584 : vector<8x128xf32> to vector<8x128xbf16>
    %c1_243 = arith.constant 1 : index
    %c0_244 = arith.constant 0 : index
    %c0_245 = arith.constant 0 : index
    %675 = vector.load %arg3[%c1_243, %c0_244, %c0_245] : memref<2x128x384xbf16, #tpu.memory_space<vmem>>, vector<1x128x384xbf16>
    %676 = vector.shape_cast %675 : vector<1x128x384xbf16> to vector<128x384xbf16>
    %cst_246 = arith.constant dense<0.000000e+00> : vector<8x384xf32>
    %677 = tpu.matmul %674, %676, %cst_246 {dimension_numbers = #tpu.dot_dimension_numbers<[1], [0], [0], [1], [0, 0, 1, 1], [], []>} : vector<8x128xbf16>, vector<128x384xbf16>, vector<8x384xf32> -> vector<8x384xf32>
    %678 = arith.addf %677, %22 : vector<8x384xf32>
    %679 = arith.truncf %625 : vector<8x128xf32> to vector<8x128xbf16>
    %c1_247 = arith.constant 1 : index
    %c0_248 = arith.constant 0 : index
    %c0_249 = arith.constant 0 : index
    %680 = vector.load %arg4[%c1_247, %c0_248, %c0_249] : memref<2x128x384xbf16, #tpu.memory_space<vmem>>, vector<1x128x384xbf16>
    %681 = vector.shape_cast %680 : vector<1x128x384xbf16> to vector<128x384xbf16>
    %cst_250 = arith.constant dense<0.000000e+00> : vector<8x384xf32>
    %682 = tpu.matmul %679, %681, %cst_250 {dimension_numbers = #tpu.dot_dimension_numbers<[1], [0], [0], [1], [0, 0, 1, 1], [], []>} : vector<8x128xbf16>, vector<128x384xbf16>, vector<8x384xf32> -> vector<8x384xf32>
    %683 = vector.extract_strided_slice %678 {offsets = [0, 0], sizes = [8, 128], strides = [1, 1]} : vector<8x384xf32> to vector<8x128xf32>
    %684 = vector.extract_strided_slice %682 {offsets = [0, 0], sizes = [8, 128], strides = [1, 1]} : vector<8x384xf32> to vector<8x128xf32>
    %685 = arith.addf %683, %684 : vector<8x128xf32>
    %686 = arith.negf %685 : vector<8x128xf32>
    %687 = math.exp %686 : vector<8x128xf32>
    %cst_251 = arith.constant 1.000000e+00 : f32
    %688 = vector.broadcast %cst_251 : f32 to vector<8x128xf32>
    %689 = arith.addf %688, %687 : vector<8x128xf32>
    %690 = arith.divf %688, %689 : vector<8x128xf32>
    %691 = vector.extract_strided_slice %678 {offsets = [0, 128], sizes = [8, 128], strides = [1, 1]} : vector<8x384xf32> to vector<8x128xf32>
    %692 = vector.extract_strided_slice %682 {offsets = [0, 128], sizes = [8, 128], strides = [1, 1]} : vector<8x384xf32> to vector<8x128xf32>
    %693 = arith.addf %691, %692 : vector<8x128xf32>
    %694 = arith.negf %693 : vector<8x128xf32>
    %695 = math.exp %694 : vector<8x128xf32>
    %cst_252 = arith.constant 1.000000e+00 : f32
    %696 = vector.broadcast %cst_252 : f32 to vector<8x128xf32>
    %697 = arith.addf %696, %695 : vector<8x128xf32>
    %698 = arith.divf %696, %697 : vector<8x128xf32>
    %699 = vector.extract_strided_slice %678 {offsets = [0, 256], sizes = [8, 128], strides = [1, 1]} : vector<8x384xf32> to vector<8x128xf32>
    %700 = vector.extract_strided_slice %682 {offsets = [0, 256], sizes = [8, 128], strides = [1, 1]} : vector<8x384xf32> to vector<8x128xf32>
    %701 = arith.addf %700, %30 : vector<8x128xf32>
    %702 = arith.mulf %690, %701 : vector<8x128xf32>
    %703 = arith.addf %699, %702 : vector<8x128xf32>
    %704 = math.tanh %703 : vector<8x128xf32>
    %cst_253 = arith.constant 1.000000e+00 : f32
    %705 = vector.broadcast %cst_253 : f32 to vector<8x128xf32>
    %706 = arith.subf %705, %698 : vector<8x128xf32>
    %707 = arith.mulf %706, %704 : vector<8x128xf32>
    %708 = arith.mulf %698, %625 : vector<8x128xf32>
    %709 = arith.addf %707, %708 : vector<8x128xf32>
    %710 = arith.select %673, %709, %625 : vector<8x128xf32>
    %711 = arith.extui %673 : i1 to i32
    %c0_i32_254 = arith.constant 0 : i32
    %712 = arith.cmpi ne, %711, %c0_i32_254 : i32
    scf.if %712 {
      %c8_i32_293 = arith.constant 8 : i32
      %806 = arith.muli %670, %c8_i32_293 : i32
      %807 = tpu.assume_multiple %806, 8 : i32
      %808 = arith.index_cast %807 : i32 to index
      %c0_294 = arith.constant 0 : index
      %809 = vector.load %arg11[%808, %c0_294] : memref<64x128xf32, #tpu.memory_space<vmem>>, vector<8x128xf32>
      tpu.vector_store %arg11[%808, %c0_294], %710 {strides = array<i32>} : memref<64x128xf32, #tpu.memory_space<vmem>>, vector<8x128xf32>,
    } else {
    }
    %c8_i32_255 = arith.constant 8 : i32
    %c0_i32_256 = arith.constant 0 : i32
    %713 = arith.subi %c8_i32_255, %c0_i32_256 : i32
    %c0_i32_257 = arith.constant 0 : i32
    %714 = arith.cmpi sge, %713, %c0_i32_257 : i32
    %c8_i32_258 = arith.constant 8 : i32
    %715 = arith.cmpi slt, %713, %c8_i32_258 : i32
    %716 = arith.andi %714, %715 : i1
    %c0_i32_259 = arith.constant 0 : i32
    %c7_i32_260 = arith.constant 7 : i32
    %717 = arith.maxsi %c0_i32_259, %713 : i32
    %718 = arith.minsi %c7_i32_260, %717 : i32
    %c8_i32_261 = arith.constant 8 : i32
    %719 = arith.muli %718, %c8_i32_261 : i32
    %720 = tpu.assume_multiple %719, 8 : i32
    %721 = arith.index_cast %720 : i32 to index
    %c0_262 = arith.constant 0 : index
    %722 = vector.load %arg10[%721, %c0_262] : memref<64x384xf32, #tpu.memory_space<vmem>>, vector<8x384xf32>
    %723 = arith.truncf %669 : vector<8x128xf32> to vector<8x128xbf16>
    %c0_263 = arith.constant 0 : index
    %c0_264 = arith.constant 0 : index
    %c0_265 = arith.constant 0 : index
    %724 = vector.load %arg4[%c0_263, %c0_264, %c0_265] : memref<2x128x384xbf16, #tpu.memory_space<vmem>>, vector<1x128x384xbf16>
    %725 = vector.shape_cast %724 : vector<1x128x384xbf16> to vector<128x384xbf16>
    %cst_266 = arith.constant dense<0.000000e+00> : vector<8x384xf32>
    %726 = tpu.matmul %723, %725, %cst_266 {dimension_numbers = #tpu.dot_dimension_numbers<[1], [0], [0], [1], [0, 0, 1, 1], [], []>} : vector<8x128xbf16>, vector<128x384xbf16>, vector<8x384xf32> -> vector<8x384xf32>
    %727 = vector.extract_strided_slice %722 {offsets = [0, 0], sizes = [8, 128], strides = [1, 1]} : vector<8x384xf32> to vector<8x128xf32>
    %728 = vector.extract_strided_slice %726 {offsets = [0, 0], sizes = [8, 128], strides = [1, 1]} : vector<8x384xf32> to vector<8x128xf32>
    %729 = arith.addf %727, %728 : vector<8x128xf32>
    %730 = arith.negf %729 : vector<8x128xf32>
    %731 = math.exp %730 : vector<8x128xf32>
    %cst_267 = arith.constant 1.000000e+00 : f32
    %732 = vector.broadcast %cst_267 : f32 to vector<8x128xf32>
    %733 = arith.addf %732, %731 : vector<8x128xf32>
    %734 = arith.divf %732, %733 : vector<8x128xf32>
    %735 = vector.extract_strided_slice %722 {offsets = [0, 128], sizes = [8, 128], strides = [1, 1]} : vector<8x384xf32> to vector<8x128xf32>
    %736 = vector.extract_strided_slice %726 {offsets = [0, 128], sizes = [8, 128], strides = [1, 1]} : vector<8x384xf32> to vector<8x128xf32>
    %737 = arith.addf %735, %736 : vector<8x128xf32>
    %738 = arith.negf %737 : vector<8x128xf32>
    %739 = math.exp %738 : vector<8x128xf32>
    %cst_268 = arith.constant 1.000000e+00 : f32
    %740 = vector.broadcast %cst_268 : f32 to vector<8x128xf32>
    %741 = arith.addf %740, %739 : vector<8x128xf32>
    %742 = arith.divf %740, %741 : vector<8x128xf32>
    %743 = vector.extract_strided_slice %722 {offsets = [0, 256], sizes = [8, 128], strides = [1, 1]} : vector<8x384xf32> to vector<8x128xf32>
    %744 = vector.extract_strided_slice %726 {offsets = [0, 256], sizes = [8, 128], strides = [1, 1]} : vector<8x384xf32> to vector<8x128xf32>
    %745 = arith.addf %744, %26 : vector<8x128xf32>
    %746 = arith.mulf %734, %745 : vector<8x128xf32>
    %747 = arith.addf %743, %746 : vector<8x128xf32>
    %748 = math.tanh %747 : vector<8x128xf32>
    %cst_269 = arith.constant 1.000000e+00 : f32
    %749 = vector.broadcast %cst_269 : f32 to vector<8x128xf32>
    %750 = arith.subf %749, %742 : vector<8x128xf32>
    %751 = arith.mulf %750, %748 : vector<8x128xf32>
    %752 = arith.mulf %742, %669 : vector<8x128xf32>
    %753 = arith.addf %751, %752 : vector<8x128xf32>
    %754 = arith.select %716, %753, %669 : vector<8x128xf32>
    %c1_i32_270 = arith.constant 1 : i32
    %755 = arith.subi %c8_i32_255, %c1_i32_270 : i32
    %c0_i32_271 = arith.constant 0 : i32
    %756 = arith.cmpi sge, %755, %c0_i32_271 : i32
    %c8_i32_272 = arith.constant 8 : i32
    %757 = arith.cmpi slt, %755, %c8_i32_272 : i32
    %758 = arith.andi %756, %757 : i1
    %759 = arith.truncf %669 : vector<8x128xf32> to vector<8x128xbf16>
    %c1_273 = arith.constant 1 : index
    %c0_274 = arith.constant 0 : index
    %c0_275 = arith.constant 0 : index
    %760 = vector.load %arg3[%c1_273, %c0_274, %c0_275] : memref<2x128x384xbf16, #tpu.memory_space<vmem>>, vector<1x128x384xbf16>
    %761 = vector.shape_cast %760 : vector<1x128x384xbf16> to vector<128x384xbf16>
    %cst_276 = arith.constant dense<0.000000e+00> : vector<8x384xf32>
    %762 = tpu.matmul %759, %761, %cst_276 {dimension_numbers = #tpu.dot_dimension_numbers<[1], [0], [0], [1], [0, 0, 1, 1], [], []>} : vector<8x128xbf16>, vector<128x384xbf16>, vector<8x384xf32> -> vector<8x384xf32>
    %763 = arith.addf %762, %22 : vector<8x384xf32>
    %764 = arith.truncf %710 : vector<8x128xf32> to vector<8x128xbf16>
    %c1_277 = arith.constant 1 : index
    %c0_278 = arith.constant 0 : index
    %c0_279 = arith.constant 0 : index
    %765 = vector.load %arg4[%c1_277, %c0_278, %c0_279] : memref<2x128x384xbf16, #tpu.memory_space<vmem>>, vector<1x128x384xbf16>
    %766 = vector.shape_cast %765 : vector<1x128x384xbf16> to vector<128x384xbf16>
    %cst_280 = arith.constant dense<0.000000e+00> : vector<8x384xf32>
    %767 = tpu.matmul %764, %766, %cst_280 {dimension_numbers = #tpu.dot_dimension_numbers<[1], [0], [0], [1], [0, 0, 1, 1], [], []>} : vector<8x128xbf16>, vector<128x384xbf16>, vector<8x384xf32> -> vector<8x384xf32>
    %768 = vector.extract_strided_slice %763 {offsets = [0, 0], sizes = [8, 128], strides = [1, 1]} : vector<8x384xf32> to vector<8x128xf32>
    %769 = vector.extract_strided_slice %767 {offsets = [0, 0], sizes = [8, 128], strides = [1, 1]} : vector<8x384xf32> to vector<8x128xf32>
    %770 = arith.addf %768, %769 : vector<8x128xf32>
    %771 = arith.negf %770 : vector<8x128xf32>
    %772 = math.exp %771 : vector<8x128xf32>
    %cst_281 = arith.constant 1.000000e+00 : f32
    %773 = vector.broadcast %cst_281 : f32 to vector<8x128xf32>
    %774 = arith.addf %773, %772 : vector<8x128xf32>
    %775 = arith.divf %773, %774 : vector<8x128xf32>
    %776 = vector.extract_strided_slice %763 {offsets = [0, 128], sizes = [8, 128], strides = [1, 1]} : vector<8x384xf32> to vector<8x128xf32>
    %777 = vector.extract_strided_slice %767 {offsets = [0, 128], sizes = [8, 128], strides = [1, 1]} : vector<8x384xf32> to vector<8x128xf32>
    %778 = arith.addf %776, %777 : vector<8x128xf32>
    %779 = arith.negf %778 : vector<8x128xf32>
    %780 = math.exp %779 : vector<8x128xf32>
    %cst_282 = arith.constant 1.000000e+00 : f32
    %781 = vector.broadcast %cst_282 : f32 to vector<8x128xf32>
    %782 = arith.addf %781, %780 : vector<8x128xf32>
    %783 = arith.divf %781, %782 : vector<8x128xf32>
    %784 = vector.extract_strided_slice %763 {offsets = [0, 256], sizes = [8, 128], strides = [1, 1]} : vector<8x384xf32> to vector<8x128xf32>
    %785 = vector.extract_strided_slice %767 {offsets = [0, 256], sizes = [8, 128], strides = [1, 1]} : vector<8x384xf32> to vector<8x128xf32>
    %786 = arith.addf %785, %30 : vector<8x128xf32>
    %787 = arith.mulf %775, %786 : vector<8x128xf32>
    %788 = arith.addf %784, %787 : vector<8x128xf32>
    %789 = math.tanh %788 : vector<8x128xf32>
    %cst_283 = arith.constant 1.000000e+00 : f32
    %790 = vector.broadcast %cst_283 : f32 to vector<8x128xf32>
    %791 = arith.subf %790, %783 : vector<8x128xf32>
    %792 = arith.mulf %791, %789 : vector<8x128xf32>
    %793 = arith.mulf %783, %710 : vector<8x128xf32>
    %794 = arith.addf %792, %793 : vector<8x128xf32>
    %795 = arith.select %758, %794, %710 : vector<8x128xf32>
    %796 = arith.extui %758 : i1 to i32
    %c0_i32_284 = arith.constant 0 : i32
    %797 = arith.cmpi ne, %796, %c0_i32_284 : i32
    scf.if %797 {
      %c8_i32_293 = arith.constant 8 : i32
      %806 = arith.muli %755, %c8_i32_293 : i32
      %807 = tpu.assume_multiple %806, 8 : i32
      %808 = arith.index_cast %807 : i32 to index
      %c0_294 = arith.constant 0 : index
      %809 = vector.load %arg11[%808, %c0_294] : memref<64x128xf32, #tpu.memory_space<vmem>>, vector<8x128xf32>
      tpu.vector_store %arg11[%808, %c0_294], %795 {strides = array<i32>} : memref<64x128xf32, #tpu.memory_space<vmem>>, vector<8x128xf32>,
    } else {
    }
    %c9_i32 = arith.constant 9 : i32
    %c32 = arith.constant 32 : index
    %c0_285 = arith.constant 0 : index
    %798 = vector.load %arg11[%c32, %c0_285] : memref<64x128xf32, #tpu.memory_space<vmem>>, vector<32x128xf32>
    %799 = arith.truncf %798 : vector<32x128xf32> to vector<32x128xbf16>
    %c0_286 = arith.constant 0 : index
    %c0_287 = arith.constant 0 : index
    %800 = vector.load %arg7[%c0_286, %c0_287] : memref<128x128xbf16, #tpu.memory_space<vmem>>, vector<128x128xbf16>
    %cst_288 = arith.constant dense<0.000000e+00> : vector<32x128xf32>
    %801 = tpu.matmul %799, %800, %cst_288 {dimension_numbers = #tpu.dot_dimension_numbers<[1], [0], [0], [1], [0, 0, 1, 1], [], []>} : vector<32x128xbf16>, vector<128x128xbf16>, vector<32x128xf32> -> vector<32x128xf32>
    %c0_289 = arith.constant 0 : index
    %c0_290 = arith.constant 0 : index
    %802 = vector.load %arg8[%c0_289, %c0_290] : memref<1x128xf32, #tpu.memory_space<vmem>>, vector<1x128xf32>
    %803 = vector.broadcast %802 : vector<1x128xf32> to vector<32x128xf32>
    %804 = arith.addf %801, %803 : vector<32x128xf32>
    %c0_291 = arith.constant 0 : index
    %c0_292 = arith.constant 0 : index
    %805 = vector.load %arg9[%c0_291, %c0_292] : memref<32x128xf32, #tpu.memory_space<vmem>>, vector<32x128xf32>
    tpu.vector_store %arg9[%c0_291, %c0_292], %804 {strides = array<i32>} : memref<32x128xf32, #tpu.memory_space<vmem>>, vector<32x128xf32>,
    return
  }
}

</mosaic_0001>

<llo_original>
// kernel: model_forward.1
$region0: #{model_forward.1}
  #allocation0 [shape = 'u32[]', space=smem, size = 0x4, offset = 0x4, fixed_abs, tag = 'smem constant byte address 0x4 - core index']
  #allocation1 [shape = 'u32[72,128]{1,0:T(1,128)}', space=vmem, size = 0x9000, scoped, tag = 'internal scratch']
  #allocation2 [shape = 'f32[64,384]{1,0:T(8,128)}', space=vmem, size = 0x18000, scoped, tag = 'scratch operand']
  #allocation3 [shape = 'f32[64,128]{1,0:T(8,128)}', space=vmem, size = 0x8000, scoped, tag = 'scratch operand']
  %s0 = inlined_call_operand.vmem [shape: bf16[64,16], index: 0, kind: input, shape index: {}]
  %s1 = inlined_call_operand.vmem [shape: f32[8,128], index: 1, kind: input, shape index: {}]
  %s2 = inlined_call_operand.vmem [shape: bf16[16,128], index: 2, kind: input, shape index: {}]
  %s3 = inlined_call_operand.vmem [shape: bf16[2,128,384], index: 3, kind: input, shape index: {}]
  %s4 = inlined_call_operand.vmem [shape: bf16[2,128,384], index: 4, kind: input, shape index: {}]
  %s5 = inlined_call_operand.vmem [shape: f32[2,1,384], index: 5, kind: input, shape index: {}]
  %s6 = inlined_call_operand.vmem [shape: f32[2,1,128], index: 6, kind: input, shape index: {}]
  %s7 = inlined_call_operand.vmem [shape: bf16[128,128], index: 7, kind: input, shape index: {}]
  %s8 = inlined_call_operand.vmem [shape: f32[1,128], index: 8, kind: input, shape index: {}]
  %s9 = inlined_call_operand.vmem [shape: f32[32,128], index: 9, kind: output, shape index: {}]
  %s10 = sld [smem:[#allocation0]]
  $region46: #{model_forward.1} parent=0
    _
  %s12 = ssub.s32 1, %s10
  %s13 = scalar_select 0, %s12, %s10
  // Predicated region
  $region2: #{model_forward.1} parent=0 // pred_check
    _
  $region3: #{model_forward.1} parent=0 // pred_check_branch
    %15 = sbr.rel (0) target = $region5
  $region4: #{model_forward.1} parent=0 // pred_region
    _
  $region5: #{model_forward.1} parent=0 // pred_fallthru
    _
  // Predicated region
  $region6: #{model_forward.1} parent=0 // pred_check
    _
  $region7: #{model_forward.1} parent=0 // pred_check_branch
    %17 = sbr.rel (0) target = $region9
  $region8: #{model_forward.1} parent=0 // pred_region
    _
  $region9: #{model_forward.1} parent=0 // pred_fallthru
    _
  // Predicated region
  $region10: #{model_forward.1} parent=0 // pred_check
    _
  $region11: #{model_forward.1} parent=0 // pred_check_branch
    %19 = sbr.rel (0) target = $region13
  $region12: #{model_forward.1} parent=0 // pred_region
    _
  $region13: #{model_forward.1} parent=0 // pred_fallthru
    _
  // Predicated region
  $region14: #{model_forward.1} parent=0 // pred_check
    _
  $region15: #{model_forward.1} parent=0 // pred_check_branch
    %21 = sbr.rel (0) target = $region17
  $region16: #{model_forward.1} parent=0 // pred_region
    _
  $region17: #{model_forward.1} parent=0 // pred_fallthru
    _
  // Predicated region
  $region18: #{model_forward.1} parent=0 // pred_check
    _
  $region19: #{model_forward.1} parent=0 // pred_check_branch
    %23 = sbr.rel (0) target = $region21
  $region20: #{model_forward.1} parent=0 // pred_region
    _
  $region21: #{model_forward.1} parent=0 // pred_fallthru
    _
  // Predicated region
  $region22: #{model_forward.1} parent=0 // pred_check
    _
  $region23: #{model_forward.1} parent=0 // pred_check_branch
    %25 = sbr.rel (0) target = $region25
  $region24: #{model_forward.1} parent=0 // pred_region
    _
  $region25: #{model_forward.1} parent=0 // pred_fallthru
    _
  // Predicated region
  $region26: #{model_forward.1} parent=0 // pred_check
    _
  $region27: #{model_forward.1} parent=0 // pred_check_branch
    %27 = sbr.rel (0) target = $region29
  $region28: #{model_forward.1} parent=0 // pred_region
    _
  $region29: #{model_forward.1} parent=0 // pred_fallthru
    _
  // Predicated region
  $region30: #{model_forward.1} parent=0 // pred_check
    _
  $region31: #{model_forward.1} parent=0 // pred_check_branch
    %29 = sbr.rel (0) target = $region33
  $region32: #{model_forward.1} parent=0 // pred_region
    _
  $region33: #{model_forward.1} parent=0 // pred_fallthru
    _
  // Predicated region
  $region34: #{model_forward.1} parent=0 // pred_check
    _
  $region35: #{model_forward.1} parent=0 // pred_check_branch
    %31 = sbr.rel (0) target = $region37
  $region36: #{model_forward.1} parent=0 // pred_region
    _
  $region37: #{model_forward.1} parent=0 // pred_fallthru
    _
  %v33 = vld [vmem:[%s0] sm:$0xf]
  %v34 = vld [vmem:[%s0 + $0x4] sm:$0xf]
  %v35 = vld [vmem:[%s0 + $0x8] sm:$0xf]
  %v36 = vld [vmem:[%s0 + $0xc] sm:$0xf]
  %v37 = vld [vmem:[%s0 + $0x10] sm:$0xf]
  %v38 = vld [vmem:[%s0 + $0x14] sm:$0xf]
  %v39 = vld [vmem:[%s0 + $0x18] sm:$0xf]
  %v40 = vld [vmem:[%s0 + $0x1c] sm:$0xf]
  %v41 = vld [vmem:[%s2] sm:$0xf]
  %v42 = vld [vmem:[%s2 + $0x4] sm:$0xf]
  %v51 = vunpack.c.l.b16 %v33
  %v52 = vunpack.c.l.b16 %v34
  %v53 = vunpack.c.l.b16 %v35
  %v54 = vunpack.c.l.b16 %v36
  %v55 = vunpack.c.l.b16 %v37
  %v56 = vunpack.c.l.b16 %v38
  %v57 = vunpack.c.l.b16 %v39
  %v58 = vunpack.c.l.b16 %v40
  %v59 = vpack.c.b16 %v52, %v51
  %v60 = vpack.c.b16 %v54, %v53
  %v61 = vpack.c.b16 %v56, %v55
  %v62 = vpack.c.b16 %v58, %v57
  %v65 = vunpack.c.l.b16 %v41
  %v66 = vunpack.c.l.b16 %v42
  %v67 = vpack.c.b16 %v66, %v65
  %vm69 = vcmask 130048
  %v71 = vsel %vm69, %v59, 0
  %v74 = vsel %vm69, %v60, 0
  %v77 = vsel %vm69, %v61, 0
  %v80 = vsel %vm69, %v62, 0
  %82 = vmatpush.bf16.msra.mxu0 0
  %83 = vmatpush.bf16.msra.mxu0 0
  %84 = vmatpush.bf16.msra.mxu0 0
  %85 = vmatpush.bf16.msra.mxu0 0
  %86 = vmatpush.bf16.msra.mxu0 0
  %87 = vmatpush.bf16.msra.mxu0 0
  %88 = vmatpush.bf16.msra.mxu0 0
  %89 = vmatpush.bf16.msra.mxu0 %v67
  %90 = vmatmul.bf16.gmra.mxu0 %v71
  %v91 = vpop.f32.mrf.mxu0
  %v92 = vadd.f32 0.0, %v91
  %v93 = vpop.f32.mrf.mxu0
  %v94 = vadd.f32 0.0, %v93
  %95 = vmatmul.bf16.gmra.mxu0 %v74
  %v96 = vpop.f32.mrf.mxu0
  %v97 = vadd.f32 0.0, %v96
  %v98 = vpop.f32.mrf.mxu0
  %v99 = vadd.f32 0.0, %v98
  %100 = vmatmul.bf16.gmra.mxu0 %v77
  %v101 = vpop.f32.mrf.mxu0
  %v102 = vadd.f32 0.0, %v101
  %v103 = vpop.f32.mrf.mxu0
  %v104 = vadd.f32 0.0, %v103
  %105 = vmatmul.bf16.gmra.mxu0 %v80
  %v106 = vpop.f32.mrf.mxu0
  %v107 = vadd.f32 0.0, %v106
  %v108 = vpop.f32.mrf.mxu0
  %v109 = vadd.f32 0.0, %v108
  %110 = vdwg.mxu0
  %v111 = vld [vmem:[%s1] sm:$0xff]
  %v113 = vrot.slane %v111, 1
  %v114 = vrot.slane %v111, 2
  %v115 = vrot.slane %v111, 3
  %v116 = vrot.slane %v111, 4
  %v117 = vrot.slane %v111, 5
  %v118 = vrot.slane %v111, 6
  %v119 = vrot.slane %v111, 7
  %v120 = vperm.slane %v111, 0
  %v121 = vperm.slane %v113, 0
  %v122 = vperm.slane %v114, 0
  %v123 = vperm.slane %v115, 0
  %v124 = vperm.slane %v116, 0
  %v125 = vperm.slane %v117, 0
  %v126 = vperm.slane %v118, 0
  %v127 = vperm.slane %v119, 0
  %v136 = vadd.f32 %v92, %v120
  %v137 = vadd.f32 %v94, %v121
  %v138 = vadd.f32 %v97, %v122
  %v139 = vadd.f32 %v99, %v123
  %v140 = vadd.f32 %v102, %v124
  %v141 = vadd.f32 %v104, %v125
  %v142 = vadd.f32 %v107, %v126
  %v143 = vadd.f32 %v109, %v127
  %v144 = vpack.c.bf16 %v137, %v136
  %v145 = vpack.c.bf16 %v139, %v138
  %v146 = vpack.c.bf16 %v141, %v140
  %v147 = vpack.c.bf16 %v143, %v142
  %v148 = vld [vmem:[%s3] sm:$0xff]
  %v149 = vld [vmem:[%s3 + $0x8] sm:$0xf]
  %v150 = vld [vmem:[%s3 + $0xc] sm:$0xff]
  %v151 = vld [vmem:[%s3 + $0x14] sm:$0xf]
  %v152 = vld [vmem:[%s3 + $0x18] sm:$0xff]
  %v153 = vld [vmem:[%s3 + $0x20] sm:$0xf]
  %v154 = vld [vmem:[%s3 + $0x24] sm:$0xff]
  %v155 = vld [vmem:[%s3 + $0x2c] sm:$0xf]
  %v156 = vld [vmem:[%s3 + $0x30] sm:$0xff]
  %v157 = vld [vmem:[%s3 + $0x38] sm:$0xf]
  %v158 = vld [vmem:[%s3 + $0x3c] sm:$0xff]
  %v159 = vld [vmem:[%s3 + $0x44] sm:$0xf]
  %v160 = vld [vmem:[%s3 + $0x48] sm:$0xff]
  %v161 = vld [vmem:[%s3 + $0x50] sm:$0xf]
  %v162 = vld [vmem:[%s3 + $0x54] sm:$0xff]
  %v163 = vld [vmem:[%s3 + $0x5c] sm:$0xf]
  %v164 = vld [vmem:[%s3 + $0x60] sm:$0xff]
  %v165 = vld [vmem:[%s3 + $0x68] sm:$0xf]
  %v166 = vld [vmem:[%s3 + $0x6c] sm:$0xff]
  %v167 = vld [vmem:[%s3 + $0x74] sm:$0xf]
  %v168 = vld [vmem:[%s3 + $0x78] sm:$0xff]
  %v169 = vld [vmem:[%s3 + $0x80] sm:$0xf]
  %v170 = vld [vmem:[%s3 + $0x84] sm:$0xff]
  %v171 = vld [vmem:[%s3 + $0x8c] sm:$0xf]
  %v172 = vld [vmem:[%s3 + $0x90] sm:$0xff]
  %v173 = vld [vmem:[%s3 + $0x98] sm:$0xf]
  %v174 = vld [vmem:[%s3 + $0x9c] sm:$0xff]
  %v175 = vld [vmem:[%s3 + $0xa4] sm:$0xf]
  %v176 = vld [vmem:[%s3 + $0xa8] sm:$0xff]
  %v177 = vld [vmem:[%s3 + $0xb0] sm:$0xf]
  %v178 = vld [vmem:[%s3 + $0xb4] sm:$0xff]
  %v179 = vld [vmem:[%s3 + $0xbc] sm:$0xf]
  %v180 = vld [vmem:[%s5] sm:$0x7]
  %v182 = vperm.slane %v180, 0
  %v183 = vperm.slane %v180, 1
  %v184 = vperm.slane %v180, 2
  %v220 = vunpack.c.l.b16 %v148
  %v221 = vunpack.c.h.b16 %v148
  %v222 = vunpack.c.l.b16 %v149
  %v223 = vunpack.c.l.b16 %v150
  %v224 = vunpack.c.h.b16 %v150
  %v225 = vunpack.c.l.b16 %v151
  %v226 = vunpack.c.l.b16 %v152
  %v227 = vunpack.c.h.b16 %v152
  %v228 = vunpack.c.l.b16 %v153
  %v229 = vunpack.c.l.b16 %v154
  %v230 = vunpack.c.h.b16 %v154
  %v231 = vunpack.c.l.b16 %v155
  %v232 = vunpack.c.l.b16 %v156
  %v233 = vunpack.c.h.b16 %v156
  %v234 = vunpack.c.l.b16 %v157
  %v235 = vunpack.c.l.b16 %v158
  %v236 = vunpack.c.h.b16 %v158
  %v237 = vunpack.c.l.b16 %v159
  %v238 = vunpack.c.l.b16 %v160
  %v239 = vunpack.c.h.b16 %v160
  %v240 = vunpack.c.l.b16 %v161
  %v241 = vunpack.c.l.b16 %v162
  %v242 = vunpack.c.h.b16 %v162
  %v243 = vunpack.c.l.b16 %v163
  %v244 = vunpack.c.l.b16 %v164
  %v245 = vunpack.c.h.b16 %v164
  %v246 = vunpack.c.l.b16 %v165
  %v247 = vunpack.c.l.b16 %v166
  %v248 = vunpack.c.h.b16 %v166
  %v249 = vunpack.c.l.b16 %v167
  %v250 = vunpack.c.l.b16 %v168
  %v251 = vunpack.c.h.b16 %v168
  %v252 = vunpack.c.l.b16 %v169
  %v253 = vunpack.c.l.b16 %v170
  %v254 = vunpack.c.h.b16 %v170
  %v255 = vunpack.c.l.b16 %v171
  %v256 = vunpack.c.l.b16 %v172
  %v257 = vunpack.c.h.b16 %v172
  %v258 = vunpack.c.l.b16 %v173
  %v259 = vunpack.c.l.b16 %v174
  %v260 = vunpack.c.h.b16 %v174
  %v261 = vunpack.c.l.b16 %v175
  %v262 = vunpack.c.l.b16 %v176
  %v263 = vunpack.c.h.b16 %v176
  %v264 = vunpack.c.l.b16 %v177
  %v265 = vunpack.c.l.b16 %v178
  %v266 = vunpack.c.h.b16 %v178
  %v267 = vunpack.c.l.b16 %v179
  %v268 = vpack.c.b16 %v223, %v220
  %v269 = vpack.c.b16 %v224, %v221
  %v270 = vpack.c.b16 %v225, %v222
  %v271 = vpack.c.b16 %v229, %v226
  %v272 = vpack.c.b16 %v230, %v227
  %v273 = vpack.c.b16 %v231, %v228
  %v274 = vpack.c.b16 %v235, %v232
  %v275 = vpack.c.b16 %v236, %v233
  %v276 = vpack.c.b16 %v237, %v234
  %v277 = vpack.c.b16 %v241, %v238
  %v278 = vpack.c.b16 %v242, %v239
  %v279 = vpack.c.b16 %v243, %v240
  %v280 = vpack.c.b16 %v247, %v244
  %v281 = vpack.c.b16 %v248, %v245
  %v282 = vpack.c.b16 %v249, %v246
  %v283 = vpack.c.b16 %v253, %v250
  %v284 = vpack.c.b16 %v254, %v251
  %v285 = vpack.c.b16 %v255, %v252
  %v286 = vpack.c.b16 %v259, %v256
  %v287 = vpack.c.b16 %v260, %v257
  %v288 = vpack.c.b16 %v261, %v258
  %v289 = vpack.c.b16 %v265, %v262
  %v290 = vpack.c.b16 %v266, %v263
  %v291 = vpack.c.b16 %v267, %v264
  %316 = vmatpush.bf16.msra.mxu0 %v289
  %317 = vmatpush.bf16.msra.mxu0 %v286
  %318 = vmatpush.bf16.msra.mxu0 %v283
  %319 = vmatpush.bf16.msra.mxu0 %v280
  %320 = vmatpush.bf16.msra.mxu0 %v277
  %321 = vmatpush.bf16.msra.mxu0 %v274
  %322 = vmatpush.bf16.msra.mxu0 %v271
  %323 = vmatpush.bf16.msra.mxu0 %v268
  %324 = vmatmul.bf16.gmra.mxu0 %v144
  %v325 = vpop.f32.mrf.mxu0
  %v326 = vadd.f32 %v182, %v325
  %v327 = vpop.f32.mrf.mxu0
  %v328 = vadd.f32 %v182, %v327
  %329 = vmatmul.bf16.gmra.mxu0 %v145
  %v330 = vpop.f32.mrf.mxu0
  %v331 = vadd.f32 %v182, %v330
  %v332 = vpop.f32.mrf.mxu0
  %v333 = vadd.f32 %v182, %v332
  %334 = vmatmul.bf16.gmra.mxu0 %v146
  %v335 = vpop.f32.mrf.mxu0
  %v336 = vadd.f32 %v182, %v335
  %v337 = vpop.f32.mrf.mxu0
  %v338 = vadd.f32 %v182, %v337
  %339 = vmatmul.bf16.gmra.mxu0 %v147
  %v340 = vpop.f32.mrf.mxu0
  %v341 = vadd.f32 %v182, %v340
  %v342 = vpop.f32.mrf.mxu0
  %v343 = vadd.f32 %v182, %v342
  %344 = vdwg.mxu0
  %345 = vmatpush.bf16.msra.mxu0 %v290
  %346 = vmatpush.bf16.msra.mxu0 %v287
  %347 = vmatpush.bf16.msra.mxu0 %v284
  %348 = vmatpush.bf16.msra.mxu0 %v281
  %349 = vmatpush.bf16.msra.mxu0 %v278
  %350 = vmatpush.bf16.msra.mxu0 %v275
  %351 = vmatpush.bf16.msra.mxu0 %v272
  %352 = vmatpush.bf16.msra.mxu0 %v269
  %353 = vmatmul.bf16.gmra.mxu0 %v144
  %v354 = vpop.f32.mrf.mxu0
  %v355 = vadd.f32 %v183, %v354
  %v356 = vpop.f32.mrf.mxu0
  %v357 = vadd.f32 %v183, %v356
  %358 = vmatmul.bf16.gmra.mxu0 %v145
  %v359 = vpop.f32.mrf.mxu0
  %v360 = vadd.f32 %v183, %v359
  %v361 = vpop.f32.mrf.mxu0
  %v362 = vadd.f32 %v183, %v361
  %363 = vmatmul.bf16.gmra.mxu0 %v146
  %v364 = vpop.f32.mrf.mxu0
  %v365 = vadd.f32 %v183, %v364
  %v366 = vpop.f32.mrf.mxu0
  %v367 = vadd.f32 %v183, %v366
  %368 = vmatmul.bf16.gmra.mxu0 %v147
  %v369 = vpop.f32.mrf.mxu0
  %v370 = vadd.f32 %v183, %v369
  %v371 = vpop.f32.mrf.mxu0
  %v372 = vadd.f32 %v183, %v371
  %373 = vdwg.mxu0
  %374 = vmatpush.bf16.msra.mxu0 %v291
  %375 = vmatpush.bf16.msra.mxu0 %v288
  %376 = vmatpush.bf16.msra.mxu0 %v285
  %377 = vmatpush.bf16.msra.mxu0 %v282
  %378 = vmatpush.bf16.msra.mxu0 %v279
  %379 = vmatpush.bf16.msra.mxu0 %v276
  %380 = vmatpush.bf16.msra.mxu0 %v273
  %381 = vmatpush.bf16.msra.mxu0 %v270
  %382 = vmatmul.bf16.gmra.mxu0 %v144
  %v383 = vpop.f32.mrf.mxu0
  %v384 = vadd.f32 %v184, %v383
  %v385 = vpop.f32.mrf.mxu0
  %v386 = vadd.f32 %v184, %v385
  %387 = vmatmul.bf16.gmra.mxu0 %v145
  %v388 = vpop.f32.mrf.mxu0
  %v389 = vadd.f32 %v184, %v388
  %v390 = vpop.f32.mrf.mxu0
  %v391 = vadd.f32 %v184, %v390
  %392 = vmatmul.bf16.gmra.mxu0 %v146
  %v393 = vpop.f32.mrf.mxu0
  %v394 = vadd.f32 %v184, %v393
  %v395 = vpop.f32.mrf.mxu0
  %v396 = vadd.f32 %v184, %v395
  %397 = vmatmul.bf16.gmra.mxu0 %v147
  %v398 = vpop.f32.mrf.mxu0
  %v399 = vadd.f32 %v184, %v398
  %v400 = vpop.f32.mrf.mxu0
  %v401 = vadd.f32 %v184, %v400
  %402 = vdwg.mxu0
  %403 = vst [vmem:[#allocation2] sm:$0xff] %v326
  %404 = vst [vmem:[#allocation2 + $0x8] sm:$0xff] %v355
  %405 = vst [vmem:[#allocation2 + $0x10] sm:$0xff] %v384
  %406 = vst [vmem:[#allocation2 + $0x18] sm:$0xff] %v328
  %407 = vst [vmem:[#allocation2 + $0x20] sm:$0xff] %v357
  %408 = vst [vmem:[#allocation2 + $0x28] sm:$0xff] %v386
  %409 = vst [vmem:[#allocation2 + $0x30] sm:$0xff] %v331
  %410 = vst [vmem:[#allocation2 + $0x38] sm:$0xff] %v360
  %411 = vst [vmem:[#allocation2 + $0x40] sm:$0xff] %v389
  %412 = vst [vmem:[#allocation2 + $0x48] sm:$0xff] %v333
  %413 = vst [vmem:[#allocation2 + $0x50] sm:$0xff] %v362
  %414 = vst [vmem:[#allocation2 + $0x58] sm:$0xff] %v391
  %415 = vst [vmem:[#allocation2 + $0x60] sm:$0xff] %v336
  %416 = vst [vmem:[#allocation2 + $0x68] sm:$0xff] %v365
  %417 = vst [vmem:[#allocation2 + $0x70] sm:$0xff] %v394
  %418 = vst [vmem:[#allocation2 + $0x78] sm:$0xff] %v338
  %419 = vst [vmem:[#allocation2 + $0x80] sm:$0xff] %v367
  %420 = vst [vmem:[#allocation2 + $0x88] sm:$0xff] %v396
  %421 = vst [vmem:[#allocation2 + $0x90] sm:$0xff] %v341
  %422 = vst [vmem:[#allocation2 + $0x98] sm:$0xff] %v370
  %423 = vst [vmem:[#allocation2 + $0xa0] sm:$0xff] %v399
  %424 = vst [vmem:[#allocation2 + $0xa8] sm:$0xff] %v343
  %425 = vst [vmem:[#allocation2 + $0xb0] sm:$0xff] %v372
  %426 = vst [vmem:[#allocation2 + $0xb8] sm:$0xff] %v401
  %s427 = scalar_lea.vmem %s5, 3
  %v428 = vld [vmem:[%s427] sm:$0x7]
  %v430 = vperm.slane %v428, 0
  %v431 = vperm.slane %v428, 1
  %v432 = vperm.slane %v428, 2
  %v436 = vld [vmem:[%s6] sm:$0x1]
  %v438 = vperm.slane %v436, 0
  %s440 = scalar_lea.vmem %s6, 1
  %v441 = vld [vmem:[%s440] sm:$0x1]
  %v443 = vperm.slane %v441, 0
  %s445 = smul.u32 0, 3
  %s446 = smul.addr %s445, 8
  %s447 = scalar_lea.vmem [#allocation2], %s446
  %v448 = vld [vmem:[%s447] sm:$0xff]
  %v449 = vld [vmem:[%s447 + $0x8] sm:$0xff]
  %v450 = vld [vmem:[%s447 + $0x10] sm:$0xff]
  %v451 = vld [vmem:[%s4] sm:$0xff]
  %v452 = vld [vmem:[%s4 + $0x8] sm:$0xf]
  %v453 = vld [vmem:[%s4 + $0xc] sm:$0xff]
  %v454 = vld [vmem:[%s4 + $0x14] sm:$0xf]
  %v455 = vld [vmem:[%s4 + $0x18] sm:$0xff]
  %v456 = vld [vmem:[%s4 + $0x20] sm:$0xf]
  %v457 = vld [vmem:[%s4 + $0x24] sm:$0xff]
  %v458 = vld [vmem:[%s4 + $0x2c] sm:$0xf]
  %v459 = vld [vmem:[%s4 + $0x30] sm:$0xff]
  %v460 = vld [vmem:[%s4 + $0x38] sm:$0xf]
  %v461 = vld [vmem:[%s4 + $0x3c] sm:$0xff]
  %v462 = vld [vmem:[%s4 + $0x44] sm:$0xf]
  %v463 = vld [vmem:[%s4 + $0x48] sm:$0xff]
  %v464 = vld [vmem:[%s4 + $0x50] sm:$0xf]
  %v465 = vld [vmem:[%s4 + $0x54] sm:$0xff]
  %v466 = vld [vmem:[%s4 + $0x5c] sm:$0xf]
  %v467 = vld [vmem:[%s4 + $0x60] sm:$0xff]
  %v468 = vld [vmem:[%s4 + $0x68] sm:$0xf]
  %v469 = vld [vmem:[%s4 + $0x6c] sm:$0xff]
  %v470 = vld [vmem:[%s4 + $0x74] sm:$0xf]
  %v471 = vld [vmem:[%s4 + $0x78] sm:$0xff]
  %v472 = vld [vmem:[%s4 + $0x80] sm:$0xf]
  %v473 = vld [vmem:[%s4 + $0x84] sm:$0xff]
  %v474 = vld [vmem:[%s4 + $0x8c] sm:$0xf]
  %v475 = vld [vmem:[%s4 + $0x90] sm:$0xff]
  %v476 = vld [vmem:[%s4 + $0x98] sm:$0xf]
  %v477 = vld [vmem:[%s4 + $0x9c] sm:$0xff]
  %v478 = vld [vmem:[%s4 + $0xa4] sm:$0xf]
  %v479 = vld [vmem:[%s4 + $0xa8] sm:$0xff]
  %v480 = vld [vmem:[%s4 + $0xb0] sm:$0xf]
  %v481 = vld [vmem:[%s4 + $0xb4] sm:$0xff]
  %v482 = vld [vmem:[%s4 + $0xbc] sm:$0xf]
  %v515 = vunpack.c.l.b16 %v451
  %v516 = vunpack.c.h.b16 %v451
  %v517 = vunpack.c.l.b16 %v452
  %v518 = vunpack.c.l.b16 %v453
  %v519 = vunpack.c.h.b16 %v453
  %v520 = vunpack.c.l.b16 %v454
  %v521 = vunpack.c.l.b16 %v455
  %v522 = vunpack.c.h.b16 %v455
  %v523 = vunpack.c.l.b16 %v456
  %v524 = vunpack.c.l.b16 %v457
  %v525 = vunpack.c.h.b16 %v457
  %v526 = vunpack.c.l.b16 %v458
  %v527 = vunpack.c.l.b16 %v459
  %v528 = vunpack.c.h.b16 %v459
  %v529 = vunpack.c.l.b16 %v460
  %v530 = vunpack.c.l.b16 %v461
  %v531 = vunpack.c.h.b16 %v461
  %v532 = vunpack.c.l.b16 %v462
  %v533 = vunpack.c.l.b16 %v463
  %v534 = vunpack.c.h.b16 %v463
  %v535 = vunpack.c.l.b16 %v464
  %v536 = vunpack.c.l.b16 %v465
  %v537 = vunpack.c.h.b16 %v465
  %v538 = vunpack.c.l.b16 %v466
  %v539 = vunpack.c.l.b16 %v467
  %v540 = vunpack.c.h.b16 %v467
  %v541 = vunpack.c.l.b16 %v468
  %v542 = vunpack.c.l.b16 %v469
  %v543 = vunpack.c.h.b16 %v469
  %v544 = vunpack.c.l.b16 %v470
  %v545 = vunpack.c.l.b16 %v471
  %v546 = vunpack.c.h.b16 %v471
  %v547 = vunpack.c.l.b16 %v472
  %v548 = vunpack.c.l.b16 %v473
  %v549 = vunpack.c.h.b16 %v473
  %v550 = vunpack.c.l.b16 %v474
  %v551 = vunpack.c.l.b16 %v475
  %v552 = vunpack.c.h.b16 %v475
  %v553 = vunpack.c.l.b16 %v476
  %v554 = vunpack.c.l.b16 %v477
  %v555 = vunpack.c.h.b16 %v477
  %v556 = vunpack.c.l.b16 %v478
  %v557 = vunpack.c.l.b16 %v479
  %v558 = vunpack.c.h.b16 %v479
  %v559 = vunpack.c.l.b16 %v480
  %v560 = vunpack.c.l.b16 %v481
  %v561 = vunpack.c.h.b16 %v481
  %v562 = vunpack.c.l.b16 %v482
  %v563 = vpack.c.b16 %v518, %v515
  %v564 = vpack.c.b16 %v519, %v516
  %v565 = vpack.c.b16 %v520, %v517
  %v566 = vpack.c.b16 %v524, %v521
  %v567 = vpack.c.b16 %v525, %v522
  %v568 = vpack.c.b16 %v526, %v523
  %v569 = vpack.c.b16 %v530, %v527
  %v570 = vpack.c.b16 %v531, %v528
  %v571 = vpack.c.b16 %v532, %v529
  %v572 = vpack.c.b16 %v536, %v533
  %v573 = vpack.c.b16 %v537, %v534
  %v574 = vpack.c.b16 %v538, %v535
  %v575 = vpack.c.b16 %v542, %v539
  %v576 = vpack.c.b16 %v543, %v540
  %v577 = vpack.c.b16 %v544, %v541
  %v578 = vpack.c.b16 %v548, %v545
  %v579 = vpack.c.b16 %v549, %v546
  %v580 = vpack.c.b16 %v550, %v547
  %v581 = vpack.c.b16 %v554, %v551
  %v582 = vpack.c.b16 %v555, %v552
  %v583 = vpack.c.b16 %v556, %v553
  %v584 = vpack.c.b16 %v560, %v557
  %v585 = vpack.c.b16 %v561, %v558
  %v586 = vpack.c.b16 %v562, %v559
  %611 = vmatpush.bf16.msra.mxu0 %v584
  %612 = vmatpush.bf16.msra.mxu0 %v581
  %613 = vmatpush.bf16.msra.mxu0 %v578
  %614 = vmatpush.bf16.msra.mxu0 %v575
  %615 = vmatpush.bf16.msra.mxu0 %v572
  %616 = vmatpush.bf16.msra.mxu0 %v569
  %617 = vmatpush.bf16.msra.mxu0 %v566
  %618 = vmatpush.bf16.msra.mxu0 %v563
  %619 = vmatmul.bf16.gmra.mxu0 0
  %v620 = vpop.f32.mrf.mxu0
  %v621 = vadd.f32 0.0, %v620
  %v622 = vpop.f32.mrf.mxu0
  %623 = vdwg.mxu0
  %624 = vmatpush.bf16.msra.mxu0 %v585
  %625 = vmatpush.bf16.msra.mxu0 %v582
  %626 = vmatpush.bf16.msra.mxu0 %v579
  %627 = vmatpush.bf16.msra.mxu0 %v576
  %628 = vmatpush.bf16.msra.mxu0 %v573
  %629 = vmatpush.bf16.msra.mxu0 %v570
  %630 = vmatpush.bf16.msra.mxu0 %v567
  %631 = vmatpush.bf16.msra.mxu0 %v564
  %632 = vmatmul.bf16.gmra.mxu0 0
  %v633 = vpop.f32.mrf.mxu0
  %v634 = vadd.f32 0.0, %v633
  %v635 = vpop.f32.mrf.mxu0
  %636 = vdwg.mxu0
  %637 = vmatpush.bf16.msra.mxu0 %v586
  %638 = vmatpush.bf16.msra.mxu0 %v583
  %639 = vmatpush.bf16.msra.mxu0 %v580
  %640 = vmatpush.bf16.msra.mxu0 %v577
  %641 = vmatpush.bf16.msra.mxu0 %v574
  %642 = vmatpush.bf16.msra.mxu0 %v571
  %643 = vmatpush.bf16.msra.mxu0 %v568
  %644 = vmatpush.bf16.msra.mxu0 %v565
  %645 = vmatmul.bf16.gmra.mxu0 0
  %v646 = vpop.f32.mrf.mxu0
  %v647 = vadd.f32 0.0, %v646
  %v648 = vpop.f32.mrf.mxu0
  %649 = vdwg.mxu0
  %v650 = vadd.f32 %v448, %v621
  %v651 = vxor.u32 %v650, 2147483648
  %v652 = vmul.f32 %v651, 1.442695
  %v653 = vpow.pop %v652
  %v654 = vadd.f32 %v653, 1.0
  %v655 = vrcp.pop %v654
  %v656 = vmul.f32 %v654, %v655
  %v657 = vsub.f32 1.0, %v656
  %v658 = vmul.f32 %v655, %v657
  %v659 = vadd.f32 %v655, %v658
  %vm660 = vweird.f32 %v654
  %vm661 = vweird.f32 %v655
  %vm662 = vmor %vm660, %vm661
  %v663 = vsel %vm662, %v655, %v659
  %v664 = vand.u32 2147483647, %v654
  %vm665 = vcmp.eq.f32.partialorder %v664, 8.507059e+37
  %v666 = vand.u32 %v654, 2147483648
  %v667 = vor.u32 1.1754944e-38, %v666
  %v668 = vsel %vm665, %v667, %v663
  %v669 = vmul.f32 1.0, %v668
  %v670 = vadd.f32 %v449, %v634
  %v671 = vxor.u32 %v670, 2147483648
  %v672 = vmul.f32 %v671, 1.442695
  %v673 = vpow.pop %v672
  %v674 = vadd.f32 %v673, 1.0
  %v675 = vrcp.pop %v674
  %v676 = vmul.f32 %v674, %v675
  %v677 = vsub.f32 1.0, %v676
  %v678 = vmul.f32 %v675, %v677
  %v679 = vadd.f32 %v675, %v678
  %vm680 = vweird.f32 %v674
  %vm681 = vweird.f32 %v675
  %vm682 = vmor %vm680, %vm681
  %v683 = vsel %vm682, %v675, %v679
  %v684 = vand.u32 2147483647, %v674
  %vm685 = vcmp.eq.f32.partialorder %v684, 8.507059e+37
  %v686 = vand.u32 %v674, 2147483648
  %v687 = vor.u32 1.1754944e-38, %v686
  %v688 = vsel %vm685, %v687, %v683
  %v689 = vmul.f32 1.0, %v688
  %v690 = vadd.f32 %v647, %v438
  %v691 = vmul.f32 %v669, %v690
  %v692 = vadd.f32 %v450, %v691
  %v693 = vtanh.pop %v692
  %v694 = vsub.f32 1.0, %v689
  %v695 = vmul.f32 %v694, %v693
  %v696 = vmul.f32 %v689, 0.0
  %v697 = vadd.f32 %v695, %v696
  %s698 = smul.u32 1, 3
  %s699 = smul.addr %s698, 8
  %s700 = scalar_lea.vmem [#allocation2], %s699
  %v701 = vld [vmem:[%s700] sm:$0xff]
  %v702 = vld [vmem:[%s700 + $0x8] sm:$0xff]
  %v703 = vld [vmem:[%s700 + $0x10] sm:$0xff]
  %v704 = vpack.c.bf16 %v697, %v697
  %705 = vmatpush.bf16.msra.mxu0 %v584
  %706 = vmatpush.bf16.msra.mxu0 %v581
  %707 = vmatpush.bf16.msra.mxu0 %v578
  %708 = vmatpush.bf16.msra.mxu0 %v575
  %709 = vmatpush.bf16.msra.mxu0 %v572
  %710 = vmatpush.bf16.msra.mxu0 %v569
  %711 = vmatpush.bf16.msra.mxu0 %v566
  %712 = vmatpush.bf16.msra.mxu0 %v563
  %713 = vmatmul.bf16.gmra.mxu0 %v704
  %v714 = vpop.f32.mrf.mxu0
  %v715 = vadd.f32 0.0, %v714
  %v716 = vpop.f32.mrf.mxu0
  %717 = vdwg.mxu0
  %718 = vmatpush.bf16.msra.mxu0 %v585
  %719 = vmatpush.bf16.msra.mxu0 %v582
  %720 = vmatpush.bf16.msra.mxu0 %v579
  %721 = vmatpush.bf16.msra.mxu0 %v576
  %722 = vmatpush.bf16.msra.mxu0 %v573
  %723 = vmatpush.bf16.msra.mxu0 %v570
  %724 = vmatpush.bf16.msra.mxu0 %v567
  %725 = vmatpush.bf16.msra.mxu0 %v564
  %726 = vmatmul.bf16.gmra.mxu0 %v704
  %v727 = vpop.f32.mrf.mxu0
  %v728 = vadd.f32 0.0, %v727
  %v729 = vpop.f32.mrf.mxu0
  %730 = vdwg.mxu0
  %731 = vmatpush.bf16.msra.mxu0 %v586
  %732 = vmatpush.bf16.msra.mxu0 %v583
  %733 = vmatpush.bf16.msra.mxu0 %v580
  %734 = vmatpush.bf16.msra.mxu0 %v577
  %735 = vmatpush.bf16.msra.mxu0 %v574
  %736 = vmatpush.bf16.msra.mxu0 %v571
  %737 = vmatpush.bf16.msra.mxu0 %v568
  %738 = vmatpush.bf16.msra.mxu0 %v565
  %739 = vmatmul.bf16.gmra.mxu0 %v704
  %v740 = vpop.f32.mrf.mxu0
  %v741 = vadd.f32 0.0, %v740
  %v742 = vpop.f32.mrf.mxu0
  %743 = vdwg.mxu0
  %v744 = vadd.f32 %v701, %v715
  %v745 = vxor.u32 %v744, 2147483648
  %v746 = vmul.f32 %v745, 1.442695
  %v747 = vpow.pop %v746
  %v748 = vadd.f32 %v747, 1.0
  %v749 = vrcp.pop %v748
  %v750 = vmul.f32 %v748, %v749
  %v751 = vsub.f32 1.0, %v750
  %v752 = vmul.f32 %v749, %v751
  %v753 = vadd.f32 %v749, %v752
  %vm754 = vweird.f32 %v748
  %vm755 = vweird.f32 %v749
  %vm756 = vmor %vm754, %vm755
  %v757 = vsel %vm756, %v749, %v753
  %v758 = vand.u32 2147483647, %v748
  %vm759 = vcmp.eq.f32.partialorder %v758, 8.507059e+37
  %v760 = vand.u32 %v748, 2147483648
  %v761 = vor.u32 1.1754944e-38, %v760
  %v762 = vsel %vm759, %v761, %v757
  %v763 = vmul.f32 1.0, %v762
  %v764 = vadd.f32 %v702, %v728
  %v765 = vxor.u32 %v764, 2147483648
  %v766 = vmul.f32 %v765, 1.442695
  %v767 = vpow.pop %v766
  %v768 = vadd.f32 %v767, 1.0
  %v769 = vrcp.pop %v768
  %v770 = vmul.f32 %v768, %v769
  %v771 = vsub.f32 1.0, %v770
  %v772 = vmul.f32 %v769, %v771
  %v773 = vadd.f32 %v769, %v772
  %vm774 = vweird.f32 %v768
  %vm775 = vweird.f32 %v769
  %vm776 = vmor %vm774, %vm775
  %v777 = vsel %vm776, %v769, %v773
  %v778 = vand.u32 2147483647, %v768
  %vm779 = vcmp.eq.f32.partialorder %v778, 8.507059e+37
  %v780 = vand.u32 %v768, 2147483648
  %v781 = vor.u32 1.1754944e-38, %v780
  %v782 = vsel %vm779, %v781, %v777
  %v783 = vmul.f32 1.0, %v782
  %v784 = vadd.f32 %v741, %v438
  %v785 = vmul.f32 %v763, %v784
  %v786 = vadd.f32 %v703, %v785
  %v787 = vtanh.pop %v786
  %v788 = vsub.f32 1.0, %v783
  %v789 = vmul.f32 %v788, %v787
  %v790 = vmul.f32 %v783, %v697
  %v791 = vadd.f32 %v789, %v790
  %s792 = scalar_lea.vmem %s3, 192
  %v793 = vld [vmem:[%s792] sm:$0xff]
  %v794 = vld [vmem:[%s792 + $0x8] sm:$0xf]
  %v795 = vld [vmem:[%s792 + $0xc] sm:$0xff]
  %v796 = vld [vmem:[%s792 + $0x14] sm:$0xf]
  %v797 = vld [vmem:[%s792 + $0x18] sm:$0xff]
  %v798 = vld [vmem:[%s792 + $0x20] sm:$0xf]
  %v799 = vld [vmem:[%s792 + $0x24] sm:$0xff]
  %v800 = vld [vmem:[%s792 + $0x2c] sm:$0xf]
  %v801 = vld [vmem:[%s792 + $0x30] sm:$0xff]
  %v802 = vld [vmem:[%s792 + $0x38] sm:$0xf]
  %v803 = vld [vmem:[%s792 + $0x3c] sm:$0xff]
  %v804 = vld [vmem:[%s792 + $0x44] sm:$0xf]
  %v805 = vld [vmem:[%s792 + $0x48] sm:$0xff]
  %v806 = vld [vmem:[%s792 + $0x50] sm:$0xf]
  %v807 = vld [vmem:[%s792 + $0x54] sm:$0xff]
  %v808 = vld [vmem:[%s792 + $0x5c] sm:$0xf]
  %v809 = vld [vmem:[%s792 + $0x60] sm:$0xff]
  %v810 = vld [vmem:[%s792 + $0x68] sm:$0xf]
  %v811 = vld [vmem:[%s792 + $0x6c] sm:$0xff]
  %v812 = vld [vmem:[%s792 + $0x74] sm:$0xf]
  %v813 = vld [vmem:[%s792 + $0x78] sm:$0xff]
  %v814 = vld [vmem:[%s792 + $0x80] sm:$0xf]
  %v815 = vld [vmem:[%s792 + $0x84] sm:$0xff]
  %v816 = vld [vmem:[%s792 + $0x8c] sm:$0xf]
  %v817 = vld [vmem:[%s792 + $0x90] sm:$0xff]
  %v818 = vld [vmem:[%s792 + $0x98] sm:$0xf]
  %v819 = vld [vmem:[%s792 + $0x9c] sm:$0xff]
  %v820 = vld [vmem:[%s792 + $0xa4] sm:$0xf]
  %v821 = vld [vmem:[%s792 + $0xa8] sm:$0xff]
  %v822 = vld [vmem:[%s792 + $0xb0] sm:$0xf]
  %v823 = vld [vmem:[%s792 + $0xb4] sm:$0xff]
  %v824 = vld [vmem:[%s792 + $0xbc] sm:$0xf]
  %v857 = vunpack.c.l.b16 %v793
  %v858 = vunpack.c.h.b16 %v793
  %v859 = vunpack.c.l.b16 %v794
  %v860 = vunpack.c.l.b16 %v795
  %v861 = vunpack.c.h.b16 %v795
  %v862 = vunpack.c.l.b16 %v796
  %v863 = vunpack.c.l.b16 %v797
  %v864 = vunpack.c.h.b16 %v797
  %v865 = vunpack.c.l.b16 %v798
  %v866 = vunpack.c.l.b16 %v799
  %v867 = vunpack.c.h.b16 %v799
  %v868 = vunpack.c.l.b16 %v800
  %v869 = vunpack.c.l.b16 %v801
  %v870 = vunpack.c.h.b16 %v801
  %v871 = vunpack.c.l.b16 %v802
  %v872 = vunpack.c.l.b16 %v803
  %v873 = vunpack.c.h.b16 %v803
  %v874 = vunpack.c.l.b16 %v804
  %v875 = vunpack.c.l.b16 %v805
  %v876 = vunpack.c.h.b16 %v805
  %v877 = vunpack.c.l.b16 %v806
  %v878 = vunpack.c.l.b16 %v807
  %v879 = vunpack.c.h.b16 %v807
  %v880 = vunpack.c.l.b16 %v808
  %v881 = vunpack.c.l.b16 %v809
  %v882 = vunpack.c.h.b16 %v809
  %v883 = vunpack.c.l.b16 %v810
  %v884 = vunpack.c.l.b16 %v811
  %v885 = vunpack.c.h.b16 %v811
  %v886 = vunpack.c.l.b16 %v812
  %v887 = vunpack.c.l.b16 %v813
  %v888 = vunpack.c.h.b16 %v813
  %v889 = vunpack.c.l.b16 %v814
  %v890 = vunpack.c.l.b16 %v815
  %v891 = vunpack.c.h.b16 %v815
  %v892 = vunpack.c.l.b16 %v816
  %v893 = vunpack.c.l.b16 %v817
  %v894 = vunpack.c.h.b16 %v817
  %v895 = vunpack.c.l.b16 %v818
  %v896 = vunpack.c.l.b16 %v819
  %v897 = vunpack.c.h.b16 %v819
  %v898 = vunpack.c.l.b16 %v820
  %v899 = vunpack.c.l.b16 %v821
  %v900 = vunpack.c.h.b16 %v821
  %v901 = vunpack.c.l.b16 %v822
  %v902 = vunpack.c.l.b16 %v823
  %v903 = vunpack.c.h.b16 %v823
  %v904 = vunpack.c.l.b16 %v824
  %v905 = vpack.c.b16 %v860, %v857
  %v906 = vpack.c.b16 %v861, %v858
  %v907 = vpack.c.b16 %v862, %v859
  %v908 = vpack.c.b16 %v866, %v863
  %v909 = vpack.c.b16 %v867, %v864
  %v910 = vpack.c.b16 %v868, %v865
  %v911 = vpack.c.b16 %v872, %v869
  %v912 = vpack.c.b16 %v873, %v870
  %v913 = vpack.c.b16 %v874, %v871
  %v914 = vpack.c.b16 %v878, %v875
  %v915 = vpack.c.b16 %v879, %v876
  %v916 = vpack.c.b16 %v880, %v877
  %v917 = vpack.c.b16 %v884, %v881
  %v918 = vpack.c.b16 %v885, %v882
  %v919 = vpack.c.b16 %v886, %v883
  %v920 = vpack.c.b16 %v890, %v887
  %v921 = vpack.c.b16 %v891, %v888
  %v922 = vpack.c.b16 %v892, %v889
  %v923 = vpack.c.b16 %v896, %v893
  %v924 = vpack.c.b16 %v897, %v894
  %v925 = vpack.c.b16 %v898, %v895
  %v926 = vpack.c.b16 %v902, %v899
  %v927 = vpack.c.b16 %v903, %v900
  %v928 = vpack.c.b16 %v904, %v901
  %953 = vmatpush.bf16.msra.mxu0 %v926
  %954 = vmatpush.bf16.msra.mxu0 %v923
  %955 = vmatpush.bf16.msra.mxu0 %v920
  %956 = vmatpush.bf16.msra.mxu0 %v917
  %957 = vmatpush.bf16.msra.mxu0 %v914
  %958 = vmatpush.bf16.msra.mxu0 %v911
  %959 = vmatpush.bf16.msra.mxu0 %v908
  %960 = vmatpush.bf16.msra.mxu0 %v905
  %961 = vmatmul.bf16.gmra.mxu0 %v704
  %v962 = vpop.f32.mrf.mxu0
  %v963 = vadd.f32 %v430, %v962
  %v964 = vpop.f32.mrf.mxu0
  %965 = vdwg.mxu0
  %966 = vmatpush.bf16.msra.mxu0 %v927
  %967 = vmatpush.bf16.msra.mxu0 %v924
  %968 = vmatpush.bf16.msra.mxu0 %v921
  %969 = vmatpush.bf16.msra.mxu0 %v918
  %970 = vmatpush.bf16.msra.mxu0 %v915
  %971 = vmatpush.bf16.msra.mxu0 %v912
  %972 = vmatpush.bf16.msra.mxu0 %v909
  %973 = vmatpush.bf16.msra.mxu0 %v906
  %974 = vmatmul.bf16.gmra.mxu0 %v704
  %v975 = vpop.f32.mrf.mxu0
  %v976 = vadd.f32 %v431, %v975
  %v977 = vpop.f32.mrf.mxu0
  %978 = vdwg.mxu0
  %979 = vmatpush.bf16.msra.mxu0 %v928
  %980 = vmatpush.bf16.msra.mxu0 %v925
  %981 = vmatpush.bf16.msra.mxu0 %v922
  %982 = vmatpush.bf16.msra.mxu0 %v919
  %983 = vmatpush.bf16.msra.mxu0 %v916
  %984 = vmatpush.bf16.msra.mxu0 %v913
  %985 = vmatpush.bf16.msra.mxu0 %v910
  %986 = vmatpush.bf16.msra.mxu0 %v907
  %987 = vmatmul.bf16.gmra.mxu0 %v704
  %v988 = vpop.f32.mrf.mxu0
  %v989 = vadd.f32 %v432, %v988
  %v990 = vpop.f32.mrf.mxu0
  %991 = vdwg.mxu0
  %s992 = scalar_lea.vmem %s4, 192
  %v993 = vld [vmem:[%s992] sm:$0xff]
  %v994 = vld [vmem:[%s992 + $0x8] sm:$0xf]
  %v995 = vld [vmem:[%s992 + $0xc] sm:$0xff]
  %v996 = vld [vmem:[%s992 + $0x14] sm:$0xf]
  %v997 = vld [vmem:[%s992 + $0x18] sm:$0xff]
  %v998 = vld [vmem:[%s992 + $0x20] sm:$0xf]
  %v999 = vld [vmem:[%s992 + $0x24] sm:$0xff]
  %v1000 = vld [vmem:[%s992 + $0x2c] sm:$0xf]
  %v1001 = vld [vmem:[%s992 + $0x30] sm:$0xff]
  %v1002 = vld [vmem:[%s992 + $0x38] sm:$0xf]
  %v1003 = vld [vmem:[%s992 + $0x3c] sm:$0xff]
  %v1004 = vld [vmem:[%s992 + $0x44] sm:$0xf]
  %v1005 = vld [vmem:[%s992 + $0x48] sm:$0xff]
  %v1006 = vld [vmem:[%s992 + $0x50] sm:$0xf]
  %v1007 = vld [vmem:[%s992 + $0x54] sm:$0xff]
  %v1008 = vld [vmem:[%s992 + $0x5c] sm:$0xf]
  %v1009 = vld [vmem:[%s992 + $0x60] sm:$0xff]
  %v1010 = vld [vmem:[%s992 + $0x68] sm:$0xf]
  %v1011 = vld [vmem:[%s992 + $0x6c] sm:$0xff]
  %v1012 = vld [vmem:[%s992 + $0x74] sm:$0xf]
  %v1013 = vld [vmem:[%s992 + $0x78] sm:$0xff]
  %v1014 = vld [vmem:[%s992 + $0x80] sm:$0xf]
  %v1015 = vld [vmem:[%s992 + $0x84] sm:$0xff]
  %v1016 = vld [vmem:[%s992 + $0x8c] sm:$0xf]
  %v1017 = vld [vmem:[%s992 + $0x90] sm:$0xff]
  %v1018 = vld [vmem:[%s992 + $0x98] sm:$0xf]
  %v1019 = vld [vmem:[%s992 + $0x9c] sm:$0xff]
  %v1020 = vld [vmem:[%s992 + $0xa4] sm:$0xf]
  %v1021 = vld [vmem:[%s992 + $0xa8] sm:$0xff]
  %v1022 = vld [vmem:[%s992 + $0xb0] sm:$0xf]
  %v1023 = vld [vmem:[%s992 + $0xb4] sm:$0xff]
  %v1024 = vld [vmem:[%s992 + $0xbc] sm:$0xf]
  %v1057 = vunpack.c.l.b16 %v993
  %v1058 = vunpack.c.h.b16 %v993
  %v1059 = vunpack.c.l.b16 %v994
  %v1060 = vunpack.c.l.b16 %v995
  %v1061 = vunpack.c.h.b16 %v995
  %v1062 = vunpack.c.l.b16 %v996
  %v1063 = vunpack.c.l.b16 %v997
  %v1064 = vunpack.c.h.b16 %v997
  %v1065 = vunpack.c.l.b16 %v998
  %v1066 = vunpack.c.l.b16 %v999
  %v1067 = vunpack.c.h.b16 %v999
  %v1068 = vunpack.c.l.b16 %v1000
  %v1069 = vunpack.c.l.b16 %v1001
  %v1070 = vunpack.c.h.b16 %v1001
  %v1071 = vunpack.c.l.b16 %v1002
  %v1072 = vunpack.c.l.b16 %v1003
  %v1073 = vunpack.c.h.b16 %v1003
  %v1074 = vunpack.c.l.b16 %v1004
  %v1075 = vunpack.c.l.b16 %v1005
  %v1076 = vunpack.c.h.b16 %v1005
  %v1077 = vunpack.c.l.b16 %v1006
  %v1078 = vunpack.c.l.b16 %v1007
  %v1079 = vunpack.c.h.b16 %v1007
  %v1080 = vunpack.c.l.b16 %v1008
  %v1081 = vunpack.c.l.b16 %v1009
  %v1082 = vunpack.c.h.b16 %v1009
  %v1083 = vunpack.c.l.b16 %v1010
  %v1084 = vunpack.c.l.b16 %v1011
  %v1085 = vunpack.c.h.b16 %v1011
  %v1086 = vunpack.c.l.b16 %v1012
  %v1087 = vunpack.c.l.b16 %v1013
  %v1088 = vunpack.c.h.b16 %v1013
  %v1089 = vunpack.c.l.b16 %v1014
  %v1090 = vunpack.c.l.b16 %v1015
  %v1091 = vunpack.c.h.b16 %v1015
  %v1092 = vunpack.c.l.b16 %v1016
  %v1093 = vunpack.c.l.b16 %v1017
  %v1094 = vunpack.c.h.b16 %v1017
  %v1095 = vunpack.c.l.b16 %v1018
  %v1096 = vunpack.c.l.b16 %v1019
  %v1097 = vunpack.c.h.b16 %v1019
  %v1098 = vunpack.c.l.b16 %v1020
  %v1099 = vunpack.c.l.b16 %v1021
  %v1100 = vunpack.c.h.b16 %v1021
  %v1101 = vunpack.c.l.b16 %v1022
  %v1102 = vunpack.c.l.b16 %v1023
  %v1103 = vunpack.c.h.b16 %v1023
  %v1104 = vunpack.c.l.b16 %v1024
  %v1105 = vpack.c.b16 %v1060, %v1057
  %v1106 = vpack.c.b16 %v1061, %v1058
  %v1107 = vpack.c.b16 %v1062, %v1059
  %v1108 = vpack.c.b16 %v1066, %v1063
  %v1109 = vpack.c.b16 %v1067, %v1064
  %v1110 = vpack.c.b16 %v1068, %v1065
  %v1111 = vpack.c.b16 %v1072, %v1069
  %v1112 = vpack.c.b16 %v1073, %v1070
  %v1113 = vpack.c.b16 %v1074, %v1071
  %v1114 = vpack.c.b16 %v1078, %v1075
  %v1115 = vpack.c.b16 %v1079, %v1076
  %v1116 = vpack.c.b16 %v1080, %v1077
  %v1117 = vpack.c.b16 %v1084, %v1081
  %v1118 = vpack.c.b16 %v1085, %v1082
  %v1119 = vpack.c.b16 %v1086, %v1083
  %v1120 = vpack.c.b16 %v1090, %v1087
  %v1121 = vpack.c.b16 %v1091, %v1088
  %v1122 = vpack.c.b16 %v1092, %v1089
  %v1123 = vpack.c.b16 %v1096, %v1093
  %v1124 = vpack.c.b16 %v1097, %v1094
  %v1125 = vpack.c.b16 %v1098, %v1095
  %v1126 = vpack.c.b16 %v1102, %v1099
  %v1127 = vpack.c.b16 %v1103, %v1100
  %v1128 = vpack.c.b16 %v1104, %v1101
  %1153 = vmatpush.bf16.msra.mxu0 %v1126
  %1154 = vmatpush.bf16.msra.mxu0 %v1123
  %1155 = vmatpush.bf16.msra.mxu0 %v1120
  %1156 = vmatpush.bf16.msra.mxu0 %v1117
  %1157 = vmatpush.bf16.msra.mxu0 %v1114
  %1158 = vmatpush.bf16.msra.mxu0 %v1111
  %1159 = vmatpush.bf16.msra.mxu0 %v1108
  %1160 = vmatpush.bf16.msra.mxu0 %v1105
  %1161 = vmatmul.bf16.gmra.mxu0 0
  %v1162 = vpop.f32.mrf.mxu0
  %v1163 = vadd.f32 0.0, %v1162
  %v1164 = vpop.f32.mrf.mxu0
  %1165 = vdwg.mxu0
  %1166 = vmatpush.bf16.msra.mxu0 %v1127
  %1167 = vmatpush.bf16.msra.mxu0 %v1124
  %1168 = vmatpush.bf16.msra.mxu0 %v1121
  %1169 = vmatpush.bf16.msra.mxu0 %v1118
  %1170 = vmatpush.bf16.msra.mxu0 %v1115
  %1171 = vmatpush.bf16.msra.mxu0 %v1112
  %1172 = vmatpush.bf16.msra.mxu0 %v1109
  %1173 = vmatpush.bf16.msra.mxu0 %v1106
  %1174 = vmatmul.bf16.gmra.mxu0 0
  %v1175 = vpop.f32.mrf.mxu0
  %v1176 = vadd.f32 0.0, %v1175
  %v1177 = vpop.f32.mrf.mxu0
  %1178 = vdwg.mxu0
  %1179 = vmatpush.bf16.msra.mxu0 %v1128
  %1180 = vmatpush.bf16.msra.mxu0 %v1125
  %1181 = vmatpush.bf16.msra.mxu0 %v1122
  %1182 = vmatpush.bf16.msra.mxu0 %v1119
  %1183 = vmatpush.bf16.msra.mxu0 %v1116
  %1184 = vmatpush.bf16.msra.mxu0 %v1113
  %1185 = vmatpush.bf16.msra.mxu0 %v1110
  %1186 = vmatpush.bf16.msra.mxu0 %v1107
  %1187 = vmatmul.bf16.gmra.mxu0 0
  %v1188 = vpop.f32.mrf.mxu0
  %v1189 = vadd.f32 0.0, %v1188
  %v1190 = vpop.f32.mrf.mxu0
  %1191 = vdwg.mxu0
  %v1192 = vadd.f32 %v963, %v1163
  %v1193 = vxor.u32 %v1192, 2147483648
  %v1194 = vmul.f32 %v1193, 1.442695
  %v1195 = vpow.pop %v1194
  %v1196 = vadd.f32 %v1195, 1.0
  %v1197 = vrcp.pop %v1196
  %v1198 = vmul.f32 %v1196, %v1197
  %v1199 = vsub.f32 1.0, %v1198
  %v1200 = vmul.f32 %v1197, %v1199
  %v1201 = vadd.f32 %v1197, %v1200
  %vm1202 = vweird.f32 %v1196
  %vm1203 = vweird.f32 %v1197
  %vm1204 = vmor %vm1202, %vm1203
  %v1205 = vsel %vm1204, %v1197, %v1201
  %v1206 = vand.u32 2147483647, %v1196
  %vm1207 = vcmp.eq.f32.partialorder %v1206, 8.507059e+37
  %v1208 = vand.u32 %v1196, 2147483648
  %v1209 = vor.u32 1.1754944e-38, %v1208
  %v1210 = vsel %vm1207, %v1209, %v1205
  %v1211 = vmul.f32 1.0, %v1210
  %v1212 = vadd.f32 %v976, %v1176
  %v1213 = vxor.u32 %v1212, 2147483648
  %v1214 = vmul.f32 %v1213, 1.442695
  %v1215 = vpow.pop %v1214
  %v1216 = vadd.f32 %v1215, 1.0
  %v1217 = vrcp.pop %v1216
  %v1218 = vmul.f32 %v1216, %v1217
  %v1219 = vsub.f32 1.0, %v1218
  %v1220 = vmul.f32 %v1217, %v1219
  %v1221 = vadd.f32 %v1217, %v1220
  %vm1222 = vweird.f32 %v1216
  %vm1223 = vweird.f32 %v1217
  %vm1224 = vmor %vm1222, %vm1223
  %v1225 = vsel %vm1224, %v1217, %v1221
  %v1226 = vand.u32 2147483647, %v1216
  %vm1227 = vcmp.eq.f32.partialorder %v1226, 8.507059e+37
  %v1228 = vand.u32 %v1216, 2147483648
  %v1229 = vor.u32 1.1754944e-38, %v1228
  %v1230 = vsel %vm1227, %v1229, %v1225
  %v1231 = vmul.f32 1.0, %v1230
  %v1232 = vadd.f32 %v1189, %v443
  %v1233 = vmul.f32 %v1211, %v1232
  %v1234 = vadd.f32 %v989, %v1233
  %v1235 = vtanh.pop %v1234
  %v1236 = vsub.f32 1.0, %v1231
  %v1237 = vmul.f32 %v1236, %v1235
  %v1238 = vmul.f32 %v1231, 0.0
  %v1239 = vadd.f32 %v1237, %v1238
  %1240 = vst [vmem:[#allocation3] sm:$0xff] %v1239
  %s1241 = smul.u32 2, 3
  %s1242 = smul.addr %s1241, 8
  %s1243 = scalar_lea.vmem [#allocation2], %s1242
  %v1244 = vld [vmem:[%s1243] sm:$0xff]
  %v1245 = vld [vmem:[%s1243 + $0x8] sm:$0xff]
  %v1246 = vld [vmem:[%s1243 + $0x10] sm:$0xff]
  %v1247 = vpack.c.bf16 %v791, %v791
  %v1248 = vld [vmem:[%s4] sm:$0xff]
  %v1249 = vld [vmem:[%s4 + $0x8] sm:$0xf]
  %v1250 = vld [vmem:[%s4 + $0xc] sm:$0xff]
  %v1251 = vld [vmem:[%s4 + $0x14] sm:$0xf]
  %v1252 = vld [vmem:[%s4 + $0x18] sm:$0xff]
  %v1253 = vld [vmem:[%s4 + $0x20] sm:$0xf]
  %v1254 = vld [vmem:[%s4 + $0x24] sm:$0xff]
  %v1255 = vld [vmem:[%s4 + $0x2c] sm:$0xf]
  %v1256 = vld [vmem:[%s4 + $0x30] sm:$0xff]
  %v1257 = vld [vmem:[%s4 + $0x38] sm:$0xf]
  %v1258 = vld [vmem:[%s4 + $0x3c] sm:$0xff]
  %v1259 = vld [vmem:[%s4 + $0x44] sm:$0xf]
  %v1260 = vld [vmem:[%s4 + $0x48] sm:$0xff]
  %v1261 = vld [vmem:[%s4 + $0x50] sm:$0xf]
  %v1262 = vld [vmem:[%s4 + $0x54] sm:$0xff]
  %v1263 = vld [vmem:[%s4 + $0x5c] sm:$0xf]
  %v1264 = vld [vmem:[%s4 + $0x60] sm:$0xff]
  %v1265 = vld [vmem:[%s4 + $0x68] sm:$0xf]
  %v1266 = vld [vmem:[%s4 + $0x6c] sm:$0xff]
  %v1267 = vld [vmem:[%s4 + $0x74] sm:$0xf]
  %v1268 = vld [vmem:[%s4 + $0x78] sm:$0xff]
  %v1269 = vld [vmem:[%s4 + $0x80] sm:$0xf]
  %v1270 = vld [vmem:[%s4 + $0x84] sm:$0xff]
  %v1271 = vld [vmem:[%s4 + $0x8c] sm:$0xf]
  %v1272 = vld [vmem:[%s4 + $0x90] sm:$0xff]
  %v1273 = vld [vmem:[%s4 + $0x98] sm:$0xf]
  %v1274 = vld [vmem:[%s4 + $0x9c] sm:$0xff]
  %v1275 = vld [vmem:[%s4 + $0xa4] sm:$0xf]
  %v1276 = vld [vmem:[%s4 + $0xa8] sm:$0xff]
  %v1277 = vld [vmem:[%s4 + $0xb0] sm:$0xf]
  %v1278 = vld [vmem:[%s4 + $0xb4] sm:$0xff]
  %v1279 = vld [vmem:[%s4 + $0xbc] sm:$0xf]
  %v1312 = vunpack.c.l.b16 %v1248
  %v1313 = vunpack.c.h.b16 %v1248
  %v1314 = vunpack.c.l.b16 %v1249
  %v1315 = vunpack.c.l.b16 %v1250
  %v1316 = vunpack.c.h.b16 %v1250
  %v1317 = vunpack.c.l.b16 %v1251
  %v1318 = vunpack.c.l.b16 %v1252
  %v1319 = vunpack.c.h.b16 %v1252
  %v1320 = vunpack.c.l.b16 %v1253
  %v1321 = vunpack.c.l.b16 %v1254
  %v1322 = vunpack.c.h.b16 %v1254
  %v1323 = vunpack.c.l.b16 %v1255
  %v1324 = vunpack.c.l.b16 %v1256
  %v1325 = vunpack.c.h.b16 %v1256
  %v1326 = vunpack.c.l.b16 %v1257
  %v1327 = vunpack.c.l.b16 %v1258
  %v1328 = vunpack.c.h.b16 %v1258
  %v1329 = vunpack.c.l.b16 %v1259
  %v1330 = vunpack.c.l.b16 %v1260
  %v1331 = vunpack.c.h.b16 %v1260
  %v1332 = vunpack.c.l.b16 %v1261
  %v1333 = vunpack.c.l.b16 %v1262
  %v1334 = vunpack.c.h.b16 %v1262
  %v1335 = vunpack.c.l.b16 %v1263
  %v1336 = vunpack.c.l.b16 %v1264
  %v1337 = vunpack.c.h.b16 %v1264
  %v1338 = vunpack.c.l.b16 %v1265
  %v1339 = vunpack.c.l.b16 %v1266
  %v1340 = vunpack.c.h.b16 %v1266
  %v1341 = vunpack.c.l.b16 %v1267
  %v1342 = vunpack.c.l.b16 %v1268
  %v1343 = vunpack.c.h.b16 %v1268
  %v1344 = vunpack.c.l.b16 %v1269
  %v1345 = vunpack.c.l.b16 %v1270
  %v1346 = vunpack.c.h.b16 %v1270
  %v1347 = vunpack.c.l.b16 %v1271
  %v1348 = vunpack.c.l.b16 %v1272
  %v1349 = vunpack.c.h.b16 %v1272
  %v1350 = vunpack.c.l.b16 %v1273
  %v1351 = vunpack.c.l.b16 %v1274
  %v1352 = vunpack.c.h.b16 %v1274
  %v1353 = vunpack.c.l.b16 %v1275
  %v1354 = vunpack.c.l.b16 %v1276
  %v1355 = vunpack.c.h.b16 %v1276
  %v1356 = vunpack.c.l.b16 %v1277
  %v1357 = vunpack.c.l.b16 %v1278
  %v1358 = vunpack.c.h.b16 %v1278
  %v1359 = vunpack.c.l.b16 %v1279
  %v1360 = vpack.c.b16 %v1315, %v1312
  %v1361 = vpack.c.b16 %v1316, %v1313
  %v1362 = vpack.c.b16 %v1317, %v1314
  %v1363 = vpack.c.b16 %v1321, %v1318
  %v1364 = vpack.c.b16 %v1322, %v1319
  %v1365 = vpack.c.b16 %v1323, %v1320
  %v1366 = vpack.c.b16 %v1327, %v1324
  %v1367 = vpack.c.b16 %v1328, %v1325
  %v1368 = vpack.c.b16 %v1329, %v1326
  %v1369 = vpack.c.b16 %v1333, %v1330
  %v1370 = vpack.c.b16 %v1334, %v1331
  %v1371 = vpack.c.b16 %v1335, %v1332
  %v1372 = vpack.c.b16 %v1339, %v1336
  %v1373 = vpack.c.b16 %v1340, %v1337
  %v1374 = vpack.c.b16 %v1341, %v1338
  %v1375 = vpack.c.b16 %v1345, %v1342
  %v1376 = vpack.c.b16 %v1346, %v1343
  %v1377 = vpack.c.b16 %v1347, %v1344
  %v1378 = vpack.c.b16 %v1351, %v1348
  %v1379 = vpack.c.b16 %v1352, %v1349
  %v1380 = vpack.c.b16 %v1353, %v1350
  %v1381 = vpack.c.b16 %v1357, %v1354
  %v1382 = vpack.c.b16 %v1358, %v1355
  %v1383 = vpack.c.b16 %v1359, %v1356
  %1408 = vmatpush.bf16.msra.mxu0 %v1381
  %1409 = vmatpush.bf16.msra.mxu0 %v1378
  %1410 = vmatpush.bf16.msra.mxu0 %v1375
  %1411 = vmatpush.bf16.msra.mxu0 %v1372
  %1412 = vmatpush.bf16.msra.mxu0 %v1369
  %1413 = vmatpush.bf16.msra.mxu0 %v1366
  %1414 = vmatpush.bf16.msra.mxu0 %v1363
  %1415 = vmatpush.bf16.msra.mxu0 %v1360
  %1416 = vmatmul.bf16.gmra.mxu0 %v1247
  %v1417 = vpop.f32.mrf.mxu0
  %v1418 = vadd.f32 0.0, %v1417
  %v1419 = vpop.f32.mrf.mxu0
  %1420 = vdwg.mxu0
  %1421 = vmatpush.bf16.msra.mxu0 %v1382
  %1422 = vmatpush.bf16.msra.mxu0 %v1379
  %1423 = vmatpush.bf16.msra.mxu0 %v1376
  %1424 = vmatpush.bf16.msra.mxu0 %v1373
  %1425 = vmatpush.bf16.msra.mxu0 %v1370
  %1426 = vmatpush.bf16.msra.mxu0 %v1367
  %1427 = vmatpush.bf16.msra.mxu0 %v1364
  %1428 = vmatpush.bf16.msra.mxu0 %v1361
  %1429 = vmatmul.bf16.gmra.mxu0 %v1247
  %v1430 = vpop.f32.mrf.mxu0
  %v1431 = vadd.f32 0.0, %v1430
  %v1432 = vpop.f32.mrf.mxu0
  %1433 = vdwg.mxu0
  %1434 = vmatpush.bf16.msra.mxu0 %v1383
  %1435 = vmatpush.bf16.msra.mxu0 %v1380
  %1436 = vmatpush.bf16.msra.mxu0 %v1377
  %1437 = vmatpush.bf16.msra.mxu0 %v1374
  %1438 = vmatpush.bf16.msra.mxu0 %v1371
  %1439 = vmatpush.bf16.msra.mxu0 %v1368
  %1440 = vmatpush.bf16.msra.mxu0 %v1365
  %1441 = vmatpush.bf16.msra.mxu0 %v1362
  %1442 = vmatmul.bf16.gmra.mxu0 %v1247
  %v1443 = vpop.f32.mrf.mxu0
  %v1444 = vadd.f32 0.0, %v1443
  %v1445 = vpop.f32.mrf.mxu0
  %1446 = vdwg.mxu0
  %v1447 = vadd.f32 %v1244, %v1418
  %v1448 = vxor.u32 %v1447, 2147483648
  %v1449 = vmul.f32 %v1448, 1.442695
  %v1450 = vpow.pop %v1449
  %v1451 = vadd.f32 %v1450, 1.0
  %v1452 = vrcp.pop %v1451
  %v1453 = vmul.f32 %v1451, %v1452
  %v1454 = vsub.f32 1.0, %v1453
  %v1455 = vmul.f32 %v1452, %v1454
  %v1456 = vadd.f32 %v1452, %v1455
  %vm1457 = vweird.f32 %v1451
  %vm1458 = vweird.f32 %v1452
  %vm1459 = vmor %vm1457, %vm1458
  %v1460 = vsel %vm1459, %v1452, %v1456
  %v1461 = vand.u32 2147483647, %v1451
  %vm1462 = vcmp.eq.f32.partialorder %v1461, 8.507059e+37
  %v1463 = vand.u32 %v1451, 2147483648
  %v1464 = vor.u32 1.1754944e-38, %v1463
  %v1465 = vsel %vm1462, %v1464, %v1460
  %v1466 = vmul.f32 1.0, %v1465
  %v1467 = vadd.f32 %v1245, %v1431
  %v1468 = vxor.u32 %v1467, 2147483648
  %v1469 = vmul.f32 %v1468, 1.442695
  %v1470 = vpow.pop %v1469
  %v1471 = vadd.f32 %v1470, 1.0
  %v1472 = vrcp.pop %v1471
  %v1473 = vmul.f32 %v1471, %v1472
  %v1474 = vsub.f32 1.0, %v1473
  %v1475 = vmul.f32 %v1472, %v1474
  %v1476 = vadd.f32 %v1472, %v1475
  %vm1477 = vweird.f32 %v1471
  %vm1478 = vweird.f32 %v1472
  %vm1479 = vmor %vm1477, %vm1478
  %v1480 = vsel %vm1479, %v1472, %v1476
  %v1481 = vand.u32 2147483647, %v1471
  %vm1482 = vcmp.eq.f32.partialorder %v1481, 8.507059e+37
  %v1483 = vand.u32 %v1471, 2147483648
  %v1484 = vor.u32 1.1754944e-38, %v1483
  %v1485 = vsel %vm1482, %v1484, %v1480
  %v1486 = vmul.f32 1.0, %v1485
  %v1487 = vadd.f32 %v1444, %v438
  %v1488 = vmul.f32 %v1466, %v1487
  %v1489 = vadd.f32 %v1246, %v1488
  %v1490 = vtanh.pop %v1489
  %v1491 = vsub.f32 1.0, %v1486
  %v1492 = vmul.f32 %v1491, %v1490
  %v1493 = vmul.f32 %v1486, %v791
  %v1494 = vadd.f32 %v1492, %v1493
  %v1495 = vld [vmem:[%s792] sm:$0xff]
  %v1496 = vld [vmem:[%s792 + $0x8] sm:$0xf]
  %v1497 = vld [vmem:[%s792 + $0xc] sm:$0xff]
  %v1498 = vld [vmem:[%s792 + $0x14] sm:$0xf]
  %v1499 = vld [vmem:[%s792 + $0x18] sm:$0xff]
  %v1500 = vld [vmem:[%s792 + $0x20] sm:$0xf]
  %v1501 = vld [vmem:[%s792 + $0x24] sm:$0xff]
  %v1502 = vld [vmem:[%s792 + $0x2c] sm:$0xf]
  %v1503 = vld [vmem:[%s792 + $0x30] sm:$0xff]
  %v1504 = vld [vmem:[%s792 + $0x38] sm:$0xf]
  %v1505 = vld [vmem:[%s792 + $0x3c] sm:$0xff]
  %v1506 = vld [vmem:[%s792 + $0x44] sm:$0xf]
  %v1507 = vld [vmem:[%s792 + $0x48] sm:$0xff]
  %v1508 = vld [vmem:[%s792 + $0x50] sm:$0xf]
  %v1509 = vld [vmem:[%s792 + $0x54] sm:$0xff]
  %v1510 = vld [vmem:[%s792 + $0x5c] sm:$0xf]
  %v1511 = vld [vmem:[%s792 + $0x60] sm:$0xff]
  %v1512 = vld [vmem:[%s792 + $0x68] sm:$0xf]
  %v1513 = vld [vmem:[%s792 + $0x6c] sm:$0xff]
  %v1514 = vld [vmem:[%s792 + $0x74] sm:$0xf]
  %v1515 = vld [vmem:[%s792 + $0x78] sm:$0xff]
  %v1516 = vld [vmem:[%s792 + $0x80] sm:$0xf]
  %v1517 = vld [vmem:[%s792 + $0x84] sm:$0xff]
  %v1518 = vld [vmem:[%s792 + $0x8c] sm:$0xf]
  %v1519 = vld [vmem:[%s792 + $0x90] sm:$0xff]
  %v1520 = vld [vmem:[%s792 + $0x98] sm:$0xf]
  %v1521 = vld [vmem:[%s792 + $0x9c] sm:$0xff]
  %v1522 = vld [vmem:[%s792 + $0xa4] sm:$0xf]
  %v1523 = vld [vmem:[%s792 + $0xa8] sm:$0xff]
  %v1524 = vld [vmem:[%s792 + $0xb0] sm:$0xf]
  %v1525 = vld [vmem:[%s792 + $0xb4] sm:$0xff]
  %v1526 = vld [vmem:[%s792 + $0xbc] sm:$0xf]
  %v1559 = vunpack.c.l.b16 %v1495
  %v1560 = vunpack.c.h.b16 %v1495
  %v1561 = vunpack.c.l.b16 %v1496
  %v1562 = vunpack.c.l.b16 %v1497
  %v1563 = vunpack.c.h.b16 %v1497
  %v1564 = vunpack.c.l.b16 %v1498
  %v1565 = vunpack.c.l.b16 %v1499
  %v1566 = vunpack.c.h.b16 %v1499
  %v1567 = vunpack.c.l.b16 %v1500
  %v1568 = vunpack.c.l.b16 %v1501
  %v1569 = vunpack.c.h.b16 %v1501
  %v1570 = vunpack.c.l.b16 %v1502
  %v1571 = vunpack.c.l.b16 %v1503
  %v1572 = vunpack.c.h.b16 %v1503
  %v1573 = vunpack.c.l.b16 %v1504
  %v1574 = vunpack.c.l.b16 %v1505
  %v1575 = vunpack.c.h.b16 %v1505
  %v1576 = vunpack.c.l.b16 %v1506
  %v1577 = vunpack.c.l.b16 %v1507
  %v1578 = vunpack.c.h.b16 %v1507
  %v1579 = vunpack.c.l.b16 %v1508
  %v1580 = vunpack.c.l.b16 %v1509
  %v1581 = vunpack.c.h.b16 %v1509
  %v1582 = vunpack.c.l.b16 %v1510
  %v1583 = vunpack.c.l.b16 %v1511
  %v1584 = vunpack.c.h.b16 %v1511
  %v1585 = vunpack.c.l.b16 %v1512
  %v1586 = vunpack.c.l.b16 %v1513
  %v1587 = vunpack.c.h.b16 %v1513
  %v1588 = vunpack.c.l.b16 %v1514
  %v1589 = vunpack.c.l.b16 %v1515
  %v1590 = vunpack.c.h.b16 %v1515
  %v1591 = vunpack.c.l.b16 %v1516
  %v1592 = vunpack.c.l.b16 %v1517
  %v1593 = vunpack.c.h.b16 %v1517
  %v1594 = vunpack.c.l.b16 %v1518
  %v1595 = vunpack.c.l.b16 %v1519
  %v1596 = vunpack.c.h.b16 %v1519
  %v1597 = vunpack.c.l.b16 %v1520
  %v1598 = vunpack.c.l.b16 %v1521
  %v1599 = vunpack.c.h.b16 %v1521
  %v1600 = vunpack.c.l.b16 %v1522
  %v1601 = vunpack.c.l.b16 %v1523
  %v1602 = vunpack.c.h.b16 %v1523
  %v1603 = vunpack.c.l.b16 %v1524
  %v1604 = vunpack.c.l.b16 %v1525
  %v1605 = vunpack.c.h.b16 %v1525
  %v1606 = vunpack.c.l.b16 %v1526
  %v1607 = vpack.c.b16 %v1562, %v1559
  %v1608 = vpack.c.b16 %v1563, %v1560
  %v1609 = vpack.c.b16 %v1564, %v1561
  %v1610 = vpack.c.b16 %v1568, %v1565
  %v1611 = vpack.c.b16 %v1569, %v1566
  %v1612 = vpack.c.b16 %v1570, %v1567
  %v1613 = vpack.c.b16 %v1574, %v1571
  %v1614 = vpack.c.b16 %v1575, %v1572
  %v1615 = vpack.c.b16 %v1576, %v1573
  %v1616 = vpack.c.b16 %v1580, %v1577
  %v1617 = vpack.c.b16 %v1581, %v1578
  %v1618 = vpack.c.b16 %v1582, %v1579
  %v1619 = vpack.c.b16 %v1586, %v1583
  %v1620 = vpack.c.b16 %v1587, %v1584
  %v1621 = vpack.c.b16 %v1588, %v1585
  %v1622 = vpack.c.b16 %v1592, %v1589
  %v1623 = vpack.c.b16 %v1593, %v1590
  %v1624 = vpack.c.b16 %v1594, %v1591
  %v1625 = vpack.c.b16 %v1598, %v1595
  %v1626 = vpack.c.b16 %v1599, %v1596
  %v1627 = vpack.c.b16 %v1600, %v1597
  %v1628 = vpack.c.b16 %v1604, %v1601
  %v1629 = vpack.c.b16 %v1605, %v1602
  %v1630 = vpack.c.b16 %v1606, %v1603
  %1655 = vmatpush.bf16.msra.mxu0 %v1628
  %1656 = vmatpush.bf16.msra.mxu0 %v1625
  %1657 = vmatpush.bf16.msra.mxu0 %v1622
  %1658 = vmatpush.bf16.msra.mxu0 %v1619
  %1659 = vmatpush.bf16.msra.mxu0 %v1616
  %1660 = vmatpush.bf16.msra.mxu0 %v1613
  %1661 = vmatpush.bf16.msra.mxu0 %v1610
  %1662 = vmatpush.bf16.msra.mxu0 %v1607
  %1663 = vmatmul.bf16.gmra.mxu0 %v1247
  %v1664 = vpop.f32.mrf.mxu0
  %v1665 = vadd.f32 %v430, %v1664
  %v1666 = vpop.f32.mrf.mxu0
  %1667 = vdwg.mxu0
  %1668 = vmatpush.bf16.msra.mxu0 %v1629
  %1669 = vmatpush.bf16.msra.mxu0 %v1626
  %1670 = vmatpush.bf16.msra.mxu0 %v1623
  %1671 = vmatpush.bf16.msra.mxu0 %v1620
  %1672 = vmatpush.bf16.msra.mxu0 %v1617
  %1673 = vmatpush.bf16.msra.mxu0 %v1614
  %1674 = vmatpush.bf16.msra.mxu0 %v1611
  %1675 = vmatpush.bf16.msra.mxu0 %v1608
  %1676 = vmatmul.bf16.gmra.mxu0 %v1247
  %v1677 = vpop.f32.mrf.mxu0
  %v1678 = vadd.f32 %v431, %v1677
  %v1679 = vpop.f32.mrf.mxu0
  %1680 = vdwg.mxu0
  %1681 = vmatpush.bf16.msra.mxu0 %v1630
  %1682 = vmatpush.bf16.msra.mxu0 %v1627
  %1683 = vmatpush.bf16.msra.mxu0 %v1624
  %1684 = vmatpush.bf16.msra.mxu0 %v1621
  %1685 = vmatpush.bf16.msra.mxu0 %v1618
  %1686 = vmatpush.bf16.msra.mxu0 %v1615
  %1687 = vmatpush.bf16.msra.mxu0 %v1612
  %1688 = vmatpush.bf16.msra.mxu0 %v1609
  %1689 = vmatmul.bf16.gmra.mxu0 %v1247
  %v1690 = vpop.f32.mrf.mxu0
  %v1691 = vadd.f32 %v432, %v1690
  %v1692 = vpop.f32.mrf.mxu0
  %1693 = vdwg.mxu0
  %v1694 = vpack.c.bf16 %v1239, %v1239
  %v1695 = vld [vmem:[%s992] sm:$0xff]
  %v1696 = vld [vmem:[%s992 + $0x8] sm:$0xf]
  %v1697 = vld [vmem:[%s992 + $0xc] sm:$0xff]
  %v1698 = vld [vmem:[%s992 + $0x14] sm:$0xf]
  %v1699 = vld [vmem:[%s992 + $0x18] sm:$0xff]
  %v1700 = vld [vmem:[%s992 + $0x20] sm:$0xf]
  %v1701 = vld [vmem:[%s992 + $0x24] sm:$0xff]
  %v1702 = vld [vmem:[%s992 + $0x2c] sm:$0xf]
  %v1703 = vld [vmem:[%s992 + $0x30] sm:$0xff]
  %v1704 = vld [vmem:[%s992 + $0x38] sm:$0xf]
  %v1705 = vld [vmem:[%s992 + $0x3c] sm:$0xff]
  %v1706 = vld [vmem:[%s992 + $0x44] sm:$0xf]
  %v1707 = vld [vmem:[%s992 + $0x48] sm:$0xff]
  %v1708 = vld [vmem:[%s992 + $0x50] sm:$0xf]
  %v1709 = vld [vmem:[%s992 + $0x54] sm:$0xff]
  %v1710 = vld [vmem:[%s992 + $0x5c] sm:$0xf]
  %v1711 = vld [vmem:[%s992 + $0x60] sm:$0xff]
  %v1712 = vld [vmem:[%s992 + $0x68] sm:$0xf]
  %v1713 = vld [vmem:[%s992 + $0x6c] sm:$0xff]
  %v1714 = vld [vmem:[%s992 + $0x74] sm:$0xf]
  %v1715 = vld [vmem:[%s992 + $0x78] sm:$0xff]
  %v1716 = vld [vmem:[%s992 + $0x80] sm:$0xf]
  %v1717 = vld [vmem:[%s992 + $0x84] sm:$0xff]
  %v1718 = vld [vmem:[%s992 + $0x8c] sm:$0xf]
  %v1719 = vld [vmem:[%s992 + $0x90] sm:$0xff]
  %v1720 = vld [vmem:[%s992 + $0x98] sm:$0xf]
  %v1721 = vld [vmem:[%s992 + $0x9c] sm:$0xff]
  %v1722 = vld [vmem:[%s992 + $0xa4] sm:$0xf]
  %v1723 = vld [vmem:[%s992 + $0xa8] sm:$0xff]
  %v1724 = vld [vmem:[%s992 + $0xb0] sm:$0xf]
  %v1725 = vld [vmem:[%s992 + $0xb4] sm:$0xff]
  %v1726 = vld [vmem:[%s992 + $0xbc] sm:$0xf]
  %v1759 = vunpack.c.l.b16 %v1695
  %v1760 = vunpack.c.h.b16 %v1695
  %v1761 = vunpack.c.l.b16 %v1696
  %v1762 = vunpack.c.l.b16 %v1697
  %v1763 = vunpack.c.h.b16 %v1697
  %v1764 = vunpack.c.l.b16 %v1698
  %v1765 = vunpack.c.l.b16 %v1699
  %v1766 = vunpack.c.h.b16 %v1699
  %v1767 = vunpack.c.l.b16 %v1700
  %v1768 = vunpack.c.l.b16 %v1701
  %v1769 = vunpack.c.h.b16 %v1701
  %v1770 = vunpack.c.l.b16 %v1702
  %v1771 = vunpack.c.l.b16 %v1703
  %v1772 = vunpack.c.h.b16 %v1703
  %v1773 = vunpack.c.l.b16 %v1704
  %v1774 = vunpack.c.l.b16 %v1705
  %v1775 = vunpack.c.h.b16 %v1705
  %v1776 = vunpack.c.l.b16 %v1706
  %v1777 = vunpack.c.l.b16 %v1707
  %v1778 = vunpack.c.h.b16 %v1707
  %v1779 = vunpack.c.l.b16 %v1708
  %v1780 = vunpack.c.l.b16 %v1709
  %v1781 = vunpack.c.h.b16 %v1709
  %v1782 = vunpack.c.l.b16 %v1710
  %v1783 = vunpack.c.l.b16 %v1711
  %v1784 = vunpack.c.h.b16 %v1711
  %v1785 = vunpack.c.l.b16 %v1712
  %v1786 = vunpack.c.l.b16 %v1713
  %v1787 = vunpack.c.h.b16 %v1713
  %v1788 = vunpack.c.l.b16 %v1714
  %v1789 = vunpack.c.l.b16 %v1715
  %v1790 = vunpack.c.h.b16 %v1715
  %v1791 = vunpack.c.l.b16 %v1716
  %v1792 = vunpack.c.l.b16 %v1717
  %v1793 = vunpack.c.h.b16 %v1717
  %v1794 = vunpack.c.l.b16 %v1718
  %v1795 = vunpack.c.l.b16 %v1719
  %v1796 = vunpack.c.h.b16 %v1719
  %v1797 = vunpack.c.l.b16 %v1720
  %v1798 = vunpack.c.l.b16 %v1721
  %v1799 = vunpack.c.h.b16 %v1721
  %v1800 = vunpack.c.l.b16 %v1722
  %v1801 = vunpack.c.l.b16 %v1723
  %v1802 = vunpack.c.h.b16 %v1723
  %v1803 = vunpack.c.l.b16 %v1724
  %v1804 = vunpack.c.l.b16 %v1725
  %v1805 = vunpack.c.h.b16 %v1725
  %v1806 = vunpack.c.l.b16 %v1726
  %v1807 = vpack.c.b16 %v1762, %v1759
  %v1808 = vpack.c.b16 %v1763, %v1760
  %v1809 = vpack.c.b16 %v1764, %v1761
  %v1810 = vpack.c.b16 %v1768, %v1765
  %v1811 = vpack.c.b16 %v1769, %v1766
  %v1812 = vpack.c.b16 %v1770, %v1767
  %v1813 = vpack.c.b16 %v1774, %v1771
  %v1814 = vpack.c.b16 %v1775, %v1772
  %v1815 = vpack.c.b16 %v1776, %v1773
  %v1816 = vpack.c.b16 %v1780, %v1777
  %v1817 = vpack.c.b16 %v1781, %v1778
  %v1818 = vpack.c.b16 %v1782, %v1779
  %v1819 = vpack.c.b16 %v1786, %v1783
  %v1820 = vpack.c.b16 %v1787, %v1784
  %v1821 = vpack.c.b16 %v1788, %v1785
  %v1822 = vpack.c.b16 %v1792, %v1789
  %v1823 = vpack.c.b16 %v1793, %v1790
  %v1824 = vpack.c.b16 %v1794, %v1791
  %v1825 = vpack.c.b16 %v1798, %v1795
  %v1826 = vpack.c.b16 %v1799, %v1796
  %v1827 = vpack.c.b16 %v1800, %v1797
  %v1828 = vpack.c.b16 %v1804, %v1801
  %v1829 = vpack.c.b16 %v1805, %v1802
  %v1830 = vpack.c.b16 %v1806, %v1803
  %1855 = vmatpush.bf16.msra.mxu0 %v1828
  %1856 = vmatpush.bf16.msra.mxu0 %v1825
  %1857 = vmatpush.bf16.msra.mxu0 %v1822
  %1858 = vmatpush.bf16.msra.mxu0 %v1819
  %1859 = vmatpush.bf16.msra.mxu0 %v1816
  %1860 = vmatpush.bf16.msra.mxu0 %v1813
  %1861 = vmatpush.bf16.msra.mxu0 %v1810
  %1862 = vmatpush.bf16.msra.mxu0 %v1807
  %1863 = vmatmul.bf16.gmra.mxu0 %v1694
  %v1864 = vpop.f32.mrf.mxu0
  %v1865 = vadd.f32 0.0, %v1864
  %v1866 = vpop.f32.mrf.mxu0
  %1867 = vdwg.mxu0
  %1868 = vmatpush.bf16.msra.mxu0 %v1829
  %1869 = vmatpush.bf16.msra.mxu0 %v1826
  %1870 = vmatpush.bf16.msra.mxu0 %v1823
  %1871 = vmatpush.bf16.msra.mxu0 %v1820
  %1872 = vmatpush.bf16.msra.mxu0 %v1817
  %1873 = vmatpush.bf16.msra.mxu0 %v1814
  %1874 = vmatpush.bf16.msra.mxu0 %v1811
  %1875 = vmatpush.bf16.msra.mxu0 %v1808
  %1876 = vmatmul.bf16.gmra.mxu0 %v1694
  %v1877 = vpop.f32.mrf.mxu0
  %v1878 = vadd.f32 0.0, %v1877
  %v1879 = vpop.f32.mrf.mxu0
  %1880 = vdwg.mxu0
  %1881 = vmatpush.bf16.msra.mxu0 %v1830
  %1882 = vmatpush.bf16.msra.mxu0 %v1827
  %1883 = vmatpush.bf16.msra.mxu0 %v1824
  %1884 = vmatpush.bf16.msra.mxu0 %v1821
  %1885 = vmatpush.bf16.msra.mxu0 %v1818
  %1886 = vmatpush.bf16.msra.mxu0 %v1815
  %1887 = vmatpush.bf16.msra.mxu0 %v1812
  %1888 = vmatpush.bf16.msra.mxu0 %v1809
  %1889 = vmatmul.bf16.gmra.mxu0 %v1694
  %v1890 = vpop.f32.mrf.mxu0
  %v1891 = vadd.f32 0.0, %v1890
  %v1892 = vpop.f32.mrf.mxu0
  %1893 = vdwg.mxu0
  %v1894 = vadd.f32 %v1665, %v1865
  %v1895 = vxor.u32 %v1894, 2147483648
  %v1896 = vmul.f32 %v1895, 1.442695
  %v1897 = vpow.pop %v1896
  %v1898 = vadd.f32 %v1897, 1.0
  %v1899 = vrcp.pop %v1898
  %v1900 = vmul.f32 %v1898, %v1899
  %v1901 = vsub.f32 1.0, %v1900
  %v1902 = vmul.f32 %v1899, %v1901
  %v1903 = vadd.f32 %v1899, %v1902
  %vm1904 = vweird.f32 %v1898
  %vm1905 = vweird.f32 %v1899
  %vm1906 = vmor %vm1904, %vm1905
  %v1907 = vsel %vm1906, %v1899, %v1903
  %v1908 = vand.u32 2147483647, %v1898
  %vm1909 = vcmp.eq.f32.partialorder %v1908, 8.507059e+37
  %v1910 = vand.u32 %v1898, 2147483648
  %v1911 = vor.u32 1.1754944e-38, %v1910
  %v1912 = vsel %vm1909, %v1911, %v1907
  %v1913 = vmul.f32 1.0, %v1912
  %v1914 = vadd.f32 %v1678, %v1878
  %v1915 = vxor.u32 %v1914, 2147483648
  %v1916 = vmul.f32 %v1915, 1.442695
  %v1917 = vpow.pop %v1916
  %v1918 = vadd.f32 %v1917, 1.0
  %v1919 = vrcp.pop %v1918
  %v1920 = vmul.f32 %v1918, %v1919
  %v1921 = vsub.f32 1.0, %v1920
  %v1922 = vmul.f32 %v1919, %v1921
  %v1923 = vadd.f32 %v1919, %v1922
  %vm1924 = vweird.f32 %v1918
  %vm1925 = vweird.f32 %v1919
  %vm1926 = vmor %vm1924, %vm1925
  %v1927 = vsel %vm1926, %v1919, %v1923
  %v1928 = vand.u32 2147483647, %v1918
  %vm1929 = vcmp.eq.f32.partialorder %v1928, 8.507059e+37
  %v1930 = vand.u32 %v1918, 2147483648
  %v1931 = vor.u32 1.1754944e-38, %v1930
  %v1932 = vsel %vm1929, %v1931, %v1927
  %v1933 = vmul.f32 1.0, %v1932
  %v1934 = vadd.f32 %v1891, %v443
  %v1935 = vmul.f32 %v1913, %v1934
  %v1936 = vadd.f32 %v1691, %v1935
  %v1937 = vtanh.pop %v1936
  %v1938 = vsub.f32 1.0, %v1933
  %v1939 = vmul.f32 %v1938, %v1937
  %v1940 = vmul.f32 %v1933, %v1239
  %v1941 = vadd.f32 %v1939, %v1940
  %s1942 = scalar_lea.vmem [#allocation3], 8
  %1943 = vst [vmem:[%s1942] sm:$0xff] %v1941
  %s1944 = smul.u32 3, 3
  %s1945 = smul.addr %s1944, 8
  %s1946 = scalar_lea.vmem [#allocation2], %s1945
  %v1947 = vld [vmem:[%s1946] sm:$0xff]
  %v1948 = vld [vmem:[%s1946 + $0x8] sm:$0xff]
  %v1949 = vld [vmem:[%s1946 + $0x10] sm:$0xff]
  %v1950 = vpack.c.bf16 %v1494, %v1494
  %v1951 = vld [vmem:[%s4] sm:$0xff]
  %v1952 = vld [vmem:[%s4 + $0x8] sm:$0xf]
  %v1953 = vld [vmem:[%s4 + $0xc] sm:$0xff]
  %v1954 = vld [vmem:[%s4 + $0x14] sm:$0xf]
  %v1955 = vld [vmem:[%s4 + $0x18] sm:$0xff]
  %v1956 = vld [vmem:[%s4 + $0x20] sm:$0xf]
  %v1957 = vld [vmem:[%s4 + $0x24] sm:$0xff]
  %v1958 = vld [vmem:[%s4 + $0x2c] sm:$0xf]
  %v1959 = vld [vmem:[%s4 + $0x30] sm:$0xff]
  %v1960 = vld [vmem:[%s4 + $0x38] sm:$0xf]
  %v1961 = vld [vmem:[%s4 + $0x3c] sm:$0xff]
  %v1962 = vld [vmem:[%s4 + $0x44] sm:$0xf]
  %v1963 = vld [vmem:[%s4 + $0x48] sm:$0xff]
  %v1964 = vld [vmem:[%s4 + $0x50] sm:$0xf]
  %v1965 = vld [vmem:[%s4 + $0x54] sm:$0xff]
  %v1966 = vld [vmem:[%s4 + $0x5c] sm:$0xf]
  %v1967 = vld [vmem:[%s4 + $0x60] sm:$0xff]
  %v1968 = vld [vmem:[%s4 + $0x68] sm:$0xf]
  %v1969 = vld [vmem:[%s4 + $0x6c] sm:$0xff]
  %v1970 = vld [vmem:[%s4 + $0x74] sm:$0xf]
  %v1971 = vld [vmem:[%s4 + $0x78] sm:$0xff]
  %v1972 = vld [vmem:[%s4 + $0x80] sm:$0xf]
  %v1973 = vld [vmem:[%s4 + $0x84] sm:$0xff]
  %v1974 = vld [vmem:[%s4 + $0x8c] sm:$0xf]
  %v1975 = vld [vmem:[%s4 + $0x90] sm:$0xff]
  %v1976 = vld [vmem:[%s4 + $0x98] sm:$0xf]
  %v1977 = vld [vmem:[%s4 + $0x9c] sm:$0xff]
  %v1978 = vld [vmem:[%s4 + $0xa4] sm:$0xf]
  %v1979 = vld [vmem:[%s4 + $0xa8] sm:$0xff]
  %v1980 = vld [vmem:[%s4 + $0xb0] sm:$0xf]
  %v1981 = vld [vmem:[%s4 + $0xb4] sm:$0xff]
  %v1982 = vld [vmem:[%s4 + $0xbc] sm:$0xf]
  %v2015 = vunpack.c.l.b16 %v1951
  %v2016 = vunpack.c.h.b16 %v1951
  %v2017 = vunpack.c.l.b16 %v1952
  %v2018 = vunpack.c.l.b16 %v1953
  %v2019 = vunpack.c.h.b16 %v1953
  %v2020 = vunpack.c.l.b16 %v1954
  %v2021 = vunpack.c.l.b16 %v1955
  %v2022 = vunpack.c.h.b16 %v1955
  %v2023 = vunpack.c.l.b16 %v1956
  %v2024 = vunpack.c.l.b16 %v1957
  %v2025 = vunpack.c.h.b16 %v1957
  %v2026 = vunpack.c.l.b16 %v1958
  %v2027 = vunpack.c.l.b16 %v1959
  %v2028 = vunpack.c.h.b16 %v1959
  %v2029 = vunpack.c.l.b16 %v1960
  %v2030 = vunpack.c.l.b16 %v1961
  %v2031 = vunpack.c.h.b16 %v1961
  %v2032 = vunpack.c.l.b16 %v1962
  %v2033 = vunpack.c.l.b16 %v1963
  %v2034 = vunpack.c.h.b16 %v1963
  %v2035 = vunpack.c.l.b16 %v1964
  %v2036 = vunpack.c.l.b16 %v1965
  %v2037 = vunpack.c.h.b16 %v1965
  %v2038 = vunpack.c.l.b16 %v1966
  %v2039 = vunpack.c.l.b16 %v1967
  %v2040 = vunpack.c.h.b16 %v1967
  %v2041 = vunpack.c.l.b16 %v1968
  %v2042 = vunpack.c.l.b16 %v1969
  %v2043 = vunpack.c.h.b16 %v1969
  %v2044 = vunpack.c.l.b16 %v1970
  %v2045 = vunpack.c.l.b16 %v1971
  %v2046 = vunpack.c.h.b16 %v1971
  %v2047 = vunpack.c.l.b16 %v1972
  %v2048 = vunpack.c.l.b16 %v1973
  %v2049 = vunpack.c.h.b16 %v1973
  %v2050 = vunpack.c.l.b16 %v1974
  %v2051 = vunpack.c.l.b16 %v1975
  %v2052 = vunpack.c.h.b16 %v1975
  %v2053 = vunpack.c.l.b16 %v1976
  %v2054 = vunpack.c.l.b16 %v1977
  %v2055 = vunpack.c.h.b16 %v1977
  %v2056 = vunpack.c.l.b16 %v1978
  %v2057 = vunpack.c.l.b16 %v1979
  %v2058 = vunpack.c.h.b16 %v1979
  %v2059 = vunpack.c.l.b16 %v1980
  %v2060 = vunpack.c.l.b16 %v1981
  %v2061 = vunpack.c.h.b16 %v1981
  %v2062 = vunpack.c.l.b16 %v1982
  %v2063 = vpack.c.b16 %v2018, %v2015
  %v2064 = vpack.c.b16 %v2019, %v2016
  %v2065 = vpack.c.b16 %v2020, %v2017
  %v2066 = vpack.c.b16 %v2024, %v2021
  %v2067 = vpack.c.b16 %v2025, %v2022
  %v2068 = vpack.c.b16 %v2026, %v2023
  %v2069 = vpack.c.b16 %v2030, %v2027
  %v2070 = vpack.c.b16 %v2031, %v2028
  %v2071 = vpack.c.b16 %v2032, %v2029
  %v2072 = vpack.c.b16 %v2036, %v2033
  %v2073 = vpack.c.b16 %v2037, %v2034
  %v2074 = vpack.c.b16 %v2038, %v2035
  %v2075 = vpack.c.b16 %v2042, %v2039
  %v2076 = vpack.c.b16 %v2043, %v2040
  %v2077 = vpack.c.b16 %v2044, %v2041
  %v2078 = vpack.c.b16 %v2048, %v2045
  %v2079 = vpack.c.b16 %v2049, %v2046
  %v2080 = vpack.c.b16 %v2050, %v2047
  %v2081 = vpack.c.b16 %v2054, %v2051
  %v2082 = vpack.c.b16 %v2055, %v2052
  %v2083 = vpack.c.b16 %v2056, %v2053
  %v2084 = vpack.c.b16 %v2060, %v2057
  %v2085 = vpack.c.b16 %v2061, %v2058
  %v2086 = vpack.c.b16 %v2062, %v2059
  %2111 = vmatpush.bf16.msra.mxu0 %v2084
  %2112 = vmatpush.bf16.msra.mxu0 %v2081
  %2113 = vmatpush.bf16.msra.mxu0 %v2078
  %2114 = vmatpush.bf16.msra.mxu0 %v2075
  %2115 = vmatpush.bf16.msra.mxu0 %v2072
  %2116 = vmatpush.bf16.msra.mxu0 %v2069
  %2117 = vmatpush.bf16.msra.mxu0 %v2066
  %2118 = vmatpush.bf16.msra.mxu0 %v2063
  %2119 = vmatmul.bf16.gmra.mxu0 %v1950
  %v2120 = vpop.f32.mrf.mxu0
  %v2121 = vadd.f32 0.0, %v2120
  %v2122 = vpop.f32.mrf.mxu0
  %2123 = vdwg.mxu0
  %2124 = vmatpush.bf16.msra.mxu0 %v2085
  %2125 = vmatpush.bf16.msra.mxu0 %v2082
  %2126 = vmatpush.bf16.msra.mxu0 %v2079
  %2127 = vmatpush.bf16.msra.mxu0 %v2076
  %2128 = vmatpush.bf16.msra.mxu0 %v2073
  %2129 = vmatpush.bf16.msra.mxu0 %v2070
  %2130 = vmatpush.bf16.msra.mxu0 %v2067
  %2131 = vmatpush.bf16.msra.mxu0 %v2064
  %2132 = vmatmul.bf16.gmra.mxu0 %v1950
  %v2133 = vpop.f32.mrf.mxu0
  %v2134 = vadd.f32 0.0, %v2133
  %v2135 = vpop.f32.mrf.mxu0
  %2136 = vdwg.mxu0
  %2137 = vmatpush.bf16.msra.mxu0 %v2086
  %2138 = vmatpush.bf16.msra.mxu0 %v2083
  %2139 = vmatpush.bf16.msra.mxu0 %v2080
  %2140 = vmatpush.bf16.msra.mxu0 %v2077
  %2141 = vmatpush.bf16.msra.mxu0 %v2074
  %2142 = vmatpush.bf16.msra.mxu0 %v2071
  %2143 = vmatpush.bf16.msra.mxu0 %v2068
  %2144 = vmatpush.bf16.msra.mxu0 %v2065
  %2145 = vmatmul.bf16.gmra.mxu0 %v1950
  %v2146 = vpop.f32.mrf.mxu0
  %v2147 = vadd.f32 0.0, %v2146
  %v2148 = vpop.f32.mrf.mxu0
  %2149 = vdwg.mxu0
  %v2150 = vadd.f32 %v1947, %v2121
  %v2151 = vxor.u32 %v2150, 2147483648
  %v2152 = vmul.f32 %v2151, 1.442695
  %v2153 = vpow.pop %v2152
  %v2154 = vadd.f32 %v2153, 1.0
  %v2155 = vrcp.pop %v2154
  %v2156 = vmul.f32 %v2154, %v2155
  %v2157 = vsub.f32 1.0, %v2156
  %v2158 = vmul.f32 %v2155, %v2157
  %v2159 = vadd.f32 %v2155, %v2158
  %vm2160 = vweird.f32 %v2154
  %vm2161 = vweird.f32 %v2155
  %vm2162 = vmor %vm2160, %vm2161
  %v2163 = vsel %vm2162, %v2155, %v2159
  %v2164 = vand.u32 2147483647, %v2154
  %vm2165 = vcmp.eq.f32.partialorder %v2164, 8.507059e+37
  %v2166 = vand.u32 %v2154, 2147483648
  %v2167 = vor.u32 1.1754944e-38, %v2166
  %v2168 = vsel %vm2165, %v2167, %v2163
  %v2169 = vmul.f32 1.0, %v2168
  %v2170 = vadd.f32 %v1948, %v2134
  %v2171 = vxor.u32 %v2170, 2147483648
  %v2172 = vmul.f32 %v2171, 1.442695
  %v2173 = vpow.pop %v2172
  %v2174 = vadd.f32 %v2173, 1.0
  %v2175 = vrcp.pop %v2174
  %v2176 = vmul.f32 %v2174, %v2175
  %v2177 = vsub.f32 1.0, %v2176
  %v2178 = vmul.f32 %v2175, %v2177
  %v2179 = vadd.f32 %v2175, %v2178
  %vm2180 = vweird.f32 %v2174
  %vm2181 = vweird.f32 %v2175
  %vm2182 = vmor %vm2180, %vm2181
  %v2183 = vsel %vm2182, %v2175, %v2179
  %v2184 = vand.u32 2147483647, %v2174
  %vm2185 = vcmp.eq.f32.partialorder %v2184, 8.507059e+37
  %v2186 = vand.u32 %v2174, 2147483648
  %v2187 = vor.u32 1.1754944e-38, %v2186
  %v2188 = vsel %vm2185, %v2187, %v2183
  %v2189 = vmul.f32 1.0, %v2188
  %v2190 = vadd.f32 %v2147, %v438
  %v2191 = vmul.f32 %v2169, %v2190
  %v2192 = vadd.f32 %v1949, %v2191
  %v2193 = vtanh.pop %v2192
  %v2194 = vsub.f32 1.0, %v2189
  %v2195 = vmul.f32 %v2194, %v2193
  %v2196 = vmul.f32 %v2189, %v1494
  %v2197 = vadd.f32 %v2195, %v2196
  %v2198 = vld [vmem:[%s792] sm:$0xff]
  %v2199 = vld [vmem:[%s792 + $0x8] sm:$0xf]
  %v2200 = vld [vmem:[%s792 + $0xc] sm:$0xff]
  %v2201 = vld [vmem:[%s792 + $0x14] sm:$0xf]
  %v2202 = vld [vmem:[%s792 + $0x18] sm:$0xff]
  %v2203 = vld [vmem:[%s792 + $0x20] sm:$0xf]
  %v2204 = vld [vmem:[%s792 + $0x24] sm:$0xff]
  %v2205 = vld [vmem:[%s792 + $0x2c] sm:$0xf]
  %v2206 = vld [vmem:[%s792 + $0x30] sm:$0xff]
  %v2207 = vld [vmem:[%s792 + $0x38] sm:$0xf]
  %v2208 = vld [vmem:[%s792 + $0x3c] sm:$0xff]
  %v2209 = vld [vmem:[%s792 + $0x44] sm:$0xf]
  %v2210 = vld [vmem:[%s792 + $0x48] sm:$0xff]
  %v2211 = vld [vmem:[%s792 + $0x50] sm:$0xf]
  %v2212 = vld [vmem:[%s792 + $0x54] sm:$0xff]
  %v2213 = vld [vmem:[%s792 + $0x5c] sm:$0xf]
  %v2214 = vld [vmem:[%s792 + $0x60] sm:$0xff]
  %v2215 = vld [vmem:[%s792 + $0x68] sm:$0xf]
  %v2216 = vld [vmem:[%s792 + $0x6c] sm:$0xff]
  %v2217 = vld [vmem:[%s792 + $0x74] sm:$0xf]
  %v2218 = vld [vmem:[%s792 + $0x78] sm:$0xff]
  %v2219 = vld [vmem:[%s792 + $0x80] sm:$0xf]
  %v2220 = vld [vmem:[%s792 + $0x84] sm:$0xff]
  %v2221 = vld [vmem:[%s792 + $0x8c] sm:$0xf]
  %v2222 = vld [vmem:[%s792 + $0x90] sm:$0xff]
  %v2223 = vld [vmem:[%s792 + $0x98] sm:$0xf]
  %v2224 = vld [vmem:[%s792 + $0x9c] sm:$0xff]
  %v2225 = vld [vmem:[%s792 + $0xa4] sm:$0xf]
  %v2226 = vld [vmem:[%s792 + $0xa8] sm:$0xff]
  %v2227 = vld [vmem:[%s792 + $0xb0] sm:$0xf]
  %v2228 = vld [vmem:[%s792 + $0xb4] sm:$0xff]
  %v2229 = vld [vmem:[%s792 + $0xbc] sm:$0xf]
  %v2262 = vunpack.c.l.b16 %v2198
  %v2263 = vunpack.c.h.b16 %v2198
  %v2264 = vunpack.c.l.b16 %v2199
  %v2265 = vunpack.c.l.b16 %v2200
  %v2266 = vunpack.c.h.b16 %v2200
  %v2267 = vunpack.c.l.b16 %v2201
  %v2268 = vunpack.c.l.b16 %v2202
  %v2269 = vunpack.c.h.b16 %v2202
  %v2270 = vunpack.c.l.b16 %v2203
  %v2271 = vunpack.c.l.b16 %v2204
  %v2272 = vunpack.c.h.b16 %v2204
  %v2273 = vunpack.c.l.b16 %v2205
  %v2274 = vunpack.c.l.b16 %v2206
  %v2275 = vunpack.c.h.b16 %v2206
  %v2276 = vunpack.c.l.b16 %v2207
  %v2277 = vunpack.c.l.b16 %v2208
  %v2278 = vunpack.c.h.b16 %v2208
  %v2279 = vunpack.c.l.b16 %v2209
  %v2280 = vunpack.c.l.b16 %v2210
  %v2281 = vunpack.c.h.b16 %v2210
  %v2282 = vunpack.c.l.b16 %v2211
  %v2283 = vunpack.c.l.b16 %v2212
  %v2284 = vunpack.c.h.b16 %v2212
  %v2285 = vunpack.c.l.b16 %v2213
  %v2286 = vunpack.c.l.b16 %v2214
  %v2287 = vunpack.c.h.b16 %v2214
  %v2288 = vunpack.c.l.b16 %v2215
  %v2289 = vunpack.c.l.b16 %v2216
  %v2290 = vunpack.c.h.b16 %v2216
  %v2291 = vunpack.c.l.b16 %v2217
  %v2292 = vunpack.c.l.b16 %v2218
  %v2293 = vunpack.c.h.b16 %v2218
  %v2294 = vunpack.c.l.b16 %v2219
  %v2295 = vunpack.c.l.b16 %v2220
  %v2296 = vunpack.c.h.b16 %v2220
  %v2297 = vunpack.c.l.b16 %v2221
  %v2298 = vunpack.c.l.b16 %v2222
  %v2299 = vunpack.c.h.b16 %v2222
  %v2300 = vunpack.c.l.b16 %v2223
  %v2301 = vunpack.c.l.b16 %v2224
  %v2302 = vunpack.c.h.b16 %v2224
  %v2303 = vunpack.c.l.b16 %v2225
  %v2304 = vunpack.c.l.b16 %v2226
  %v2305 = vunpack.c.h.b16 %v2226
  %v2306 = vunpack.c.l.b16 %v2227
  %v2307 = vunpack.c.l.b16 %v2228
  %v2308 = vunpack.c.h.b16 %v2228
  %v2309 = vunpack.c.l.b16 %v2229
  %v2310 = vpack.c.b16 %v2265, %v2262
  %v2311 = vpack.c.b16 %v2266, %v2263
  %v2312 = vpack.c.b16 %v2267, %v2264
  %v2313 = vpack.c.b16 %v2271, %v2268
  %v2314 = vpack.c.b16 %v2272, %v2269
  %v2315 = vpack.c.b16 %v2273, %v2270
  %v2316 = vpack.c.b16 %v2277, %v2274
  %v2317 = vpack.c.b16 %v2278, %v2275
  %v2318 = vpack.c.b16 %v2279, %v2276
  %v2319 = vpack.c.b16 %v2283, %v2280
  %v2320 = vpack.c.b16 %v2284, %v2281
  %v2321 = vpack.c.b16 %v2285, %v2282
  %v2322 = vpack.c.b16 %v2289, %v2286
  %v2323 = vpack.c.b16 %v2290, %v2287
  %v2324 = vpack.c.b16 %v2291, %v2288
  %v2325 = vpack.c.b16 %v2295, %v2292
  %v2326 = vpack.c.b16 %v2296, %v2293
  %v2327 = vpack.c.b16 %v2297, %v2294
  %v2328 = vpack.c.b16 %v2301, %v2298
  %v2329 = vpack.c.b16 %v2302, %v2299
  %v2330 = vpack.c.b16 %v2303, %v2300
  %v2331 = vpack.c.b16 %v2307, %v2304
  %v2332 = vpack.c.b16 %v2308, %v2305
  %v2333 = vpack.c.b16 %v2309, %v2306
  %2358 = vmatpush.bf16.msra.mxu0 %v2331
  %2359 = vmatpush.bf16.msra.mxu0 %v2328
  %2360 = vmatpush.bf16.msra.mxu0 %v2325
  %2361 = vmatpush.bf16.msra.mxu0 %v2322
  %2362 = vmatpush.bf16.msra.mxu0 %v2319
  %2363 = vmatpush.bf16.msra.mxu0 %v2316
  %2364 = vmatpush.bf16.msra.mxu0 %v2313
  %2365 = vmatpush.bf16.msra.mxu0 %v2310
  %2366 = vmatmul.bf16.gmra.mxu0 %v1950
  %v2367 = vpop.f32.mrf.mxu0
  %v2368 = vadd.f32 %v430, %v2367
  %v2369 = vpop.f32.mrf.mxu0
  %2370 = vdwg.mxu0
  %2371 = vmatpush.bf16.msra.mxu0 %v2332
  %2372 = vmatpush.bf16.msra.mxu0 %v2329
  %2373 = vmatpush.bf16.msra.mxu0 %v2326
  %2374 = vmatpush.bf16.msra.mxu0 %v2323
  %2375 = vmatpush.bf16.msra.mxu0 %v2320
  %2376 = vmatpush.bf16.msra.mxu0 %v2317
  %2377 = vmatpush.bf16.msra.mxu0 %v2314
  %2378 = vmatpush.bf16.msra.mxu0 %v2311
  %2379 = vmatmul.bf16.gmra.mxu0 %v1950
  %v2380 = vpop.f32.mrf.mxu0
  %v2381 = vadd.f32 %v431, %v2380
  %v2382 = vpop.f32.mrf.mxu0
  %2383 = vdwg.mxu0
  %2384 = vmatpush.bf16.msra.mxu0 %v2333
  %2385 = vmatpush.bf16.msra.mxu0 %v2330
  %2386 = vmatpush.bf16.msra.mxu0 %v2327
  %2387 = vmatpush.bf16.msra.mxu0 %v2324
  %2388 = vmatpush.bf16.msra.mxu0 %v2321
  %2389 = vmatpush.bf16.msra.mxu0 %v2318
  %2390 = vmatpush.bf16.msra.mxu0 %v2315
  %2391 = vmatpush.bf16.msra.mxu0 %v2312
  %2392 = vmatmul.bf16.gmra.mxu0 %v1950
  %v2393 = vpop.f32.mrf.mxu0
  %v2394 = vadd.f32 %v432, %v2393
  %v2395 = vpop.f32.mrf.mxu0
  %2396 = vdwg.mxu0
  %v2397 = vpack.c.bf16 %v1941, %v1941
  %v2398 = vld [vmem:[%s992] sm:$0xff]
  %v2399 = vld [vmem:[%s992 + $0x8] sm:$0xf]
  %v2400 = vld [vmem:[%s992 + $0xc] sm:$0xff]
  %v2401 = vld [vmem:[%s992 + $0x14] sm:$0xf]
  %v2402 = vld [vmem:[%s992 + $0x18] sm:$0xff]
  %v2403 = vld [vmem:[%s992 + $0x20] sm:$0xf]
  %v2404 = vld [vmem:[%s992 + $0x24] sm:$0xff]
  %v2405 = vld [vmem:[%s992 + $0x2c] sm:$0xf]
  %v2406 = vld [vmem:[%s992 + $0x30] sm:$0xff]
  %v2407 = vld [vmem:[%s992 + $0x38] sm:$0xf]
  %v2408 = vld [vmem:[%s992 + $0x3c] sm:$0xff]
  %v2409 = vld [vmem:[%s992 + $0x44] sm:$0xf]
  %v2410 = vld [vmem:[%s992 + $0x48] sm:$0xff]
  %v2411 = vld [vmem:[%s992 + $0x50] sm:$0xf]
  %v2412 = vld [vmem:[%s992 + $0x54] sm:$0xff]
  %v2413 = vld [vmem:[%s992 + $0x5c] sm:$0xf]
  %v2414 = vld [vmem:[%s992 + $0x60] sm:$0xff]
  %v2415 = vld [vmem:[%s992 + $0x68] sm:$0xf]
  %v2416 = vld [vmem:[%s992 + $0x6c] sm:$0xff]
  %v2417 = vld [vmem:[%s992 + $0x74] sm:$0xf]
  %v2418 = vld [vmem:[%s992 + $0x78] sm:$0xff]
  %v2419 = vld [vmem:[%s992 + $0x80] sm:$0xf]
  %v2420 = vld [vmem:[%s992 + $0x84] sm:$0xff]
  %v2421 = vld [vmem:[%s992 + $0x8c] sm:$0xf]
  %v2422 = vld [vmem:[%s992 + $0x90] sm:$0xff]
  %v2423 = vld [vmem:[%s992 + $0x98] sm:$0xf]
  %v2424 = vld [vmem:[%s992 + $0x9c] sm:$0xff]
  %v2425 = vld [vmem:[%s992 + $0xa4] sm:$0xf]
  %v2426 = vld [vmem:[%s992 + $0xa8] sm:$0xff]
  %v2427 = vld [vmem:[%s992 + $0xb0] sm:$0xf]
  %v2428 = vld [vmem:[%s992 + $0xb4] sm:$0xff]
  %v2429 = vld [vmem:[%s992 + $0xbc] sm:$0xf]
  %v2462 = vunpack.c.l.b16 %v2398
  %v2463 = vunpack.c.h.b16 %v2398
  %v2464 = vunpack.c.l.b16 %v2399
  %v2465 = vunpack.c.l.b16 %v2400
  %v2466 = vunpack.c.h.b16 %v2400
  %v2467 = vunpack.c.l.b16 %v2401
  %v2468 = vunpack.c.l.b16 %v2402
  %v2469 = vunpack.c.h.b16 %v2402
  %v2470 = vunpack.c.l.b16 %v2403
  %v2471 = vunpack.c.l.b16 %v2404
  %v2472 = vunpack.c.h.b16 %v2404
  %v2473 = vunpack.c.l.b16 %v2405
  %v2474 = vunpack.c.l.b16 %v2406
  %v2475 = vunpack.c.h.b16 %v2406
  %v2476 = vunpack.c.l.b16 %v2407
  %v2477 = vunpack.c.l.b16 %v2408
  %v2478 = vunpack.c.h.b16 %v2408
  %v2479 = vunpack.c.l.b16 %v2409
  %v2480 = vunpack.c.l.b16 %v2410
  %v2481 = vunpack.c.h.b16 %v2410
  %v2482 = vunpack.c.l.b16 %v2411
  %v2483 = vunpack.c.l.b16 %v2412
  %v2484 = vunpack.c.h.b16 %v2412
  %v2485 = vunpack.c.l.b16 %v2413
  %v2486 = vunpack.c.l.b16 %v2414
  %v2487 = vunpack.c.h.b16 %v2414
  %v2488 = vunpack.c.l.b16 %v2415
  %v2489 = vunpack.c.l.b16 %v2416
  %v2490 = vunpack.c.h.b16 %v2416
  %v2491 = vunpack.c.l.b16 %v2417
  %v2492 = vunpack.c.l.b16 %v2418
  %v2493 = vunpack.c.h.b16 %v2418
  %v2494 = vunpack.c.l.b16 %v2419
  %v2495 = vunpack.c.l.b16 %v2420
  %v2496 = vunpack.c.h.b16 %v2420
  %v2497 = vunpack.c.l.b16 %v2421
  %v2498 = vunpack.c.l.b16 %v2422
  %v2499 = vunpack.c.h.b16 %v2422
  %v2500 = vunpack.c.l.b16 %v2423
  %v2501 = vunpack.c.l.b16 %v2424
  %v2502 = vunpack.c.h.b16 %v2424
  %v2503 = vunpack.c.l.b16 %v2425
  %v2504 = vunpack.c.l.b16 %v2426
  %v2505 = vunpack.c.h.b16 %v2426
  %v2506 = vunpack.c.l.b16 %v2427
  %v2507 = vunpack.c.l.b16 %v2428
  %v2508 = vunpack.c.h.b16 %v2428
  %v2509 = vunpack.c.l.b16 %v2429
  %v2510 = vpack.c.b16 %v2465, %v2462
  %v2511 = vpack.c.b16 %v2466, %v2463
  %v2512 = vpack.c.b16 %v2467, %v2464
  %v2513 = vpack.c.b16 %v2471, %v2468
  %v2514 = vpack.c.b16 %v2472, %v2469
  %v2515 = vpack.c.b16 %v2473, %v2470
  %v2516 = vpack.c.b16 %v2477, %v2474
  %v2517 = vpack.c.b16 %v2478, %v2475
  %v2518 = vpack.c.b16 %v2479, %v2476
  %v2519 = vpack.c.b16 %v2483, %v2480
  %v2520 = vpack.c.b16 %v2484, %v2481
  %v2521 = vpack.c.b16 %v2485, %v2482
  %v2522 = vpack.c.b16 %v2489, %v2486
  %v2523 = vpack.c.b16 %v2490, %v2487
  %v2524 = vpack.c.b16 %v2491, %v2488
  %v2525 = vpack.c.b16 %v2495, %v2492
  %v2526 = vpack.c.b16 %v2496, %v2493
  %v2527 = vpack.c.b16 %v2497, %v2494
  %v2528 = vpack.c.b16 %v2501, %v2498
  %v2529 = vpack.c.b16 %v2502, %v2499
  %v2530 = vpack.c.b16 %v2503, %v2500
  %v2531 = vpack.c.b16 %v2507, %v2504
  %v2532 = vpack.c.b16 %v2508, %v2505
  %v2533 = vpack.c.b16 %v2509, %v2506
  %2558 = vmatpush.bf16.msra.mxu0 %v2531
  %2559 = vmatpush.bf16.msra.mxu0 %v2528
  %2560 = vmatpush.bf16.msra.mxu0 %v2525
  %2561 = vmatpush.bf16.msra.mxu0 %v2522
  %2562 = vmatpush.bf16.msra.mxu0 %v2519
  %2563 = vmatpush.bf16.msra.mxu0 %v2516
  %2564 = vmatpush.bf16.msra.mxu0 %v2513
  %2565 = vmatpush.bf16.msra.mxu0 %v2510
  %2566 = vmatmul.bf16.gmra.mxu0 %v2397
  %v2567 = vpop.f32.mrf.mxu0
  %v2568 = vadd.f32 0.0, %v2567
  %v2569 = vpop.f32.mrf.mxu0
  %2570 = vdwg.mxu0
  %2571 = vmatpush.bf16.msra.mxu0 %v2532
  %2572 = vmatpush.bf16.msra.mxu0 %v2529
  %2573 = vmatpush.bf16.msra.mxu0 %v2526
  %2574 = vmatpush.bf16.msra.mxu0 %v2523
  %2575 = vmatpush.bf16.msra.mxu0 %v2520
  %2576 = vmatpush.bf16.msra.mxu0 %v2517
  %2577 = vmatpush.bf16.msra.mxu0 %v2514
  %2578 = vmatpush.bf16.msra.mxu0 %v2511
  %2579 = vmatmul.bf16.gmra.mxu0 %v2397
  %v2580 = vpop.f32.mrf.mxu0
  %v2581 = vadd.f32 0.0, %v2580
  %v2582 = vpop.f32.mrf.mxu0
  %2583 = vdwg.mxu0
  %2584 = vmatpush.bf16.msra.mxu0 %v2533
  %2585 = vmatpush.bf16.msra.mxu0 %v2530
  %2586 = vmatpush.bf16.msra.mxu0 %v2527
  %2587 = vmatpush.bf16.msra.mxu0 %v2524
  %2588 = vmatpush.bf16.msra.mxu0 %v2521
  %2589 = vmatpush.bf16.msra.mxu0 %v2518
  %2590 = vmatpush.bf16.msra.mxu0 %v2515
  %2591 = vmatpush.bf16.msra.mxu0 %v2512
  %2592 = vmatmul.bf16.gmra.mxu0 %v2397
  %v2593 = vpop.f32.mrf.mxu0
  %v2594 = vadd.f32 0.0, %v2593
  %v2595 = vpop.f32.mrf.mxu0
  %2596 = vdwg.mxu0
  %v2597 = vadd.f32 %v2368, %v2568
  %v2598 = vxor.u32 %v2597, 2147483648
  %v2599 = vmul.f32 %v2598, 1.442695
  %v2600 = vpow.pop %v2599
  %v2601 = vadd.f32 %v2600, 1.0
  %v2602 = vrcp.pop %v2601
  %v2603 = vmul.f32 %v2601, %v2602
  %v2604 = vsub.f32 1.0, %v2603
  %v2605 = vmul.f32 %v2602, %v2604
  %v2606 = vadd.f32 %v2602, %v2605
  %vm2607 = vweird.f32 %v2601
  %vm2608 = vweird.f32 %v2602
  %vm2609 = vmor %vm2607, %vm2608
  %v2610 = vsel %vm2609, %v2602, %v2606
  %v2611 = vand.u32 2147483647, %v2601
  %vm2612 = vcmp.eq.f32.partialorder %v2611, 8.507059e+37
  %v2613 = vand.u32 %v2601, 2147483648
  %v2614 = vor.u32 1.1754944e-38, %v2613
  %v2615 = vsel %vm2612, %v2614, %v2610
  %v2616 = vmul.f32 1.0, %v2615
  %v2617 = vadd.f32 %v2381, %v2581
  %v2618 = vxor.u32 %v2617, 2147483648
  %v2619 = vmul.f32 %v2618, 1.442695
  %v2620 = vpow.pop %v2619
  %v2621 = vadd.f32 %v2620, 1.0
  %v2622 = vrcp.pop %v2621
  %v2623 = vmul.f32 %v2621, %v2622
  %v2624 = vsub.f32 1.0, %v2623
  %v2625 = vmul.f32 %v2622, %v2624
  %v2626 = vadd.f32 %v2622, %v2625
  %vm2627 = vweird.f32 %v2621
  %vm2628 = vweird.f32 %v2622
  %vm2629 = vmor %vm2627, %vm2628
  %v2630 = vsel %vm2629, %v2622, %v2626
  %v2631 = vand.u32 2147483647, %v2621
  %vm2632 = vcmp.eq.f32.partialorder %v2631, 8.507059e+37
  %v2633 = vand.u32 %v2621, 2147483648
  %v2634 = vor.u32 1.1754944e-38, %v2633
  %v2635 = vsel %vm2632, %v2634, %v2630
  %v2636 = vmul.f32 1.0, %v2635
  %v2637 = vadd.f32 %v2594, %v443
  %v2638 = vmul.f32 %v2616, %v2637
  %v2639 = vadd.f32 %v2394, %v2638
  %v2640 = vtanh.pop %v2639
  %v2641 = vsub.f32 1.0, %v2636
  %v2642 = vmul.f32 %v2641, %v2640
  %v2643 = vmul.f32 %v2636, %v1941
  %v2644 = vadd.f32 %v2642, %v2643
  %s2645 = scalar_lea.vmem [#allocation3], 16
  %2646 = vst [vmem:[%s2645] sm:$0xff] %v2644
  %s2647 = smul.u32 4, 3
  %s2648 = smul.addr %s2647, 8
  %s2649 = scalar_lea.vmem [#allocation2], %s2648
  %v2650 = vld [vmem:[%s2649] sm:$0xff]
  %v2651 = vld [vmem:[%s2649 + $0x8] sm:$0xff]
  %v2652 = vld [vmem:[%s2649 + $0x10] sm:$0xff]
  %v2653 = vpack.c.bf16 %v2197, %v2197
  %v2654 = vld [vmem:[%s4] sm:$0xff]
  %v2655 = vld [vmem:[%s4 + $0x8] sm:$0xf]
  %v2656 = vld [vmem:[%s4 + $0xc] sm:$0xff]
  %v2657 = vld [vmem:[%s4 + $0x14] sm:$0xf]
  %v2658 = vld [vmem:[%s4 + $0x18] sm:$0xff]
  %v2659 = vld [vmem:[%s4 + $0x20] sm:$0xf]
  %v2660 = vld [vmem:[%s4 + $0x24] sm:$0xff]
  %v2661 = vld [vmem:[%s4 + $0x2c] sm:$0xf]
  %v2662 = vld [vmem:[%s4 + $0x30] sm:$0xff]
  %v2663 = vld [vmem:[%s4 + $0x38] sm:$0xf]
  %v2664 = vld [vmem:[%s4 + $0x3c] sm:$0xff]
  %v2665 = vld [vmem:[%s4 + $0x44] sm:$0xf]
  %v2666 = vld [vmem:[%s4 + $0x48] sm:$0xff]
  %v2667 = vld [vmem:[%s4 + $0x50] sm:$0xf]
  %v2668 = vld [vmem:[%s4 + $0x54] sm:$0xff]
  %v2669 = vld [vmem:[%s4 + $0x5c] sm:$0xf]
  %v2670 = vld [vmem:[%s4 + $0x60] sm:$0xff]
  %v2671 = vld [vmem:[%s4 + $0x68] sm:$0xf]
  %v2672 = vld [vmem:[%s4 + $0x6c] sm:$0xff]
  %v2673 = vld [vmem:[%s4 + $0x74] sm:$0xf]
  %v2674 = vld [vmem:[%s4 + $0x78] sm:$0xff]
  %v2675 = vld [vmem:[%s4 + $0x80] sm:$0xf]
  %v2676 = vld [vmem:[%s4 + $0x84] sm:$0xff]
  %v2677 = vld [vmem:[%s4 + $0x8c] sm:$0xf]
  %v2678 = vld [vmem:[%s4 + $0x90] sm:$0xff]
  %v2679 = vld [vmem:[%s4 + $0x98] sm:$0xf]
  %v2680 = vld [vmem:[%s4 + $0x9c] sm:$0xff]
  %v2681 = vld [vmem:[%s4 + $0xa4] sm:$0xf]
  %v2682 = vld [vmem:[%s4 + $0xa8] sm:$0xff]
  %v2683 = vld [vmem:[%s4 + $0xb0] sm:$0xf]
  %v2684 = vld [vmem:[%s4 + $0xb4] sm:$0xff]
  %v2685 = vld [vmem:[%s4 + $0xbc] sm:$0xf]
  %v2718 = vunpack.c.l.b16 %v2654
  %v2719 = vunpack.c.h.b16 %v2654
  %v2720 = vunpack.c.l.b16 %v2655
  %v2721 = vunpack.c.l.b16 %v2656
  %v2722 = vunpack.c.h.b16 %v2656
  %v2723 = vunpack.c.l.b16 %v2657
  %v2724 = vunpack.c.l.b16 %v2658
  %v2725 = vunpack.c.h.b16 %v2658
  %v2726 = vunpack.c.l.b16 %v2659
  %v2727 = vunpack.c.l.b16 %v2660
  %v2728 = vunpack.c.h.b16 %v2660
  %v2729 = vunpack.c.l.b16 %v2661
  %v2730 = vunpack.c.l.b16 %v2662
  %v2731 = vunpack.c.h.b16 %v2662
  %v2732 = vunpack.c.l.b16 %v2663
  %v2733 = vunpack.c.l.b16 %v2664
  %v2734 = vunpack.c.h.b16 %v2664
  %v2735 = vunpack.c.l.b16 %v2665
  %v2736 = vunpack.c.l.b16 %v2666
  %v2737 = vunpack.c.h.b16 %v2666
  %v2738 = vunpack.c.l.b16 %v2667
  %v2739 = vunpack.c.l.b16 %v2668
  %v2740 = vunpack.c.h.b16 %v2668
  %v2741 = vunpack.c.l.b16 %v2669
  %v2742 = vunpack.c.l.b16 %v2670
  %v2743 = vunpack.c.h.b16 %v2670
  %v2744 = vunpack.c.l.b16 %v2671
  %v2745 = vunpack.c.l.b16 %v2672
  %v2746 = vunpack.c.h.b16 %v2672
  %v2747 = vunpack.c.l.b16 %v2673
  %v2748 = vunpack.c.l.b16 %v2674
  %v2749 = vunpack.c.h.b16 %v2674
  %v2750 = vunpack.c.l.b16 %v2675
  %v2751 = vunpack.c.l.b16 %v2676
  %v2752 = vunpack.c.h.b16 %v2676
  %v2753 = vunpack.c.l.b16 %v2677
  %v2754 = vunpack.c.l.b16 %v2678
  %v2755 = vunpack.c.h.b16 %v2678
  %v2756 = vunpack.c.l.b16 %v2679
  %v2757 = vunpack.c.l.b16 %v2680
  %v2758 = vunpack.c.h.b16 %v2680
  %v2759 = vunpack.c.l.b16 %v2681
  %v2760 = vunpack.c.l.b16 %v2682
  %v2761 = vunpack.c.h.b16 %v2682
  %v2762 = vunpack.c.l.b16 %v2683
  %v2763 = vunpack.c.l.b16 %v2684
  %v2764 = vunpack.c.h.b16 %v2684
  %v2765 = vunpack.c.l.b16 %v2685
  %v2766 = vpack.c.b16 %v2721, %v2718
  %v2767 = vpack.c.b16 %v2722, %v2719
  %v2768 = vpack.c.b16 %v2723, %v2720
  %v2769 = vpack.c.b16 %v2727, %v2724
  %v2770 = vpack.c.b16 %v2728, %v2725
  %v2771 = vpack.c.b16 %v2729, %v2726
  %v2772 = vpack.c.b16 %v2733, %v2730
  %v2773 = vpack.c.b16 %v2734, %v2731
  %v2774 = vpack.c.b16 %v2735, %v2732
  %v2775 = vpack.c.b16 %v2739, %v2736
  %v2776 = vpack.c.b16 %v2740, %v2737
  %v2777 = vpack.c.b16 %v2741, %v2738
  %v2778 = vpack.c.b16 %v2745, %v2742
  %v2779 = vpack.c.b16 %v2746, %v2743
  %v2780 = vpack.c.b16 %v2747, %v2744
  %v2781 = vpack.c.b16 %v2751, %v2748
  %v2782 = vpack.c.b16 %v2752, %v2749
  %v2783 = vpack.c.b16 %v2753, %v2750
  %v2784 = vpack.c.b16 %v2757, %v2754
  %v2785 = vpack.c.b16 %v2758, %v2755
  %v2786 = vpack.c.b16 %v2759, %v2756
  %v2787 = vpack.c.b16 %v2763, %v2760
  %v2788 = vpack.c.b16 %v2764, %v2761
  %v2789 = vpack.c.b16 %v2765, %v2762
  %2814 = vmatpush.bf16.msra.mxu0 %v2787
  %2815 = vmatpush.bf16.msra.mxu0 %v2784
  %2816 = vmatpush.bf16.msra.mxu0 %v2781
  %2817 = vmatpush.bf16.msra.mxu0 %v2778
  %2818 = vmatpush.bf16.msra.mxu0 %v2775
  %2819 = vmatpush.bf16.msra.mxu0 %v2772
  %2820 = vmatpush.bf16.msra.mxu0 %v2769
  %2821 = vmatpush.bf16.msra.mxu0 %v2766
  %2822 = vmatmul.bf16.gmra.mxu0 %v2653
  %v2823 = vpop.f32.mrf.mxu0
  %v2824 = vadd.f32 0.0, %v2823
  %v2825 = vpop.f32.mrf.mxu0
  %2826 = vdwg.mxu0
  %2827 = vmatpush.bf16.msra.mxu0 %v2788
  %2828 = vmatpush.bf16.msra.mxu0 %v2785
  %2829 = vmatpush.bf16.msra.mxu0 %v2782
  %2830 = vmatpush.bf16.msra.mxu0 %v2779
  %2831 = vmatpush.bf16.msra.mxu0 %v2776
  %2832 = vmatpush.bf16.msra.mxu0 %v2773
  %2833 = vmatpush.bf16.msra.mxu0 %v2770
  %2834 = vmatpush.bf16.msra.mxu0 %v2767
  %2835 = vmatmul.bf16.gmra.mxu0 %v2653
  %v2836 = vpop.f32.mrf.mxu0
  %v2837 = vadd.f32 0.0, %v2836
  %v2838 = vpop.f32.mrf.mxu0
  %2839 = vdwg.mxu0
  %2840 = vmatpush.bf16.msra.mxu0 %v2789
  %2841 = vmatpush.bf16.msra.mxu0 %v2786
  %2842 = vmatpush.bf16.msra.mxu0 %v2783
  %2843 = vmatpush.bf16.msra.mxu0 %v2780
  %2844 = vmatpush.bf16.msra.mxu0 %v2777
  %2845 = vmatpush.bf16.msra.mxu0 %v2774
  %2846 = vmatpush.bf16.msra.mxu0 %v2771
  %2847 = vmatpush.bf16.msra.mxu0 %v2768
  %2848 = vmatmul.bf16.gmra.mxu0 %v2653
  %v2849 = vpop.f32.mrf.mxu0
  %v2850 = vadd.f32 0.0, %v2849
  %v2851 = vpop.f32.mrf.mxu0
  %2852 = vdwg.mxu0
  %v2853 = vadd.f32 %v2650, %v2824
  %v2854 = vxor.u32 %v2853, 2147483648
  %v2855 = vmul.f32 %v2854, 1.442695
  %v2856 = vpow.pop %v2855
  %v2857 = vadd.f32 %v2856, 1.0
  %v2858 = vrcp.pop %v2857
  %v2859 = vmul.f32 %v2857, %v2858
  %v2860 = vsub.f32 1.0, %v2859
  %v2861 = vmul.f32 %v2858, %v2860
  %v2862 = vadd.f32 %v2858, %v2861
  %vm2863 = vweird.f32 %v2857
  %vm2864 = vweird.f32 %v2858
  %vm2865 = vmor %vm2863, %vm2864
  %v2866 = vsel %vm2865, %v2858, %v2862
  %v2867 = vand.u32 2147483647, %v2857
  %vm2868 = vcmp.eq.f32.partialorder %v2867, 8.507059e+37
  %v2869 = vand.u32 %v2857, 2147483648
  %v2870 = vor.u32 1.1754944e-38, %v2869
  %v2871 = vsel %vm2868, %v2870, %v2866
  %v2872 = vmul.f32 1.0, %v2871
  %v2873 = vadd.f32 %v2651, %v2837
  %v2874 = vxor.u32 %v2873, 2147483648
  %v2875 = vmul.f32 %v2874, 1.442695
  %v2876 = vpow.pop %v2875
  %v2877 = vadd.f32 %v2876, 1.0
  %v2878 = vrcp.pop %v2877
  %v2879 = vmul.f32 %v2877, %v2878
  %v2880 = vsub.f32 1.0, %v2879
  %v2881 = vmul.f32 %v2878, %v2880
  %v2882 = vadd.f32 %v2878, %v2881
  %vm2883 = vweird.f32 %v2877
  %vm2884 = vweird.f32 %v2878
  %vm2885 = vmor %vm2883, %vm2884
  %v2886 = vsel %vm2885, %v2878, %v2882
  %v2887 = vand.u32 2147483647, %v2877
  %vm2888 = vcmp.eq.f32.partialorder %v2887, 8.507059e+37
  %v2889 = vand.u32 %v2877, 2147483648
  %v2890 = vor.u32 1.1754944e-38, %v2889
  %v2891 = vsel %vm2888, %v2890, %v2886
  %v2892 = vmul.f32 1.0, %v2891
  %v2893 = vadd.f32 %v2850, %v438
  %v2894 = vmul.f32 %v2872, %v2893
  %v2895 = vadd.f32 %v2652, %v2894
  %v2896 = vtanh.pop %v2895
  %v2897 = vsub.f32 1.0, %v2892
  %v2898 = vmul.f32 %v2897, %v2896
  %v2899 = vmul.f32 %v2892, %v2197
  %v2900 = vadd.f32 %v2898, %v2899
  %v2901 = vld [vmem:[%s792] sm:$0xff]
  %v2902 = vld [vmem:[%s792 + $0x8] sm:$0xf]
  %v2903 = vld [vmem:[%s792 + $0xc] sm:$0xff]
  %v2904 = vld [vmem:[%s792 + $0x14] sm:$0xf]
  %v2905 = vld [vmem:[%s792 + $0x18] sm:$0xff]
  %v2906 = vld [vmem:[%s792 + $0x20] sm:$0xf]
  %v2907 = vld [vmem:[%s792 + $0x24] sm:$0xff]
  %v2908 = vld [vmem:[%s792 + $0x2c] sm:$0xf]
  %v2909 = vld [vmem:[%s792 + $0x30] sm:$0xff]
  %v2910 = vld [vmem:[%s792 + $0x38] sm:$0xf]
  %v2911 = vld [vmem:[%s792 + $0x3c] sm:$0xff]
  %v2912 = vld [vmem:[%s792 + $0x44] sm:$0xf]
  %v2913 = vld [vmem:[%s792 + $0x48] sm:$0xff]
  %v2914 = vld [vmem:[%s792 + $0x50] sm:$0xf]
  %v2915 = vld [vmem:[%s792 + $0x54] sm:$0xff]
  %v2916 = vld [vmem:[%s792 + $0x5c] sm:$0xf]
  %v2917 = vld [vmem:[%s792 + $0x60] sm:$0xff]
  %v2918 = vld [vmem:[%s792 + $0x68] sm:$0xf]
  %v2919 = vld [vmem:[%s792 + $0x6c] sm:$0xff]
  %v2920 = vld [vmem:[%s792 + $0x74] sm:$0xf]
  %v2921 = vld [vmem:[%s792 + $0x78] sm:$0xff]
  %v2922 = vld [vmem:[%s792 + $0x80] sm:$0xf]
  %v2923 = vld [vmem:[%s792 + $0x84] sm:$0xff]
  %v2924 = vld [vmem:[%s792 + $0x8c] sm:$0xf]
  %v2925 = vld [vmem:[%s792 + $0x90] sm:$0xff]
  %v2926 = vld [vmem:[%s792 + $0x98] sm:$0xf]
  %v2927 = vld [vmem:[%s792 + $0x9c] sm:$0xff]
  %v2928 = vld [vmem:[%s792 + $0xa4] sm:$0xf]
  %v2929 = vld [vmem:[%s792 + $0xa8] sm:$0xff]
  %v2930 = vld [vmem:[%s792 + $0xb0] sm:$0xf]
  %v2931 = vld [vmem:[%s792 + $0xb4] sm:$0xff]
  %v2932 = vld [vmem:[%s792 + $0xbc] sm:$0xf]
  %v2965 = vunpack.c.l.b16 %v2901
  %v2966 = vunpack.c.h.b16 %v2901
  %v2967 = vunpack.c.l.b16 %v2902
  %v2968 = vunpack.c.l.b16 %v2903
  %v2969 = vunpack.c.h.b16 %v2903
  %v2970 = vunpack.c.l.b16 %v2904
  %v2971 = vunpack.c.l.b16 %v2905
  %v2972 = vunpack.c.h.b16 %v2905
  %v2973 = vunpack.c.l.b16 %v2906
  %v2974 = vunpack.c.l.b16 %v2907
  %v2975 = vunpack.c.h.b16 %v2907
  %v2976 = vunpack.c.l.b16 %v2908
  %v2977 = vunpack.c.l.b16 %v2909
  %v2978 = vunpack.c.h.b16 %v2909
  %v2979 = vunpack.c.l.b16 %v2910
  %v2980 = vunpack.c.l.b16 %v2911
  %v2981 = vunpack.c.h.b16 %v2911
  %v2982 = vunpack.c.l.b16 %v2912
  %v2983 = vunpack.c.l.b16 %v2913
  %v2984 = vunpack.c.h.b16 %v2913
  %v2985 = vunpack.c.l.b16 %v2914
  %v2986 = vunpack.c.l.b16 %v2915
  %v2987 = vunpack.c.h.b16 %v2915
  %v2988 = vunpack.c.l.b16 %v2916
  %v2989 = vunpack.c.l.b16 %v2917
  %v2990 = vunpack.c.h.b16 %v2917
  %v2991 = vunpack.c.l.b16 %v2918
  %v2992 = vunpack.c.l.b16 %v2919
  %v2993 = vunpack.c.h.b16 %v2919
  %v2994 = vunpack.c.l.b16 %v2920
  %v2995 = vunpack.c.l.b16 %v2921
  %v2996 = vunpack.c.h.b16 %v2921
  %v2997 = vunpack.c.l.b16 %v2922
  %v2998 = vunpack.c.l.b16 %v2923
  %v2999 = vunpack.c.h.b16 %v2923
  %v3000 = vunpack.c.l.b16 %v2924
  %v3001 = vunpack.c.l.b16 %v2925
  %v3002 = vunpack.c.h.b16 %v2925
  %v3003 = vunpack.c.l.b16 %v2926
  %v3004 = vunpack.c.l.b16 %v2927
  %v3005 = vunpack.c.h.b16 %v2927
  %v3006 = vunpack.c.l.b16 %v2928
  %v3007 = vunpack.c.l.b16 %v2929
  %v3008 = vunpack.c.h.b16 %v2929
  %v3009 = vunpack.c.l.b16 %v2930
  %v3010 = vunpack.c.l.b16 %v2931
  %v3011 = vunpack.c.h.b16 %v2931
  %v3012 = vunpack.c.l.b16 %v2932
  %v3013 = vpack.c.b16 %v2968, %v2965
  %v3014 = vpack.c.b16 %v2969, %v2966
  %v3015 = vpack.c.b16 %v2970, %v2967
  %v3016 = vpack.c.b16 %v2974, %v2971
  %v3017 = vpack.c.b16 %v2975, %v2972
  %v3018 = vpack.c.b16 %v2976, %v2973
  %v3019 = vpack.c.b16 %v2980, %v2977
  %v3020 = vpack.c.b16 %v2981, %v2978
  %v3021 = vpack.c.b16 %v2982, %v2979
  %v3022 = vpack.c.b16 %v2986, %v2983
  %v3023 = vpack.c.b16 %v2987, %v2984
  %v3024 = vpack.c.b16 %v2988, %v2985
  %v3025 = vpack.c.b16 %v2992, %v2989
  %v3026 = vpack.c.b16 %v2993, %v2990
  %v3027 = vpack.c.b16 %v2994, %v2991
  %v3028 = vpack.c.b16 %v2998, %v2995
  %v3029 = vpack.c.b16 %v2999, %v2996
  %v3030 = vpack.c.b16 %v3000, %v2997
  %v3031 = vpack.c.b16 %v3004, %v3001
  %v3032 = vpack.c.b16 %v3005, %v3002
  %v3033 = vpack.c.b16 %v3006, %v3003
  %v3034 = vpack.c.b16 %v3010, %v3007
  %v3035 = vpack.c.b16 %v3011, %v3008
  %v3036 = vpack.c.b16 %v3012, %v3009
  %3061 = vmatpush.bf16.msra.mxu0 %v3034
  %3062 = vmatpush.bf16.msra.mxu0 %v3031
  %3063 = vmatpush.bf16.msra.mxu0 %v3028
  %3064 = vmatpush.bf16.msra.mxu0 %v3025
  %3065 = vmatpush.bf16.msra.mxu0 %v3022
  %3066 = vmatpush.bf16.msra.mxu0 %v3019
  %3067 = vmatpush.bf16.msra.mxu0 %v3016
  %3068 = vmatpush.bf16.msra.mxu0 %v3013
  %3069 = vmatmul.bf16.gmra.mxu0 %v2653
  %v3070 = vpop.f32.mrf.mxu0
  %v3071 = vadd.f32 %v430, %v3070
  %v3072 = vpop.f32.mrf.mxu0
  %3073 = vdwg.mxu0
  %3074 = vmatpush.bf16.msra.mxu0 %v3035
  %3075 = vmatpush.bf16.msra.mxu0 %v3032
  %3076 = vmatpush.bf16.msra.mxu0 %v3029
  %3077 = vmatpush.bf16.msra.mxu0 %v3026
  %3078 = vmatpush.bf16.msra.mxu0 %v3023
  %3079 = vmatpush.bf16.msra.mxu0 %v3020
  %3080 = vmatpush.bf16.msra.mxu0 %v3017
  %3081 = vmatpush.bf16.msra.mxu0 %v3014
  %3082 = vmatmul.bf16.gmra.mxu0 %v2653
  %v3083 = vpop.f32.mrf.mxu0
  %v3084 = vadd.f32 %v431, %v3083
  %v3085 = vpop.f32.mrf.mxu0
  %3086 = vdwg.mxu0
  %3087 = vmatpush.bf16.msra.mxu0 %v3036
  %3088 = vmatpush.bf16.msra.mxu0 %v3033
  %3089 = vmatpush.bf16.msra.mxu0 %v3030
  %3090 = vmatpush.bf16.msra.mxu0 %v3027
  %3091 = vmatpush.bf16.msra.mxu0 %v3024
  %3092 = vmatpush.bf16.msra.mxu0 %v3021
  %3093 = vmatpush.bf16.msra.mxu0 %v3018
  %3094 = vmatpush.bf16.msra.mxu0 %v3015
  %3095 = vmatmul.bf16.gmra.mxu0 %v2653
  %v3096 = vpop.f32.mrf.mxu0
  %v3097 = vadd.f32 %v432, %v3096
  %v3098 = vpop.f32.mrf.mxu0
  %3099 = vdwg.mxu0
  %v3100 = vpack.c.bf16 %v2644, %v2644
  %v3101 = vld [vmem:[%s992] sm:$0xff]
  %v3102 = vld [vmem:[%s992 + $0x8] sm:$0xf]
  %v3103 = vld [vmem:[%s992 + $0xc] sm:$0xff]
  %v3104 = vld [vmem:[%s992 + $0x14] sm:$0xf]
  %v3105 = vld [vmem:[%s992 + $0x18] sm:$0xff]
  %v3106 = vld [vmem:[%s992 + $0x20] sm:$0xf]
  %v3107 = vld [vmem:[%s992 + $0x24] sm:$0xff]
  %v3108 = vld [vmem:[%s992 + $0x2c] sm:$0xf]
  %v3109 = vld [vmem:[%s992 + $0x30] sm:$0xff]
  %v3110 = vld [vmem:[%s992 + $0x38] sm:$0xf]
  %v3111 = vld [vmem:[%s992 + $0x3c] sm:$0xff]
  %v3112 = vld [vmem:[%s992 + $0x44] sm:$0xf]
  %v3113 = vld [vmem:[%s992 + $0x48] sm:$0xff]
  %v3114 = vld [vmem:[%s992 + $0x50] sm:$0xf]
  %v3115 = vld [vmem:[%s992 + $0x54] sm:$0xff]
  %v3116 = vld [vmem:[%s992 + $0x5c] sm:$0xf]
  %v3117 = vld [vmem:[%s992 + $0x60] sm:$0xff]
  %v3118 = vld [vmem:[%s992 + $0x68] sm:$0xf]
  %v3119 = vld [vmem:[%s992 + $0x6c] sm:$0xff]
  %v3120 = vld [vmem:[%s992 + $0x74] sm:$0xf]
  %v3121 = vld [vmem:[%s992 + $0x78] sm:$0xff]
  %v3122 = vld [vmem:[%s992 + $0x80] sm:$0xf]
  %v3123 = vld [vmem:[%s992 + $0x84] sm:$0xff]
  %v3124 = vld [vmem:[%s992 + $0x8c] sm:$0xf]
  %v3125 = vld [vmem:[%s992 + $0x90] sm:$0xff]
  %v3126 = vld [vmem:[%s992 + $0x98] sm:$0xf]
  %v3127 = vld [vmem:[%s992 + $0x9c] sm:$0xff]
  %v3128 = vld [vmem:[%s992 + $0xa4] sm:$0xf]
  %v3129 = vld [vmem:[%s992 + $0xa8] sm:$0xff]
  %v3130 = vld [vmem:[%s992 + $0xb0] sm:$0xf]
  %v3131 = vld [vmem:[%s992 + $0xb4] sm:$0xff]
  %v3132 = vld [vmem:[%s992 + $0xbc] sm:$0xf]
  %v3165 = vunpack.c.l.b16 %v3101
  %v3166 = vunpack.c.h.b16 %v3101
  %v3167 = vunpack.c.l.b16 %v3102
  %v3168 = vunpack.c.l.b16 %v3103
  %v3169 = vunpack.c.h.b16 %v3103
  %v3170 = vunpack.c.l.b16 %v3104
  %v3171 = vunpack.c.l.b16 %v3105
  %v3172 = vunpack.c.h.b16 %v3105
  %v3173 = vunpack.c.l.b16 %v3106
  %v3174 = vunpack.c.l.b16 %v3107
  %v3175 = vunpack.c.h.b16 %v3107
  %v3176 = vunpack.c.l.b16 %v3108
  %v3177 = vunpack.c.l.b16 %v3109
  %v3178 = vunpack.c.h.b16 %v3109
  %v3179 = vunpack.c.l.b16 %v3110
  %v3180 = vunpack.c.l.b16 %v3111
  %v3181 = vunpack.c.h.b16 %v3111
  %v3182 = vunpack.c.l.b16 %v3112
  %v3183 = vunpack.c.l.b16 %v3113
  %v3184 = vunpack.c.h.b16 %v3113
  %v3185 = vunpack.c.l.b16 %v3114
  %v3186 = vunpack.c.l.b16 %v3115
  %v3187 = vunpack.c.h.b16 %v3115
  %v3188 = vunpack.c.l.b16 %v3116
  %v3189 = vunpack.c.l.b16 %v3117
  %v3190 = vunpack.c.h.b16 %v3117
  %v3191 = vunpack.c.l.b16 %v3118
  %v3192 = vunpack.c.l.b16 %v3119
  %v3193 = vunpack.c.h.b16 %v3119
  %v3194 = vunpack.c.l.b16 %v3120
  %v3195 = vunpack.c.l.b16 %v3121
  %v3196 = vunpack.c.h.b16 %v3121
  %v3197 = vunpack.c.l.b16 %v3122
  %v3198 = vunpack.c.l.b16 %v3123
  %v3199 = vunpack.c.h.b16 %v3123
  %v3200 = vunpack.c.l.b16 %v3124
  %v3201 = vunpack.c.l.b16 %v3125
  %v3202 = vunpack.c.h.b16 %v3125
  %v3203 = vunpack.c.l.b16 %v3126
  %v3204 = vunpack.c.l.b16 %v3127
  %v3205 = vunpack.c.h.b16 %v3127
  %v3206 = vunpack.c.l.b16 %v3128
  %v3207 = vunpack.c.l.b16 %v3129
  %v3208 = vunpack.c.h.b16 %v3129
  %v3209 = vunpack.c.l.b16 %v3130
  %v3210 = vunpack.c.l.b16 %v3131
  %v3211 = vunpack.c.h.b16 %v3131
  %v3212 = vunpack.c.l.b16 %v3132
  %v3213 = vpack.c.b16 %v3168, %v3165
  %v3214 = vpack.c.b16 %v3169, %v3166
  %v3215 = vpack.c.b16 %v3170, %v3167
  %v3216 = vpack.c.b16 %v3174, %v3171
  %v3217 = vpack.c.b16 %v3175, %v3172
  %v3218 = vpack.c.b16 %v3176, %v3173
  %v3219 = vpack.c.b16 %v3180, %v3177
  %v3220 = vpack.c.b16 %v3181, %v3178
  %v3221 = vpack.c.b16 %v3182, %v3179
  %v3222 = vpack.c.b16 %v3186, %v3183
  %v3223 = vpack.c.b16 %v3187, %v3184
  %v3224 = vpack.c.b16 %v3188, %v3185
  %v3225 = vpack.c.b16 %v3192, %v3189
  %v3226 = vpack.c.b16 %v3193, %v3190
  %v3227 = vpack.c.b16 %v3194, %v3191
  %v3228 = vpack.c.b16 %v3198, %v3195
  %v3229 = vpack.c.b16 %v3199, %v3196
  %v3230 = vpack.c.b16 %v3200, %v3197
  %v3231 = vpack.c.b16 %v3204, %v3201
  %v3232 = vpack.c.b16 %v3205, %v3202
  %v3233 = vpack.c.b16 %v3206, %v3203
  %v3234 = vpack.c.b16 %v3210, %v3207
  %v3235 = vpack.c.b16 %v3211, %v3208
  %v3236 = vpack.c.b16 %v3212, %v3209
  %3261 = vmatpush.bf16.msra.mxu0 %v3234
  %3262 = vmatpush.bf16.msra.mxu0 %v3231
  %3263 = vmatpush.bf16.msra.mxu0 %v3228
  %3264 = vmatpush.bf16.msra.mxu0 %v3225
  %3265 = vmatpush.bf16.msra.mxu0 %v3222
  %3266 = vmatpush.bf16.msra.mxu0 %v3219
  %3267 = vmatpush.bf16.msra.mxu0 %v3216
  %3268 = vmatpush.bf16.msra.mxu0 %v3213
  %3269 = vmatmul.bf16.gmra.mxu0 %v3100
  %v3270 = vpop.f32.mrf.mxu0
  %v3271 = vadd.f32 0.0, %v3270
  %v3272 = vpop.f32.mrf.mxu0
  %3273 = vdwg.mxu0
  %3274 = vmatpush.bf16.msra.mxu0 %v3235
  %3275 = vmatpush.bf16.msra.mxu0 %v3232
  %3276 = vmatpush.bf16.msra.mxu0 %v3229
  %3277 = vmatpush.bf16.msra.mxu0 %v3226
  %3278 = vmatpush.bf16.msra.mxu0 %v3223
  %3279 = vmatpush.bf16.msra.mxu0 %v3220
  %3280 = vmatpush.bf16.msra.mxu0 %v3217
  %3281 = vmatpush.bf16.msra.mxu0 %v3214
  %3282 = vmatmul.bf16.gmra.mxu0 %v3100
  %v3283 = vpop.f32.mrf.mxu0
  %v3284 = vadd.f32 0.0, %v3283
  %v3285 = vpop.f32.mrf.mxu0
  %3286 = vdwg.mxu0
  %3287 = vmatpush.bf16.msra.mxu0 %v3236
  %3288 = vmatpush.bf16.msra.mxu0 %v3233
  %3289 = vmatpush.bf16.msra.mxu0 %v3230
  %3290 = vmatpush.bf16.msra.mxu0 %v3227
  %3291 = vmatpush.bf16.msra.mxu0 %v3224
  %3292 = vmatpush.bf16.msra.mxu0 %v3221
  %3293 = vmatpush.bf16.msra.mxu0 %v3218
  %3294 = vmatpush.bf16.msra.mxu0 %v3215
  %3295 = vmatmul.bf16.gmra.mxu0 %v3100
  %v3296 = vpop.f32.mrf.mxu0
  %v3297 = vadd.f32 0.0, %v3296
  %v3298 = vpop.f32.mrf.mxu0
  %3299 = vdwg.mxu0
  %v3300 = vadd.f32 %v3071, %v3271
  %v3301 = vxor.u32 %v3300, 2147483648
  %v3302 = vmul.f32 %v3301, 1.442695
  %v3303 = vpow.pop %v3302
  %v3304 = vadd.f32 %v3303, 1.0
  %v3305 = vrcp.pop %v3304
  %v3306 = vmul.f32 %v3304, %v3305
  %v3307 = vsub.f32 1.0, %v3306
  %v3308 = vmul.f32 %v3305, %v3307
  %v3309 = vadd.f32 %v3305, %v3308
  %vm3310 = vweird.f32 %v3304
  %vm3311 = vweird.f32 %v3305
  %vm3312 = vmor %vm3310, %vm3311
  %v3313 = vsel %vm3312, %v3305, %v3309
  %v3314 = vand.u32 2147483647, %v3304
  %vm3315 = vcmp.eq.f32.partialorder %v3314, 8.507059e+37
  %v3316 = vand.u32 %v3304, 2147483648
  %v3317 = vor.u32 1.1754944e-38, %v3316
  %v3318 = vsel %vm3315, %v3317, %v3313
  %v3319 = vmul.f32 1.0, %v3318
  %v3320 = vadd.f32 %v3084, %v3284
  %v3321 = vxor.u32 %v3320, 2147483648
  %v3322 = vmul.f32 %v3321, 1.442695
  %v3323 = vpow.pop %v3322
  %v3324 = vadd.f32 %v3323, 1.0
  %v3325 = vrcp.pop %v3324
  %v3326 = vmul.f32 %v3324, %v3325
  %v3327 = vsub.f32 1.0, %v3326
  %v3328 = vmul.f32 %v3325, %v3327
  %v3329 = vadd.f32 %v3325, %v3328
  %vm3330 = vweird.f32 %v3324
  %vm3331 = vweird.f32 %v3325
  %vm3332 = vmor %vm3330, %vm3331
  %v3333 = vsel %vm3332, %v3325, %v3329
  %v3334 = vand.u32 2147483647, %v3324
  %vm3335 = vcmp.eq.f32.partialorder %v3334, 8.507059e+37
  %v3336 = vand.u32 %v3324, 2147483648
  %v3337 = vor.u32 1.1754944e-38, %v3336
  %v3338 = vsel %vm3335, %v3337, %v3333
  %v3339 = vmul.f32 1.0, %v3338
  %v3340 = vadd.f32 %v3297, %v443
  %v3341 = vmul.f32 %v3319, %v3340
  %v3342 = vadd.f32 %v3097, %v3341
  %v3343 = vtanh.pop %v3342
  %v3344 = vsub.f32 1.0, %v3339
  %v3345 = vmul.f32 %v3344, %v3343
  %v3346 = vmul.f32 %v3339, %v2644
  %v3347 = vadd.f32 %v3345, %v3346
  %s3348 = scalar_lea.vmem [#allocation3], 24
  %3349 = vst [vmem:[%s3348] sm:$0xff] %v3347
  %s3350 = smul.u32 5, 3
  %s3351 = smul.addr %s3350, 8
  %s3352 = scalar_lea.vmem [#allocation2], %s3351
  %v3353 = vld [vmem:[%s3352] sm:$0xff]
  %v3354 = vld [vmem:[%s3352 + $0x8] sm:$0xff]
  %v3355 = vld [vmem:[%s3352 + $0x10] sm:$0xff]
  %v3356 = vpack.c.bf16 %v2900, %v2900
  %v3357 = vld [vmem:[%s4] sm:$0xff]
  %v3358 = vld [vmem:[%s4 + $0x8] sm:$0xf]
  %v3359 = vld [vmem:[%s4 + $0xc] sm:$0xff]
  %v3360 = vld [vmem:[%s4 + $0x14] sm:$0xf]
  %v3361 = vld [vmem:[%s4 + $0x18] sm:$0xff]
  %v3362 = vld [vmem:[%s4 + $0x20] sm:$0xf]
  %v3363 = vld [vmem:[%s4 + $0x24] sm:$0xff]
  %v3364 = vld [vmem:[%s4 + $0x2c] sm:$0xf]
  %v3365 = vld [vmem:[%s4 + $0x30] sm:$0xff]
  %v3366 = vld [vmem:[%s4 + $0x38] sm:$0xf]
  %v3367 = vld [vmem:[%s4 + $0x3c] sm:$0xff]
  %v3368 = vld [vmem:[%s4 + $0x44] sm:$0xf]
  %v3369 = vld [vmem:[%s4 + $0x48] sm:$0xff]
  %v3370 = vld [vmem:[%s4 + $0x50] sm:$0xf]
  %v3371 = vld [vmem:[%s4 + $0x54] sm:$0xff]
  %v3372 = vld [vmem:[%s4 + $0x5c] sm:$0xf]
  %v3373 = vld [vmem:[%s4 + $0x60] sm:$0xff]
  %v3374 = vld [vmem:[%s4 + $0x68] sm:$0xf]
  %v3375 = vld [vmem:[%s4 + $0x6c] sm:$0xff]
  %v3376 = vld [vmem:[%s4 + $0x74] sm:$0xf]
  %v3377 = vld [vmem:[%s4 + $0x78] sm:$0xff]
  %v3378 = vld [vmem:[%s4 + $0x80] sm:$0xf]
  %v3379 = vld [vmem:[%s4 + $0x84] sm:$0xff]
  %v3380 = vld [vmem:[%s4 + $0x8c] sm:$0xf]
  %v3381 = vld [vmem:[%s4 + $0x90] sm:$0xff]
  %v3382 = vld [vmem:[%s4 + $0x98] sm:$0xf]
  %v3383 = vld [vmem:[%s4 + $0x9c] sm:$0xff]
  %v3384 = vld [vmem:[%s4 + $0xa4] sm:$0xf]
  %v3385 = vld [vmem:[%s4 + $0xa8] sm:$0xff]
  %v3386 = vld [vmem:[%s4 + $0xb0] sm:$0xf]
  %v3387 = vld [vmem:[%s4 + $0xb4] sm:$0xff]
  %v3388 = vld [vmem:[%s4 + $0xbc] sm:$0xf]
  %v3421 = vunpack.c.l.b16 %v3357
  %v3422 = vunpack.c.h.b16 %v3357
  %v3423 = vunpack.c.l.b16 %v3358
  %v3424 = vunpack.c.l.b16 %v3359
  %v3425 = vunpack.c.h.b16 %v3359
  %v3426 = vunpack.c.l.b16 %v3360
  %v3427 = vunpack.c.l.b16 %v3361
  %v3428 = vunpack.c.h.b16 %v3361
  %v3429 = vunpack.c.l.b16 %v3362
  %v3430 = vunpack.c.l.b16 %v3363
  %v3431 = vunpack.c.h.b16 %v3363
  %v3432 = vunpack.c.l.b16 %v3364
  %v3433 = vunpack.c.l.b16 %v3365
  %v3434 = vunpack.c.h.b16 %v3365
  %v3435 = vunpack.c.l.b16 %v3366
  %v3436 = vunpack.c.l.b16 %v3367
  %v3437 = vunpack.c.h.b16 %v3367
  %v3438 = vunpack.c.l.b16 %v3368
  %v3439 = vunpack.c.l.b16 %v3369
  %v3440 = vunpack.c.h.b16 %v3369
  %v3441 = vunpack.c.l.b16 %v3370
  %v3442 = vunpack.c.l.b16 %v3371
  %v3443 = vunpack.c.h.b16 %v3371
  %v3444 = vunpack.c.l.b16 %v3372
  %v3445 = vunpack.c.l.b16 %v3373
  %v3446 = vunpack.c.h.b16 %v3373
  %v3447 = vunpack.c.l.b16 %v3374
  %v3448 = vunpack.c.l.b16 %v3375
  %v3449 = vunpack.c.h.b16 %v3375
  %v3450 = vunpack.c.l.b16 %v3376
  %v3451 = vunpack.c.l.b16 %v3377
  %v3452 = vunpack.c.h.b16 %v3377
  %v3453 = vunpack.c.l.b16 %v3378
  %v3454 = vunpack.c.l.b16 %v3379
  %v3455 = vunpack.c.h.b16 %v3379
  %v3456 = vunpack.c.l.b16 %v3380
  %v3457 = vunpack.c.l.b16 %v3381
  %v3458 = vunpack.c.h.b16 %v3381
  %v3459 = vunpack.c.l.b16 %v3382
  %v3460 = vunpack.c.l.b16 %v3383
  %v3461 = vunpack.c.h.b16 %v3383
  %v3462 = vunpack.c.l.b16 %v3384
  %v3463 = vunpack.c.l.b16 %v3385
  %v3464 = vunpack.c.h.b16 %v3385
  %v3465 = vunpack.c.l.b16 %v3386
  %v3466 = vunpack.c.l.b16 %v3387
  %v3467 = vunpack.c.h.b16 %v3387
  %v3468 = vunpack.c.l.b16 %v3388
  %v3469 = vpack.c.b16 %v3424, %v3421
  %v3470 = vpack.c.b16 %v3425, %v3422
  %v3471 = vpack.c.b16 %v3426, %v3423
  %v3472 = vpack.c.b16 %v3430, %v3427
  %v3473 = vpack.c.b16 %v3431, %v3428
  %v3474 = vpack.c.b16 %v3432, %v3429
  %v3475 = vpack.c.b16 %v3436, %v3433
  %v3476 = vpack.c.b16 %v3437, %v3434
  %v3477 = vpack.c.b16 %v3438, %v3435
  %v3478 = vpack.c.b16 %v3442, %v3439
  %v3479 = vpack.c.b16 %v3443, %v3440
  %v3480 = vpack.c.b16 %v3444, %v3441
  %v3481 = vpack.c.b16 %v3448, %v3445
  %v3482 = vpack.c.b16 %v3449, %v3446
  %v3483 = vpack.c.b16 %v3450, %v3447
  %v3484 = vpack.c.b16 %v3454, %v3451
  %v3485 = vpack.c.b16 %v3455, %v3452
  %v3486 = vpack.c.b16 %v3456, %v3453
  %v3487 = vpack.c.b16 %v3460, %v3457
  %v3488 = vpack.c.b16 %v3461, %v3458
  %v3489 = vpack.c.b16 %v3462, %v3459
  %v3490 = vpack.c.b16 %v3466, %v3463
  %v3491 = vpack.c.b16 %v3467, %v3464
  %v3492 = vpack.c.b16 %v3468, %v3465
  %3517 = vmatpush.bf16.msra.mxu0 %v3490
  %3518 = vmatpush.bf16.msra.mxu0 %v3487
  %3519 = vmatpush.bf16.msra.mxu0 %v3484
  %3520 = vmatpush.bf16.msra.mxu0 %v3481
  %3521 = vmatpush.bf16.msra.mxu0 %v3478
  %3522 = vmatpush.bf16.msra.mxu0 %v3475
  %3523 = vmatpush.bf16.msra.mxu0 %v3472
  %3524 = vmatpush.bf16.msra.mxu0 %v3469
  %3525 = vmatmul.bf16.gmra.mxu0 %v3356
  %v3526 = vpop.f32.mrf.mxu0
  %v3527 = vadd.f32 0.0, %v3526
  %v3528 = vpop.f32.mrf.mxu0
  %3529 = vdwg.mxu0
  %3530 = vmatpush.bf16.msra.mxu0 %v3491
  %3531 = vmatpush.bf16.msra.mxu0 %v3488
  %3532 = vmatpush.bf16.msra.mxu0 %v3485
  %3533 = vmatpush.bf16.msra.mxu0 %v3482
  %3534 = vmatpush.bf16.msra.mxu0 %v3479
  %3535 = vmatpush.bf16.msra.mxu0 %v3476
  %3536 = vmatpush.bf16.msra.mxu0 %v3473
  %3537 = vmatpush.bf16.msra.mxu0 %v3470
  %3538 = vmatmul.bf16.gmra.mxu0 %v3356
  %v3539 = vpop.f32.mrf.mxu0
  %v3540 = vadd.f32 0.0, %v3539
  %v3541 = vpop.f32.mrf.mxu0
  %3542 = vdwg.mxu0
  %3543 = vmatpush.bf16.msra.mxu0 %v3492
  %3544 = vmatpush.bf16.msra.mxu0 %v3489
  %3545 = vmatpush.bf16.msra.mxu0 %v3486
  %3546 = vmatpush.bf16.msra.mxu0 %v3483
  %3547 = vmatpush.bf16.msra.mxu0 %v3480
  %3548 = vmatpush.bf16.msra.mxu0 %v3477
  %3549 = vmatpush.bf16.msra.mxu0 %v3474
  %3550 = vmatpush.bf16.msra.mxu0 %v3471
  %3551 = vmatmul.bf16.gmra.mxu0 %v3356
  %v3552 = vpop.f32.mrf.mxu0
  %v3553 = vadd.f32 0.0, %v3552
  %v3554 = vpop.f32.mrf.mxu0
  %3555 = vdwg.mxu0
  %v3556 = vadd.f32 %v3353, %v3527
  %v3557 = vxor.u32 %v3556, 2147483648
  %v3558 = vmul.f32 %v3557, 1.442695
  %v3559 = vpow.pop %v3558
  %v3560 = vadd.f32 %v3559, 1.0
  %v3561 = vrcp.pop %v3560
  %v3562 = vmul.f32 %v3560, %v3561
  %v3563 = vsub.f32 1.0, %v3562
  %v3564 = vmul.f32 %v3561, %v3563
  %v3565 = vadd.f32 %v3561, %v3564
  %vm3566 = vweird.f32 %v3560
  %vm3567 = vweird.f32 %v3561
  %vm3568 = vmor %vm3566, %vm3567
  %v3569 = vsel %vm3568, %v3561, %v3565
  %v3570 = vand.u32 2147483647, %v3560
  %vm3571 = vcmp.eq.f32.partialorder %v3570, 8.507059e+37
  %v3572 = vand.u32 %v3560, 2147483648
  %v3573 = vor.u32 1.1754944e-38, %v3572
  %v3574 = vsel %vm3571, %v3573, %v3569
  %v3575 = vmul.f32 1.0, %v3574
  %v3576 = vadd.f32 %v3354, %v3540
  %v3577 = vxor.u32 %v3576, 2147483648
  %v3578 = vmul.f32 %v3577, 1.442695
  %v3579 = vpow.pop %v3578
  %v3580 = vadd.f32 %v3579, 1.0
  %v3581 = vrcp.pop %v3580
  %v3582 = vmul.f32 %v3580, %v3581
  %v3583 = vsub.f32 1.0, %v3582
  %v3584 = vmul.f32 %v3581, %v3583
  %v3585 = vadd.f32 %v3581, %v3584
  %vm3586 = vweird.f32 %v3580
  %vm3587 = vweird.f32 %v3581
  %vm3588 = vmor %vm3586, %vm3587
  %v3589 = vsel %vm3588, %v3581, %v3585
  %v3590 = vand.u32 2147483647, %v3580
  %vm3591 = vcmp.eq.f32.partialorder %v3590, 8.507059e+37
  %v3592 = vand.u32 %v3580, 2147483648
  %v3593 = vor.u32 1.1754944e-38, %v3592
  %v3594 = vsel %vm3591, %v3593, %v3589
  %v3595 = vmul.f32 1.0, %v3594
  %v3596 = vadd.f32 %v3553, %v438
  %v3597 = vmul.f32 %v3575, %v3596
  %v3598 = vadd.f32 %v3355, %v3597
  %v3599 = vtanh.pop %v3598
  %v3600 = vsub.f32 1.0, %v3595
  %v3601 = vmul.f32 %v3600, %v3599
  %v3602 = vmul.f32 %v3595, %v2900
  %v3603 = vadd.f32 %v3601, %v3602
  %v3604 = vld [vmem:[%s792] sm:$0xff]
  %v3605 = vld [vmem:[%s792 + $0x8] sm:$0xf]
  %v3606 = vld [vmem:[%s792 + $0xc] sm:$0xff]
  %v3607 = vld [vmem:[%s792 + $0x14] sm:$0xf]
  %v3608 = vld [vmem:[%s792 + $0x18] sm:$0xff]
  %v3609 = vld [vmem:[%s792 + $0x20] sm:$0xf]
  %v3610 = vld [vmem:[%s792 + $0x24] sm:$0xff]
  %v3611 = vld [vmem:[%s792 + $0x2c] sm:$0xf]
  %v3612 = vld [vmem:[%s792 + $0x30] sm:$0xff]
  %v3613 = vld [vmem:[%s792 + $0x38] sm:$0xf]
  %v3614 = vld [vmem:[%s792 + $0x3c] sm:$0xff]
  %v3615 = vld [vmem:[%s792 + $0x44] sm:$0xf]
  %v3616 = vld [vmem:[%s792 + $0x48] sm:$0xff]
  %v3617 = vld [vmem:[%s792 + $0x50] sm:$0xf]
  %v3618 = vld [vmem:[%s792 + $0x54] sm:$0xff]
  %v3619 = vld [vmem:[%s792 + $0x5c] sm:$0xf]
  %v3620 = vld [vmem:[%s792 + $0x60] sm:$0xff]
  %v3621 = vld [vmem:[%s792 + $0x68] sm:$0xf]
  %v3622 = vld [vmem:[%s792 + $0x6c] sm:$0xff]
  %v3623 = vld [vmem:[%s792 + $0x74] sm:$0xf]
  %v3624 = vld [vmem:[%s792 + $0x78] sm:$0xff]
  %v3625 = vld [vmem:[%s792 + $0x80] sm:$0xf]
  %v3626 = vld [vmem:[%s792 + $0x84] sm:$0xff]
  %v3627 = vld [vmem:[%s792 + $0x8c] sm:$0xf]
  %v3628 = vld [vmem:[%s792 + $0x90] sm:$0xff]
  %v3629 = vld [vmem:[%s792 + $0x98] sm:$0xf]
  %v3630 = vld [vmem:[%s792 + $0x9c] sm:$0xff]
  %v3631 = vld [vmem:[%s792 + $0xa4] sm:$0xf]
  %v3632 = vld [vmem:[%s792 + $0xa8] sm:$0xff]
  %v3633 = vld [vmem:[%s792 + $0xb0] sm:$0xf]
  %v3634 = vld [vmem:[%s792 + $0xb4] sm:$0xff]
  %v3635 = vld [vmem:[%s792 + $0xbc] sm:$0xf]
  %v3668 = vunpack.c.l.b16 %v3604
  %v3669 = vunpack.c.h.b16 %v3604
  %v3670 = vunpack.c.l.b16 %v3605
  %v3671 = vunpack.c.l.b16 %v3606
  %v3672 = vunpack.c.h.b16 %v3606
  %v3673 = vunpack.c.l.b16 %v3607
  %v3674 = vunpack.c.l.b16 %v3608
  %v3675 = vunpack.c.h.b16 %v3608
  %v3676 = vunpack.c.l.b16 %v3609
  %v3677 = vunpack.c.l.b16 %v3610
  %v3678 = vunpack.c.h.b16 %v3610
  %v3679 = vunpack.c.l.b16 %v3611
  %v3680 = vunpack.c.l.b16 %v3612
  %v3681 = vunpack.c.h.b16 %v3612
  %v3682 = vunpack.c.l.b16 %v3613
  %v3683 = vunpack.c.l.b16 %v3614
  %v3684 = vunpack.c.h.b16 %v3614
  %v3685 = vunpack.c.l.b16 %v3615
  %v3686 = vunpack.c.l.b16 %v3616
  %v3687 = vunpack.c.h.b16 %v3616
  %v3688 = vunpack.c.l.b16 %v3617
  %v3689 = vunpack.c.l.b16 %v3618
  %v3690 = vunpack.c.h.b16 %v3618
  %v3691 = vunpack.c.l.b16 %v3619
  %v3692 = vunpack.c.l.b16 %v3620
  %v3693 = vunpack.c.h.b16 %v3620
  %v3694 = vunpack.c.l.b16 %v3621
  %v3695 = vunpack.c.l.b16 %v3622
  %v3696 = vunpack.c.h.b16 %v3622
  %v3697 = vunpack.c.l.b16 %v3623
  %v3698 = vunpack.c.l.b16 %v3624
  %v3699 = vunpack.c.h.b16 %v3624
  %v3700 = vunpack.c.l.b16 %v3625
  %v3701 = vunpack.c.l.b16 %v3626
  %v3702 = vunpack.c.h.b16 %v3626
  %v3703 = vunpack.c.l.b16 %v3627
  %v3704 = vunpack.c.l.b16 %v3628
  %v3705 = vunpack.c.h.b16 %v3628
  %v3706 = vunpack.c.l.b16 %v3629
  %v3707 = vunpack.c.l.b16 %v3630
  %v3708 = vunpack.c.h.b16 %v3630
  %v3709 = vunpack.c.l.b16 %v3631
  %v3710 = vunpack.c.l.b16 %v3632
  %v3711 = vunpack.c.h.b16 %v3632
  %v3712 = vunpack.c.l.b16 %v3633
  %v3713 = vunpack.c.l.b16 %v3634
  %v3714 = vunpack.c.h.b16 %v3634
  %v3715 = vunpack.c.l.b16 %v3635
  %v3716 = vpack.c.b16 %v3671, %v3668
  %v3717 = vpack.c.b16 %v3672, %v3669
  %v3718 = vpack.c.b16 %v3673, %v3670
  %v3719 = vpack.c.b16 %v3677, %v3674
  %v3720 = vpack.c.b16 %v3678, %v3675
  %v3721 = vpack.c.b16 %v3679, %v3676
  %v3722 = vpack.c.b16 %v3683, %v3680
  %v3723 = vpack.c.b16 %v3684, %v3681
  %v3724 = vpack.c.b16 %v3685, %v3682
  %v3725 = vpack.c.b16 %v3689, %v3686
  %v3726 = vpack.c.b16 %v3690, %v3687
  %v3727 = vpack.c.b16 %v3691, %v3688
  %v3728 = vpack.c.b16 %v3695, %v3692
  %v3729 = vpack.c.b16 %v3696, %v3693
  %v3730 = vpack.c.b16 %v3697, %v3694
  %v3731 = vpack.c.b16 %v3701, %v3698
  %v3732 = vpack.c.b16 %v3702, %v3699
  %v3733 = vpack.c.b16 %v3703, %v3700
  %v3734 = vpack.c.b16 %v3707, %v3704
  %v3735 = vpack.c.b16 %v3708, %v3705
  %v3736 = vpack.c.b16 %v3709, %v3706
  %v3737 = vpack.c.b16 %v3713, %v3710
  %v3738 = vpack.c.b16 %v3714, %v3711
  %v3739 = vpack.c.b16 %v3715, %v3712
  %3764 = vmatpush.bf16.msra.mxu0 %v3737
  %3765 = vmatpush.bf16.msra.mxu0 %v3734
  %3766 = vmatpush.bf16.msra.mxu0 %v3731
  %3767 = vmatpush.bf16.msra.mxu0 %v3728
  %3768 = vmatpush.bf16.msra.mxu0 %v3725
  %3769 = vmatpush.bf16.msra.mxu0 %v3722
  %3770 = vmatpush.bf16.msra.mxu0 %v3719
  %3771 = vmatpush.bf16.msra.mxu0 %v3716
  %3772 = vmatmul.bf16.gmra.mxu0 %v3356
  %v3773 = vpop.f32.mrf.mxu0
  %v3774 = vadd.f32 %v430, %v3773
  %v3775 = vpop.f32.mrf.mxu0
  %3776 = vdwg.mxu0
  %3777 = vmatpush.bf16.msra.mxu0 %v3738
  %3778 = vmatpush.bf16.msra.mxu0 %v3735
  %3779 = vmatpush.bf16.msra.mxu0 %v3732
  %3780 = vmatpush.bf16.msra.mxu0 %v3729
  %3781 = vmatpush.bf16.msra.mxu0 %v3726
  %3782 = vmatpush.bf16.msra.mxu0 %v3723
  %3783 = vmatpush.bf16.msra.mxu0 %v3720
  %3784 = vmatpush.bf16.msra.mxu0 %v3717
  %3785 = vmatmul.bf16.gmra.mxu0 %v3356
  %v3786 = vpop.f32.mrf.mxu0
  %v3787 = vadd.f32 %v431, %v3786
  %v3788 = vpop.f32.mrf.mxu0
  %3789 = vdwg.mxu0
  %3790 = vmatpush.bf16.msra.mxu0 %v3739
  %3791 = vmatpush.bf16.msra.mxu0 %v3736
  %3792 = vmatpush.bf16.msra.mxu0 %v3733
  %3793 = vmatpush.bf16.msra.mxu0 %v3730
  %3794 = vmatpush.bf16.msra.mxu0 %v3727
  %3795 = vmatpush.bf16.msra.mxu0 %v3724
  %3796 = vmatpush.bf16.msra.mxu0 %v3721
  %3797 = vmatpush.bf16.msra.mxu0 %v3718
  %3798 = vmatmul.bf16.gmra.mxu0 %v3356
  %v3799 = vpop.f32.mrf.mxu0
  %v3800 = vadd.f32 %v432, %v3799
  %v3801 = vpop.f32.mrf.mxu0
  %3802 = vdwg.mxu0
  %v3803 = vpack.c.bf16 %v3347, %v3347
  %v3804 = vld [vmem:[%s992] sm:$0xff]
  %v3805 = vld [vmem:[%s992 + $0x8] sm:$0xf]
  %v3806 = vld [vmem:[%s992 + $0xc] sm:$0xff]
  %v3807 = vld [vmem:[%s992 + $0x14] sm:$0xf]
  %v3808 = vld [vmem:[%s992 + $0x18] sm:$0xff]
  %v3809 = vld [vmem:[%s992 + $0x20] sm:$0xf]
  %v3810 = vld [vmem:[%s992 + $0x24] sm:$0xff]
  %v3811 = vld [vmem:[%s992 + $0x2c] sm:$0xf]
  %v3812 = vld [vmem:[%s992 + $0x30] sm:$0xff]
  %v3813 = vld [vmem:[%s992 + $0x38] sm:$0xf]
  %v3814 = vld [vmem:[%s992 + $0x3c] sm:$0xff]
  %v3815 = vld [vmem:[%s992 + $0x44] sm:$0xf]
  %v3816 = vld [vmem:[%s992 + $0x48] sm:$0xff]
  %v3817 = vld [vmem:[%s992 + $0x50] sm:$0xf]
  %v3818 = vld [vmem:[%s992 + $0x54] sm:$0xff]
  %v3819 = vld [vmem:[%s992 + $0x5c] sm:$0xf]
  %v3820 = vld [vmem:[%s992 + $0x60] sm:$0xff]
  %v3821 = vld [vmem:[%s992 + $0x68] sm:$0xf]
  %v3822 = vld [vmem:[%s992 + $0x6c] sm:$0xff]
  %v3823 = vld [vmem:[%s992 + $0x74] sm:$0xf]
  %v3824 = vld [vmem:[%s992 + $0x78] sm:$0xff]
  %v3825 = vld [vmem:[%s992 + $0x80] sm:$0xf]
  %v3826 = vld [vmem:[%s992 + $0x84] sm:$0xff]
  %v3827 = vld [vmem:[%s992 + $0x8c] sm:$0xf]
  %v3828 = vld [vmem:[%s992 + $0x90] sm:$0xff]
  %v3829 = vld [vmem:[%s992 + $0x98] sm:$0xf]
  %v3830 = vld [vmem:[%s992 + $0x9c] sm:$0xff]
  %v3831 = vld [vmem:[%s992 + $0xa4] sm:$0xf]
  %v3832 = vld [vmem:[%s992 + $0xa8] sm:$0xff]
  %v3833 = vld [vmem:[%s992 + $0xb0] sm:$0xf]
  %v3834 = vld [vmem:[%s992 + $0xb4] sm:$0xff]
  %v3835 = vld [vmem:[%s992 + $0xbc] sm:$0xf]
  %v3868 = vunpack.c.l.b16 %v3804
  %v3869 = vunpack.c.h.b16 %v3804
  %v3870 = vunpack.c.l.b16 %v3805
  %v3871 = vunpack.c.l.b16 %v3806
  %v3872 = vunpack.c.h.b16 %v3806
  %v3873 = vunpack.c.l.b16 %v3807
  %v3874 = vunpack.c.l.b16 %v3808
  %v3875 = vunpack.c.h.b16 %v3808
  %v3876 = vunpack.c.l.b16 %v3809
  %v3877 = vunpack.c.l.b16 %v3810
  %v3878 = vunpack.c.h.b16 %v3810
  %v3879 = vunpack.c.l.b16 %v3811
  %v3880 = vunpack.c.l.b16 %v3812
  %v3881 = vunpack.c.h.b16 %v3812
  %v3882 = vunpack.c.l.b16 %v3813
  %v3883 = vunpack.c.l.b16 %v3814
  %v3884 = vunpack.c.h.b16 %v3814
  %v3885 = vunpack.c.l.b16 %v3815
  %v3886 = vunpack.c.l.b16 %v3816
  %v3887 = vunpack.c.h.b16 %v3816
  %v3888 = vunpack.c.l.b16 %v3817
  %v3889 = vunpack.c.l.b16 %v3818
  %v3890 = vunpack.c.h.b16 %v3818
  %v3891 = vunpack.c.l.b16 %v3819
  %v3892 = vunpack.c.l.b16 %v3820
  %v3893 = vunpack.c.h.b16 %v3820
  %v3894 = vunpack.c.l.b16 %v3821
  %v3895 = vunpack.c.l.b16 %v3822
  %v3896 = vunpack.c.h.b16 %v3822
  %v3897 = vunpack.c.l.b16 %v3823
  %v3898 = vunpack.c.l.b16 %v3824
  %v3899 = vunpack.c.h.b16 %v3824
  %v3900 = vunpack.c.l.b16 %v3825
  %v3901 = vunpack.c.l.b16 %v3826
  %v3902 = vunpack.c.h.b16 %v3826
  %v3903 = vunpack.c.l.b16 %v3827
  %v3904 = vunpack.c.l.b16 %v3828
  %v3905 = vunpack.c.h.b16 %v3828
  %v3906 = vunpack.c.l.b16 %v3829
  %v3907 = vunpack.c.l.b16 %v3830
  %v3908 = vunpack.c.h.b16 %v3830
  %v3909 = vunpack.c.l.b16 %v3831
  %v3910 = vunpack.c.l.b16 %v3832
  %v3911 = vunpack.c.h.b16 %v3832
  %v3912 = vunpack.c.l.b16 %v3833
  %v3913 = vunpack.c.l.b16 %v3834
  %v3914 = vunpack.c.h.b16 %v3834
  %v3915 = vunpack.c.l.b16 %v3835
  %v3916 = vpack.c.b16 %v3871, %v3868
  %v3917 = vpack.c.b16 %v3872, %v3869
  %v3918 = vpack.c.b16 %v3873, %v3870
  %v3919 = vpack.c.b16 %v3877, %v3874
  %v3920 = vpack.c.b16 %v3878, %v3875
  %v3921 = vpack.c.b16 %v3879, %v3876
  %v3922 = vpack.c.b16 %v3883, %v3880
  %v3923 = vpack.c.b16 %v3884, %v3881
  %v3924 = vpack.c.b16 %v3885, %v3882
  %v3925 = vpack.c.b16 %v3889, %v3886
  %v3926 = vpack.c.b16 %v3890, %v3887
  %v3927 = vpack.c.b16 %v3891, %v3888
  %v3928 = vpack.c.b16 %v3895, %v3892
  %v3929 = vpack.c.b16 %v3896, %v3893
  %v3930 = vpack.c.b16 %v3897, %v3894
  %v3931 = vpack.c.b16 %v3901, %v3898
  %v3932 = vpack.c.b16 %v3902, %v3899
  %v3933 = vpack.c.b16 %v3903, %v3900
  %v3934 = vpack.c.b16 %v3907, %v3904
  %v3935 = vpack.c.b16 %v3908, %v3905
  %v3936 = vpack.c.b16 %v3909, %v3906
  %v3937 = vpack.c.b16 %v3913, %v3910
  %v3938 = vpack.c.b16 %v3914, %v3911
  %v3939 = vpack.c.b16 %v3915, %v3912
  %3964 = vmatpush.bf16.msra.mxu0 %v3937
  %3965 = vmatpush.bf16.msra.mxu0 %v3934
  %3966 = vmatpush.bf16.msra.mxu0 %v3931
  %3967 = vmatpush.bf16.msra.mxu0 %v3928
  %3968 = vmatpush.bf16.msra.mxu0 %v3925
  %3969 = vmatpush.bf16.msra.mxu0 %v3922
  %3970 = vmatpush.bf16.msra.mxu0 %v3919
  %3971 = vmatpush.bf16.msra.mxu0 %v3916
  %3972 = vmatmul.bf16.gmra.mxu0 %v3803
  %v3973 = vpop.f32.mrf.mxu0
  %v3974 = vadd.f32 0.0, %v3973
  %v3975 = vpop.f32.mrf.mxu0
  %3976 = vdwg.mxu0
  %3977 = vmatpush.bf16.msra.mxu0 %v3938
  %3978 = vmatpush.bf16.msra.mxu0 %v3935
  %3979 = vmatpush.bf16.msra.mxu0 %v3932
  %3980 = vmatpush.bf16.msra.mxu0 %v3929
  %3981 = vmatpush.bf16.msra.mxu0 %v3926
  %3982 = vmatpush.bf16.msra.mxu0 %v3923
  %3983 = vmatpush.bf16.msra.mxu0 %v3920
  %3984 = vmatpush.bf16.msra.mxu0 %v3917
  %3985 = vmatmul.bf16.gmra.mxu0 %v3803
  %v3986 = vpop.f32.mrf.mxu0
  %v3987 = vadd.f32 0.0, %v3986
  %v3988 = vpop.f32.mrf.mxu0
  %3989 = vdwg.mxu0
  %3990 = vmatpush.bf16.msra.mxu0 %v3939
  %3991 = vmatpush.bf16.msra.mxu0 %v3936
  %3992 = vmatpush.bf16.msra.mxu0 %v3933
  %3993 = vmatpush.bf16.msra.mxu0 %v3930
  %3994 = vmatpush.bf16.msra.mxu0 %v3927
  %3995 = vmatpush.bf16.msra.mxu0 %v3924
  %3996 = vmatpush.bf16.msra.mxu0 %v3921
  %3997 = vmatpush.bf16.msra.mxu0 %v3918
  %3998 = vmatmul.bf16.gmra.mxu0 %v3803
  %v3999 = vpop.f32.mrf.mxu0
  %v4000 = vadd.f32 0.0, %v3999
  %v4001 = vpop.f32.mrf.mxu0
  %4002 = vdwg.mxu0
  %v4003 = vadd.f32 %v3774, %v3974
  %v4004 = vxor.u32 %v4003, 2147483648
  %v4005 = vmul.f32 %v4004, 1.442695
  %v4006 = vpow.pop %v4005
  %v4007 = vadd.f32 %v4006, 1.0
  %v4008 = vrcp.pop %v4007
  %v4009 = vmul.f32 %v4007, %v4008
  %v4010 = vsub.f32 1.0, %v4009
  %v4011 = vmul.f32 %v4008, %v4010
  %v4012 = vadd.f32 %v4008, %v4011
  %vm4013 = vweird.f32 %v4007
  %vm4014 = vweird.f32 %v4008
  %vm4015 = vmor %vm4013, %vm4014
  %v4016 = vsel %vm4015, %v4008, %v4012
  %v4017 = vand.u32 2147483647, %v4007
  %vm4018 = vcmp.eq.f32.partialorder %v4017, 8.507059e+37
  %v4019 = vand.u32 %v4007, 2147483648
  %v4020 = vor.u32 1.1754944e-38, %v4019
  %v4021 = vsel %vm4018, %v4020, %v4016
  %v4022 = vmul.f32 1.0, %v4021
  %v4023 = vadd.f32 %v3787, %v3987
  %v4024 = vxor.u32 %v4023, 2147483648
  %v4025 = vmul.f32 %v4024, 1.442695
  %v4026 = vpow.pop %v4025
  %v4027 = vadd.f32 %v4026, 1.0
  %v4028 = vrcp.pop %v4027
  %v4029 = vmul.f32 %v4027, %v4028
  %v4030 = vsub.f32 1.0, %v4029
  %v4031 = vmul.f32 %v4028, %v4030
  %v4032 = vadd.f32 %v4028, %v4031
  %vm4033 = vweird.f32 %v4027
  %vm4034 = vweird.f32 %v4028
  %vm4035 = vmor %vm4033, %vm4034
  %v4036 = vsel %vm4035, %v4028, %v4032
  %v4037 = vand.u32 2147483647, %v4027
  %vm4038 = vcmp.eq.f32.partialorder %v4037, 8.507059e+37
  %v4039 = vand.u32 %v4027, 2147483648
  %v4040 = vor.u32 1.1754944e-38, %v4039
  %v4041 = vsel %vm4038, %v4040, %v4036
  %v4042 = vmul.f32 1.0, %v4041
  %v4043 = vadd.f32 %v4000, %v443
  %v4044 = vmul.f32 %v4022, %v4043
  %v4045 = vadd.f32 %v3800, %v4044
  %v4046 = vtanh.pop %v4045
  %v4047 = vsub.f32 1.0, %v4042
  %v4048 = vmul.f32 %v4047, %v4046
  %v4049 = vmul.f32 %v4042, %v3347
  %v4050 = vadd.f32 %v4048, %v4049
  %s4051 = scalar_lea.vmem [#allocation3], 32
  %4052 = vst [vmem:[%s4051] sm:$0xff] %v4050
  %s4053 = smul.u32 6, 3
  %s4054 = smul.addr %s4053, 8
  %s4055 = scalar_lea.vmem [#allocation2], %s4054
  %v4056 = vld [vmem:[%s4055] sm:$0xff]
  %v4057 = vld [vmem:[%s4055 + $0x8] sm:$0xff]
  %v4058 = vld [vmem:[%s4055 + $0x10] sm:$0xff]
  %v4059 = vpack.c.bf16 %v3603, %v3603
  %v4060 = vld [vmem:[%s4] sm:$0xff]
  %v4061 = vld [vmem:[%s4 + $0x8] sm:$0xf]
  %v4062 = vld [vmem:[%s4 + $0xc] sm:$0xff]
  %v4063 = vld [vmem:[%s4 + $0x14] sm:$0xf]
  %v4064 = vld [vmem:[%s4 + $0x18] sm:$0xff]
  %v4065 = vld [vmem:[%s4 + $0x20] sm:$0xf]
  %v4066 = vld [vmem:[%s4 + $0x24] sm:$0xff]
  %v4067 = vld [vmem:[%s4 + $0x2c] sm:$0xf]
  %v4068 = vld [vmem:[%s4 + $0x30] sm:$0xff]
  %v4069 = vld [vmem:[%s4 + $0x38] sm:$0xf]
  %v4070 = vld [vmem:[%s4 + $0x3c] sm:$0xff]
  %v4071 = vld [vmem:[%s4 + $0x44] sm:$0xf]
  %v4072 = vld [vmem:[%s4 + $0x48] sm:$0xff]
  %v4073 = vld [vmem:[%s4 + $0x50] sm:$0xf]
  %v4074 = vld [vmem:[%s4 + $0x54] sm:$0xff]
  %v4075 = vld [vmem:[%s4 + $0x5c] sm:$0xf]
  %v4076 = vld [vmem:[%s4 + $0x60] sm:$0xff]
  %v4077 = vld [vmem:[%s4 + $0x68] sm:$0xf]
  %v4078 = vld [vmem:[%s4 + $0x6c] sm:$0xff]
  %v4079 = vld [vmem:[%s4 + $0x74] sm:$0xf]
  %v4080 = vld [vmem:[%s4 + $0x78] sm:$0xff]
  %v4081 = vld [vmem:[%s4 + $0x80] sm:$0xf]
  %v4082 = vld [vmem:[%s4 + $0x84] sm:$0xff]
  %v4083 = vld [vmem:[%s4 + $0x8c] sm:$0xf]
  %v4084 = vld [vmem:[%s4 + $0x90] sm:$0xff]
  %v4085 = vld [vmem:[%s4 + $0x98] sm:$0xf]
  %v4086 = vld [vmem:[%s4 + $0x9c] sm:$0xff]
  %v4087 = vld [vmem:[%s4 + $0xa4] sm:$0xf]
  %v4088 = vld [vmem:[%s4 + $0xa8] sm:$0xff]
  %v4089 = vld [vmem:[%s4 + $0xb0] sm:$0xf]
  %v4090 = vld [vmem:[%s4 + $0xb4] sm:$0xff]
  %v4091 = vld [vmem:[%s4 + $0xbc] sm:$0xf]
  %v4124 = vunpack.c.l.b16 %v4060
  %v4125 = vunpack.c.h.b16 %v4060
  %v4126 = vunpack.c.l.b16 %v4061
  %v4127 = vunpack.c.l.b16 %v4062
  %v4128 = vunpack.c.h.b16 %v4062
  %v4129 = vunpack.c.l.b16 %v4063
  %v4130 = vunpack.c.l.b16 %v4064
  %v4131 = vunpack.c.h.b16 %v4064
  %v4132 = vunpack.c.l.b16 %v4065
  %v4133 = vunpack.c.l.b16 %v4066
  %v4134 = vunpack.c.h.b16 %v4066
  %v4135 = vunpack.c.l.b16 %v4067
  %v4136 = vunpack.c.l.b16 %v4068
  %v4137 = vunpack.c.h.b16 %v4068
  %v4138 = vunpack.c.l.b16 %v4069
  %v4139 = vunpack.c.l.b16 %v4070
  %v4140 = vunpack.c.h.b16 %v4070
  %v4141 = vunpack.c.l.b16 %v4071
  %v4142 = vunpack.c.l.b16 %v4072
  %v4143 = vunpack.c.h.b16 %v4072
  %v4144 = vunpack.c.l.b16 %v4073
  %v4145 = vunpack.c.l.b16 %v4074
  %v4146 = vunpack.c.h.b16 %v4074
  %v4147 = vunpack.c.l.b16 %v4075
  %v4148 = vunpack.c.l.b16 %v4076
  %v4149 = vunpack.c.h.b16 %v4076
  %v4150 = vunpack.c.l.b16 %v4077
  %v4151 = vunpack.c.l.b16 %v4078
  %v4152 = vunpack.c.h.b16 %v4078
  %v4153 = vunpack.c.l.b16 %v4079
  %v4154 = vunpack.c.l.b16 %v4080
  %v4155 = vunpack.c.h.b16 %v4080
  %v4156 = vunpack.c.l.b16 %v4081
  %v4157 = vunpack.c.l.b16 %v4082
  %v4158 = vunpack.c.h.b16 %v4082
  %v4159 = vunpack.c.l.b16 %v4083
  %v4160 = vunpack.c.l.b16 %v4084
  %v4161 = vunpack.c.h.b16 %v4084
  %v4162 = vunpack.c.l.b16 %v4085
  %v4163 = vunpack.c.l.b16 %v4086
  %v4164 = vunpack.c.h.b16 %v4086
  %v4165 = vunpack.c.l.b16 %v4087
  %v4166 = vunpack.c.l.b16 %v4088
  %v4167 = vunpack.c.h.b16 %v4088
  %v4168 = vunpack.c.l.b16 %v4089
  %v4169 = vunpack.c.l.b16 %v4090
  %v4170 = vunpack.c.h.b16 %v4090
  %v4171 = vunpack.c.l.b16 %v4091
  %v4172 = vpack.c.b16 %v4127, %v4124
  %v4173 = vpack.c.b16 %v4128, %v4125
  %v4174 = vpack.c.b16 %v4129, %v4126
  %v4175 = vpack.c.b16 %v4133, %v4130
  %v4176 = vpack.c.b16 %v4134, %v4131
  %v4177 = vpack.c.b16 %v4135, %v4132
  %v4178 = vpack.c.b16 %v4139, %v4136
  %v4179 = vpack.c.b16 %v4140, %v4137
  %v4180 = vpack.c.b16 %v4141, %v4138
  %v4181 = vpack.c.b16 %v4145, %v4142
  %v4182 = vpack.c.b16 %v4146, %v4143
  %v4183 = vpack.c.b16 %v4147, %v4144
  %v4184 = vpack.c.b16 %v4151, %v4148
  %v4185 = vpack.c.b16 %v4152, %v4149
  %v4186 = vpack.c.b16 %v4153, %v4150
  %v4187 = vpack.c.b16 %v4157, %v4154
  %v4188 = vpack.c.b16 %v4158, %v4155
  %v4189 = vpack.c.b16 %v4159, %v4156
  %v4190 = vpack.c.b16 %v4163, %v4160
  %v4191 = vpack.c.b16 %v4164, %v4161
  %v4192 = vpack.c.b16 %v4165, %v4162
  %v4193 = vpack.c.b16 %v4169, %v4166
  %v4194 = vpack.c.b16 %v4170, %v4167
  %v4195 = vpack.c.b16 %v4171, %v4168
  %4220 = vmatpush.bf16.msra.mxu0 %v4193
  %4221 = vmatpush.bf16.msra.mxu0 %v4190
  %4222 = vmatpush.bf16.msra.mxu0 %v4187
  %4223 = vmatpush.bf16.msra.mxu0 %v4184
  %4224 = vmatpush.bf16.msra.mxu0 %v4181
  %4225 = vmatpush.bf16.msra.mxu0 %v4178
  %4226 = vmatpush.bf16.msra.mxu0 %v4175
  %4227 = vmatpush.bf16.msra.mxu0 %v4172
  %4228 = vmatmul.bf16.gmra.mxu0 %v4059
  %v4229 = vpop.f32.mrf.mxu0
  %v4230 = vadd.f32 0.0, %v4229
  %v4231 = vpop.f32.mrf.mxu0
  %4232 = vdwg.mxu0
  %4233 = vmatpush.bf16.msra.mxu0 %v4194
  %4234 = vmatpush.bf16.msra.mxu0 %v4191
  %4235 = vmatpush.bf16.msra.mxu0 %v4188
  %4236 = vmatpush.bf16.msra.mxu0 %v4185
  %4237 = vmatpush.bf16.msra.mxu0 %v4182
  %4238 = vmatpush.bf16.msra.mxu0 %v4179
  %4239 = vmatpush.bf16.msra.mxu0 %v4176
  %4240 = vmatpush.bf16.msra.mxu0 %v4173
  %4241 = vmatmul.bf16.gmra.mxu0 %v4059
  %v4242 = vpop.f32.mrf.mxu0
  %v4243 = vadd.f32 0.0, %v4242
  %v4244 = vpop.f32.mrf.mxu0
  %4245 = vdwg.mxu0
  %4246 = vmatpush.bf16.msra.mxu0 %v4195
  %4247 = vmatpush.bf16.msra.mxu0 %v4192
  %4248 = vmatpush.bf16.msra.mxu0 %v4189
  %4249 = vmatpush.bf16.msra.mxu0 %v4186
  %4250 = vmatpush.bf16.msra.mxu0 %v4183
  %4251 = vmatpush.bf16.msra.mxu0 %v4180
  %4252 = vmatpush.bf16.msra.mxu0 %v4177
  %4253 = vmatpush.bf16.msra.mxu0 %v4174
  %4254 = vmatmul.bf16.gmra.mxu0 %v4059
  %v4255 = vpop.f32.mrf.mxu0
  %v4256 = vadd.f32 0.0, %v4255
  %v4257 = vpop.f32.mrf.mxu0
  %4258 = vdwg.mxu0
  %v4259 = vadd.f32 %v4056, %v4230
  %v4260 = vxor.u32 %v4259, 2147483648
  %v4261 = vmul.f32 %v4260, 1.442695
  %v4262 = vpow.pop %v4261
  %v4263 = vadd.f32 %v4262, 1.0
  %v4264 = vrcp.pop %v4263
  %v4265 = vmul.f32 %v4263, %v4264
  %v4266 = vsub.f32 1.0, %v4265
  %v4267 = vmul.f32 %v4264, %v4266
  %v4268 = vadd.f32 %v4264, %v4267
  %vm4269 = vweird.f32 %v4263
  %vm4270 = vweird.f32 %v4264
  %vm4271 = vmor %vm4269, %vm4270
  %v4272 = vsel %vm4271, %v4264, %v4268
  %v4273 = vand.u32 2147483647, %v4263
  %vm4274 = vcmp.eq.f32.partialorder %v4273, 8.507059e+37
  %v4275 = vand.u32 %v4263, 2147483648
  %v4276 = vor.u32 1.1754944e-38, %v4275
  %v4277 = vsel %vm4274, %v4276, %v4272
  %v4278 = vmul.f32 1.0, %v4277
  %v4279 = vadd.f32 %v4057, %v4243
  %v4280 = vxor.u32 %v4279, 2147483648
  %v4281 = vmul.f32 %v4280, 1.442695
  %v4282 = vpow.pop %v4281
  %v4283 = vadd.f32 %v4282, 1.0
  %v4284 = vrcp.pop %v4283
  %v4285 = vmul.f32 %v4283, %v4284
  %v4286 = vsub.f32 1.0, %v4285
  %v4287 = vmul.f32 %v4284, %v4286
  %v4288 = vadd.f32 %v4284, %v4287
  %vm4289 = vweird.f32 %v4283
  %vm4290 = vweird.f32 %v4284
  %vm4291 = vmor %vm4289, %vm4290
  %v4292 = vsel %vm4291, %v4284, %v4288
  %v4293 = vand.u32 2147483647, %v4283
  %vm4294 = vcmp.eq.f32.partialorder %v4293, 8.507059e+37
  %v4295 = vand.u32 %v4283, 2147483648
  %v4296 = vor.u32 1.1754944e-38, %v4295
  %v4297 = vsel %vm4294, %v4296, %v4292
  %v4298 = vmul.f32 1.0, %v4297
  %v4299 = vadd.f32 %v4256, %v438
  %v4300 = vmul.f32 %v4278, %v4299
  %v4301 = vadd.f32 %v4058, %v4300
  %v4302 = vtanh.pop %v4301
  %v4303 = vsub.f32 1.0, %v4298
  %v4304 = vmul.f32 %v4303, %v4302
  %v4305 = vmul.f32 %v4298, %v3603
  %v4306 = vadd.f32 %v4304, %v4305
  %v4307 = vld [vmem:[%s792] sm:$0xff]
  %v4308 = vld [vmem:[%s792 + $0x8] sm:$0xf]
  %v4309 = vld [vmem:[%s792 + $0xc] sm:$0xff]
  %v4310 = vld [vmem:[%s792 + $0x14] sm:$0xf]
  %v4311 = vld [vmem:[%s792 + $0x18] sm:$0xff]
  %v4312 = vld [vmem:[%s792 + $0x20] sm:$0xf]
  %v4313 = vld [vmem:[%s792 + $0x24] sm:$0xff]
  %v4314 = vld [vmem:[%s792 + $0x2c] sm:$0xf]
  %v4315 = vld [vmem:[%s792 + $0x30] sm:$0xff]
  %v4316 = vld [vmem:[%s792 + $0x38] sm:$0xf]
  %v4317 = vld [vmem:[%s792 + $0x3c] sm:$0xff]
  %v4318 = vld [vmem:[%s792 + $0x44] sm:$0xf]
  %v4319 = vld [vmem:[%s792 + $0x48] sm:$0xff]
  %v4320 = vld [vmem:[%s792 + $0x50] sm:$0xf]
  %v4321 = vld [vmem:[%s792 + $0x54] sm:$0xff]
  %v4322 = vld [vmem:[%s792 + $0x5c] sm:$0xf]
  %v4323 = vld [vmem:[%s792 + $0x60] sm:$0xff]
  %v4324 = vld [vmem:[%s792 + $0x68] sm:$0xf]
  %v4325 = vld [vmem:[%s792 + $0x6c] sm:$0xff]
  %v4326 = vld [vmem:[%s792 + $0x74] sm:$0xf]
  %v4327 = vld [vmem:[%s792 + $0x78] sm:$0xff]
  %v4328 = vld [vmem:[%s792 + $0x80] sm:$0xf]
  %v4329 = vld [vmem:[%s792 + $0x84] sm:$0xff]
  %v4330 = vld [vmem:[%s792 + $0x8c] sm:$0xf]
  %v4331 = vld [vmem:[%s792 + $0x90] sm:$0xff]
  %v4332 = vld [vmem:[%s792 + $0x98] sm:$0xf]
  %v4333 = vld [vmem:[%s792 + $0x9c] sm:$0xff]
  %v4334 = vld [vmem:[%s792 + $0xa4] sm:$0xf]
  %v4335 = vld [vmem:[%s792 + $0xa8] sm:$0xff]
  %v4336 = vld [vmem:[%s792 + $0xb0] sm:$0xf]
  %v4337 = vld [vmem:[%s792 + $0xb4] sm:$0xff]
  %v4338 = vld [vmem:[%s792 + $0xbc] sm:$0xf]
  %v4371 = vunpack.c.l.b16 %v4307
  %v4372 = vunpack.c.h.b16 %v4307
  %v4373 = vunpack.c.l.b16 %v4308
  %v4374 = vunpack.c.l.b16 %v4309
  %v4375 = vunpack.c.h.b16 %v4309
  %v4376 = vunpack.c.l.b16 %v4310
  %v4377 = vunpack.c.l.b16 %v4311
  %v4378 = vunpack.c.h.b16 %v4311
  %v4379 = vunpack.c.l.b16 %v4312
  %v4380 = vunpack.c.l.b16 %v4313
  %v4381 = vunpack.c.h.b16 %v4313
  %v4382 = vunpack.c.l.b16 %v4314
  %v4383 = vunpack.c.l.b16 %v4315
  %v4384 = vunpack.c.h.b16 %v4315
  %v4385 = vunpack.c.l.b16 %v4316
  %v4386 = vunpack.c.l.b16 %v4317
  %v4387 = vunpack.c.h.b16 %v4317
  %v4388 = vunpack.c.l.b16 %v4318
  %v4389 = vunpack.c.l.b16 %v4319
  %v4390 = vunpack.c.h.b16 %v4319
  %v4391 = vunpack.c.l.b16 %v4320
  %v4392 = vunpack.c.l.b16 %v4321
  %v4393 = vunpack.c.h.b16 %v4321
  %v4394 = vunpack.c.l.b16 %v4322
  %v4395 = vunpack.c.l.b16 %v4323
  %v4396 = vunpack.c.h.b16 %v4323
  %v4397 = vunpack.c.l.b16 %v4324
  %v4398 = vunpack.c.l.b16 %v4325
  %v4399 = vunpack.c.h.b16 %v4325
  %v4400 = vunpack.c.l.b16 %v4326
  %v4401 = vunpack.c.l.b16 %v4327
  %v4402 = vunpack.c.h.b16 %v4327
  %v4403 = vunpack.c.l.b16 %v4328
  %v4404 = vunpack.c.l.b16 %v4329
  %v4405 = vunpack.c.h.b16 %v4329
  %v4406 = vunpack.c.l.b16 %v4330
  %v4407 = vunpack.c.l.b16 %v4331
  %v4408 = vunpack.c.h.b16 %v4331
  %v4409 = vunpack.c.l.b16 %v4332
  %v4410 = vunpack.c.l.b16 %v4333
  %v4411 = vunpack.c.h.b16 %v4333
  %v4412 = vunpack.c.l.b16 %v4334
  %v4413 = vunpack.c.l.b16 %v4335
  %v4414 = vunpack.c.h.b16 %v4335
  %v4415 = vunpack.c.l.b16 %v4336
  %v4416 = vunpack.c.l.b16 %v4337
  %v4417 = vunpack.c.h.b16 %v4337
  %v4418 = vunpack.c.l.b16 %v4338
  %v4419 = vpack.c.b16 %v4374, %v4371
  %v4420 = vpack.c.b16 %v4375, %v4372
  %v4421 = vpack.c.b16 %v4376, %v4373
  %v4422 = vpack.c.b16 %v4380, %v4377
  %v4423 = vpack.c.b16 %v4381, %v4378
  %v4424 = vpack.c.b16 %v4382, %v4379
  %v4425 = vpack.c.b16 %v4386, %v4383
  %v4426 = vpack.c.b16 %v4387, %v4384
  %v4427 = vpack.c.b16 %v4388, %v4385
  %v4428 = vpack.c.b16 %v4392, %v4389
  %v4429 = vpack.c.b16 %v4393, %v4390
  %v4430 = vpack.c.b16 %v4394, %v4391
  %v4431 = vpack.c.b16 %v4398, %v4395
  %v4432 = vpack.c.b16 %v4399, %v4396
  %v4433 = vpack.c.b16 %v4400, %v4397
  %v4434 = vpack.c.b16 %v4404, %v4401
  %v4435 = vpack.c.b16 %v4405, %v4402
  %v4436 = vpack.c.b16 %v4406, %v4403
  %v4437 = vpack.c.b16 %v4410, %v4407
  %v4438 = vpack.c.b16 %v4411, %v4408
  %v4439 = vpack.c.b16 %v4412, %v4409
  %v4440 = vpack.c.b16 %v4416, %v4413
  %v4441 = vpack.c.b16 %v4417, %v4414
  %v4442 = vpack.c.b16 %v4418, %v4415
  %4467 = vmatpush.bf16.msra.mxu0 %v4440
  %4468 = vmatpush.bf16.msra.mxu0 %v4437
  %4469 = vmatpush.bf16.msra.mxu0 %v4434
  %4470 = vmatpush.bf16.msra.mxu0 %v4431
  %4471 = vmatpush.bf16.msra.mxu0 %v4428
  %4472 = vmatpush.bf16.msra.mxu0 %v4425
  %4473 = vmatpush.bf16.msra.mxu0 %v4422
  %4474 = vmatpush.bf16.msra.mxu0 %v4419
  %4475 = vmatmul.bf16.gmra.mxu0 %v4059
  %v4476 = vpop.f32.mrf.mxu0
  %v4477 = vadd.f32 %v430, %v4476
  %v4478 = vpop.f32.mrf.mxu0
  %4479 = vdwg.mxu0
  %4480 = vmatpush.bf16.msra.mxu0 %v4441
  %4481 = vmatpush.bf16.msra.mxu0 %v4438
  %4482 = vmatpush.bf16.msra.mxu0 %v4435
  %4483 = vmatpush.bf16.msra.mxu0 %v4432
  %4484 = vmatpush.bf16.msra.mxu0 %v4429
  %4485 = vmatpush.bf16.msra.mxu0 %v4426
  %4486 = vmatpush.bf16.msra.mxu0 %v4423
  %4487 = vmatpush.bf16.msra.mxu0 %v4420
  %4488 = vmatmul.bf16.gmra.mxu0 %v4059
  %v4489 = vpop.f32.mrf.mxu0
  %v4490 = vadd.f32 %v431, %v4489
  %v4491 = vpop.f32.mrf.mxu0
  %4492 = vdwg.mxu0
  %4493 = vmatpush.bf16.msra.mxu0 %v4442
  %4494 = vmatpush.bf16.msra.mxu0 %v4439
  %4495 = vmatpush.bf16.msra.mxu0 %v4436
  %4496 = vmatpush.bf16.msra.mxu0 %v4433
  %4497 = vmatpush.bf16.msra.mxu0 %v4430
  %4498 = vmatpush.bf16.msra.mxu0 %v4427
  %4499 = vmatpush.bf16.msra.mxu0 %v4424
  %4500 = vmatpush.bf16.msra.mxu0 %v4421
  %4501 = vmatmul.bf16.gmra.mxu0 %v4059
  %v4502 = vpop.f32.mrf.mxu0
  %v4503 = vadd.f32 %v432, %v4502
  %v4504 = vpop.f32.mrf.mxu0
  %4505 = vdwg.mxu0
  %v4506 = vpack.c.bf16 %v4050, %v4050
  %v4507 = vld [vmem:[%s992] sm:$0xff]
  %v4508 = vld [vmem:[%s992 + $0x8] sm:$0xf]
  %v4509 = vld [vmem:[%s992 + $0xc] sm:$0xff]
  %v4510 = vld [vmem:[%s992 + $0x14] sm:$0xf]
  %v4511 = vld [vmem:[%s992 + $0x18] sm:$0xff]
  %v4512 = vld [vmem:[%s992 + $0x20] sm:$0xf]
  %v4513 = vld [vmem:[%s992 + $0x24] sm:$0xff]
  %v4514 = vld [vmem:[%s992 + $0x2c] sm:$0xf]
  %v4515 = vld [vmem:[%s992 + $0x30] sm:$0xff]
  %v4516 = vld [vmem:[%s992 + $0x38] sm:$0xf]
  %v4517 = vld [vmem:[%s992 + $0x3c] sm:$0xff]
  %v4518 = vld [vmem:[%s992 + $0x44] sm:$0xf]
  %v4519 = vld [vmem:[%s992 + $0x48] sm:$0xff]
  %v4520 = vld [vmem:[%s992 + $0x50] sm:$0xf]
  %v4521 = vld [vmem:[%s992 + $0x54] sm:$0xff]
  %v4522 = vld [vmem:[%s992 + $0x5c] sm:$0xf]
  %v4523 = vld [vmem:[%s992 + $0x60] sm:$0xff]
  %v4524 = vld [vmem:[%s992 + $0x68] sm:$0xf]
  %v4525 = vld [vmem:[%s992 + $0x6c] sm:$0xff]
  %v4526 = vld [vmem:[%s992 + $0x74] sm:$0xf]
  %v4527 = vld [vmem:[%s992 + $0x78] sm:$0xff]
  %v4528 = vld [vmem:[%s992 + $0x80] sm:$0xf]
  %v4529 = vld [vmem:[%s992 + $0x84] sm:$0xff]
  %v4530 = vld [vmem:[%s992 + $0x8c] sm:$0xf]
  %v4531 = vld [vmem:[%s992 + $0x90] sm:$0xff]
  %v4532 = vld [vmem:[%s992 + $0x98] sm:$0xf]
  %v4533 = vld [vmem:[%s992 + $0x9c] sm:$0xff]
  %v4534 = vld [vmem:[%s992 + $0xa4] sm:$0xf]
  %v4535 = vld [vmem:[%s992 + $0xa8] sm:$0xff]
  %v4536 = vld [vmem:[%s992 + $0xb0] sm:$0xf]
  %v4537 = vld [vmem:[%s992 + $0xb4] sm:$0xff]
  %v4538 = vld [vmem:[%s992 + $0xbc] sm:$0xf]
  %v4571 = vunpack.c.l.b16 %v4507
  %v4572 = vunpack.c.h.b16 %v4507
  %v4573 = vunpack.c.l.b16 %v4508
  %v4574 = vunpack.c.l.b16 %v4509
  %v4575 = vunpack.c.h.b16 %v4509
  %v4576 = vunpack.c.l.b16 %v4510
  %v4577 = vunpack.c.l.b16 %v4511
  %v4578 = vunpack.c.h.b16 %v4511
  %v4579 = vunpack.c.l.b16 %v4512
  %v4580 = vunpack.c.l.b16 %v4513
  %v4581 = vunpack.c.h.b16 %v4513
  %v4582 = vunpack.c.l.b16 %v4514
  %v4583 = vunpack.c.l.b16 %v4515
  %v4584 = vunpack.c.h.b16 %v4515
  %v4585 = vunpack.c.l.b16 %v4516
  %v4586 = vunpack.c.l.b16 %v4517
  %v4587 = vunpack.c.h.b16 %v4517
  %v4588 = vunpack.c.l.b16 %v4518
  %v4589 = vunpack.c.l.b16 %v4519
  %v4590 = vunpack.c.h.b16 %v4519
  %v4591 = vunpack.c.l.b16 %v4520
  %v4592 = vunpack.c.l.b16 %v4521
  %v4593 = vunpack.c.h.b16 %v4521
  %v4594 = vunpack.c.l.b16 %v4522
  %v4595 = vunpack.c.l.b16 %v4523
  %v4596 = vunpack.c.h.b16 %v4523
  %v4597 = vunpack.c.l.b16 %v4524
  %v4598 = vunpack.c.l.b16 %v4525
  %v4599 = vunpack.c.h.b16 %v4525
  %v4600 = vunpack.c.l.b16 %v4526
  %v4601 = vunpack.c.l.b16 %v4527
  %v4602 = vunpack.c.h.b16 %v4527
  %v4603 = vunpack.c.l.b16 %v4528
  %v4604 = vunpack.c.l.b16 %v4529
  %v4605 = vunpack.c.h.b16 %v4529
  %v4606 = vunpack.c.l.b16 %v4530
  %v4607 = vunpack.c.l.b16 %v4531
  %v4608 = vunpack.c.h.b16 %v4531
  %v4609 = vunpack.c.l.b16 %v4532
  %v4610 = vunpack.c.l.b16 %v4533
  %v4611 = vunpack.c.h.b16 %v4533
  %v4612 = vunpack.c.l.b16 %v4534
  %v4613 = vunpack.c.l.b16 %v4535
  %v4614 = vunpack.c.h.b16 %v4535
  %v4615 = vunpack.c.l.b16 %v4536
  %v4616 = vunpack.c.l.b16 %v4537
  %v4617 = vunpack.c.h.b16 %v4537
  %v4618 = vunpack.c.l.b16 %v4538
  %v4619 = vpack.c.b16 %v4574, %v4571
  %v4620 = vpack.c.b16 %v4575, %v4572
  %v4621 = vpack.c.b16 %v4576, %v4573
  %v4622 = vpack.c.b16 %v4580, %v4577
  %v4623 = vpack.c.b16 %v4581, %v4578
  %v4624 = vpack.c.b16 %v4582, %v4579
  %v4625 = vpack.c.b16 %v4586, %v4583
  %v4626 = vpack.c.b16 %v4587, %v4584
  %v4627 = vpack.c.b16 %v4588, %v4585
  %v4628 = vpack.c.b16 %v4592, %v4589
  %v4629 = vpack.c.b16 %v4593, %v4590
  %v4630 = vpack.c.b16 %v4594, %v4591
  %v4631 = vpack.c.b16 %v4598, %v4595
  %v4632 = vpack.c.b16 %v4599, %v4596
  %v4633 = vpack.c.b16 %v4600, %v4597
  %v4634 = vpack.c.b16 %v4604, %v4601
  %v4635 = vpack.c.b16 %v4605, %v4602
  %v4636 = vpack.c.b16 %v4606, %v4603
  %v4637 = vpack.c.b16 %v4610, %v4607
  %v4638 = vpack.c.b16 %v4611, %v4608
  %v4639 = vpack.c.b16 %v4612, %v4609
  %v4640 = vpack.c.b16 %v4616, %v4613
  %v4641 = vpack.c.b16 %v4617, %v4614
  %v4642 = vpack.c.b16 %v4618, %v4615
  %4667 = vmatpush.bf16.msra.mxu0 %v4640
  %4668 = vmatpush.bf16.msra.mxu0 %v4637
  %4669 = vmatpush.bf16.msra.mxu0 %v4634
  %4670 = vmatpush.bf16.msra.mxu0 %v4631
  %4671 = vmatpush.bf16.msra.mxu0 %v4628
  %4672 = vmatpush.bf16.msra.mxu0 %v4625
  %4673 = vmatpush.bf16.msra.mxu0 %v4622
  %4674 = vmatpush.bf16.msra.mxu0 %v4619
  %4675 = vmatmul.bf16.gmra.mxu0 %v4506
  %v4676 = vpop.f32.mrf.mxu0
  %v4677 = vadd.f32 0.0, %v4676
  %v4678 = vpop.f32.mrf.mxu0
  %4679 = vdwg.mxu0
  %4680 = vmatpush.bf16.msra.mxu0 %v4641
  %4681 = vmatpush.bf16.msra.mxu0 %v4638
  %4682 = vmatpush.bf16.msra.mxu0 %v4635
  %4683 = vmatpush.bf16.msra.mxu0 %v4632
  %4684 = vmatpush.bf16.msra.mxu0 %v4629
  %4685 = vmatpush.bf16.msra.mxu0 %v4626
  %4686 = vmatpush.bf16.msra.mxu0 %v4623
  %4687 = vmatpush.bf16.msra.mxu0 %v4620
  %4688 = vmatmul.bf16.gmra.mxu0 %v4506
  %v4689 = vpop.f32.mrf.mxu0
  %v4690 = vadd.f32 0.0, %v4689
  %v4691 = vpop.f32.mrf.mxu0
  %4692 = vdwg.mxu0
  %4693 = vmatpush.bf16.msra.mxu0 %v4642
  %4694 = vmatpush.bf16.msra.mxu0 %v4639
  %4695 = vmatpush.bf16.msra.mxu0 %v4636
  %4696 = vmatpush.bf16.msra.mxu0 %v4633
  %4697 = vmatpush.bf16.msra.mxu0 %v4630
  %4698 = vmatpush.bf16.msra.mxu0 %v4627
  %4699 = vmatpush.bf16.msra.mxu0 %v4624
  %4700 = vmatpush.bf16.msra.mxu0 %v4621
  %4701 = vmatmul.bf16.gmra.mxu0 %v4506
  %v4702 = vpop.f32.mrf.mxu0
  %v4703 = vadd.f32 0.0, %v4702
  %v4704 = vpop.f32.mrf.mxu0
  %4705 = vdwg.mxu0
  %v4706 = vadd.f32 %v4477, %v4677
  %v4707 = vxor.u32 %v4706, 2147483648
  %v4708 = vmul.f32 %v4707, 1.442695
  %v4709 = vpow.pop %v4708
  %v4710 = vadd.f32 %v4709, 1.0
  %v4711 = vrcp.pop %v4710
  %v4712 = vmul.f32 %v4710, %v4711
  %v4713 = vsub.f32 1.0, %v4712
  %v4714 = vmul.f32 %v4711, %v4713
  %v4715 = vadd.f32 %v4711, %v4714
  %vm4716 = vweird.f32 %v4710
  %vm4717 = vweird.f32 %v4711
  %vm4718 = vmor %vm4716, %vm4717
  %v4719 = vsel %vm4718, %v4711, %v4715
  %v4720 = vand.u32 2147483647, %v4710
  %vm4721 = vcmp.eq.f32.partialorder %v4720, 8.507059e+37
  %v4722 = vand.u32 %v4710, 2147483648
  %v4723 = vor.u32 1.1754944e-38, %v4722
  %v4724 = vsel %vm4721, %v4723, %v4719
  %v4725 = vmul.f32 1.0, %v4724
  %v4726 = vadd.f32 %v4490, %v4690
  %v4727 = vxor.u32 %v4726, 2147483648
  %v4728 = vmul.f32 %v4727, 1.442695
  %v4729 = vpow.pop %v4728
  %v4730 = vadd.f32 %v4729, 1.0
  %v4731 = vrcp.pop %v4730
  %v4732 = vmul.f32 %v4730, %v4731
  %v4733 = vsub.f32 1.0, %v4732
  %v4734 = vmul.f32 %v4731, %v4733
  %v4735 = vadd.f32 %v4731, %v4734
  %vm4736 = vweird.f32 %v4730
  %vm4737 = vweird.f32 %v4731
  %vm4738 = vmor %vm4736, %vm4737
  %v4739 = vsel %vm4738, %v4731, %v4735
  %v4740 = vand.u32 2147483647, %v4730
  %vm4741 = vcmp.eq.f32.partialorder %v4740, 8.507059e+37
  %v4742 = vand.u32 %v4730, 2147483648
  %v4743 = vor.u32 1.1754944e-38, %v4742
  %v4744 = vsel %vm4741, %v4743, %v4739
  %v4745 = vmul.f32 1.0, %v4744
  %v4746 = vadd.f32 %v4703, %v443
  %v4747 = vmul.f32 %v4725, %v4746
  %v4748 = vadd.f32 %v4503, %v4747
  %v4749 = vtanh.pop %v4748
  %v4750 = vsub.f32 1.0, %v4745
  %v4751 = vmul.f32 %v4750, %v4749
  %v4752 = vmul.f32 %v4745, %v4050
  %v4753 = vadd.f32 %v4751, %v4752
  %s4754 = scalar_lea.vmem [#allocation3], 40
  %4755 = vst [vmem:[%s4754] sm:$0xff] %v4753
  %s4756 = smul.u32 7, 3
  %s4757 = smul.addr %s4756, 8
  %s4758 = scalar_lea.vmem [#allocation2], %s4757
  %v4759 = vld [vmem:[%s4758] sm:$0xff]
  %v4760 = vld [vmem:[%s4758 + $0x8] sm:$0xff]
  %v4761 = vld [vmem:[%s4758 + $0x10] sm:$0xff]
  %v4762 = vpack.c.bf16 %v4306, %v4306
  %v4763 = vld [vmem:[%s4] sm:$0xff]
  %v4764 = vld [vmem:[%s4 + $0x8] sm:$0xf]
  %v4765 = vld [vmem:[%s4 + $0xc] sm:$0xff]
  %v4766 = vld [vmem:[%s4 + $0x14] sm:$0xf]
  %v4767 = vld [vmem:[%s4 + $0x18] sm:$0xff]
  %v4768 = vld [vmem:[%s4 + $0x20] sm:$0xf]
  %v4769 = vld [vmem:[%s4 + $0x24] sm:$0xff]
  %v4770 = vld [vmem:[%s4 + $0x2c] sm:$0xf]
  %v4771 = vld [vmem:[%s4 + $0x30] sm:$0xff]
  %v4772 = vld [vmem:[%s4 + $0x38] sm:$0xf]
  %v4773 = vld [vmem:[%s4 + $0x3c] sm:$0xff]
  %v4774 = vld [vmem:[%s4 + $0x44] sm:$0xf]
  %v4775 = vld [vmem:[%s4 + $0x48] sm:$0xff]
  %v4776 = vld [vmem:[%s4 + $0x50] sm:$0xf]
  %v4777 = vld [vmem:[%s4 + $0x54] sm:$0xff]
  %v4778 = vld [vmem:[%s4 + $0x5c] sm:$0xf]
  %v4779 = vld [vmem:[%s4 + $0x60] sm:$0xff]
  %v4780 = vld [vmem:[%s4 + $0x68] sm:$0xf]
  %v4781 = vld [vmem:[%s4 + $0x6c] sm:$0xff]
  %v4782 = vld [vmem:[%s4 + $0x74] sm:$0xf]
  %v4783 = vld [vmem:[%s4 + $0x78] sm:$0xff]
  %v4784 = vld [vmem:[%s4 + $0x80] sm:$0xf]
  %v4785 = vld [vmem:[%s4 + $0x84] sm:$0xff]
  %v4786 = vld [vmem:[%s4 + $0x8c] sm:$0xf]
  %v4787 = vld [vmem:[%s4 + $0x90] sm:$0xff]
  %v4788 = vld [vmem:[%s4 + $0x98] sm:$0xf]
  %v4789 = vld [vmem:[%s4 + $0x9c] sm:$0xff]
  %v4790 = vld [vmem:[%s4 + $0xa4] sm:$0xf]
  %v4791 = vld [vmem:[%s4 + $0xa8] sm:$0xff]
  %v4792 = vld [vmem:[%s4 + $0xb0] sm:$0xf]
  %v4793 = vld [vmem:[%s4 + $0xb4] sm:$0xff]
  %v4794 = vld [vmem:[%s4 + $0xbc] sm:$0xf]
  %v4827 = vunpack.c.l.b16 %v4763
  %v4828 = vunpack.c.h.b16 %v4763
  %v4829 = vunpack.c.l.b16 %v4764
  %v4830 = vunpack.c.l.b16 %v4765
  %v4831 = vunpack.c.h.b16 %v4765
  %v4832 = vunpack.c.l.b16 %v4766
  %v4833 = vunpack.c.l.b16 %v4767
  %v4834 = vunpack.c.h.b16 %v4767
  %v4835 = vunpack.c.l.b16 %v4768
  %v4836 = vunpack.c.l.b16 %v4769
  %v4837 = vunpack.c.h.b16 %v4769
  %v4838 = vunpack.c.l.b16 %v4770
  %v4839 = vunpack.c.l.b16 %v4771
  %v4840 = vunpack.c.h.b16 %v4771
  %v4841 = vunpack.c.l.b16 %v4772
  %v4842 = vunpack.c.l.b16 %v4773
  %v4843 = vunpack.c.h.b16 %v4773
  %v4844 = vunpack.c.l.b16 %v4774
  %v4845 = vunpack.c.l.b16 %v4775
  %v4846 = vunpack.c.h.b16 %v4775
  %v4847 = vunpack.c.l.b16 %v4776
  %v4848 = vunpack.c.l.b16 %v4777
  %v4849 = vunpack.c.h.b16 %v4777
  %v4850 = vunpack.c.l.b16 %v4778
  %v4851 = vunpack.c.l.b16 %v4779
  %v4852 = vunpack.c.h.b16 %v4779
  %v4853 = vunpack.c.l.b16 %v4780
  %v4854 = vunpack.c.l.b16 %v4781
  %v4855 = vunpack.c.h.b16 %v4781
  %v4856 = vunpack.c.l.b16 %v4782
  %v4857 = vunpack.c.l.b16 %v4783
  %v4858 = vunpack.c.h.b16 %v4783
  %v4859 = vunpack.c.l.b16 %v4784
  %v4860 = vunpack.c.l.b16 %v4785
  %v4861 = vunpack.c.h.b16 %v4785
  %v4862 = vunpack.c.l.b16 %v4786
  %v4863 = vunpack.c.l.b16 %v4787
  %v4864 = vunpack.c.h.b16 %v4787
  %v4865 = vunpack.c.l.b16 %v4788
  %v4866 = vunpack.c.l.b16 %v4789
  %v4867 = vunpack.c.h.b16 %v4789
  %v4868 = vunpack.c.l.b16 %v4790
  %v4869 = vunpack.c.l.b16 %v4791
  %v4870 = vunpack.c.h.b16 %v4791
  %v4871 = vunpack.c.l.b16 %v4792
  %v4872 = vunpack.c.l.b16 %v4793
  %v4873 = vunpack.c.h.b16 %v4793
  %v4874 = vunpack.c.l.b16 %v4794
  %v4875 = vpack.c.b16 %v4830, %v4827
  %v4876 = vpack.c.b16 %v4831, %v4828
  %v4877 = vpack.c.b16 %v4832, %v4829
  %v4878 = vpack.c.b16 %v4836, %v4833
  %v4879 = vpack.c.b16 %v4837, %v4834
  %v4880 = vpack.c.b16 %v4838, %v4835
  %v4881 = vpack.c.b16 %v4842, %v4839
  %v4882 = vpack.c.b16 %v4843, %v4840
  %v4883 = vpack.c.b16 %v4844, %v4841
  %v4884 = vpack.c.b16 %v4848, %v4845
  %v4885 = vpack.c.b16 %v4849, %v4846
  %v4886 = vpack.c.b16 %v4850, %v4847
  %v4887 = vpack.c.b16 %v4854, %v4851
  %v4888 = vpack.c.b16 %v4855, %v4852
  %v4889 = vpack.c.b16 %v4856, %v4853
  %v4890 = vpack.c.b16 %v4860, %v4857
  %v4891 = vpack.c.b16 %v4861, %v4858
  %v4892 = vpack.c.b16 %v4862, %v4859
  %v4893 = vpack.c.b16 %v4866, %v4863
  %v4894 = vpack.c.b16 %v4867, %v4864
  %v4895 = vpack.c.b16 %v4868, %v4865
  %v4896 = vpack.c.b16 %v4872, %v4869
  %v4897 = vpack.c.b16 %v4873, %v4870
  %v4898 = vpack.c.b16 %v4874, %v4871
  %4923 = vmatpush.bf16.msra.mxu0 %v4896
  %4924 = vmatpush.bf16.msra.mxu0 %v4893
  %4925 = vmatpush.bf16.msra.mxu0 %v4890
  %4926 = vmatpush.bf16.msra.mxu0 %v4887
  %4927 = vmatpush.bf16.msra.mxu0 %v4884
  %4928 = vmatpush.bf16.msra.mxu0 %v4881
  %4929 = vmatpush.bf16.msra.mxu0 %v4878
  %4930 = vmatpush.bf16.msra.mxu0 %v4875
  %4931 = vmatmul.bf16.gmra.mxu0 %v4762
  %v4932 = vpop.f32.mrf.mxu0
  %v4933 = vadd.f32 0.0, %v4932
  %v4934 = vpop.f32.mrf.mxu0
  %4935 = vdwg.mxu0
  %4936 = vmatpush.bf16.msra.mxu0 %v4897
  %4937 = vmatpush.bf16.msra.mxu0 %v4894
  %4938 = vmatpush.bf16.msra.mxu0 %v4891
  %4939 = vmatpush.bf16.msra.mxu0 %v4888
  %4940 = vmatpush.bf16.msra.mxu0 %v4885
  %4941 = vmatpush.bf16.msra.mxu0 %v4882
  %4942 = vmatpush.bf16.msra.mxu0 %v4879
  %4943 = vmatpush.bf16.msra.mxu0 %v4876
  %4944 = vmatmul.bf16.gmra.mxu0 %v4762
  %v4945 = vpop.f32.mrf.mxu0
  %v4946 = vadd.f32 0.0, %v4945
  %v4947 = vpop.f32.mrf.mxu0
  %4948 = vdwg.mxu0
  %4949 = vmatpush.bf16.msra.mxu0 %v4898
  %4950 = vmatpush.bf16.msra.mxu0 %v4895
  %4951 = vmatpush.bf16.msra.mxu0 %v4892
  %4952 = vmatpush.bf16.msra.mxu0 %v4889
  %4953 = vmatpush.bf16.msra.mxu0 %v4886
  %4954 = vmatpush.bf16.msra.mxu0 %v4883
  %4955 = vmatpush.bf16.msra.mxu0 %v4880
  %4956 = vmatpush.bf16.msra.mxu0 %v4877
  %4957 = vmatmul.bf16.gmra.mxu0 %v4762
  %v4958 = vpop.f32.mrf.mxu0
  %v4959 = vadd.f32 0.0, %v4958
  %v4960 = vpop.f32.mrf.mxu0
  %4961 = vdwg.mxu0
  %v4962 = vadd.f32 %v4759, %v4933
  %v4963 = vxor.u32 %v4962, 2147483648
  %v4964 = vmul.f32 %v4963, 1.442695
  %v4965 = vpow.pop %v4964
  %v4966 = vadd.f32 %v4965, 1.0
  %v4967 = vrcp.pop %v4966
  %v4968 = vmul.f32 %v4966, %v4967
  %v4969 = vsub.f32 1.0, %v4968
  %v4970 = vmul.f32 %v4967, %v4969
  %v4971 = vadd.f32 %v4967, %v4970
  %vm4972 = vweird.f32 %v4966
  %vm4973 = vweird.f32 %v4967
  %vm4974 = vmor %vm4972, %vm4973
  %v4975 = vsel %vm4974, %v4967, %v4971
  %v4976 = vand.u32 2147483647, %v4966
  %vm4977 = vcmp.eq.f32.partialorder %v4976, 8.507059e+37
  %v4978 = vand.u32 %v4966, 2147483648
  %v4979 = vor.u32 1.1754944e-38, %v4978
  %v4980 = vsel %vm4977, %v4979, %v4975
  %v4981 = vmul.f32 1.0, %v4980
  %v4982 = vadd.f32 %v4760, %v4946
  %v4983 = vxor.u32 %v4982, 2147483648
  %v4984 = vmul.f32 %v4983, 1.442695
  %v4985 = vpow.pop %v4984
  %v4986 = vadd.f32 %v4985, 1.0
  %v4987 = vrcp.pop %v4986
  %v4988 = vmul.f32 %v4986, %v4987
  %v4989 = vsub.f32 1.0, %v4988
  %v4990 = vmul.f32 %v4987, %v4989
  %v4991 = vadd.f32 %v4987, %v4990
  %vm4992 = vweird.f32 %v4986
  %vm4993 = vweird.f32 %v4987
  %vm4994 = vmor %vm4992, %vm4993
  %v4995 = vsel %vm4994, %v4987, %v4991
  %v4996 = vand.u32 2147483647, %v4986
  %vm4997 = vcmp.eq.f32.partialorder %v4996, 8.507059e+37
  %v4998 = vand.u32 %v4986, 2147483648
  %v4999 = vor.u32 1.1754944e-38, %v4998
  %v5000 = vsel %vm4997, %v4999, %v4995
  %v5001 = vmul.f32 1.0, %v5000
  %v5002 = vadd.f32 %v4959, %v438
  %v5003 = vmul.f32 %v4981, %v5002
  %v5004 = vadd.f32 %v4761, %v5003
  %v5005 = vtanh.pop %v5004
  %v5006 = vsub.f32 1.0, %v5001
  %v5007 = vmul.f32 %v5006, %v5005
  %v5008 = vmul.f32 %v5001, %v4306
  %v5009 = vadd.f32 %v5007, %v5008
  %v5010 = vld [vmem:[%s792] sm:$0xff]
  %v5011 = vld [vmem:[%s792 + $0x8] sm:$0xf]
  %v5012 = vld [vmem:[%s792 + $0xc] sm:$0xff]
  %v5013 = vld [vmem:[%s792 + $0x14] sm:$0xf]
  %v5014 = vld [vmem:[%s792 + $0x18] sm:$0xff]
  %v5015 = vld [vmem:[%s792 + $0x20] sm:$0xf]
  %v5016 = vld [vmem:[%s792 + $0x24] sm:$0xff]
  %v5017 = vld [vmem:[%s792 + $0x2c] sm:$0xf]
  %v5018 = vld [vmem:[%s792 + $0x30] sm:$0xff]
  %v5019 = vld [vmem:[%s792 + $0x38] sm:$0xf]
  %v5020 = vld [vmem:[%s792 + $0x3c] sm:$0xff]
  %v5021 = vld [vmem:[%s792 + $0x44] sm:$0xf]
  %v5022 = vld [vmem:[%s792 + $0x48] sm:$0xff]
  %v5023 = vld [vmem:[%s792 + $0x50] sm:$0xf]
  %v5024 = vld [vmem:[%s792 + $0x54] sm:$0xff]
  %v5025 = vld [vmem:[%s792 + $0x5c] sm:$0xf]
  %v5026 = vld [vmem:[%s792 + $0x60] sm:$0xff]
  %v5027 = vld [vmem:[%s792 + $0x68] sm:$0xf]
  %v5028 = vld [vmem:[%s792 + $0x6c] sm:$0xff]
  %v5029 = vld [vmem:[%s792 + $0x74] sm:$0xf]
  %v5030 = vld [vmem:[%s792 + $0x78] sm:$0xff]
  %v5031 = vld [vmem:[%s792 + $0x80] sm:$0xf]
  %v5032 = vld [vmem:[%s792 + $0x84] sm:$0xff]
  %v5033 = vld [vmem:[%s792 + $0x8c] sm:$0xf]
  %v5034 = vld [vmem:[%s792 + $0x90] sm:$0xff]
  %v5035 = vld [vmem:[%s792 + $0x98] sm:$0xf]
  %v5036 = vld [vmem:[%s792 + $0x9c] sm:$0xff]
  %v5037 = vld [vmem:[%s792 + $0xa4] sm:$0xf]
  %v5038 = vld [vmem:[%s792 + $0xa8] sm:$0xff]
  %v5039 = vld [vmem:[%s792 + $0xb0] sm:$0xf]
  %v5040 = vld [vmem:[%s792 + $0xb4] sm:$0xff]
  %v5041 = vld [vmem:[%s792 + $0xbc] sm:$0xf]
  %v5074 = vunpack.c.l.b16 %v5010
  %v5075 = vunpack.c.h.b16 %v5010
  %v5076 = vunpack.c.l.b16 %v5011
  %v5077 = vunpack.c.l.b16 %v5012
  %v5078 = vunpack.c.h.b16 %v5012
  %v5079 = vunpack.c.l.b16 %v5013
  %v5080 = vunpack.c.l.b16 %v5014
  %v5081 = vunpack.c.h.b16 %v5014
  %v5082 = vunpack.c.l.b16 %v5015
  %v5083 = vunpack.c.l.b16 %v5016
  %v5084 = vunpack.c.h.b16 %v5016
  %v5085 = vunpack.c.l.b16 %v5017
  %v5086 = vunpack.c.l.b16 %v5018
  %v5087 = vunpack.c.h.b16 %v5018
  %v5088 = vunpack.c.l.b16 %v5019
  %v5089 = vunpack.c.l.b16 %v5020
  %v5090 = vunpack.c.h.b16 %v5020
  %v5091 = vunpack.c.l.b16 %v5021
  %v5092 = vunpack.c.l.b16 %v5022
  %v5093 = vunpack.c.h.b16 %v5022
  %v5094 = vunpack.c.l.b16 %v5023
  %v5095 = vunpack.c.l.b16 %v5024
  %v5096 = vunpack.c.h.b16 %v5024
  %v5097 = vunpack.c.l.b16 %v5025
  %v5098 = vunpack.c.l.b16 %v5026
  %v5099 = vunpack.c.h.b16 %v5026
  %v5100 = vunpack.c.l.b16 %v5027
  %v5101 = vunpack.c.l.b16 %v5028
  %v5102 = vunpack.c.h.b16 %v5028
  %v5103 = vunpack.c.l.b16 %v5029
  %v5104 = vunpack.c.l.b16 %v5030
  %v5105 = vunpack.c.h.b16 %v5030
  %v5106 = vunpack.c.l.b16 %v5031
  %v5107 = vunpack.c.l.b16 %v5032
  %v5108 = vunpack.c.h.b16 %v5032
  %v5109 = vunpack.c.l.b16 %v5033
  %v5110 = vunpack.c.l.b16 %v5034
  %v5111 = vunpack.c.h.b16 %v5034
  %v5112 = vunpack.c.l.b16 %v5035
  %v5113 = vunpack.c.l.b16 %v5036
  %v5114 = vunpack.c.h.b16 %v5036
  %v5115 = vunpack.c.l.b16 %v5037
  %v5116 = vunpack.c.l.b16 %v5038
  %v5117 = vunpack.c.h.b16 %v5038
  %v5118 = vunpack.c.l.b16 %v5039
  %v5119 = vunpack.c.l.b16 %v5040
  %v5120 = vunpack.c.h.b16 %v5040
  %v5121 = vunpack.c.l.b16 %v5041
  %v5122 = vpack.c.b16 %v5077, %v5074
  %v5123 = vpack.c.b16 %v5078, %v5075
  %v5124 = vpack.c.b16 %v5079, %v5076
  %v5125 = vpack.c.b16 %v5083, %v5080
  %v5126 = vpack.c.b16 %v5084, %v5081
  %v5127 = vpack.c.b16 %v5085, %v5082
  %v5128 = vpack.c.b16 %v5089, %v5086
  %v5129 = vpack.c.b16 %v5090, %v5087
  %v5130 = vpack.c.b16 %v5091, %v5088
  %v5131 = vpack.c.b16 %v5095, %v5092
  %v5132 = vpack.c.b16 %v5096, %v5093
  %v5133 = vpack.c.b16 %v5097, %v5094
  %v5134 = vpack.c.b16 %v5101, %v5098
  %v5135 = vpack.c.b16 %v5102, %v5099
  %v5136 = vpack.c.b16 %v5103, %v5100
  %v5137 = vpack.c.b16 %v5107, %v5104
  %v5138 = vpack.c.b16 %v5108, %v5105
  %v5139 = vpack.c.b16 %v5109, %v5106
  %v5140 = vpack.c.b16 %v5113, %v5110
  %v5141 = vpack.c.b16 %v5114, %v5111
  %v5142 = vpack.c.b16 %v5115, %v5112
  %v5143 = vpack.c.b16 %v5119, %v5116
  %v5144 = vpack.c.b16 %v5120, %v5117
  %v5145 = vpack.c.b16 %v5121, %v5118
  %5170 = vmatpush.bf16.msra.mxu0 %v5143
  %5171 = vmatpush.bf16.msra.mxu0 %v5140
  %5172 = vmatpush.bf16.msra.mxu0 %v5137
  %5173 = vmatpush.bf16.msra.mxu0 %v5134
  %5174 = vmatpush.bf16.msra.mxu0 %v5131
  %5175 = vmatpush.bf16.msra.mxu0 %v5128
  %5176 = vmatpush.bf16.msra.mxu0 %v5125
  %5177 = vmatpush.bf16.msra.mxu0 %v5122
  %5178 = vmatmul.bf16.gmra.mxu0 %v4762
  %v5179 = vpop.f32.mrf.mxu0
  %v5180 = vadd.f32 %v430, %v5179
  %v5181 = vpop.f32.mrf.mxu0
  %5182 = vdwg.mxu0
  %5183 = vmatpush.bf16.msra.mxu0 %v5144
  %5184 = vmatpush.bf16.msra.mxu0 %v5141
  %5185 = vmatpush.bf16.msra.mxu0 %v5138
  %5186 = vmatpush.bf16.msra.mxu0 %v5135
  %5187 = vmatpush.bf16.msra.mxu0 %v5132
  %5188 = vmatpush.bf16.msra.mxu0 %v5129
  %5189 = vmatpush.bf16.msra.mxu0 %v5126
  %5190 = vmatpush.bf16.msra.mxu0 %v5123
  %5191 = vmatmul.bf16.gmra.mxu0 %v4762
  %v5192 = vpop.f32.mrf.mxu0
  %v5193 = vadd.f32 %v431, %v5192
  %v5194 = vpop.f32.mrf.mxu0
  %5195 = vdwg.mxu0
  %5196 = vmatpush.bf16.msra.mxu0 %v5145
  %5197 = vmatpush.bf16.msra.mxu0 %v5142
  %5198 = vmatpush.bf16.msra.mxu0 %v5139
  %5199 = vmatpush.bf16.msra.mxu0 %v5136
  %5200 = vmatpush.bf16.msra.mxu0 %v5133
  %5201 = vmatpush.bf16.msra.mxu0 %v5130
  %5202 = vmatpush.bf16.msra.mxu0 %v5127
  %5203 = vmatpush.bf16.msra.mxu0 %v5124
  %5204 = vmatmul.bf16.gmra.mxu0 %v4762
  %v5205 = vpop.f32.mrf.mxu0
  %v5206 = vadd.f32 %v432, %v5205
  %v5207 = vpop.f32.mrf.mxu0
  %5208 = vdwg.mxu0
  %v5209 = vpack.c.bf16 %v4753, %v4753
  %v5210 = vld [vmem:[%s992] sm:$0xff]
  %v5211 = vld [vmem:[%s992 + $0x8] sm:$0xf]
  %v5212 = vld [vmem:[%s992 + $0xc] sm:$0xff]
  %v5213 = vld [vmem:[%s992 + $0x14] sm:$0xf]
  %v5214 = vld [vmem:[%s992 + $0x18] sm:$0xff]
  %v5215 = vld [vmem:[%s992 + $0x20] sm:$0xf]
  %v5216 = vld [vmem:[%s992 + $0x24] sm:$0xff]
  %v5217 = vld [vmem:[%s992 + $0x2c] sm:$0xf]
  %v5218 = vld [vmem:[%s992 + $0x30] sm:$0xff]
  %v5219 = vld [vmem:[%s992 + $0x38] sm:$0xf]
  %v5220 = vld [vmem:[%s992 + $0x3c] sm:$0xff]
  %v5221 = vld [vmem:[%s992 + $0x44] sm:$0xf]
  %v5222 = vld [vmem:[%s992 + $0x48] sm:$0xff]
  %v5223 = vld [vmem:[%s992 + $0x50] sm:$0xf]
  %v5224 = vld [vmem:[%s992 + $0x54] sm:$0xff]
  %v5225 = vld [vmem:[%s992 + $0x5c] sm:$0xf]
  %v5226 = vld [vmem:[%s992 + $0x60] sm:$0xff]
  %v5227 = vld [vmem:[%s992 + $0x68] sm:$0xf]
  %v5228 = vld [vmem:[%s992 + $0x6c] sm:$0xff]
  %v5229 = vld [vmem:[%s992 + $0x74] sm:$0xf]
  %v5230 = vld [vmem:[%s992 + $0x78] sm:$0xff]
  %v5231 = vld [vmem:[%s992 + $0x80] sm:$0xf]
  %v5232 = vld [vmem:[%s992 + $0x84] sm:$0xff]
  %v5233 = vld [vmem:[%s992 + $0x8c] sm:$0xf]
  %v5234 = vld [vmem:[%s992 + $0x90] sm:$0xff]
  %v5235 = vld [vmem:[%s992 + $0x98] sm:$0xf]
  %v5236 = vld [vmem:[%s992 + $0x9c] sm:$0xff]
  %v5237 = vld [vmem:[%s992 + $0xa4] sm:$0xf]
  %v5238 = vld [vmem:[%s992 + $0xa8] sm:$0xff]
  %v5239 = vld [vmem:[%s992 + $0xb0] sm:$0xf]
  %v5240 = vld [vmem:[%s992 + $0xb4] sm:$0xff]
  %v5241 = vld [vmem:[%s992 + $0xbc] sm:$0xf]
  %v5274 = vunpack.c.l.b16 %v5210
  %v5275 = vunpack.c.h.b16 %v5210
  %v5276 = vunpack.c.l.b16 %v5211
  %v5277 = vunpack.c.l.b16 %v5212
  %v5278 = vunpack.c.h.b16 %v5212
  %v5279 = vunpack.c.l.b16 %v5213
  %v5280 = vunpack.c.l.b16 %v5214
  %v5281 = vunpack.c.h.b16 %v5214
  %v5282 = vunpack.c.l.b16 %v5215
  %v5283 = vunpack.c.l.b16 %v5216
  %v5284 = vunpack.c.h.b16 %v5216
  %v5285 = vunpack.c.l.b16 %v5217
  %v5286 = vunpack.c.l.b16 %v5218
  %v5287 = vunpack.c.h.b16 %v5218
  %v5288 = vunpack.c.l.b16 %v5219
  %v5289 = vunpack.c.l.b16 %v5220
  %v5290 = vunpack.c.h.b16 %v5220
  %v5291 = vunpack.c.l.b16 %v5221
  %v5292 = vunpack.c.l.b16 %v5222
  %v5293 = vunpack.c.h.b16 %v5222
  %v5294 = vunpack.c.l.b16 %v5223
  %v5295 = vunpack.c.l.b16 %v5224
  %v5296 = vunpack.c.h.b16 %v5224
  %v5297 = vunpack.c.l.b16 %v5225
  %v5298 = vunpack.c.l.b16 %v5226
  %v5299 = vunpack.c.h.b16 %v5226
  %v5300 = vunpack.c.l.b16 %v5227
  %v5301 = vunpack.c.l.b16 %v5228
  %v5302 = vunpack.c.h.b16 %v5228
  %v5303 = vunpack.c.l.b16 %v5229
  %v5304 = vunpack.c.l.b16 %v5230
  %v5305 = vunpack.c.h.b16 %v5230
  %v5306 = vunpack.c.l.b16 %v5231
  %v5307 = vunpack.c.l.b16 %v5232
  %v5308 = vunpack.c.h.b16 %v5232
  %v5309 = vunpack.c.l.b16 %v5233
  %v5310 = vunpack.c.l.b16 %v5234
  %v5311 = vunpack.c.h.b16 %v5234
  %v5312 = vunpack.c.l.b16 %v5235
  %v5313 = vunpack.c.l.b16 %v5236
  %v5314 = vunpack.c.h.b16 %v5236
  %v5315 = vunpack.c.l.b16 %v5237
  %v5316 = vunpack.c.l.b16 %v5238
  %v5317 = vunpack.c.h.b16 %v5238
  %v5318 = vunpack.c.l.b16 %v5239
  %v5319 = vunpack.c.l.b16 %v5240
  %v5320 = vunpack.c.h.b16 %v5240
  %v5321 = vunpack.c.l.b16 %v5241
  %v5322 = vpack.c.b16 %v5277, %v5274
  %v5323 = vpack.c.b16 %v5278, %v5275
  %v5324 = vpack.c.b16 %v5279, %v5276
  %v5325 = vpack.c.b16 %v5283, %v5280
  %v5326 = vpack.c.b16 %v5284, %v5281
  %v5327 = vpack.c.b16 %v5285, %v5282
  %v5328 = vpack.c.b16 %v5289, %v5286
  %v5329 = vpack.c.b16 %v5290, %v5287
  %v5330 = vpack.c.b16 %v5291, %v5288
  %v5331 = vpack.c.b16 %v5295, %v5292
  %v5332 = vpack.c.b16 %v5296, %v5293
  %v5333 = vpack.c.b16 %v5297, %v5294
  %v5334 = vpack.c.b16 %v5301, %v5298
  %v5335 = vpack.c.b16 %v5302, %v5299
  %v5336 = vpack.c.b16 %v5303, %v5300
  %v5337 = vpack.c.b16 %v5307, %v5304
  %v5338 = vpack.c.b16 %v5308, %v5305
  %v5339 = vpack.c.b16 %v5309, %v5306
  %v5340 = vpack.c.b16 %v5313, %v5310
  %v5341 = vpack.c.b16 %v5314, %v5311
  %v5342 = vpack.c.b16 %v5315, %v5312
  %v5343 = vpack.c.b16 %v5319, %v5316
  %v5344 = vpack.c.b16 %v5320, %v5317
  %v5345 = vpack.c.b16 %v5321, %v5318
  %5370 = vmatpush.bf16.msra.mxu0 %v5343
  %5371 = vmatpush.bf16.msra.mxu0 %v5340
  %5372 = vmatpush.bf16.msra.mxu0 %v5337
  %5373 = vmatpush.bf16.msra.mxu0 %v5334
  %5374 = vmatpush.bf16.msra.mxu0 %v5331
  %5375 = vmatpush.bf16.msra.mxu0 %v5328
  %5376 = vmatpush.bf16.msra.mxu0 %v5325
  %5377 = vmatpush.bf16.msra.mxu0 %v5322
  %5378 = vmatmul.bf16.gmra.mxu0 %v5209
  %v5379 = vpop.f32.mrf.mxu0
  %v5380 = vadd.f32 0.0, %v5379
  %v5381 = vpop.f32.mrf.mxu0
  %5382 = vdwg.mxu0
  %5383 = vmatpush.bf16.msra.mxu0 %v5344
  %5384 = vmatpush.bf16.msra.mxu0 %v5341
  %5385 = vmatpush.bf16.msra.mxu0 %v5338
  %5386 = vmatpush.bf16.msra.mxu0 %v5335
  %5387 = vmatpush.bf16.msra.mxu0 %v5332
  %5388 = vmatpush.bf16.msra.mxu0 %v5329
  %5389 = vmatpush.bf16.msra.mxu0 %v5326
  %5390 = vmatpush.bf16.msra.mxu0 %v5323
  %5391 = vmatmul.bf16.gmra.mxu0 %v5209
  %v5392 = vpop.f32.mrf.mxu0
  %v5393 = vadd.f32 0.0, %v5392
  %v5394 = vpop.f32.mrf.mxu0
  %5395 = vdwg.mxu0
  %5396 = vmatpush.bf16.msra.mxu0 %v5345
  %5397 = vmatpush.bf16.msra.mxu0 %v5342
  %5398 = vmatpush.bf16.msra.mxu0 %v5339
  %5399 = vmatpush.bf16.msra.mxu0 %v5336
  %5400 = vmatpush.bf16.msra.mxu0 %v5333
  %5401 = vmatpush.bf16.msra.mxu0 %v5330
  %5402 = vmatpush.bf16.msra.mxu0 %v5327
  %5403 = vmatpush.bf16.msra.mxu0 %v5324
  %5404 = vmatmul.bf16.gmra.mxu0 %v5209
  %v5405 = vpop.f32.mrf.mxu0
  %v5406 = vadd.f32 0.0, %v5405
  %v5407 = vpop.f32.mrf.mxu0
  %5408 = vdwg.mxu0
  %v5409 = vadd.f32 %v5180, %v5380
  %v5410 = vxor.u32 %v5409, 2147483648
  %v5411 = vmul.f32 %v5410, 1.442695
  %v5412 = vpow.pop %v5411
  %v5413 = vadd.f32 %v5412, 1.0
  %v5414 = vrcp.pop %v5413
  %v5415 = vmul.f32 %v5413, %v5414
  %v5416 = vsub.f32 1.0, %v5415
  %v5417 = vmul.f32 %v5414, %v5416
  %v5418 = vadd.f32 %v5414, %v5417
  %vm5419 = vweird.f32 %v5413
  %vm5420 = vweird.f32 %v5414
  %vm5421 = vmor %vm5419, %vm5420
  %v5422 = vsel %vm5421, %v5414, %v5418
  %v5423 = vand.u32 2147483647, %v5413
  %vm5424 = vcmp.eq.f32.partialorder %v5423, 8.507059e+37
  %v5425 = vand.u32 %v5413, 2147483648
  %v5426 = vor.u32 1.1754944e-38, %v5425
  %v5427 = vsel %vm5424, %v5426, %v5422
  %v5428 = vmul.f32 1.0, %v5427
  %v5429 = vadd.f32 %v5193, %v5393
  %v5430 = vxor.u32 %v5429, 2147483648
  %v5431 = vmul.f32 %v5430, 1.442695
  %v5432 = vpow.pop %v5431
  %v5433 = vadd.f32 %v5432, 1.0
  %v5434 = vrcp.pop %v5433
  %v5435 = vmul.f32 %v5433, %v5434
  %v5436 = vsub.f32 1.0, %v5435
  %v5437 = vmul.f32 %v5434, %v5436
  %v5438 = vadd.f32 %v5434, %v5437
  %vm5439 = vweird.f32 %v5433
  %vm5440 = vweird.f32 %v5434
  %vm5441 = vmor %vm5439, %vm5440
  %v5442 = vsel %vm5441, %v5434, %v5438
  %v5443 = vand.u32 2147483647, %v5433
  %vm5444 = vcmp.eq.f32.partialorder %v5443, 8.507059e+37
  %v5445 = vand.u32 %v5433, 2147483648
  %v5446 = vor.u32 1.1754944e-38, %v5445
  %v5447 = vsel %vm5444, %v5446, %v5442
  %v5448 = vmul.f32 1.0, %v5447
  %v5449 = vadd.f32 %v5406, %v443
  %v5450 = vmul.f32 %v5428, %v5449
  %v5451 = vadd.f32 %v5206, %v5450
  %v5452 = vtanh.pop %v5451
  %v5453 = vsub.f32 1.0, %v5448
  %v5454 = vmul.f32 %v5453, %v5452
  %v5455 = vmul.f32 %v5448, %v4753
  %v5456 = vadd.f32 %v5454, %v5455
  %s5457 = scalar_lea.vmem [#allocation3], 48
  %5458 = vst [vmem:[%s5457] sm:$0xff] %v5456
  %v5459 = vpack.c.bf16 %v5009, %v5009
  %v5460 = vld [vmem:[%s792] sm:$0xff]
  %v5461 = vld [vmem:[%s792 + $0x8] sm:$0xf]
  %v5462 = vld [vmem:[%s792 + $0xc] sm:$0xff]
  %v5463 = vld [vmem:[%s792 + $0x14] sm:$0xf]
  %v5464 = vld [vmem:[%s792 + $0x18] sm:$0xff]
  %v5465 = vld [vmem:[%s792 + $0x20] sm:$0xf]
  %v5466 = vld [vmem:[%s792 + $0x24] sm:$0xff]
  %v5467 = vld [vmem:[%s792 + $0x2c] sm:$0xf]
  %v5468 = vld [vmem:[%s792 + $0x30] sm:$0xff]
  %v5469 = vld [vmem:[%s792 + $0x38] sm:$0xf]
  %v5470 = vld [vmem:[%s792 + $0x3c] sm:$0xff]
  %v5471 = vld [vmem:[%s792 + $0x44] sm:$0xf]
  %v5472 = vld [vmem:[%s792 + $0x48] sm:$0xff]
  %v5473 = vld [vmem:[%s792 + $0x50] sm:$0xf]
  %v5474 = vld [vmem:[%s792 + $0x54] sm:$0xff]
  %v5475 = vld [vmem:[%s792 + $0x5c] sm:$0xf]
  %v5476 = vld [vmem:[%s792 + $0x60] sm:$0xff]
  %v5477 = vld [vmem:[%s792 + $0x68] sm:$0xf]
  %v5478 = vld [vmem:[%s792 + $0x6c] sm:$0xff]
  %v5479 = vld [vmem:[%s792 + $0x74] sm:$0xf]
  %v5480 = vld [vmem:[%s792 + $0x78] sm:$0xff]
  %v5481 = vld [vmem:[%s792 + $0x80] sm:$0xf]
  %v5482 = vld [vmem:[%s792 + $0x84] sm:$0xff]
  %v5483 = vld [vmem:[%s792 + $0x8c] sm:$0xf]
  %v5484 = vld [vmem:[%s792 + $0x90] sm:$0xff]
  %v5485 = vld [vmem:[%s792 + $0x98] sm:$0xf]
  %v5486 = vld [vmem:[%s792 + $0x9c] sm:$0xff]
  %v5487 = vld [vmem:[%s792 + $0xa4] sm:$0xf]
  %v5488 = vld [vmem:[%s792 + $0xa8] sm:$0xff]
  %v5489 = vld [vmem:[%s792 + $0xb0] sm:$0xf]
  %v5490 = vld [vmem:[%s792 + $0xb4] sm:$0xff]
  %v5491 = vld [vmem:[%s792 + $0xbc] sm:$0xf]
  %v5524 = vunpack.c.l.b16 %v5460
  %v5525 = vunpack.c.h.b16 %v5460
  %v5526 = vunpack.c.l.b16 %v5461
  %v5527 = vunpack.c.l.b16 %v5462
  %v5528 = vunpack.c.h.b16 %v5462
  %v5529 = vunpack.c.l.b16 %v5463
  %v5530 = vunpack.c.l.b16 %v5464
  %v5531 = vunpack.c.h.b16 %v5464
  %v5532 = vunpack.c.l.b16 %v5465
  %v5533 = vunpack.c.l.b16 %v5466
  %v5534 = vunpack.c.h.b16 %v5466
  %v5535 = vunpack.c.l.b16 %v5467
  %v5536 = vunpack.c.l.b16 %v5468
  %v5537 = vunpack.c.h.b16 %v5468
  %v5538 = vunpack.c.l.b16 %v5469
  %v5539 = vunpack.c.l.b16 %v5470
  %v5540 = vunpack.c.h.b16 %v5470
  %v5541 = vunpack.c.l.b16 %v5471
  %v5542 = vunpack.c.l.b16 %v5472
  %v5543 = vunpack.c.h.b16 %v5472
  %v5544 = vunpack.c.l.b16 %v5473
  %v5545 = vunpack.c.l.b16 %v5474
  %v5546 = vunpack.c.h.b16 %v5474
  %v5547 = vunpack.c.l.b16 %v5475
  %v5548 = vunpack.c.l.b16 %v5476
  %v5549 = vunpack.c.h.b16 %v5476
  %v5550 = vunpack.c.l.b16 %v5477
  %v5551 = vunpack.c.l.b16 %v5478
  %v5552 = vunpack.c.h.b16 %v5478
  %v5553 = vunpack.c.l.b16 %v5479
  %v5554 = vunpack.c.l.b16 %v5480
  %v5555 = vunpack.c.h.b16 %v5480
  %v5556 = vunpack.c.l.b16 %v5481
  %v5557 = vunpack.c.l.b16 %v5482
  %v5558 = vunpack.c.h.b16 %v5482
  %v5559 = vunpack.c.l.b16 %v5483
  %v5560 = vunpack.c.l.b16 %v5484
  %v5561 = vunpack.c.h.b16 %v5484
  %v5562 = vunpack.c.l.b16 %v5485
  %v5563 = vunpack.c.l.b16 %v5486
  %v5564 = vunpack.c.h.b16 %v5486
  %v5565 = vunpack.c.l.b16 %v5487
  %v5566 = vunpack.c.l.b16 %v5488
  %v5567 = vunpack.c.h.b16 %v5488
  %v5568 = vunpack.c.l.b16 %v5489
  %v5569 = vunpack.c.l.b16 %v5490
  %v5570 = vunpack.c.h.b16 %v5490
  %v5571 = vunpack.c.l.b16 %v5491
  %v5572 = vpack.c.b16 %v5527, %v5524
  %v5573 = vpack.c.b16 %v5528, %v5525
  %v5574 = vpack.c.b16 %v5529, %v5526
  %v5575 = vpack.c.b16 %v5533, %v5530
  %v5576 = vpack.c.b16 %v5534, %v5531
  %v5577 = vpack.c.b16 %v5535, %v5532
  %v5578 = vpack.c.b16 %v5539, %v5536
  %v5579 = vpack.c.b16 %v5540, %v5537
  %v5580 = vpack.c.b16 %v5541, %v5538
  %v5581 = vpack.c.b16 %v5545, %v5542
  %v5582 = vpack.c.b16 %v5546, %v5543
  %v5583 = vpack.c.b16 %v5547, %v5544
  %v5584 = vpack.c.b16 %v5551, %v5548
  %v5585 = vpack.c.b16 %v5552, %v5549
  %v5586 = vpack.c.b16 %v5553, %v5550
  %v5587 = vpack.c.b16 %v5557, %v5554
  %v5588 = vpack.c.b16 %v5558, %v5555
  %v5589 = vpack.c.b16 %v5559, %v5556
  %v5590 = vpack.c.b16 %v5563, %v5560
  %v5591 = vpack.c.b16 %v5564, %v5561
  %v5592 = vpack.c.b16 %v5565, %v5562
  %v5593 = vpack.c.b16 %v5569, %v5566
  %v5594 = vpack.c.b16 %v5570, %v5567
  %v5595 = vpack.c.b16 %v5571, %v5568
  %5620 = vmatpush.bf16.msra.mxu0 %v5593
  %5621 = vmatpush.bf16.msra.mxu0 %v5590
  %5622 = vmatpush.bf16.msra.mxu0 %v5587
  %5623 = vmatpush.bf16.msra.mxu0 %v5584
  %5624 = vmatpush.bf16.msra.mxu0 %v5581
  %5625 = vmatpush.bf16.msra.mxu0 %v5578
  %5626 = vmatpush.bf16.msra.mxu0 %v5575
  %5627 = vmatpush.bf16.msra.mxu0 %v5572
  %5628 = vmatmul.bf16.gmra.mxu0 %v5459
  %v5629 = vpop.f32.mrf.mxu0
  %v5630 = vadd.f32 %v430, %v5629
  %v5631 = vpop.f32.mrf.mxu0
  %5632 = vdwg.mxu0
  %5633 = vmatpush.bf16.msra.mxu0 %v5594
  %5634 = vmatpush.bf16.msra.mxu0 %v5591
  %5635 = vmatpush.bf16.msra.mxu0 %v5588
  %5636 = vmatpush.bf16.msra.mxu0 %v5585
  %5637 = vmatpush.bf16.msra.mxu0 %v5582
  %5638 = vmatpush.bf16.msra.mxu0 %v5579
  %5639 = vmatpush.bf16.msra.mxu0 %v5576
  %5640 = vmatpush.bf16.msra.mxu0 %v5573
  %5641 = vmatmul.bf16.gmra.mxu0 %v5459
  %v5642 = vpop.f32.mrf.mxu0
  %v5643 = vadd.f32 %v431, %v5642
  %v5644 = vpop.f32.mrf.mxu0
  %5645 = vdwg.mxu0
  %5646 = vmatpush.bf16.msra.mxu0 %v5595
  %5647 = vmatpush.bf16.msra.mxu0 %v5592
  %5648 = vmatpush.bf16.msra.mxu0 %v5589
  %5649 = vmatpush.bf16.msra.mxu0 %v5586
  %5650 = vmatpush.bf16.msra.mxu0 %v5583
  %5651 = vmatpush.bf16.msra.mxu0 %v5580
  %5652 = vmatpush.bf16.msra.mxu0 %v5577
  %5653 = vmatpush.bf16.msra.mxu0 %v5574
  %5654 = vmatmul.bf16.gmra.mxu0 %v5459
  %v5655 = vpop.f32.mrf.mxu0
  %v5656 = vadd.f32 %v432, %v5655
  %v5657 = vpop.f32.mrf.mxu0
  %5658 = vdwg.mxu0
  %v5659 = vpack.c.bf16 %v5456, %v5456
  %v5660 = vld [vmem:[%s992] sm:$0xff]
  %v5661 = vld [vmem:[%s992 + $0x8] sm:$0xf]
  %v5662 = vld [vmem:[%s992 + $0xc] sm:$0xff]
  %v5663 = vld [vmem:[%s992 + $0x14] sm:$0xf]
  %v5664 = vld [vmem:[%s992 + $0x18] sm:$0xff]
  %v5665 = vld [vmem:[%s992 + $0x20] sm:$0xf]
  %v5666 = vld [vmem:[%s992 + $0x24] sm:$0xff]
  %v5667 = vld [vmem:[%s992 + $0x2c] sm:$0xf]
  %v5668 = vld [vmem:[%s992 + $0x30] sm:$0xff]
  %v5669 = vld [vmem:[%s992 + $0x38] sm:$0xf]
  %v5670 = vld [vmem:[%s992 + $0x3c] sm:$0xff]
  %v5671 = vld [vmem:[%s992 + $0x44] sm:$0xf]
  %v5672 = vld [vmem:[%s992 + $0x48] sm:$0xff]
  %v5673 = vld [vmem:[%s992 + $0x50] sm:$0xf]
  %v5674 = vld [vmem:[%s992 + $0x54] sm:$0xff]
  %v5675 = vld [vmem:[%s992 + $0x5c] sm:$0xf]
  %v5676 = vld [vmem:[%s992 + $0x60] sm:$0xff]
  %v5677 = vld [vmem:[%s992 + $0x68] sm:$0xf]
  %v5678 = vld [vmem:[%s992 + $0x6c] sm:$0xff]
  %v5679 = vld [vmem:[%s992 + $0x74] sm:$0xf]
  %v5680 = vld [vmem:[%s992 + $0x78] sm:$0xff]
  %v5681 = vld [vmem:[%s992 + $0x80] sm:$0xf]
  %v5682 = vld [vmem:[%s992 + $0x84] sm:$0xff]
  %v5683 = vld [vmem:[%s992 + $0x8c] sm:$0xf]
  %v5684 = vld [vmem:[%s992 + $0x90] sm:$0xff]
  %v5685 = vld [vmem:[%s992 + $0x98] sm:$0xf]
  %v5686 = vld [vmem:[%s992 + $0x9c] sm:$0xff]
  %v5687 = vld [vmem:[%s992 + $0xa4] sm:$0xf]
  %v5688 = vld [vmem:[%s992 + $0xa8] sm:$0xff]
  %v5689 = vld [vmem:[%s992 + $0xb0] sm:$0xf]
  %v5690 = vld [vmem:[%s992 + $0xb4] sm:$0xff]
  %v5691 = vld [vmem:[%s992 + $0xbc] sm:$0xf]
  %v5724 = vunpack.c.l.b16 %v5660
  %v5725 = vunpack.c.h.b16 %v5660
  %v5726 = vunpack.c.l.b16 %v5661
  %v5727 = vunpack.c.l.b16 %v5662
  %v5728 = vunpack.c.h.b16 %v5662
  %v5729 = vunpack.c.l.b16 %v5663
  %v5730 = vunpack.c.l.b16 %v5664
  %v5731 = vunpack.c.h.b16 %v5664
  %v5732 = vunpack.c.l.b16 %v5665
  %v5733 = vunpack.c.l.b16 %v5666
  %v5734 = vunpack.c.h.b16 %v5666
  %v5735 = vunpack.c.l.b16 %v5667
  %v5736 = vunpack.c.l.b16 %v5668
  %v5737 = vunpack.c.h.b16 %v5668
  %v5738 = vunpack.c.l.b16 %v5669
  %v5739 = vunpack.c.l.b16 %v5670
  %v5740 = vunpack.c.h.b16 %v5670
  %v5741 = vunpack.c.l.b16 %v5671
  %v5742 = vunpack.c.l.b16 %v5672
  %v5743 = vunpack.c.h.b16 %v5672
  %v5744 = vunpack.c.l.b16 %v5673
  %v5745 = vunpack.c.l.b16 %v5674
  %v5746 = vunpack.c.h.b16 %v5674
  %v5747 = vunpack.c.l.b16 %v5675
  %v5748 = vunpack.c.l.b16 %v5676
  %v5749 = vunpack.c.h.b16 %v5676
  %v5750 = vunpack.c.l.b16 %v5677
  %v5751 = vunpack.c.l.b16 %v5678
  %v5752 = vunpack.c.h.b16 %v5678
  %v5753 = vunpack.c.l.b16 %v5679
  %v5754 = vunpack.c.l.b16 %v5680
  %v5755 = vunpack.c.h.b16 %v5680
  %v5756 = vunpack.c.l.b16 %v5681
  %v5757 = vunpack.c.l.b16 %v5682
  %v5758 = vunpack.c.h.b16 %v5682
  %v5759 = vunpack.c.l.b16 %v5683
  %v5760 = vunpack.c.l.b16 %v5684
  %v5761 = vunpack.c.h.b16 %v5684
  %v5762 = vunpack.c.l.b16 %v5685
  %v5763 = vunpack.c.l.b16 %v5686
  %v5764 = vunpack.c.h.b16 %v5686
  %v5765 = vunpack.c.l.b16 %v5687
  %v5766 = vunpack.c.l.b16 %v5688
  %v5767 = vunpack.c.h.b16 %v5688
  %v5768 = vunpack.c.l.b16 %v5689
  %v5769 = vunpack.c.l.b16 %v5690
  %v5770 = vunpack.c.h.b16 %v5690
  %v5771 = vunpack.c.l.b16 %v5691
  %v5772 = vpack.c.b16 %v5727, %v5724
  %v5773 = vpack.c.b16 %v5728, %v5725
  %v5774 = vpack.c.b16 %v5729, %v5726
  %v5775 = vpack.c.b16 %v5733, %v5730
  %v5776 = vpack.c.b16 %v5734, %v5731
  %v5777 = vpack.c.b16 %v5735, %v5732
  %v5778 = vpack.c.b16 %v5739, %v5736
  %v5779 = vpack.c.b16 %v5740, %v5737
  %v5780 = vpack.c.b16 %v5741, %v5738
  %v5781 = vpack.c.b16 %v5745, %v5742
  %v5782 = vpack.c.b16 %v5746, %v5743
  %v5783 = vpack.c.b16 %v5747, %v5744
  %v5784 = vpack.c.b16 %v5751, %v5748
  %v5785 = vpack.c.b16 %v5752, %v5749
  %v5786 = vpack.c.b16 %v5753, %v5750
  %v5787 = vpack.c.b16 %v5757, %v5754
  %v5788 = vpack.c.b16 %v5758, %v5755
  %v5789 = vpack.c.b16 %v5759, %v5756
  %v5790 = vpack.c.b16 %v5763, %v5760
  %v5791 = vpack.c.b16 %v5764, %v5761
  %v5792 = vpack.c.b16 %v5765, %v5762
  %v5793 = vpack.c.b16 %v5769, %v5766
  %v5794 = vpack.c.b16 %v5770, %v5767
  %v5795 = vpack.c.b16 %v5771, %v5768
  %5820 = vmatpush.bf16.msra.mxu0 %v5793
  %5821 = vmatpush.bf16.msra.mxu0 %v5790
  %5822 = vmatpush.bf16.msra.mxu0 %v5787
  %5823 = vmatpush.bf16.msra.mxu0 %v5784
  %5824 = vmatpush.bf16.msra.mxu0 %v5781
  %5825 = vmatpush.bf16.msra.mxu0 %v5778
  %5826 = vmatpush.bf16.msra.mxu0 %v5775
  %5827 = vmatpush.bf16.msra.mxu0 %v5772
  %5828 = vmatmul.bf16.gmra.mxu0 %v5659
  %v5829 = vpop.f32.mrf.mxu0
  %v5830 = vadd.f32 0.0, %v5829
  %v5831 = vpop.f32.mrf.mxu0
  %5832 = vdwg.mxu0
  %5833 = vmatpush.bf16.msra.mxu0 %v5794
  %5834 = vmatpush.bf16.msra.mxu0 %v5791
  %5835 = vmatpush.bf16.msra.mxu0 %v5788
  %5836 = vmatpush.bf16.msra.mxu0 %v5785
  %5837 = vmatpush.bf16.msra.mxu0 %v5782
  %5838 = vmatpush.bf16.msra.mxu0 %v5779
  %5839 = vmatpush.bf16.msra.mxu0 %v5776
  %5840 = vmatpush.bf16.msra.mxu0 %v5773
  %5841 = vmatmul.bf16.gmra.mxu0 %v5659
  %v5842 = vpop.f32.mrf.mxu0
  %v5843 = vadd.f32 0.0, %v5842
  %v5844 = vpop.f32.mrf.mxu0
  %5845 = vdwg.mxu0
  %5846 = vmatpush.bf16.msra.mxu0 %v5795
  %5847 = vmatpush.bf16.msra.mxu0 %v5792
  %5848 = vmatpush.bf16.msra.mxu0 %v5789
  %5849 = vmatpush.bf16.msra.mxu0 %v5786
  %5850 = vmatpush.bf16.msra.mxu0 %v5783
  %5851 = vmatpush.bf16.msra.mxu0 %v5780
  %5852 = vmatpush.bf16.msra.mxu0 %v5777
  %5853 = vmatpush.bf16.msra.mxu0 %v5774
  %5854 = vmatmul.bf16.gmra.mxu0 %v5659
  %v5855 = vpop.f32.mrf.mxu0
  %v5856 = vadd.f32 0.0, %v5855
  %v5857 = vpop.f32.mrf.mxu0
  %5858 = vdwg.mxu0
  %v5859 = vadd.f32 %v5630, %v5830
  %v5860 = vxor.u32 %v5859, 2147483648
  %v5861 = vmul.f32 %v5860, 1.442695
  %v5862 = vpow.pop %v5861
  %v5863 = vadd.f32 %v5862, 1.0
  %v5864 = vrcp.pop %v5863
  %v5865 = vmul.f32 %v5863, %v5864
  %v5866 = vsub.f32 1.0, %v5865
  %v5867 = vmul.f32 %v5864, %v5866
  %v5868 = vadd.f32 %v5864, %v5867
  %vm5869 = vweird.f32 %v5863
  %vm5870 = vweird.f32 %v5864
  %vm5871 = vmor %vm5869, %vm5870
  %v5872 = vsel %vm5871, %v5864, %v5868
  %v5873 = vand.u32 2147483647, %v5863
  %vm5874 = vcmp.eq.f32.partialorder %v5873, 8.507059e+37
  %v5875 = vand.u32 %v5863, 2147483648
  %v5876 = vor.u32 1.1754944e-38, %v5875
  %v5877 = vsel %vm5874, %v5876, %v5872
  %v5878 = vmul.f32 1.0, %v5877
  %v5879 = vadd.f32 %v5643, %v5843
  %v5880 = vxor.u32 %v5879, 2147483648
  %v5881 = vmul.f32 %v5880, 1.442695
  %v5882 = vpow.pop %v5881
  %v5883 = vadd.f32 %v5882, 1.0
  %v5884 = vrcp.pop %v5883
  %v5885 = vmul.f32 %v5883, %v5884
  %v5886 = vsub.f32 1.0, %v5885
  %v5887 = vmul.f32 %v5884, %v5886
  %v5888 = vadd.f32 %v5884, %v5887
  %vm5889 = vweird.f32 %v5883
  %vm5890 = vweird.f32 %v5884
  %vm5891 = vmor %vm5889, %vm5890
  %v5892 = vsel %vm5891, %v5884, %v5888
  %v5893 = vand.u32 2147483647, %v5883
  %vm5894 = vcmp.eq.f32.partialorder %v5893, 8.507059e+37
  %v5895 = vand.u32 %v5883, 2147483648
  %v5896 = vor.u32 1.1754944e-38, %v5895
  %v5897 = vsel %vm5894, %v5896, %v5892
  %v5898 = vmul.f32 1.0, %v5897
  %v5899 = vadd.f32 %v5856, %v443
  %v5900 = vmul.f32 %v5878, %v5899
  %v5901 = vadd.f32 %v5656, %v5900
  %v5902 = vtanh.pop %v5901
  %v5903 = vsub.f32 1.0, %v5898
  %v5904 = vmul.f32 %v5903, %v5902
  %v5905 = vmul.f32 %v5898, %v5456
  %v5906 = vadd.f32 %v5904, %v5905
  %s5907 = scalar_lea.vmem [#allocation3], 56
  %5908 = vst [vmem:[%s5907] sm:$0xff] %v5906
  %v5909 = vld [vmem:[#allocation3 + $0x20] sm:$0xff]
  %v5910 = vld [vmem:[#allocation3 + $0x28] sm:$0xff]
  %v5911 = vld [vmem:[#allocation3 + $0x30] sm:$0xff]
  %v5912 = vld [vmem:[#allocation3 + $0x38] sm:$0xff]
  %v5913 = vpack.c.bf16 %v5910, %v5909
  %v5914 = vpack.c.bf16 %v5912, %v5911
  %v5915 = vld [vmem:[%s7] sm:$0xf]
  %v5916 = vld [vmem:[%s7 + $0x4] sm:$0xf]
  %v5917 = vld [vmem:[%s7 + $0x8] sm:$0xf]
  %v5918 = vld [vmem:[%s7 + $0xc] sm:$0xf]
  %v5919 = vld [vmem:[%s7 + $0x10] sm:$0xf]
  %v5920 = vld [vmem:[%s7 + $0x14] sm:$0xf]
  %v5921 = vld [vmem:[%s7 + $0x18] sm:$0xf]
  %v5922 = vld [vmem:[%s7 + $0x1c] sm:$0xf]
  %v5923 = vld [vmem:[%s7 + $0x20] sm:$0xf]
  %v5924 = vld [vmem:[%s7 + $0x24] sm:$0xf]
  %v5925 = vld [vmem:[%s7 + $0x28] sm:$0xf]
  %v5926 = vld [vmem:[%s7 + $0x2c] sm:$0xf]
  %v5927 = vld [vmem:[%s7 + $0x30] sm:$0xf]
  %v5928 = vld [vmem:[%s7 + $0x34] sm:$0xf]
  %v5929 = vld [vmem:[%s7 + $0x38] sm:$0xf]
  %v5930 = vld [vmem:[%s7 + $0x3c] sm:$0xf]
  %v5931 = vld [vmem:[%s8] sm:$0x1]
  %v5933 = vperm.slane %v5931, 0
  %v5951 = vunpack.c.l.b16 %v5915
  %v5952 = vunpack.c.l.b16 %v5916
  %v5953 = vunpack.c.l.b16 %v5917
  %v5954 = vunpack.c.l.b16 %v5918
  %v5955 = vunpack.c.l.b16 %v5919
  %v5956 = vunpack.c.l.b16 %v5920
  %v5957 = vunpack.c.l.b16 %v5921
  %v5958 = vunpack.c.l.b16 %v5922
  %v5959 = vunpack.c.l.b16 %v5923
  %v5960 = vunpack.c.l.b16 %v5924
  %v5961 = vunpack.c.l.b16 %v5925
  %v5962 = vunpack.c.l.b16 %v5926
  %v5963 = vunpack.c.l.b16 %v5927
  %v5964 = vunpack.c.l.b16 %v5928
  %v5965 = vunpack.c.l.b16 %v5929
  %v5966 = vunpack.c.l.b16 %v5930
  %v5967 = vpack.c.b16 %v5952, %v5951
  %v5968 = vpack.c.b16 %v5954, %v5953
  %v5969 = vpack.c.b16 %v5956, %v5955
  %v5970 = vpack.c.b16 %v5958, %v5957
  %v5971 = vpack.c.b16 %v5960, %v5959
  %v5972 = vpack.c.b16 %v5962, %v5961
  %v5973 = vpack.c.b16 %v5964, %v5963
  %v5974 = vpack.c.b16 %v5966, %v5965
  %5983 = vmatpush.bf16.msra.mxu0 %v5974
  %5984 = vmatpush.bf16.msra.mxu0 %v5973
  %5985 = vmatpush.bf16.msra.mxu0 %v5972
  %5986 = vmatpush.bf16.msra.mxu0 %v5971
  %5987 = vmatpush.bf16.msra.mxu0 %v5970
  %5988 = vmatpush.bf16.msra.mxu0 %v5969
  %5989 = vmatpush.bf16.msra.mxu0 %v5968
  %5990 = vmatpush.bf16.msra.mxu0 %v5967
  %5991 = vmatmul.bf16.gmra.mxu0 %v5913
  %v5992 = vpop.f32.mrf.mxu0
  %v5993 = vadd.f32 %v5933, %v5992
  %v5994 = vpop.f32.mrf.mxu0
  %v5995 = vadd.f32 %v5933, %v5994
  %5996 = vmatmul.bf16.gmra.mxu0 %v5914
  %v5997 = vpop.f32.mrf.mxu0
  %v5998 = vadd.f32 %v5933, %v5997
  %v5999 = vpop.f32.mrf.mxu0
  %v6000 = vadd.f32 %v5933, %v5999
  %6001 = vdwg.mxu0
  %6002 = vst [vmem:[%s9] sm:$0xff] %v5993
  %6003 = vst [vmem:[%s9 + $0x8] sm:$0xff] %v5995
  %6004 = vst [vmem:[%s9 + $0x10] sm:$0xff] %v5998
  %6005 = vst [vmem:[%s9 + $0x18] sm:$0xff] %v6000
  // Predicated region
  $region38: #{model_forward.1} parent=0 // pred_check
    _
  $region39: #{model_forward.1} parent=0 // pred_check_branch
    %6007 = sbr.rel (0) target = $region41
  $region40: #{model_forward.1} parent=0 // pred_region
    _
  $region41: #{model_forward.1} parent=0 // pred_fallthru
    _
  // Predicated region
  $region42: #{model_forward.1} parent=0 // pred_check
    _
  $region43: #{model_forward.1} parent=0 // pred_check_branch
    %6009 = sbr.rel (0) target = $region45
  $region44: #{model_forward.1} parent=0 // pred_region
    _
  $region45: #{model_forward.1} parent=0 // pred_fallthru
    _

</llo_original>
